<compile_context>
chip_gen: v7x
topology: tpu7x:2x2x1
jax: 0.10.0
libtpu: 0.0.40
codegen_flags: <defaults>
</compile_context>

<pallas_src>
import math

import jax
import jax.numpy as jnp
from jax import lax
from jax.experimental import pallas as pl
from jax.experimental.pallas import tpu as pltpu

# -------------------- model hyper-parameters --------------------
KNN_K = 5              # EdgeConv.forward hard-sets self.k = 5
KM1 = KNN_K - 1        # incoming edges per node after self-loop removal
N_LAYERS = 3
NODES = 16             # 'nodes' hidden size (en embedding dim)
X_DIM = 8              # embedded position dim
NCLASS = 1
MLP_FEATS = [32, 64, 64, 64, 32]
BIG = 1e30
TIE_EPS = 1e-5         # index tie-break added to distances (argmin -> min idx)


# -------------------- fused forward kernel (factory) --------------------
def _make_kernel(lf, lb):
    """lf / lb: dict name -> (row_offset, n_rows, n_cols) into the two slabs."""

    def kernel(pos_ref, en_ref, wf_ref, wb_ref, score_ref, nbr_ref):
        f32, bf16 = jnp.float32, jnp.bfloat16

        def F(name):                       # f32 weight/bias view
            off, r, c = lf[name]
            return wf_ref[off:off + r, 0:c]

        def Wb(name):                      # bf16 matmul-weight view
            off, r, c = lb[name]
            return wb_ref[off:off + r, 0:c]

        pos = pos_ref[0]                   # (n, 3)
        en_raw = en_ref[0]                 # (n, 2)
        n = pos.shape[0]

        # node embeddings (embedding_position / embedding_node)
        x = jnp.dot(pos, F('emb_pos_w'), preferred_element_type=f32) + F('emb_pos_b')
        en = jnp.dot(en_raw, F('emb_node_w'), preferred_element_type=f32) + F('emb_node_b')

        # constants built once, reused by all 3 layers
        rowi = lax.broadcasted_iota(jnp.int32, (n, n), 0)
        coli = lax.broadcasted_iota(jnp.int32, (n, n), 1)
        colf = coli.astype(f32)
        diag_pen = jnp.where(rowi == coli, f32(BIG), f32(0.0))   # self-loop removal
        tie = colf * f32(TIE_EPS)                                # min-index tie-break
        ones_f = jnp.ones((n, X_DIM), f32)
        inv_k = f32(1.0 / KM1)

        def knn(xc):
            """k-1 nearest non-self neighbours as one-hot (n,n) rows; one
            cross-lane reduction per round (index folded into the key)."""
            gram = lax.dot_general(xc, xc, (((1,), (1,)), ((), ())),
                                   preferred_element_type=f32)            # <xi,xj>
            sqj = lax.dot_general(ones_f, xc * xc, (((1,), (1,)), ((), ())),
                                  preferred_element_type=f32)             # ||xj||^2
            # ||xi||^2 is constant per row -> irrelevant for row-wise argmin
            d = sqj - 2.0 * gram + diag_pen + tie
            ohs = []
            for _ in range(KM1):
                mv = jnp.min(d, axis=1, keepdims=True)
                oh = (d == mv).astype(f32)                                 # one-hot
                d = d + oh * f32(BIG)                                      # mask picked
                ohs.append(oh)
            return ohs

        # ---------------- layers 0 .. n-2 : update x / en, skip score ------
        for li in range(N_LAYERS - 1):
            p = 'l%d_' % li
            ohs = knn(x)
            s_sum = ohs[0] + ohs[1] + ohs[2] + ohs[3]                      # (n,n)
            s_mat = jnp.concatenate(ohs, axis=0)                           # (E,n)

            # x update: theta/phi linear -> single fused matmul on N rows
            mean_src = jnp.dot(s_sum, x, preferred_element_type=f32) * inv_k
            xin = jnp.concatenate([x - mean_src, x], axis=1)               # (n,16)
            x_new = jnp.dot(xin, F(p + 'xw'), preferred_element_type=f32) + F(p + 'xb')

            # en update: fused block-diagonal theta_en/phi_en MLP.
            # First (linear) layer done per-node, then gathered (linearity).
            dst0 = jnp.dot(en, F(p + 'en_dst_w'), preferred_element_type=f32) + F(p + 'en_b')
            src0 = jnp.dot(en, F(p + 'en_src_w'), preferred_element_type=f32)
            h = (jnp.concatenate([dst0] * KM1, axis=0)
                 - jnp.dot(s_mat, src0, preferred_element_type=f32))       # (E,64)
            h = jnp.maximum(h, 0.0)
            for l in range(4):
                h = jnp.maximum(
                    jnp.dot(h.astype(bf16), Wb(p + 'mid%d' % l),
                            preferred_element_type=f32) + F(p + 'midb%d' % l), 0.0)
            m_en = (jnp.dot(h.astype(bf16), Wb(p + 'w5'),
                            preferred_element_type=f32) + F(p + 'b5'))     # (E,16)
            # per-dst-node mean (round-major edge layout -> 3 adds of N-row blocks)
            en_new = (m_en[0:n] + m_en[n:2 * n] + m_en[2 * n:3 * n]
                      + m_en[3 * n:4 * n]) * inv_k
            x, en = x_new, en_new

        # ---------------- final layer : score path only --------------------
        ohs = knn(x)
        s_mat = jnp.concatenate(ohs, axis=0)                               # (E,n)
        xe = jnp.concatenate([x, en], axis=1)                              # (n,24)
        a_src = jnp.dot(xe, F('w0_src'), preferred_element_type=f32)       # (n,32)
        dst_t = jnp.dot(xe, F('w0_dst'), preferred_element_type=f32) + F('w0_b')
        h = (jnp.dot(s_mat, a_src, preferred_element_type=f32)
             + jnp.concatenate([dst_t] * KM1, axis=0))                     # (E,32)
        h = jnp.maximum(h, 0.0)
        for l in range(4):
            h = jnp.maximum(
                jnp.dot(h.astype(bf16), Wb('W_mid%d' % l),
                        preferred_element_type=f32) + F('W_midb%d' % l), 0.0)

        # last W linear with `decording` folded in, emitted lane-dense (1, E)
        srow = lax.dot_general(F('w_lastT'), h, (((1,), (1,)), ((), ())),
                               preferred_element_type=f32)                 # (8,E)
        score_ref[0] = srow[0:1, :] + F('b_last')                          # (1,E)

        # neighbour (edge-src) indices, lane-dense (KM1, N): row k = k-th nbr
        col8 = colf[0:8, :]                                                # (8,n)
        rows = [lax.dot_general(col8, ohs[k], (((1,), (1,)), ((), ())),
                                preferred_element_type=f32)[0:1, :]
                for k in range(KM1)]
        nbr_ref[0] = jnp.concatenate(rows, axis=0).astype(jnp.int32)       # (KM1,n)

    return kernel


# -------------------- deterministic parameter init --------------------
def init_linear(key, fan_in, fan_out):
    kw, kb = jax.random.split(key)
    bound = 1.0 / math.sqrt(fan_in)
    w = jax.random.uniform(kw, (fan_in, fan_out), jnp.float32, -bound, bound)
    b = jax.random.uniform(kb, (1, fan_out), jnp.float32, -bound, bound)
    return w, b


def init_mlp(key, dims):
    params = []
    keys = jax.random.split(key, len(dims) - 1)
    for k, din, dout in zip(keys, dims[:-1], dims[1:]):
        w, b = init_linear(k, din, dout)
        params += [w, b]
    return params


def init_model(key):
    ks = jax.random.split(key, 3 + N_LAYERS)
    emb_pos = init_linear(ks[0], 3, X_DIM)          # embedding_position: 3 -> 8
    emb_node = init_linear(ks[1], 2, NODES)         # embedding_node: 2 -> 16
    dec = init_linear(ks[2], NODES, NCLASS)         # decording: 16 -> 1
    layers = []
    for i in range(N_LAYERS):
        lk = jax.random.split(ks[3 + i], 5)
        theta = init_linear(lk[0], X_DIM, X_DIM)
        phi = init_linear(lk[1], X_DIM, X_DIM)
        te_mlp = init_mlp(lk[2], [NODES] + MLP_FEATS + [NODES])
        pe_mlp = init_mlp(lk[3], [NODES] + MLP_FEATS + [NODES])
        w_mlp = init_mlp(lk[4], [2 * X_DIM + 2 * NODES] + MLP_FEATS + [NODES])
        layers.append(list(theta) + list(phi) + te_mlp + pe_mlp + w_mlp)
    return emb_pos, emb_node, dec, layers


# -------------------- parameter fusion + slab packing (plain JAX) ------------
def _block_diag(a, b):
    top = jnp.concatenate([a, jnp.zeros((a.shape[0], b.shape[1]), a.dtype)], axis=1)
    bot = jnp.concatenate([jnp.zeros((b.shape[0], a.shape[1]), b.dtype), b], axis=1)
    return jnp.concatenate([top, bot], axis=0)


class _SlabPacker:
    """Packs 2-D weights/biases into one (rows, 128) slab; records offsets."""

    def __init__(self, width=128, out_dtype=jnp.float32, row_align=8):
        self.width = width
        self.out_dtype = out_dtype
        self.row_align = row_align
        self.rows = []
        self.layout = {}
        self.nrows = 0

    def add(self, name, arr):
        arr = jnp.asarray(arr, jnp.float32)
        r, c = arr.shape
        assert c <= self.width
        if c < self.width:
            arr = jnp.concatenate(
                [arr, jnp.zeros((r, self.width - c), jnp.float32)], axis=1)
        self.rows.append(arr)
        self.layout[name] = (self.nrows, r, c)
        self.nrows += r

    def finalize(self):
        rem = (-self.nrows) % self.row_align
        if rem:
            self.rows.append(jnp.zeros((rem, self.width), jnp.float32))
            self.nrows += rem
        slab = jnp.concatenate(self.rows, axis=0).astype(self.out_dtype)
        return slab, self.layout


def prepare_kernel_params(params):
    """Fuse + repack all module parameters into one f32 slab and one bf16 slab."""
    emb_pos, emb_node, dec, layers = params
    P = _SlabPacker(out_dtype=jnp.float32, row_align=8)      # f32 weights + biases
    Q = _SlabPacker(out_dtype=jnp.bfloat16, row_align=16)    # bf16 MXU-chain weights

    P.add('emb_pos_w', emb_pos[0]); P.add('emb_pos_b', emb_pos[1])
    P.add('emb_node_w', emb_node[0]); P.add('emb_node_b', emb_node[1])

    # non-final layers: fused theta/phi + block-diagonal theta_en/phi_en MLP
    for li in range(N_LAYERS - 1):
        pr = layers[li]
        th_w, th_b, ph_w, ph_b = pr[0], pr[1], pr[2], pr[3]
        te, pe = pr[4:16], pr[16:28]
        p = 'l%d_' % li
        P.add(p + 'xw', jnp.concatenate([th_w, ph_w], axis=0))            # (16,8)
        P.add(p + 'xb', th_b + ph_b)                                      # (1,8)
        z32 = jnp.zeros((NODES, MLP_FEATS[0]), jnp.float32)
        P.add(p + 'en_dst_w', jnp.concatenate([te[0], pe[0]], axis=1))    # (16,64)
        P.add(p + 'en_src_w', jnp.concatenate([te[0], z32], axis=1))      # (16,64)
        P.add(p + 'en_b', jnp.concatenate([te[1], pe[1]], axis=1))        # (1,64)
        for l in range(1, 5):
            Q.add(p + 'mid%d' % (l - 1), _block_diag(te[2 * l], pe[2 * l]))
            P.add(p + 'midb%d' % (l - 1),
                  jnp.concatenate([te[2 * l + 1], pe[2 * l + 1]], axis=1))
        Q.add(p + 'w5', jnp.concatenate([te[10], pe[10]], axis=0))        # (64,16)
        P.add(p + 'b5', te[11] + pe[11])                                  # (1,16)

    # final layer: only the W MLP matters; stack src/dst first-layer weights,
    # fold `decording` into the last linear.
    wm = layers[N_LAYERS - 1][28:40]
    w0, b0 = wm[0], wm[1]                      # rows: [x_src(8), en_src(16), x_dst(8), en_dst(16)]
    P.add('w0_src', w0[0:X_DIM + NODES, :])                               # (24,32)
    P.add('w0_dst', w0[X_DIM + NODES:, :])                                # (24,32)
    P.add('w0_b', b0)                                                     # (1,32)
    for l in range(1, 5):
        Q.add('W_mid%d' % (l - 1), wm[2 * l])
        P.add('W_midb%d' % (l - 1), wm[2 * l + 1])
    dec_w, dec_b = dec
    w_last = wm[10] @ dec_w                                               # (32,1)
    b_last = wm[11] @ dec_w + dec_b                                       # (1,1)
    P.add('w_lastT', jnp.tile(jnp.transpose(w_last), (8, 1)))             # (8,32)
    P.add('b_last', b_last)                                               # (1,1)

    slab_f32, layout_f32 = P.finalize()
    slab_bf16, layout_bf16 = Q.finalize()
    return slab_f32, layout_f32, slab_bf16, layout_bf16


# -------------------- batched forward pass --------------------
def build_forward(layout_f32, layout_bf16):
    kernel = _make_kernel(layout_f32, layout_bf16)

    def forward(pos, en_raw, idx, slab_f32, slab_bf16):
        """Batched Dynamic_Graph_Model.forward.

        pos (B,N,3), en_raw (B,N,2), idx (B,N) ->
          score_array (B,E,1), edge_array [B x (src,dst)], node_array [B x idx].
        """
        B, n, _ = pos.shape
        e = n * KM1
        scores, nbr = pl.pallas_call(
            kernel,
            out_shape=(jax.ShapeDtypeStruct((B, 1, e), jnp.float32),
                       jax.ShapeDtypeStruct((B, KM1, n), jnp.int32)),
            grid=(B,),
            in_specs=[
                pl.BlockSpec((1, n, 3), lambda b: (b, 0, 0)),
                pl.BlockSpec((1, n, 2), lambda b: (b, 0, 0)),
                pl.BlockSpec(slab_f32.shape, lambda b: (0, 0)),
                pl.BlockSpec(slab_bf16.shape, lambda b: (0, 0)),
            ],
            out_specs=(pl.BlockSpec((1, 1, e), lambda b: (b, 0, 0)),
                       pl.BlockSpec((1, KM1, n), lambda b: (b, 0, 0))),
            compiler_params=pltpu.CompilerParams(
                dimension_semantics=("parallel",)),
        )(pos, en_raw, slab_f32, slab_bf16)

        score_array = scores.reshape(B, e, NCLASS)
        # edge e = k*n + i : src = k-th neighbour of i, dst = i
        src_all = nbr.reshape(B, e)
        dst = jnp.tile(jnp.arange(n, dtype=jnp.int32), KM1)
        edge_array = [(src_all[b], dst) for b in range(B)]
        node_array = [idx[b] for b in range(B)]
        return score_array, edge_array, node_array

    return forward


# -------------------- demo --------------------
if __name__ == "__main__":
    key = jax.random.PRNGKey(0)
    k_param, k_pos, k_en = jax.random.split(key, 3)

    B, N = 4, 32                                              # batch of graphs
    E = N * KM1
    pos = jax.random.normal(k_pos, (B, N, 3), jnp.float32)    # ndata['x']
    en_raw = jax.random.normal(k_en, (B, N, 2), jnp.float32)  # ndata['en']
    idx = jnp.tile(jnp.arange(N, dtype=jnp.int32)[None], (B, 1))  # ndata['idx']

    params = init_model(k_param)
    slab_f32, lf, slab_bf16, lb = prepare_kernel_params(params)

    fwd = jax.jit(build_forward(lf, lb))
    score_array, edge_array, node_array = fwd(pos, en_raw, idx, slab_f32, slab_bf16)
    jax.block_until_ready((score_array, edge_array, node_array))

    assert score_array.shape == (B, E, NCLASS)
    assert edge_array[0][0].shape == (E,)
    assert edge_array[0][1].shape == (E,)
    assert node_array[0].shape == (N,)
    print("KERNEL_OK")
</pallas_src>

<mosaic_0001>
module attributes {stable_mosaic.version = 11 : i64} {
  func.func @kernel(%arg0: i32, %arg1: memref<1x32x3xf32, #tpu.memory_space<vmem>>, %arg2: memref<1x32x2xf32, #tpu.memory_space<vmem>>, %arg3: memref<184x128xf32, #tpu.memory_space<vmem>>, %arg4: memref<1248x128xbf16, #tpu.memory_space<vmem>>, %arg5: memref<1x1x128xf32, #tpu.memory_space<vmem>>, %arg6: memref<1x4x32xi32, #tpu.memory_space<vmem>>) attributes {dimension_semantics = [#tpu.dimension_semantics<parallel>], iteration_bounds = array<i64: 4>, scalar_prefetch = 0 : i64, scratch_operands = 0 : i64, tpu.core_type = #tpu.core_type<tc>, window_params = [{transform_indices = @transform_0, window_bounds = array<i64: 1, 32, 3>}, {transform_indices = @transform_1, window_bounds = array<i64: 1, 32, 2>}, {pipeline_mode = #tpu.pipeline_mode<synchronous>, transform_indices = @transform_2, window_bounds = array<i64: 184, 128>}, {pipeline_mode = #tpu.pipeline_mode<synchronous>, transform_indices = @transform_3, window_bounds = array<i64: 1248, 128>}, {transform_indices = @transform_4, window_bounds = array<i64: 1, 1, 128>}, {transform_indices = @transform_5, window_bounds = array<i64: 1, 4, 32>}]} {
    %c0 = arith.constant 0 : index
    %c0_0 = arith.constant 0 : index
    %c0_1 = arith.constant 0 : index
    %0 = vector.load %arg1[%c0, %c0_0, %c0_1] : memref<1x32x3xf32, #tpu.memory_space<vmem>>, vector<1x32x3xf32>
    %1 = vector.shape_cast %0 : vector<1x32x3xf32> to vector<32x3xf32>
    %c0_2 = arith.constant 0 : index
    %c0_3 = arith.constant 0 : index
    %c0_4 = arith.constant 0 : index
    %2 = vector.load %arg2[%c0_2, %c0_3, %c0_4] : memref<1x32x2xf32, #tpu.memory_space<vmem>>, vector<1x32x2xf32>
    %3 = vector.shape_cast %2 : vector<1x32x2xf32> to vector<32x2xf32>
    %c0_5 = arith.constant 0 : index
    %c0_6 = arith.constant 0 : index
    %4 = vector.load %arg3[%c0_5, %c0_6] : memref<184x128xf32, #tpu.memory_space<vmem>>, vector<3x8xf32>
    %cst = arith.constant dense<0.000000e+00> : vector<32x8xf32>
    %5 = tpu.matmul %1, %4, %cst {dimension_numbers = #tpu.dot_dimension_numbers<[1], [0], [0], [1], [0, 0, 1, 1], [], []>} : vector<32x3xf32>, vector<3x8xf32>, vector<32x8xf32> -> vector<32x8xf32>
    %c3 = arith.constant 3 : index
    %c0_7 = arith.constant 0 : index
    %6 = vector.load %arg3[%c3, %c0_7] : memref<184x128xf32, #tpu.memory_space<vmem>>, vector<1x8xf32>
    %7 = vector.broadcast %6 : vector<1x8xf32> to vector<32x8xf32>
    %8 = arith.addf %5, %7 : vector<32x8xf32>
    %c4 = arith.constant 4 : index
    %c0_8 = arith.constant 0 : index
    %9 = vector.load %arg3[%c4, %c0_8] : memref<184x128xf32, #tpu.memory_space<vmem>>, vector<2x16xf32>
    %cst_9 = arith.constant dense<0.000000e+00> : vector<32x16xf32>
    %10 = tpu.matmul %3, %9, %cst_9 {dimension_numbers = #tpu.dot_dimension_numbers<[1], [0], [0], [1], [0, 0, 1, 1], [], []>} : vector<32x2xf32>, vector<2x16xf32>, vector<32x16xf32> -> vector<32x16xf32>
    %c6 = arith.constant 6 : index
    %c0_10 = arith.constant 0 : index
    %11 = vector.load %arg3[%c6, %c0_10] : memref<184x128xf32, #tpu.memory_space<vmem>>, vector<1x16xf32>
    %12 = vector.broadcast %11 : vector<1x16xf32> to vector<32x16xf32>
    %13 = arith.addf %10, %12 : vector<32x16xf32>
    %14 = tpu.iota {dimensions = array<i32: 0>} : vector<32x32xi32>
    %15 = tpu.iota {dimensions = array<i32: 1>} : vector<32x32xi32>
    %16 = arith.sitofp %15 : vector<32x32xi32> to vector<32x32xf32>
    %17 = arith.cmpi eq, %14, %15 : vector<32x32xi32>
    %cst_11 = arith.constant 1.000000e+30 : f32
    %cst_12 = arith.constant 0.000000e+00 : f32
    %18 = vector.broadcast %cst_11 : f32 to vector<32x32xf32>
    %19 = vector.broadcast %cst_12 : f32 to vector<32x32xf32>
    %20 = arith.select %17, %18, %19 : vector<32x32xi1>, vector<32x32xf32>
    %cst_13 = arith.constant 9.99999974E-6 : f32
    %21 = vector.broadcast %cst_13 : f32 to vector<32x32xf32>
    %22 = arith.mulf %16, %21 : vector<32x32xf32>
    %cst_14 = arith.constant 1.000000e+00 : f32
    %23 = vector.broadcast %cst_14 : f32 to vector<32x8xf32>
    %cst_15 = arith.constant dense<0.000000e+00> : vector<32x32xf32>
    %24 = tpu.matmul %8, %8, %cst_15 {dimension_numbers = #tpu.dot_dimension_numbers<[1], [1], [0], [0], [0, 0, 1, 0], [], []>} : vector<32x8xf32>, vector<32x8xf32>, vector<32x32xf32> -> vector<32x32xf32>
    %25 = arith.mulf %8, %8 : vector<32x8xf32>
    %cst_16 = arith.constant dense<0.000000e+00> : vector<32x32xf32>
    %26 = tpu.matmul %23, %25, %cst_16 {dimension_numbers = #tpu.dot_dimension_numbers<[1], [1], [0], [0], [0, 0, 1, 0], [], []>} : vector<32x8xf32>, vector<32x8xf32>, vector<32x32xf32> -> vector<32x32xf32>
    %cst_17 = arith.constant 2.000000e+00 : f32
    %27 = vector.broadcast %cst_17 : f32 to vector<32x32xf32>
    %28 = arith.mulf %27, %24 : vector<32x32xf32>
    %29 = arith.subf %26, %28 : vector<32x32xf32>
    %30 = arith.addf %29, %20 : vector<32x32xf32>
    %31 = arith.addf %30, %22 : vector<32x32xf32>
    %cst_18 = arith.constant dense<0x7F800000> : vector<32xf32>
    %32 = vector.multi_reduction <minimumf>, %31, %cst_18 [1] : vector<32x32xf32> to vector<32xf32>
    %33 = vector.shape_cast %32 : vector<32xf32> to vector<32x1xf32>
    %34 = vector.broadcast %33 : vector<32x1xf32> to vector<32x32xf32>
    %35 = arith.cmpf oeq, %31, %34 : vector<32x32xf32>
    %36 = arith.extui %35 : vector<32x32xi1> to vector<32x32xi32>
    %37 = arith.sitofp %36 : vector<32x32xi32> to vector<32x32xf32>
    %cst_19 = arith.constant 1.000000e+30 : f32
    %38 = vector.broadcast %cst_19 : f32 to vector<32x32xf32>
    %39 = arith.mulf %37, %38 : vector<32x32xf32>
    %40 = arith.addf %31, %39 : vector<32x32xf32>
    %cst_20 = arith.constant dense<0x7F800000> : vector<32xf32>
    %41 = vector.multi_reduction <minimumf>, %40, %cst_20 [1] : vector<32x32xf32> to vector<32xf32>
    %42 = vector.shape_cast %41 : vector<32xf32> to vector<32x1xf32>
    %43 = vector.broadcast %42 : vector<32x1xf32> to vector<32x32xf32>
    %44 = arith.cmpf oeq, %40, %43 : vector<32x32xf32>
    %45 = arith.extui %44 : vector<32x32xi1> to vector<32x32xi32>
    %46 = arith.sitofp %45 : vector<32x32xi32> to vector<32x32xf32>
    %cst_21 = arith.constant 1.000000e+30 : f32
    %47 = vector.broadcast %cst_21 : f32 to vector<32x32xf32>
    %48 = arith.mulf %46, %47 : vector<32x32xf32>
    %49 = arith.addf %40, %48 : vector<32x32xf32>
    %cst_22 = arith.constant dense<0x7F800000> : vector<32xf32>
    %50 = vector.multi_reduction <minimumf>, %49, %cst_22 [1] : vector<32x32xf32> to vector<32xf32>
    %51 = vector.shape_cast %50 : vector<32xf32> to vector<32x1xf32>
    %52 = vector.broadcast %51 : vector<32x1xf32> to vector<32x32xf32>
    %53 = arith.cmpf oeq, %49, %52 : vector<32x32xf32>
    %54 = arith.extui %53 : vector<32x32xi1> to vector<32x32xi32>
    %55 = arith.sitofp %54 : vector<32x32xi32> to vector<32x32xf32>
    %cst_23 = arith.constant 1.000000e+30 : f32
    %56 = vector.broadcast %cst_23 : f32 to vector<32x32xf32>
    %57 = arith.mulf %55, %56 : vector<32x32xf32>
    %58 = arith.addf %49, %57 : vector<32x32xf32>
    %cst_24 = arith.constant dense<0x7F800000> : vector<32xf32>
    %59 = vector.multi_reduction <minimumf>, %58, %cst_24 [1] : vector<32x32xf32> to vector<32xf32>
    %60 = vector.shape_cast %59 : vector<32xf32> to vector<32x1xf32>
    %61 = vector.broadcast %60 : vector<32x1xf32> to vector<32x32xf32>
    %62 = arith.cmpf oeq, %58, %61 : vector<32x32xf32>
    %63 = arith.extui %62 : vector<32x32xi1> to vector<32x32xi32>
    %64 = arith.sitofp %63 : vector<32x32xi32> to vector<32x32xf32>
    %65 = arith.addf %37, %46 : vector<32x32xf32>
    %66 = arith.addf %65, %55 : vector<32x32xf32>
    %67 = arith.addf %66, %64 : vector<32x32xf32>
    %68 = tpu.concatenate %37, %46, %55, %64 in 0 : vector<32x32xf32>, vector<32x32xf32>, vector<32x32xf32>, vector<32x32xf32> -> vector<128x32xf32>
    %cst_25 = arith.constant dense<0.000000e+00> : vector<32x8xf32>
    %69 = tpu.matmul %67, %8, %cst_25 {dimension_numbers = #tpu.dot_dimension_numbers<[1], [0], [0], [1], [0, 0, 1, 1], [], []>} : vector<32x32xf32>, vector<32x8xf32>, vector<32x8xf32> -> vector<32x8xf32>
    %cst_26 = arith.constant 2.500000e-01 : f32
    %70 = vector.broadcast %cst_26 : f32 to vector<32x8xf32>
    %71 = arith.mulf %69, %70 : vector<32x8xf32>
    %72 = arith.subf %8, %71 : vector<32x8xf32>
    %73 = tpu.concatenate %72, %8 in 1 : vector<32x8xf32>, vector<32x8xf32> -> vector<32x16xf32>
    %c7 = arith.constant 7 : index
    %c0_27 = arith.constant 0 : index
    %74 = vector.load %arg3[%c7, %c0_27] : memref<184x128xf32, #tpu.memory_space<vmem>>, vector<16x8xf32>
    %cst_28 = arith.constant dense<0.000000e+00> : vector<32x8xf32>
    %75 = tpu.matmul %73, %74, %cst_28 {dimension_numbers = #tpu.dot_dimension_numbers<[1], [0], [0], [1], [0, 0, 1, 1], [], []>} : vector<32x16xf32>, vector<16x8xf32>, vector<32x8xf32> -> vector<32x8xf32>
    %c23 = arith.constant 23 : index
    %c0_29 = arith.constant 0 : index
    %76 = vector.load %arg3[%c23, %c0_29] : memref<184x128xf32, #tpu.memory_space<vmem>>, vector<1x8xf32>
    %77 = vector.broadcast %76 : vector<1x8xf32> to vector<32x8xf32>
    %78 = arith.addf %75, %77 : vector<32x8xf32>
    %c24 = arith.constant 24 : index
    %c0_30 = arith.constant 0 : index
    %79 = vector.load %arg3[%c24, %c0_30] : memref<184x128xf32, #tpu.memory_space<vmem>>, vector<16x64xf32>
    %cst_31 = arith.constant dense<0.000000e+00> : vector<32x64xf32>
    %80 = tpu.matmul %13, %79, %cst_31 {dimension_numbers = #tpu.dot_dimension_numbers<[1], [0], [0], [1], [0, 0, 1, 1], [], []>} : vector<32x16xf32>, vector<16x64xf32>, vector<32x64xf32> -> vector<32x64xf32>
    %c56 = arith.constant 56 : index
    %c0_32 = arith.constant 0 : index
    %81 = vector.load %arg3[%c56, %c0_32] : memref<184x128xf32, #tpu.memory_space<vmem>>, vector<1x64xf32>
    %82 = vector.broadcast %81 : vector<1x64xf32> to vector<32x64xf32>
    %83 = arith.addf %80, %82 : vector<32x64xf32>
    %c40 = arith.constant 40 : index
    %c0_33 = arith.constant 0 : index
    %84 = vector.load %arg3[%c40, %c0_33] : memref<184x128xf32, #tpu.memory_space<vmem>>, vector<16x64xf32>
    %cst_34 = arith.constant dense<0.000000e+00> : vector<32x64xf32>
    %85 = tpu.matmul %13, %84, %cst_34 {dimension_numbers = #tpu.dot_dimension_numbers<[1], [0], [0], [1], [0, 0, 1, 1], [], []>} : vector<32x16xf32>, vector<16x64xf32>, vector<32x64xf32> -> vector<32x64xf32>
    %86 = tpu.concatenate %83, %83, %83, %83 in 0 : vector<32x64xf32>, vector<32x64xf32>, vector<32x64xf32>, vector<32x64xf32> -> vector<128x64xf32>
    %cst_35 = arith.constant dense<0.000000e+00> : vector<128x64xf32>
    %87 = tpu.matmul %68, %85, %cst_35 {dimension_numbers = #tpu.dot_dimension_numbers<[1], [0], [0], [1], [0, 0, 1, 1], [], []>} : vector<128x32xf32>, vector<32x64xf32>, vector<128x64xf32> -> vector<128x64xf32>
    %88 = arith.subf %86, %87 : vector<128x64xf32>
    %cst_36 = arith.constant 0.000000e+00 : f32
    %89 = vector.broadcast %cst_36 : f32 to vector<128x64xf32>
    %90 = arith.maximumf %88, %89 : vector<128x64xf32>
    %91 = arith.truncf %90 : vector<128x64xf32> to vector<128x64xbf16>
    %c0_37 = arith.constant 0 : index
    %c0_38 = arith.constant 0 : index
    %92 = vector.load %arg4[%c0_37, %c0_38] : memref<1248x128xbf16, #tpu.memory_space<vmem>>, vector<64x128xbf16>
    %cst_39 = arith.constant dense<0.000000e+00> : vector<128x128xf32>
    %93 = tpu.matmul %91, %92, %cst_39 {dimension_numbers = #tpu.dot_dimension_numbers<[1], [0], [0], [1], [0, 0, 1, 1], [], []>} : vector<128x64xbf16>, vector<64x128xbf16>, vector<128x128xf32> -> vector<128x128xf32>
    %c57 = arith.constant 57 : index
    %c0_40 = arith.constant 0 : index
    %94 = vector.load %arg3[%c57, %c0_40] : memref<184x128xf32, #tpu.memory_space<vmem>>, vector<1x128xf32>
    %95 = vector.broadcast %94 : vector<1x128xf32> to vector<128x128xf32>
    %96 = arith.addf %93, %95 : vector<128x128xf32>
    %cst_41 = arith.constant 0.000000e+00 : f32
    %97 = vector.broadcast %cst_41 : f32 to vector<128x128xf32>
    %98 = arith.maximumf %96, %97 : vector<128x128xf32>
    %99 = arith.truncf %98 : vector<128x128xf32> to vector<128x128xbf16>
    %c64 = arith.constant 64 : index
    %c0_42 = arith.constant 0 : index
    %100 = vector.load %arg4[%c64, %c0_42] : memref<1248x128xbf16, #tpu.memory_space<vmem>>, vector<128x128xbf16>
    %cst_43 = arith.constant dense<0.000000e+00> : vector<128x128xf32>
    %101 = tpu.matmul %99, %100, %cst_43 {dimension_numbers = #tpu.dot_dimension_numbers<[1], [0], [0], [1], [0, 0, 1, 1], [], []>} : vector<128x128xbf16>, vector<128x128xbf16>, vector<128x128xf32> -> vector<128x128xf32>
    %c58 = arith.constant 58 : index
    %c0_44 = arith.constant 0 : index
    %102 = vector.load %arg3[%c58, %c0_44] : memref<184x128xf32, #tpu.memory_space<vmem>>, vector<1x128xf32>
    %103 = vector.broadcast %102 : vector<1x128xf32> to vector<128x128xf32>
    %104 = arith.addf %101, %103 : vector<128x128xf32>
    %cst_45 = arith.constant 0.000000e+00 : f32
    %105 = vector.broadcast %cst_45 : f32 to vector<128x128xf32>
    %106 = arith.maximumf %104, %105 : vector<128x128xf32>
    %107 = arith.truncf %106 : vector<128x128xf32> to vector<128x128xbf16>
    %c192 = arith.constant 192 : index
    %c0_46 = arith.constant 0 : index
    %108 = vector.load %arg4[%c192, %c0_46] : memref<1248x128xbf16, #tpu.memory_space<vmem>>, vector<128x128xbf16>
    %cst_47 = arith.constant dense<0.000000e+00> : vector<128x128xf32>
    %109 = tpu.matmul %107, %108, %cst_47 {dimension_numbers = #tpu.dot_dimension_numbers<[1], [0], [0], [1], [0, 0, 1, 1], [], []>} : vector<128x128xbf16>, vector<128x128xbf16>, vector<128x128xf32> -> vector<128x128xf32>
    %c59 = arith.constant 59 : index
    %c0_48 = arith.constant 0 : index
    %110 = vector.load %arg3[%c59, %c0_48] : memref<184x128xf32, #tpu.memory_space<vmem>>, vector<1x128xf32>
    %111 = vector.broadcast %110 : vector<1x128xf32> to vector<128x128xf32>
    %112 = arith.addf %109, %111 : vector<128x128xf32>
    %cst_49 = arith.constant 0.000000e+00 : f32
    %113 = vector.broadcast %cst_49 : f32 to vector<128x128xf32>
    %114 = arith.maximumf %112, %113 : vector<128x128xf32>
    %115 = arith.truncf %114 : vector<128x128xf32> to vector<128x128xbf16>
    %c320 = arith.constant 320 : index
    %c0_50 = arith.constant 0 : index
    %116 = vector.load %arg4[%c320, %c0_50] : memref<1248x128xbf16, #tpu.memory_space<vmem>>, vector<128x64xbf16>
    %cst_51 = arith.constant dense<0.000000e+00> : vector<128x64xf32>
    %117 = tpu.matmul %115, %116, %cst_51 {dimension_numbers = #tpu.dot_dimension_numbers<[1], [0], [0], [1], [0, 0, 1, 1], [], []>} : vector<128x128xbf16>, vector<128x64xbf16>, vector<128x64xf32> -> vector<128x64xf32>
    %c60 = arith.constant 60 : index
    %c0_52 = arith.constant 0 : index
    %118 = vector.load %arg3[%c60, %c0_52] : memref<184x128xf32, #tpu.memory_space<vmem>>, vector<1x64xf32>
    %119 = vector.broadcast %118 : vector<1x64xf32> to vector<128x64xf32>
    %120 = arith.addf %117, %119 : vector<128x64xf32>
    %cst_53 = arith.constant 0.000000e+00 : f32
    %121 = vector.broadcast %cst_53 : f32 to vector<128x64xf32>
    %122 = arith.maximumf %120, %121 : vector<128x64xf32>
    %123 = arith.truncf %122 : vector<128x64xf32> to vector<128x64xbf16>
    %c448 = arith.constant 448 : index
    %c0_54 = arith.constant 0 : index
    %124 = vector.load %arg4[%c448, %c0_54] : memref<1248x128xbf16, #tpu.memory_space<vmem>>, vector<64x16xbf16>
    %cst_55 = arith.constant dense<0.000000e+00> : vector<128x16xf32>
    %125 = tpu.matmul %123, %124, %cst_55 {dimension_numbers = #tpu.dot_dimension_numbers<[1], [0], [0], [1], [0, 0, 1, 1], [], []>} : vector<128x64xbf16>, vector<64x16xbf16>, vector<128x16xf32> -> vector<128x16xf32>
    %c61 = arith.constant 61 : index
    %c0_56 = arith.constant 0 : index
    %126 = vector.load %arg3[%c61, %c0_56] : memref<184x128xf32, #tpu.memory_space<vmem>>, vector<1x16xf32>
    %127 = vector.broadcast %126 : vector<1x16xf32> to vector<128x16xf32>
    %128 = arith.addf %125, %127 : vector<128x16xf32>
    %129 = vector.extract_strided_slice %128 {offsets = [0, 0], sizes = [32, 16], strides = [1, 1]} : vector<128x16xf32> to vector<32x16xf32>
    %130 = vector.extract_strided_slice %128 {offsets = [32, 0], sizes = [32, 16], strides = [1, 1]} : vector<128x16xf32> to vector<32x16xf32>
    %131 = arith.addf %129, %130 : vector<32x16xf32>
    %132 = vector.extract_strided_slice %128 {offsets = [64, 0], sizes = [32, 16], strides = [1, 1]} : vector<128x16xf32> to vector<32x16xf32>
    %133 = arith.addf %131, %132 : vector<32x16xf32>
    %134 = vector.extract_strided_slice %128 {offsets = [96, 0], sizes = [32, 16], strides = [1, 1]} : vector<128x16xf32> to vector<32x16xf32>
    %135 = arith.addf %133, %134 : vector<32x16xf32>
    %cst_57 = arith.constant 2.500000e-01 : f32
    %136 = vector.broadcast %cst_57 : f32 to vector<32x16xf32>
    %137 = arith.mulf %135, %136 : vector<32x16xf32>
    %cst_58 = arith.constant dense<0.000000e+00> : vector<32x32xf32>
    %138 = tpu.matmul %78, %78, %cst_58 {dimension_numbers = #tpu.dot_dimension_numbers<[1], [1], [0], [0], [0, 0, 1, 0], [], []>} : vector<32x8xf32>, vector<32x8xf32>, vector<32x32xf32> -> vector<32x32xf32>
    %139 = arith.mulf %78, %78 : vector<32x8xf32>
    %cst_59 = arith.constant dense<0.000000e+00> : vector<32x32xf32>
    %140 = tpu.matmul %23, %139, %cst_59 {dimension_numbers = #tpu.dot_dimension_numbers<[1], [1], [0], [0], [0, 0, 1, 0], [], []>} : vector<32x8xf32>, vector<32x8xf32>, vector<32x32xf32> -> vector<32x32xf32>
    %cst_60 = arith.constant 2.000000e+00 : f32
    %141 = vector.broadcast %cst_60 : f32 to vector<32x32xf32>
    %142 = arith.mulf %141, %138 : vector<32x32xf32>
    %143 = arith.subf %140, %142 : vector<32x32xf32>
    %144 = arith.addf %143, %20 : vector<32x32xf32>
    %145 = arith.addf %144, %22 : vector<32x32xf32>
    %cst_61 = arith.constant dense<0x7F800000> : vector<32xf32>
    %146 = vector.multi_reduction <minimumf>, %145, %cst_61 [1] : vector<32x32xf32> to vector<32xf32>
    %147 = vector.shape_cast %146 : vector<32xf32> to vector<32x1xf32>
    %148 = vector.broadcast %147 : vector<32x1xf32> to vector<32x32xf32>
    %149 = arith.cmpf oeq, %145, %148 : vector<32x32xf32>
    %150 = arith.extui %149 : vector<32x32xi1> to vector<32x32xi32>
    %151 = arith.sitofp %150 : vector<32x32xi32> to vector<32x32xf32>
    %cst_62 = arith.constant 1.000000e+30 : f32
    %152 = vector.broadcast %cst_62 : f32 to vector<32x32xf32>
    %153 = arith.mulf %151, %152 : vector<32x32xf32>
    %154 = arith.addf %145, %153 : vector<32x32xf32>
    %cst_63 = arith.constant dense<0x7F800000> : vector<32xf32>
    %155 = vector.multi_reduction <minimumf>, %154, %cst_63 [1] : vector<32x32xf32> to vector<32xf32>
    %156 = vector.shape_cast %155 : vector<32xf32> to vector<32x1xf32>
    %157 = vector.broadcast %156 : vector<32x1xf32> to vector<32x32xf32>
    %158 = arith.cmpf oeq, %154, %157 : vector<32x32xf32>
    %159 = arith.extui %158 : vector<32x32xi1> to vector<32x32xi32>
    %160 = arith.sitofp %159 : vector<32x32xi32> to vector<32x32xf32>
    %cst_64 = arith.constant 1.000000e+30 : f32
    %161 = vector.broadcast %cst_64 : f32 to vector<32x32xf32>
    %162 = arith.mulf %160, %161 : vector<32x32xf32>
    %163 = arith.addf %154, %162 : vector<32x32xf32>
    %cst_65 = arith.constant dense<0x7F800000> : vector<32xf32>
    %164 = vector.multi_reduction <minimumf>, %163, %cst_65 [1] : vector<32x32xf32> to vector<32xf32>
    %165 = vector.shape_cast %164 : vector<32xf32> to vector<32x1xf32>
    %166 = vector.broadcast %165 : vector<32x1xf32> to vector<32x32xf32>
    %167 = arith.cmpf oeq, %163, %166 : vector<32x32xf32>
    %168 = arith.extui %167 : vector<32x32xi1> to vector<32x32xi32>
    %169 = arith.sitofp %168 : vector<32x32xi32> to vector<32x32xf32>
    %cst_66 = arith.constant 1.000000e+30 : f32
    %170 = vector.broadcast %cst_66 : f32 to vector<32x32xf32>
    %171 = arith.mulf %169, %170 : vector<32x32xf32>
    %172 = arith.addf %163, %171 : vector<32x32xf32>
    %cst_67 = arith.constant dense<0x7F800000> : vector<32xf32>
    %173 = vector.multi_reduction <minimumf>, %172, %cst_67 [1] : vector<32x32xf32> to vector<32xf32>
    %174 = vector.shape_cast %173 : vector<32xf32> to vector<32x1xf32>
    %175 = vector.broadcast %174 : vector<32x1xf32> to vector<32x32xf32>
    %176 = arith.cmpf oeq, %172, %175 : vector<32x32xf32>
    %177 = arith.extui %176 : vector<32x32xi1> to vector<32x32xi32>
    %178 = arith.sitofp %177 : vector<32x32xi32> to vector<32x32xf32>
    %179 = arith.addf %151, %160 : vector<32x32xf32>
    %180 = arith.addf %179, %169 : vector<32x32xf32>
    %181 = arith.addf %180, %178 : vector<32x32xf32>
    %182 = tpu.concatenate %151, %160, %169, %178 in 0 : vector<32x32xf32>, vector<32x32xf32>, vector<32x32xf32>, vector<32x32xf32> -> vector<128x32xf32>
    %cst_68 = arith.constant dense<0.000000e+00> : vector<32x8xf32>
    %183 = tpu.matmul %181, %78, %cst_68 {dimension_numbers = #tpu.dot_dimension_numbers<[1], [0], [0], [1], [0, 0, 1, 1], [], []>} : vector<32x32xf32>, vector<32x8xf32>, vector<32x8xf32> -> vector<32x8xf32>
    %cst_69 = arith.constant 2.500000e-01 : f32
    %184 = vector.broadcast %cst_69 : f32 to vector<32x8xf32>
    %185 = arith.mulf %183, %184 : vector<32x8xf32>
    %186 = arith.subf %78, %185 : vector<32x8xf32>
    %187 = tpu.concatenate %186, %78 in 1 : vector<32x8xf32>, vector<32x8xf32> -> vector<32x16xf32>
    %c62 = arith.constant 62 : index
    %c0_70 = arith.constant 0 : index
    %188 = vector.load %arg3[%c62, %c0_70] : memref<184x128xf32, #tpu.memory_space<vmem>>, vector<16x8xf32>
    %cst_71 = arith.constant dense<0.000000e+00> : vector<32x8xf32>
    %189 = tpu.matmul %187, %188, %cst_71 {dimension_numbers = #tpu.dot_dimension_numbers<[1], [0], [0], [1], [0, 0, 1, 1], [], []>} : vector<32x16xf32>, vector<16x8xf32>, vector<32x8xf32> -> vector<32x8xf32>
    %c78 = arith.constant 78 : index
    %c0_72 = arith.constant 0 : index
    %190 = vector.load %arg3[%c78, %c0_72] : memref<184x128xf32, #tpu.memory_space<vmem>>, vector<1x8xf32>
    %191 = vector.broadcast %190 : vector<1x8xf32> to vector<32x8xf32>
    %192 = arith.addf %189, %191 : vector<32x8xf32>
    %c79 = arith.constant 79 : index
    %c0_73 = arith.constant 0 : index
    %193 = vector.load %arg3[%c79, %c0_73] : memref<184x128xf32, #tpu.memory_space<vmem>>, vector<16x64xf32>
    %cst_74 = arith.constant dense<0.000000e+00> : vector<32x64xf32>
    %194 = tpu.matmul %137, %193, %cst_74 {dimension_numbers = #tpu.dot_dimension_numbers<[1], [0], [0], [1], [0, 0, 1, 1], [], []>} : vector<32x16xf32>, vector<16x64xf32>, vector<32x64xf32> -> vector<32x64xf32>
    %c111 = arith.constant 111 : index
    %c0_75 = arith.constant 0 : index
    %195 = vector.load %arg3[%c111, %c0_75] : memref<184x128xf32, #tpu.memory_space<vmem>>, vector<1x64xf32>
    %196 = vector.broadcast %195 : vector<1x64xf32> to vector<32x64xf32>
    %197 = arith.addf %194, %196 : vector<32x64xf32>
    %c95 = arith.constant 95 : index
    %c0_76 = arith.constant 0 : index
    %198 = vector.load %arg3[%c95, %c0_76] : memref<184x128xf32, #tpu.memory_space<vmem>>, vector<16x64xf32>
    %cst_77 = arith.constant dense<0.000000e+00> : vector<32x64xf32>
    %199 = tpu.matmul %137, %198, %cst_77 {dimension_numbers = #tpu.dot_dimension_numbers<[1], [0], [0], [1], [0, 0, 1, 1], [], []>} : vector<32x16xf32>, vector<16x64xf32>, vector<32x64xf32> -> vector<32x64xf32>
    %200 = tpu.concatenate %197, %197, %197, %197 in 0 : vector<32x64xf32>, vector<32x64xf32>, vector<32x64xf32>, vector<32x64xf32> -> vector<128x64xf32>
    %cst_78 = arith.constant dense<0.000000e+00> : vector<128x64xf32>
    %201 = tpu.matmul %182, %199, %cst_78 {dimension_numbers = #tpu.dot_dimension_numbers<[1], [0], [0], [1], [0, 0, 1, 1], [], []>} : vector<128x32xf32>, vector<32x64xf32>, vector<128x64xf32> -> vector<128x64xf32>
    %202 = arith.subf %200, %201 : vector<128x64xf32>
    %cst_79 = arith.constant 0.000000e+00 : f32
    %203 = vector.broadcast %cst_79 : f32 to vector<128x64xf32>
    %204 = arith.maximumf %202, %203 : vector<128x64xf32>
    %205 = arith.truncf %204 : vector<128x64xf32> to vector<128x64xbf16>
    %c512 = arith.constant 512 : index
    %c0_80 = arith.constant 0 : index
    %206 = vector.load %arg4[%c512, %c0_80] : memref<1248x128xbf16, #tpu.memory_space<vmem>>, vector<64x128xbf16>
    %cst_81 = arith.constant dense<0.000000e+00> : vector<128x128xf32>
    %207 = tpu.matmul %205, %206, %cst_81 {dimension_numbers = #tpu.dot_dimension_numbers<[1], [0], [0], [1], [0, 0, 1, 1], [], []>} : vector<128x64xbf16>, vector<64x128xbf16>, vector<128x128xf32> -> vector<128x128xf32>
    %c112 = arith.constant 112 : index
    %c0_82 = arith.constant 0 : index
    %208 = vector.load %arg3[%c112, %c0_82] : memref<184x128xf32, #tpu.memory_space<vmem>>, vector<1x128xf32>
    %209 = vector.broadcast %208 : vector<1x128xf32> to vector<128x128xf32>
    %210 = arith.addf %207, %209 : vector<128x128xf32>
    %cst_83 = arith.constant 0.000000e+00 : f32
    %211 = vector.broadcast %cst_83 : f32 to vector<128x128xf32>
    %212 = arith.maximumf %210, %211 : vector<128x128xf32>
    %213 = arith.truncf %212 : vector<128x128xf32> to vector<128x128xbf16>
    %c576 = arith.constant 576 : index
    %c0_84 = arith.constant 0 : index
    %214 = vector.load %arg4[%c576, %c0_84] : memref<1248x128xbf16, #tpu.memory_space<vmem>>, vector<128x128xbf16>
    %cst_85 = arith.constant dense<0.000000e+00> : vector<128x128xf32>
    %215 = tpu.matmul %213, %214, %cst_85 {dimension_numbers = #tpu.dot_dimension_numbers<[1], [0], [0], [1], [0, 0, 1, 1], [], []>} : vector<128x128xbf16>, vector<128x128xbf16>, vector<128x128xf32> -> vector<128x128xf32>
    %c113 = arith.constant 113 : index
    %c0_86 = arith.constant 0 : index
    %216 = vector.load %arg3[%c113, %c0_86] : memref<184x128xf32, #tpu.memory_space<vmem>>, vector<1x128xf32>
    %217 = vector.broadcast %216 : vector<1x128xf32> to vector<128x128xf32>
    %218 = arith.addf %215, %217 : vector<128x128xf32>
    %cst_87 = arith.constant 0.000000e+00 : f32
    %219 = vector.broadcast %cst_87 : f32 to vector<128x128xf32>
    %220 = arith.maximumf %218, %219 : vector<128x128xf32>
    %221 = arith.truncf %220 : vector<128x128xf32> to vector<128x128xbf16>
    %c704 = arith.constant 704 : index
    %c0_88 = arith.constant 0 : index
    %222 = vector.load %arg4[%c704, %c0_88] : memref<1248x128xbf16, #tpu.memory_space<vmem>>, vector<128x128xbf16>
    %cst_89 = arith.constant dense<0.000000e+00> : vector<128x128xf32>
    %223 = tpu.matmul %221, %222, %cst_89 {dimension_numbers = #tpu.dot_dimension_numbers<[1], [0], [0], [1], [0, 0, 1, 1], [], []>} : vector<128x128xbf16>, vector<128x128xbf16>, vector<128x128xf32> -> vector<128x128xf32>
    %c114 = arith.constant 114 : index
    %c0_90 = arith.constant 0 : index
    %224 = vector.load %arg3[%c114, %c0_90] : memref<184x128xf32, #tpu.memory_space<vmem>>, vector<1x128xf32>
    %225 = vector.broadcast %224 : vector<1x128xf32> to vector<128x128xf32>
    %226 = arith.addf %223, %225 : vector<128x128xf32>
    %cst_91 = arith.constant 0.000000e+00 : f32
    %227 = vector.broadcast %cst_91 : f32 to vector<128x128xf32>
    %228 = arith.maximumf %226, %227 : vector<128x128xf32>
    %229 = arith.truncf %228 : vector<128x128xf32> to vector<128x128xbf16>
    %c832 = arith.constant 832 : index
    %c0_92 = arith.constant 0 : index
    %230 = vector.load %arg4[%c832, %c0_92] : memref<1248x128xbf16, #tpu.memory_space<vmem>>, vector<128x64xbf16>
    %cst_93 = arith.constant dense<0.000000e+00> : vector<128x64xf32>
    %231 = tpu.matmul %229, %230, %cst_93 {dimension_numbers = #tpu.dot_dimension_numbers<[1], [0], [0], [1], [0, 0, 1, 1], [], []>} : vector<128x128xbf16>, vector<128x64xbf16>, vector<128x64xf32> -> vector<128x64xf32>
    %c115 = arith.constant 115 : index
    %c0_94 = arith.constant 0 : index
    %232 = vector.load %arg3[%c115, %c0_94] : memref<184x128xf32, #tpu.memory_space<vmem>>, vector<1x64xf32>
    %233 = vector.broadcast %232 : vector<1x64xf32> to vector<128x64xf32>
    %234 = arith.addf %231, %233 : vector<128x64xf32>
    %cst_95 = arith.constant 0.000000e+00 : f32
    %235 = vector.broadcast %cst_95 : f32 to vector<128x64xf32>
    %236 = arith.maximumf %234, %235 : vector<128x64xf32>
    %237 = arith.truncf %236 : vector<128x64xf32> to vector<128x64xbf16>
    %c960 = arith.constant 960 : index
    %c0_96 = arith.constant 0 : index
    %238 = vector.load %arg4[%c960, %c0_96] : memref<1248x128xbf16, #tpu.memory_space<vmem>>, vector<64x16xbf16>
    %cst_97 = arith.constant dense<0.000000e+00> : vector<128x16xf32>
    %239 = tpu.matmul %237, %238, %cst_97 {dimension_numbers = #tpu.dot_dimension_numbers<[1], [0], [0], [1], [0, 0, 1, 1], [], []>} : vector<128x64xbf16>, vector<64x16xbf16>, vector<128x16xf32> -> vector<128x16xf32>
    %c116 = arith.constant 116 : index
    %c0_98 = arith.constant 0 : index
    %240 = vector.load %arg3[%c116, %c0_98] : memref<184x128xf32, #tpu.memory_space<vmem>>, vector<1x16xf32>
    %241 = vector.broadcast %240 : vector<1x16xf32> to vector<128x16xf32>
    %242 = arith.addf %239, %241 : vector<128x16xf32>
    %243 = vector.extract_strided_slice %242 {offsets = [0, 0], sizes = [32, 16], strides = [1, 1]} : vector<128x16xf32> to vector<32x16xf32>
    %244 = vector.extract_strided_slice %242 {offsets = [32, 0], sizes = [32, 16], strides = [1, 1]} : vector<128x16xf32> to vector<32x16xf32>
    %245 = arith.addf %243, %244 : vector<32x16xf32>
    %246 = vector.extract_strided_slice %242 {offsets = [64, 0], sizes = [32, 16], strides = [1, 1]} : vector<128x16xf32> to vector<32x16xf32>
    %247 = arith.addf %245, %246 : vector<32x16xf32>
    %248 = vector.extract_strided_slice %242 {offsets = [96, 0], sizes = [32, 16], strides = [1, 1]} : vector<128x16xf32> to vector<32x16xf32>
    %249 = arith.addf %247, %248 : vector<32x16xf32>
    %cst_99 = arith.constant 2.500000e-01 : f32
    %250 = vector.broadcast %cst_99 : f32 to vector<32x16xf32>
    %251 = arith.mulf %249, %250 : vector<32x16xf32>
    %cst_100 = arith.constant dense<0.000000e+00> : vector<32x32xf32>
    %252 = tpu.matmul %192, %192, %cst_100 {dimension_numbers = #tpu.dot_dimension_numbers<[1], [1], [0], [0], [0, 0, 1, 0], [], []>} : vector<32x8xf32>, vector<32x8xf32>, vector<32x32xf32> -> vector<32x32xf32>
    %253 = arith.mulf %192, %192 : vector<32x8xf32>
    %cst_101 = arith.constant dense<0.000000e+00> : vector<32x32xf32>
    %254 = tpu.matmul %23, %253, %cst_101 {dimension_numbers = #tpu.dot_dimension_numbers<[1], [1], [0], [0], [0, 0, 1, 0], [], []>} : vector<32x8xf32>, vector<32x8xf32>, vector<32x32xf32> -> vector<32x32xf32>
    %cst_102 = arith.constant 2.000000e+00 : f32
    %255 = vector.broadcast %cst_102 : f32 to vector<32x32xf32>
    %256 = arith.mulf %255, %252 : vector<32x32xf32>
    %257 = arith.subf %254, %256 : vector<32x32xf32>
    %258 = arith.addf %257, %20 : vector<32x32xf32>
    %259 = arith.addf %258, %22 : vector<32x32xf32>
    %cst_103 = arith.constant dense<0x7F800000> : vector<32xf32>
    %260 = vector.multi_reduction <minimumf>, %259, %cst_103 [1] : vector<32x32xf32> to vector<32xf32>
    %261 = vector.shape_cast %260 : vector<32xf32> to vector<32x1xf32>
    %262 = vector.broadcast %261 : vector<32x1xf32> to vector<32x32xf32>
    %263 = arith.cmpf oeq, %259, %262 : vector<32x32xf32>
    %264 = arith.extui %263 : vector<32x32xi1> to vector<32x32xi32>
    %265 = arith.sitofp %264 : vector<32x32xi32> to vector<32x32xf32>
    %cst_104 = arith.constant 1.000000e+30 : f32
    %266 = vector.broadcast %cst_104 : f32 to vector<32x32xf32>
    %267 = arith.mulf %265, %266 : vector<32x32xf32>
    %268 = arith.addf %259, %267 : vector<32x32xf32>
    %cst_105 = arith.constant dense<0x7F800000> : vector<32xf32>
    %269 = vector.multi_reduction <minimumf>, %268, %cst_105 [1] : vector<32x32xf32> to vector<32xf32>
    %270 = vector.shape_cast %269 : vector<32xf32> to vector<32x1xf32>
    %271 = vector.broadcast %270 : vector<32x1xf32> to vector<32x32xf32>
    %272 = arith.cmpf oeq, %268, %271 : vector<32x32xf32>
    %273 = arith.extui %272 : vector<32x32xi1> to vector<32x32xi32>
    %274 = arith.sitofp %273 : vector<32x32xi32> to vector<32x32xf32>
    %cst_106 = arith.constant 1.000000e+30 : f32
    %275 = vector.broadcast %cst_106 : f32 to vector<32x32xf32>
    %276 = arith.mulf %274, %275 : vector<32x32xf32>
    %277 = arith.addf %268, %276 : vector<32x32xf32>
    %cst_107 = arith.constant dense<0x7F800000> : vector<32xf32>
    %278 = vector.multi_reduction <minimumf>, %277, %cst_107 [1] : vector<32x32xf32> to vector<32xf32>
    %279 = vector.shape_cast %278 : vector<32xf32> to vector<32x1xf32>
    %280 = vector.broadcast %279 : vector<32x1xf32> to vector<32x32xf32>
    %281 = arith.cmpf oeq, %277, %280 : vector<32x32xf32>
    %282 = arith.extui %281 : vector<32x32xi1> to vector<32x32xi32>
    %283 = arith.sitofp %282 : vector<32x32xi32> to vector<32x32xf32>
    %cst_108 = arith.constant 1.000000e+30 : f32
    %284 = vector.broadcast %cst_108 : f32 to vector<32x32xf32>
    %285 = arith.mulf %283, %284 : vector<32x32xf32>
    %286 = arith.addf %277, %285 : vector<32x32xf32>
    %cst_109 = arith.constant dense<0x7F800000> : vector<32xf32>
    %287 = vector.multi_reduction <minimumf>, %286, %cst_109 [1] : vector<32x32xf32> to vector<32xf32>
    %288 = vector.shape_cast %287 : vector<32xf32> to vector<32x1xf32>
    %289 = vector.broadcast %288 : vector<32x1xf32> to vector<32x32xf32>
    %290 = arith.cmpf oeq, %286, %289 : vector<32x32xf32>
    %291 = arith.extui %290 : vector<32x32xi1> to vector<32x32xi32>
    %292 = arith.sitofp %291 : vector<32x32xi32> to vector<32x32xf32>
    %293 = tpu.concatenate %265, %274, %283, %292 in 0 : vector<32x32xf32>, vector<32x32xf32>, vector<32x32xf32>, vector<32x32xf32> -> vector<128x32xf32>
    %294 = tpu.concatenate %192, %251 in 1 : vector<32x8xf32>, vector<32x16xf32> -> vector<32x24xf32>
    %c117 = arith.constant 117 : index
    %c0_110 = arith.constant 0 : index
    %295 = vector.load %arg3[%c117, %c0_110] : memref<184x128xf32, #tpu.memory_space<vmem>>, vector<24x32xf32>
    %cst_111 = arith.constant dense<0.000000e+00> : vector<32x32xf32>
    %296 = tpu.matmul %294, %295, %cst_111 {dimension_numbers = #tpu.dot_dimension_numbers<[1], [0], [0], [1], [0, 0, 1, 1], [], []>} : vector<32x24xf32>, vector<24x32xf32>, vector<32x32xf32> -> vector<32x32xf32>
    %c141 = arith.constant 141 : index
    %c0_112 = arith.constant 0 : index
    %297 = vector.load %arg3[%c141, %c0_112] : memref<184x128xf32, #tpu.memory_space<vmem>>, vector<24x32xf32>
    %cst_113 = arith.constant dense<0.000000e+00> : vector<32x32xf32>
    %298 = tpu.matmul %294, %297, %cst_113 {dimension_numbers = #tpu.dot_dimension_numbers<[1], [0], [0], [1], [0, 0, 1, 1], [], []>} : vector<32x24xf32>, vector<24x32xf32>, vector<32x32xf32> -> vector<32x32xf32>
    %c165 = arith.constant 165 : index
    %c0_114 = arith.constant 0 : index
    %299 = vector.load %arg3[%c165, %c0_114] : memref<184x128xf32, #tpu.memory_space<vmem>>, vector<1x32xf32>
    %300 = vector.broadcast %299 : vector<1x32xf32> to vector<32x32xf32>
    %301 = arith.addf %298, %300 : vector<32x32xf32>
    %cst_115 = arith.constant dense<0.000000e+00> : vector<128x32xf32>
    %302 = tpu.matmul %293, %296, %cst_115 {dimension_numbers = #tpu.dot_dimension_numbers<[1], [0], [0], [1], [0, 0, 1, 1], [], []>} : vector<128x32xf32>, vector<32x32xf32>, vector<128x32xf32> -> vector<128x32xf32>
    %303 = tpu.concatenate %301, %301, %301, %301 in 0 : vector<32x32xf32>, vector<32x32xf32>, vector<32x32xf32>, vector<32x32xf32> -> vector<128x32xf32>
    %304 = arith.addf %302, %303 : vector<128x32xf32>
    %cst_116 = arith.constant 0.000000e+00 : f32
    %305 = vector.broadcast %cst_116 : f32 to vector<128x32xf32>
    %306 = arith.maximumf %304, %305 : vector<128x32xf32>
    %307 = arith.truncf %306 : vector<128x32xf32> to vector<128x32xbf16>
    %c1024 = arith.constant 1024 : index
    %c0_117 = arith.constant 0 : index
    %308 = vector.load %arg4[%c1024, %c0_117] : memref<1248x128xbf16, #tpu.memory_space<vmem>>, vector<32x64xbf16>
    %cst_118 = arith.constant dense<0.000000e+00> : vector<128x64xf32>
    %309 = tpu.matmul %307, %308, %cst_118 {dimension_numbers = #tpu.dot_dimension_numbers<[1], [0], [0], [1], [0, 0, 1, 1], [], []>} : vector<128x32xbf16>, vector<32x64xbf16>, vector<128x64xf32> -> vector<128x64xf32>
    %c166 = arith.constant 166 : index
    %c0_119 = arith.constant 0 : index
    %310 = vector.load %arg3[%c166, %c0_119] : memref<184x128xf32, #tpu.memory_space<vmem>>, vector<1x64xf32>
    %311 = vector.broadcast %310 : vector<1x64xf32> to vector<128x64xf32>
    %312 = arith.addf %309, %311 : vector<128x64xf32>
    %cst_120 = arith.constant 0.000000e+00 : f32
    %313 = vector.broadcast %cst_120 : f32 to vector<128x64xf32>
    %314 = arith.maximumf %312, %313 : vector<128x64xf32>
    %315 = arith.truncf %314 : vector<128x64xf32> to vector<128x64xbf16>
    %c1056 = arith.constant 1056 : index
    %c0_121 = arith.constant 0 : index
    %316 = vector.load %arg4[%c1056, %c0_121] : memref<1248x128xbf16, #tpu.memory_space<vmem>>, vector<64x64xbf16>
    %cst_122 = arith.constant dense<0.000000e+00> : vector<128x64xf32>
    %317 = tpu.matmul %315, %316, %cst_122 {dimension_numbers = #tpu.dot_dimension_numbers<[1], [0], [0], [1], [0, 0, 1, 1], [], []>} : vector<128x64xbf16>, vector<64x64xbf16>, vector<128x64xf32> -> vector<128x64xf32>
    %c167 = arith.constant 167 : index
    %c0_123 = arith.constant 0 : index
    %318 = vector.load %arg3[%c167, %c0_123] : memref<184x128xf32, #tpu.memory_space<vmem>>, vector<1x64xf32>
    %319 = vector.broadcast %318 : vector<1x64xf32> to vector<128x64xf32>
    %320 = arith.addf %317, %319 : vector<128x64xf32>
    %cst_124 = arith.constant 0.000000e+00 : f32
    %321 = vector.broadcast %cst_124 : f32 to vector<128x64xf32>
    %322 = arith.maximumf %320, %321 : vector<128x64xf32>
    %323 = arith.truncf %322 : vector<128x64xf32> to vector<128x64xbf16>
    %c1120 = arith.constant 1120 : index
    %c0_125 = arith.constant 0 : index
    %324 = vector.load %arg4[%c1120, %c0_125] : memref<1248x128xbf16, #tpu.memory_space<vmem>>, vector<64x64xbf16>
    %cst_126 = arith.constant dense<0.000000e+00> : vector<128x64xf32>
    %325 = tpu.matmul %323, %324, %cst_126 {dimension_numbers = #tpu.dot_dimension_numbers<[1], [0], [0], [1], [0, 0, 1, 1], [], []>} : vector<128x64xbf16>, vector<64x64xbf16>, vector<128x64xf32> -> vector<128x64xf32>
    %c168 = arith.constant 168 : index
    %c0_127 = arith.constant 0 : index
    %326 = vector.load %arg3[%c168, %c0_127] : memref<184x128xf32, #tpu.memory_space<vmem>>, vector<1x64xf32>
    %327 = vector.broadcast %326 : vector<1x64xf32> to vector<128x64xf32>
    %328 = arith.addf %325, %327 : vector<128x64xf32>
    %cst_128 = arith.constant 0.000000e+00 : f32
    %329 = vector.broadcast %cst_128 : f32 to vector<128x64xf32>
    %330 = arith.maximumf %328, %329 : vector<128x64xf32>
    %331 = arith.truncf %330 : vector<128x64xf32> to vector<128x64xbf16>
    %c1184 = arith.constant 1184 : index
    %c0_129 = arith.constant 0 : index
    %332 = vector.load %arg4[%c1184, %c0_129] : memref<1248x128xbf16, #tpu.memory_space<vmem>>, vector<64x32xbf16>
    %cst_130 = arith.constant dense<0.000000e+00> : vector<128x32xf32>
    %333 = tpu.matmul %331, %332, %cst_130 {dimension_numbers = #tpu.dot_dimension_numbers<[1], [0], [0], [1], [0, 0, 1, 1], [], []>} : vector<128x64xbf16>, vector<64x32xbf16>, vector<128x32xf32> -> vector<128x32xf32>
    %c169 = arith.constant 169 : index
    %c0_131 = arith.constant 0 : index
    %334 = vector.load %arg3[%c169, %c0_131] : memref<184x128xf32, #tpu.memory_space<vmem>>, vector<1x32xf32>
    %335 = vector.broadcast %334 : vector<1x32xf32> to vector<128x32xf32>
    %336 = arith.addf %333, %335 : vector<128x32xf32>
    %cst_132 = arith.constant 0.000000e+00 : f32
    %337 = vector.broadcast %cst_132 : f32 to vector<128x32xf32>
    %338 = arith.maximumf %336, %337 : vector<128x32xf32>
    %c170 = arith.constant 170 : index
    %c0_133 = arith.constant 0 : index
    %339 = vector.load %arg3[%c170, %c0_133] : memref<184x128xf32, #tpu.memory_space<vmem>>, vector<8x32xf32>
    %cst_134 = arith.constant dense<0.000000e+00> : vector<8x128xf32>
    %340 = tpu.matmul %339, %338, %cst_134 {dimension_numbers = #tpu.dot_dimension_numbers<[1], [1], [0], [0], [0, 0, 1, 0], [], []>} : vector<8x32xf32>, vector<128x32xf32>, vector<8x128xf32> -> vector<8x128xf32>
    %341 = vector.extract_strided_slice %340 {offsets = [0, 0], sizes = [1, 128], strides = [1, 1]} : vector<8x128xf32> to vector<1x128xf32>
    %c178 = arith.constant 178 : index
    %c0_135 = arith.constant 0 : index
    %342 = vector.load %arg3[%c178, %c0_135] : memref<184x128xf32, #tpu.memory_space<vmem>>, vector<1x1xf32>
    %343 = vector.broadcast %342 : vector<1x1xf32> to vector<1x128xf32>
    %344 = arith.addf %341, %343 : vector<1x128xf32>
    %c0_136 = arith.constant 0 : index
    %c0_137 = arith.constant 0 : index
    %c0_138 = arith.constant 0 : index
    %345 = vector.load %arg5[%c0_136, %c0_137, %c0_138] : memref<1x1x128xf32, #tpu.memory_space<vmem>>, vector<1x1x128xf32>
    %346 = vector.shape_cast %345 : vector<1x1x128xf32> to vector<1x128xf32>
    %347 = vector.shape_cast %344 : vector<1x128xf32> to vector<1x1x128xf32>
    tpu.vector_store %arg5[%c0_136, %c0_137, %c0_138], %347 {strides = array<i32>} : memref<1x1x128xf32, #tpu.memory_space<vmem>>, vector<1x1x128xf32>,
    %348 = vector.extract_strided_slice %16 {offsets = [0, 0], sizes = [8, 32], strides = [1, 1]} : vector<32x32xf32> to vector<8x32xf32>
    %cst_139 = arith.constant dense<0.000000e+00> : vector<8x32xf32>
    %349 = tpu.matmul %348, %265, %cst_139 {dimension_numbers = #tpu.dot_dimension_numbers<[1], [1], [0], [0], [0, 0, 1, 0], [], []>} : vector<8x32xf32>, vector<32x32xf32>, vector<8x32xf32> -> vector<8x32xf32>
    %350 = vector.extract_strided_slice %349 {offsets = [0, 0], sizes = [1, 32], strides = [1, 1]} : vector<8x32xf32> to vector<1x32xf32>
    %cst_140 = arith.constant dense<0.000000e+00> : vector<8x32xf32>
    %351 = tpu.matmul %348, %274, %cst_140 {dimension_numbers = #tpu.dot_dimension_numbers<[1], [1], [0], [0], [0, 0, 1, 0], [], []>} : vector<8x32xf32>, vector<32x32xf32>, vector<8x32xf32> -> vector<8x32xf32>
    %352 = vector.extract_strided_slice %351 {offsets = [0, 0], sizes = [1, 32], strides = [1, 1]} : vector<8x32xf32> to vector<1x32xf32>
    %cst_141 = arith.constant dense<0.000000e+00> : vector<8x32xf32>
    %353 = tpu.matmul %348, %283, %cst_141 {dimension_numbers = #tpu.dot_dimension_numbers<[1], [1], [0], [0], [0, 0, 1, 0], [], []>} : vector<8x32xf32>, vector<32x32xf32>, vector<8x32xf32> -> vector<8x32xf32>
    %354 = vector.extract_strided_slice %353 {offsets = [0, 0], sizes = [1, 32], strides = [1, 1]} : vector<8x32xf32> to vector<1x32xf32>
    %cst_142 = arith.constant dense<0.000000e+00> : vector<8x32xf32>
    %355 = tpu.matmul %348, %292, %cst_142 {dimension_numbers = #tpu.dot_dimension_numbers<[1], [1], [0], [0], [0, 0, 1, 0], [], []>} : vector<8x32xf32>, vector<32x32xf32>, vector<8x32xf32> -> vector<8x32xf32>
    %356 = vector.extract_strided_slice %355 {offsets = [0, 0], sizes = [1, 32], strides = [1, 1]} : vector<8x32xf32> to vector<1x32xf32>
    %357 = tpu.concatenate %350, %352, %354, %356 in 0 : vector<1x32xf32>, vector<1x32xf32>, vector<1x32xf32>, vector<1x32xf32> -> vector<4x32xf32>
    %358 = arith.fptosi %357 : vector<4x32xf32> to vector<4x32xi32>
    %c0_143 = arith.constant 0 : index
    %c0_144 = arith.constant 0 : index
    %c0_145 = arith.constant 0 : index
    %359 = vector.load %arg6[%c0_143, %c0_144, %c0_145] : memref<1x4x32xi32, #tpu.memory_space<vmem>>, vector<1x4x32xi32>
    %360 = vector.shape_cast %359 : vector<1x4x32xi32> to vector<4x32xi32>
    %361 = vector.shape_cast %358 : vector<4x32xi32> to vector<1x4x32xi32>
    tpu.vector_store %arg6[%c0_143, %c0_144, %c0_145], %361 {strides = array<i32>} : memref<1x4x32xi32, #tpu.memory_space<vmem>>, vector<1x4x32xi32>,
    return
  }
  func.func @transform_0(%arg0: i32) -> (i32, i32, i32) {
    %c0_i32 = arith.constant 0 : i32
    %c0_i32_0 = arith.constant 0 : i32
    %c0_i32_1 = arith.constant 0 : i32
    return %arg0, %c0_i32, %c0_i32_0 : i32, i32, i32
  }
  func.func @transform_1(%arg0: i32) -> (i32, i32, i32) {
    %c0_i32 = arith.constant 0 : i32
    %c0_i32_0 = arith.constant 0 : i32
    %c0_i32_1 = arith.constant 0 : i32
    return %arg0, %c0_i32, %c0_i32_0 : i32, i32, i32
  }
  func.func @transform_2(%arg0: i32) -> (i32, i32) {
    %c0_i32 = arith.constant 0 : i32
    %c0_i32_0 = arith.constant 0 : i32
    %c0_i32_1 = arith.constant 0 : i32
    return %c0_i32, %c0_i32_0 : i32, i32
  }
  func.func @transform_3(%arg0: i32) -> (i32, i32) {
    %c0_i32 = arith.constant 0 : i32
    %c0_i32_0 = arith.constant 0 : i32
    %c0_i32_1 = arith.constant 0 : i32
    return %c0_i32, %c0_i32_0 : i32, i32
  }
  func.func @transform_4(%arg0: i32) -> (i32, i32, i32) {
    %c0_i32 = arith.constant 0 : i32
    %c0_i32_0 = arith.constant 0 : i32
    %c0_i32_1 = arith.constant 0 : i32
    return %arg0, %c0_i32, %c0_i32_0 : i32, i32, i32
  }
  func.func @transform_5(%arg0: i32) -> (i32, i32, i32) {
    %c0_i32 = arith.constant 0 : i32
    %c0_i32_0 = arith.constant 0 : i32
    %c0_i32_1 = arith.constant 0 : i32
    return %arg0, %c0_i32, %c0_i32_0 : i32, i32, i32
  }
}

</mosaic_0001>

<llo_original>
// kernel: tile.9
$region0: #{tile.9}
  %s0 = inlined_call_operand.vmem [shape: s32[4,32], index: 0, kind: input, shape index: {}]
  %s1 = inlined_call_operand.vmem [shape: s32[128], index: 1, kind: output, shape index: {}]
  $region1: #{tile.9} parent=0
    #allocation0 [shape = 'u8[4096]{0}', space=vmem, size = 0x1000, scoped, tag = 'scoped mem for output reshape']
    #allocation1 [shape = 'u8[4096]{0}', space=vmem, size = 0x1000, scoped, tag = 'scoped mem for input reshape']
    %s3 = sshllo.u32 0, 4
    %v4 = vld [vmem:[%s0] sm:%s3]
    %5 = vst [vmem:[#allocation1] sm:%s3] %v4
    %v6 = vld [vmem:[#allocation1] sm:$0x1]
    %vm7 = vcmask 261120
    %8 = vst.msk [vmem:[#allocation0] sm:$0x1] %vm7, %v6
    %s9 = scalar_lea.vmem [#allocation1], 3
    %v10 = vld [vmem:[%s9] sm:$0x1]
    %11 = vrot.lane.b32.xlu0 %v10, 96
    %v12 = vpop.permute.xlu0 %11
    %vm13 = vcmask 1048320
    %14 = vst.msk [vmem:[#allocation0] sm:$0x1] %vm13, %v12
    %s15 = scalar_lea.vmem [#allocation1], 2
    %v16 = vld [vmem:[%s15] sm:$0x1]
    %17 = vrot.lane.b32.xlu0 %v16, 64
    %v18 = vpop.permute.xlu0 %17
    %vm19 = vcmask 785920
    %20 = vst.msk [vmem:[#allocation0] sm:$0x1] %vm19, %v18
    %s21 = scalar_lea.vmem [#allocation1], 1
    %v22 = vld [vmem:[%s21] sm:$0x1]
    %23 = vrot.lane.b32.xlu0 %v22, 32
    %v24 = vpop.permute.xlu0 %23
    %vm25 = vcmask 523520
    %26 = vst.msk [vmem:[#allocation0] sm:$0x1] %vm25, %v24
    %s28 = sshllo.u32 0, 1
    %v30 = vld [vmem:[#allocation0] sm:%s28]
    %s31 = sshllo.u32 0, 1
    %32 = vst [vmem:[%s1] sm:%s31] %v30

// kernel: squeeze.8
$region0: #{squeeze.8}
  %s0 = inlined_call_operand.vmem [shape: s32[1,4,32], index: 0, kind: input, shape index: {}]
  %s1 = inlined_call_operand.hbm [shape: s32[128], index: 1, kind: output, shape index: {}]
  $region1: #{squeeze.8} parent=0
    #allocation0 [shape = 'u8[512]{0}', space=vmem, size = 0x400, scoped, tag = 'operand span for operand 1']
    #allocation1 [shape = 's32[1]{0}', space=sflag, size = 0x4, scoped, tag = 'scoped memory for squeeze.8']
    #allocation2 [shape = 'u8[4096]{0}', space=vmem, size = 0x1000, scoped, tag = 'scoped mem for output reshape']
    #allocation3 [shape = 'u8[4096]{0}', space=vmem, size = 0x1000, scoped, tag = 'scoped mem for input reshape']
    %2 = vsyncpa [#allocation1], 0
    %s4 = sshllo.u32 0, 4
    %v5 = vld [vmem:[%s0] sm:%s4]
    %6 = vst [vmem:[#allocation3] sm:%s4] %v5
    %v7 = vld [vmem:[#allocation3] sm:$0x1]
    %vm8 = vcmask 261120
    %9 = vst.msk [vmem:[#allocation2] sm:$0x1] %vm8, %v7
    %s10 = scalar_lea.vmem [#allocation3], 3
    %v11 = vld [vmem:[%s10] sm:$0x1]
    %12 = vrot.lane.b32.xlu0 %v11, 96
    %v13 = vpop.permute.xlu0 %12
    %vm14 = vcmask 1048320
    %15 = vst.msk [vmem:[#allocation2] sm:$0x1] %vm14, %v13
    %s16 = scalar_lea.vmem [#allocation3], 2
    %v17 = vld [vmem:[%s16] sm:$0x1]
    %18 = vrot.lane.b32.xlu0 %v17, 64
    %v19 = vpop.permute.xlu0 %18
    %vm20 = vcmask 785920
    %21 = vst.msk [vmem:[#allocation2] sm:$0x1] %vm20, %v19
    %s22 = scalar_lea.vmem [#allocation3], 1
    %v23 = vld [vmem:[%s22] sm:$0x1]
    %24 = vrot.lane.b32.xlu0 %v23, 32
    %v25 = vpop.permute.xlu0 %24
    %vm26 = vcmask 523520
    %27 = vst.msk [vmem:[#allocation2] sm:$0x1] %vm26, %v25
    %s29 = sshllo.u32 0, 1
    %v31 = vld [vmem:[#allocation2] sm:%s29]
    %s32 = sshllo.u32 0, 1
    %33 = vst [vmem:[#allocation0] sm:%s32] %v31
    %s35 = ssub.s32 16, 16
    %36 = vsyncadd [#allocation1], %s35
    %s38 = sshll.u32 [#allocation0], 4
    %s39 = int_to_ptr.vmem [resolvable:$true] %s38
    %41 = dma.vmem_to_hbm [thread:$0]  %s39, 16, %s1, [#allocation1]
    %42 = dma.done [#allocation1], 16
    %43 = vsyncpa [#allocation1], 1

// kernel: forward.1
$region0: #{forward.1}
  #allocation0 [shape = 'u32[]', space=smem, size = 0x4, offset = 0x4, fixed_abs, tag = 'smem constant byte address 0x4 - core index']
  #allocation1 [shape = 'u32[144,128]{1,0:T(1,128)}', space=vmem, size = 0x12000, scoped, tag = 'internal scratch']
  %s0 = inlined_call_operand.vmem [shape: f32[4,32,3], index: 0, kind: input, shape index: {}]
  %s1 = inlined_call_operand.vmem [shape: f32[4,32,2], index: 1, kind: input, shape index: {}]
  %s2 = inlined_call_operand.vmem [shape: f32[184,128], index: 2, kind: input, shape index: {}]
  %s3 = inlined_call_operand.hbm [shape: bf16[1248,128], index: 3, kind: input, shape index: {}]
  %s4 = inlined_call_operand.hbm [shape: f32[4,1,128], index: 4, kind: output, shape index: {0}]
  %s5 = inlined_call_operand.vmem [shape: s32[4,4,32], index: 5, kind: output, shape index: {1}]
  %6 = xla_tuple %s4, %s5
  %s7 = sld [smem:[#allocation0]]
  $region61: #{forward.1} parent=0
    _
  %s9 = ssub.s32 1, %s7
  %s10 = scalar_select 0, %s9, %s7
  $region1: #{forward.1} parent=0
    #allocation2 [shape = 'u8[319488]{0}', space=vmem, size = 0x4e000, scoped, tag = 'input window, operand 3, single buffered']
    #allocation3 [shape = 's32[2]{0}', space=sflag, size = 0x8, scoped, tag = 'scoped memory for forward.1']
    #allocation4 [shape = 's32[2]{0}', space=sflag, size = 0x8, scoped, tag = 'scoped memory for forward.1']
    #allocation5 [shape = 'u8[1024]{0}', space=vmem, size = 0x400, scoped, tag = 'output window, operand 0']
    %11 = vsyncpa [#allocation3], 0
    %12 = vsyncpa [#allocation4], 0
    %s13 = scalar_lea.sflag [#allocation4], 1
    %14 = vsyncpa %s13, 0
    loop: start=0, step=1, limit=6
    $region2: #{forward.1} parent=1 // loop_pre_header
      _
    $region3: #{forward.1} parent=1 // loop_header
      %s16 = sphi 0, %s20
      %p17 = scmp.ge.s32.totalorder %s16, 6
      %s26 = sphi 0, %s28
      %s29 = sphi 0, %s26
      %s30 = sphi 0, %s29
      %s46 = sphi 0, %s30
      %s52 = sphi 0, %s54
      %s55 = sphi 0, %s52
      %s56 = sphi 0, %s55
      %s72 = sphi 0, %s56
      %s76 = sphi 0, %s76
      %s78 = sphi 0, %s76
      %s79 = sphi 0, %s78
      %s93 = sphi 0, %s79
      %s97 = sphi 0, %s97
      %s99 = sphi 0, %s97
      %s100 = sphi 0, %s99
      %s114 = sphi 0, %s100
      %s120 = sphi 0, %s122
      %s123 = sphi 0, %s120
      %s124 = sphi 0, %s123
      %s140 = sphi 0, %s124
      %s146 = sphi 0, %s148
      %s149 = sphi 0, %s146
      %s150 = sphi 0, %s149
      %s166 = sphi 0, %s150
    $region4: #{forward.1} parent=1 // loop_header_branch
      %19 = sbr.rel (%p17) target = $region8
    $region5: #{forward.1} parent=1 // loop_body
      %s21 = ssub.s32 %s16, 1
      %s22 = ssub.s32 %s16, 2
      %s23 = sadd.s32 %s16, 1
      %s24 = ssub.s32 %s16, %s23
      %p25 = scmp.eq.s32.totalorder %s24, 0
      %s27 = sadd.s32 %s26, 1
      %s28 = scalar_select %p25, %s26, %s27
      %p31 = pneg %p25
      %p32 = scmp.eq.s32.totalorder %s16, 3
      %p33 = por %p31, %p32
      %p34 = scmp.ne.s32.totalorder %s26, %s29
      %p35 = scmp.eq.s32.totalorder %s16, 0
      %p36 = por %p34, %p35
      %p37 = scmp.ne.s32.totalorder %s26, %s29
      %p38 = scmp.eq.s32.totalorder %s21, 3
      %p39 = por %p37, %p38
      %p40 = scmp.ne.s32.totalorder %s29, %s30
      %p41 = scmp.eq.s32.totalorder %s21, 0
      %p42 = por %p40, %p41
      %p43 = scmp.ne.s32.totalorder %s29, %s30
      %p44 = scmp.eq.s32.totalorder %s22, 3
      %p45 = por %p43, %p44
      %p47 = scmp.ne.s32.totalorder %s30, %s46
      %p48 = scmp.eq.s32.totalorder %s22, 0
      %p49 = por %p47, %p48
      %s50 = ssub.s32 %s16, %s23
      %p51 = scmp.eq.s32.totalorder %s50, 0
      %s53 = sadd.s32 %s52, 1
      %s54 = scalar_select %p51, %s52, %s53
      %p57 = pneg %p51
      %p58 = scmp.eq.s32.totalorder %s16, 3
      %p59 = por %p57, %p58
      %p60 = scmp.ne.s32.totalorder %s52, %s55
      %p61 = scmp.eq.s32.totalorder %s16, 0
      %p62 = por %p60, %p61
      %p63 = scmp.ne.s32.totalorder %s52, %s55
      %p64 = scmp.eq.s32.totalorder %s21, 3
      %p65 = por %p63, %p64
      %p66 = scmp.ne.s32.totalorder %s55, %s56
      %p67 = scmp.eq.s32.totalorder %s21, 0
      %p68 = por %p66, %p67
      %p69 = scmp.ne.s32.totalorder %s55, %s56
      %p70 = scmp.eq.s32.totalorder %s22, 3
      %p71 = por %p69, %p70
      %p73 = scmp.ne.s32.totalorder %s56, %s72
      %p74 = scmp.eq.s32.totalorder %s22, 0
      %p75 = por %p73, %p74
      %s77 = sadd.s32 %s76, 1
      %p80 = scmp.eq.s32.totalorder %s16, 3
      %p81 = scmp.ne.s32.totalorder %s76, %s78
      %p82 = scmp.eq.s32.totalorder %s16, 0
      %p83 = por %p81, %p82
      %p84 = scmp.ne.s32.totalorder %s76, %s78
      %p85 = scmp.eq.s32.totalorder %s21, 3
      %p86 = por %p84, %p85
      %p87 = scmp.ne.s32.totalorder %s78, %s79
      %p88 = scmp.eq.s32.totalorder %s21, 0
      %p89 = por %p87, %p88
      %p90 = scmp.ne.s32.totalorder %s78, %s79
      %p91 = scmp.eq.s32.totalorder %s22, 3
      %p92 = por %p90, %p91
      %p94 = scmp.ne.s32.totalorder %s79, %s93
      %p95 = scmp.eq.s32.totalorder %s22, 0
      %p96 = por %p94, %p95
      %s98 = sadd.s32 %s97, 1
      %p101 = scmp.eq.s32.totalorder %s16, 3
      %p102 = scmp.ne.s32.totalorder %s97, %s99
      %p103 = scmp.eq.s32.totalorder %s16, 0
      %p104 = por %p102, %p103
      %p105 = scmp.ne.s32.totalorder %s97, %s99
      %p106 = scmp.eq.s32.totalorder %s21, 3
      %p107 = por %p105, %p106
      %p108 = scmp.ne.s32.totalorder %s99, %s100
      %p109 = scmp.eq.s32.totalorder %s21, 0
      %p110 = por %p108, %p109
      %p111 = scmp.ne.s32.totalorder %s99, %s100
      %p112 = scmp.eq.s32.totalorder %s22, 3
      %p113 = por %p111, %p112
      %p115 = scmp.ne.s32.totalorder %s100, %s114
      %p116 = scmp.eq.s32.totalorder %s22, 0
      %p117 = por %p115, %p116
      %s118 = ssub.s32 %s16, %s23
      %p119 = scmp.eq.s32.totalorder %s118, 0
      %s121 = sadd.s32 %s120, 1
      %s122 = scalar_select %p119, %s120, %s121
      %p125 = pneg %p119
      %p126 = scmp.eq.s32.totalorder %s16, 3
      %p127 = por %p125, %p126
      %p128 = scmp.ne.s32.totalorder %s120, %s123
      %p129 = scmp.eq.s32.totalorder %s16, 0
      %p130 = por %p128, %p129
      %p131 = scmp.ne.s32.totalorder %s120, %s123
      %p132 = scmp.eq.s32.totalorder %s21, 3
      %p133 = por %p131, %p132
      %p134 = scmp.ne.s32.totalorder %s123, %s124
      %p135 = scmp.eq.s32.totalorder %s21, 0
      %p136 = por %p134, %p135
      %p137 = scmp.ne.s32.totalorder %s123, %s124
      %p138 = scmp.eq.s32.totalorder %s22, 3
      %p139 = por %p137, %p138
      %p141 = scmp.ne.s32.totalorder %s124, %s140
      %p142 = scmp.eq.s32.totalorder %s22, 0
      %p143 = por %p141, %p142
      %s144 = ssub.s32 %s16, %s23
      %p145 = scmp.eq.s32.totalorder %s144, 0
      %s147 = sadd.s32 %s146, 1
      %s148 = scalar_select %p145, %s146, %s147
      %p151 = pneg %p145
      %p152 = scmp.eq.s32.totalorder %s16, 3
      %p153 = por %p151, %p152
      %p154 = scmp.ne.s32.totalorder %s146, %s149
      %p155 = scmp.eq.s32.totalorder %s16, 0
      %p156 = por %p154, %p155
      %p157 = scmp.ne.s32.totalorder %s146, %s149
      %p158 = scmp.eq.s32.totalorder %s21, 3
      %p159 = por %p157, %p158
      %p160 = scmp.ne.s32.totalorder %s149, %s150
      %p161 = scmp.eq.s32.totalorder %s21, 0
      %p162 = por %p160, %p161
      %p163 = scmp.ne.s32.totalorder %s149, %s150
      %p164 = scmp.eq.s32.totalorder %s22, 3
      %p165 = por %p163, %p164
      %p167 = scmp.ne.s32.totalorder %s150, %s166
      %p168 = scmp.eq.s32.totalorder %s22, 0
      %p169 = por %p167, %p168
      %p170 = scmp.le.s32.totalorder 1, %s16
      %p171 = scmp.lt.s32.totalorder %s16, 5
      %p172 = pnand %p170, %p171
      %p173 = pneg %p172
      // Predicated region
      $region9: #{forward.1} parent=5 // pred_check
        _
      $region10: #{forward.1} parent=5 // pred_check_branch
        %175 = sbr.rel (%p172) target = $region12
      $region11: #{forward.1} parent=5 // pred_region
        %s176 = ssub.s32 %s16, 1
        // Predicated region
        $region13: #{forward.1} parent=11 // pred_check
          %p177 = pneg %p89
        $region14: #{forward.1} parent=11 // pred_check_branch
          %179 = sbr.rel (%p177) target = $region16
        $region15: #{forward.1} parent=11 // pred_region
          _
        $region16: #{forward.1} parent=11 // pred_fallthru
          _
        // Predicated region
        $region17: #{forward.1} parent=11 // pred_check
          %p180 = pneg %p110
        $region18: #{forward.1} parent=11 // pred_check_branch
          %182 = sbr.rel (%p180) target = $region20
        $region19: #{forward.1} parent=11 // pred_region
          %s184 = ssub.s32 9984, 9984
          %185 = vsyncadd [#allocation3], %s184
          %s186 = sshll.u32 [#allocation2], 4
          %s187 = int_to_ptr.vmem [resolvable:$true] %s186
          %192 = dma.hbm_to_vmem [thread:$0]  %s3, 9984, %s187, [#allocation3], 64, 64, 4
        $region20: #{forward.1} parent=11 // pred_fallthru
          _
      $region12: #{forward.1} parent=5 // pred_fallthru
        _
      %p193 = scmp.lt.s32.totalorder %s16, 4
      // Predicated region
      $region21: #{forward.1} parent=5 // pred_check
        %p194 = pneg %p193
      $region22: #{forward.1} parent=5 // pred_check_branch
        %196 = sbr.rel (%p194) target = $region24
      $region23: #{forward.1} parent=5 // pred_region
        // Predicated region
        $region25: #{forward.1} parent=23 // pred_check
          %p197 = pneg %p36
        $region26: #{forward.1} parent=23 // pred_check_branch
          %199 = sbr.rel (%p197) target = $region28
        $region27: #{forward.1} parent=23 // pred_region
          %p200 = scmp.lt.s32.totalorder %s16, 3
          %s201 = scalar_select %p200, %s16, 3
          %s202 = smul.addr %s201, 4
          %s203 = smul.addr %s202, 8
          %s204 = scalar_lea.vmem %s0, %s203
        $region28: #{forward.1} parent=23 // pred_fallthru
          _
        // Predicated region
        $region29: #{forward.1} parent=23 // pred_check
          %p205 = pneg %p62
        $region30: #{forward.1} parent=23 // pred_check_branch
          %207 = sbr.rel (%p205) target = $region32
        $region31: #{forward.1} parent=23 // pred_region
          %p208 = scmp.lt.s32.totalorder %s16, 3
          %s209 = scalar_select %p208, %s16, 3
          %s210 = smul.addr %s209, 4
          %s211 = smul.addr %s210, 8
          %s212 = scalar_lea.vmem %s1, %s211
        $region32: #{forward.1} parent=23 // pred_fallthru
          _
      $region24: #{forward.1} parent=5 // pred_fallthru
        _
      %p213 = scmp.le.s32.totalorder 1, %s16
      %p214 = scmp.lt.s32.totalorder %s16, 5
      %p215 = pnand %p213, %p214
      %p216 = pneg %p215
      // Predicated region
      $region33: #{forward.1} parent=5 // pred_check
        _
      $region34: #{forward.1} parent=5 // pred_check_branch
        %218 = sbr.rel (%p215) target = $region36
      $region35: #{forward.1} parent=5 // pred_region
        %s219 = ssub.s32 %s16, 1
        // Predicated region
        $region37: #{forward.1} parent=35 // pred_check
          %p220 = pneg %p110
        $region38: #{forward.1} parent=35 // pred_check_branch
          %222 = sbr.rel (%p220) target = $region40
        $region39: #{forward.1} parent=35 // pred_region
          %223 = dma.done [#allocation3], 9984
        $region40: #{forward.1} parent=35 // pred_fallthru
          _
        %p224 = scmp.lt.s32.totalorder %s21, 3
        %s225 = scalar_select %p224, %s21, 3
        %s226 = smul.addr %s225, 4
        %s227 = smul.addr %s226, 8
        %s228 = scalar_lea.vmem %s0, %s227
        %p229 = pneg %p42
        %p230 = pneg %p39
        %p231 = scmp.lt.s32.totalorder %s21, 3
        %s232 = scalar_select %p231, %s21, 3
        %s233 = smul.addr %s232, 4
        %s234 = smul.addr %s233, 8
        %s235 = scalar_lea.vmem %s1, %s234
        %p236 = pneg %p68
        %p237 = pneg %p65
        %p238 = pneg %p89
        %p239 = pneg %p86
        %p240 = pneg %p110
        %p241 = pneg %p107
        %p242 = pneg %p136
        %p243 = pneg %p133
        %s244 = sand.u32 %s123, 1
        %s245 = scalar_lea.sflag [#allocation4], %s244
        %s246 = sand.u32 %s123, 1
        %s247 = scalar_lea.vmem [#allocation5], %s246
        %p248 = pneg %p162
        %p249 = pneg %p159
        %p250 = scmp.lt.s32.totalorder %s21, 3
        %s251 = scalar_select %p250, %s21, 3
        %s252 = smul.addr %s251, 4
        %s253 = scalar_lea.vmem %s5, %s252
        %p254 = scmp.lt.s32.totalorder %s21, 3
        %s255 = scalar_select %p254, %s21, 3
        %s256 = smul.addr %s255, 4
        %s257 = smul.addr %s256, 8
        %s258 = scalar_lea.vmem %s0, %s257
        %p259 = scmp.lt.s32.totalorder %s21, 3
        %s260 = scalar_select %p259, %s21, 3
        %s261 = smul.addr %s260, 4
        %s262 = smul.addr %s261, 8
        %s263 = scalar_lea.vmem %s1, %s262
        %p264 = scmp.lt.s32.totalorder %s21, 3
        %s265 = scalar_select %p264, %s21, 3
        %s266 = smul.addr %s265, 4
        %s267 = scalar_lea.vmem %s5, %s266
        %v269 = vld [vmem:[%s258] sm:$0xff]
        %v270 = vld [vmem:[%s258 + $0x8] sm:$0xff]
        %v271 = vld [vmem:[%s258 + $0x10] sm:$0xff]
        %v272 = vld [vmem:[%s258 + $0x18] sm:$0xff]
        %v273 = vld [vmem:[%s263] sm:$0xff]
        %v274 = vld [vmem:[%s263 + $0x8] sm:$0xff]
        %v275 = vld [vmem:[%s263 + $0x10] sm:$0xff]
        %v276 = vld [vmem:[%s263 + $0x18] sm:$0xff]
        %v277 = vld [vmem:[%s2] sm:$0x7]
        %v278 = vld [vmem:[%s2 + $0x3] sm:$0x1]
        %v279 = vlaneseq
        %v280 = vshrl.u32 %v279, 7
        %v281 = vsub.s32 0, %v280
        %v282 = vrot.slane %v278, %v281
        %vm283 = vcmask 23552
        %v285 = vsel %vm283, %v269, 0
        %v288 = vsel %vm283, %v270, 0
        %v291 = vsel %vm283, %v271, 0
        %v294 = vsel %vm283, %v272, 0
        %vm296 = vcmask 1042432
        %v298 = vsel %vm296, %v277, 0
        %300 = vmatprep.subr.mxu0 0.0
        %301 = vmatpush1.msra.mxu0 %v298
        %302 = vmatprep.subr.mxu0 0.0
        %303 = vmatpush1.msra.mxu0 0.0
        %304 = vmatprep.subr.mxu0 0.0
        %305 = vmatpush1.msra.mxu0 0.0
        %306 = vmatprep.subr.mxu0 0.0
        %307 = vmatpush1.msra.mxu0 0.0
        %308 = vmatprep.subr.mxu0 0.0
        %309 = vmatpush1.msra.mxu0 0.0
        %310 = vmatprep.subr.mxu0 0.0
        %311 = vmatpush1.msra.mxu0 0.0
        %312 = vmatprep.subr.mxu0 0.0
        %313 = vmatpush1.msra.mxu0 0.0
        %314 = vmatprep.subr.mxu0 0.0
        %315 = vmatpush1.msra.mxu0 0.0
        %316 = vmatprep.subr.mxu0 0.0
        %317 = vmatpush1.msra.mxu0 0.0
        %318 = vmatprep.subr.mxu0 0.0
        %319 = vmatpush1.msra.mxu0 0.0
        %320 = vmatprep.subr.mxu0 0.0
        %321 = vmatpush1.msra.mxu0 0.0
        %322 = vmatprep.subr.mxu0 0.0
        %323 = vmatpush1.msra.mxu0 0.0
        %324 = vmatprep.subr.mxu0 0.0
        %325 = vmatpush1.msra.mxu0 0.0
        %326 = vmatprep.subr.mxu0 0.0
        %327 = vmatpush1.msra.mxu0 0.0
        %328 = vmatprep.subr.mxu0 0.0
        %329 = vmatpush1.msra.mxu0 0.0
        %330 = vmatprep.subr.mxu0 0.0
        %331 = vmatpush1.msra.mxu0 0.0
        %332 = vmatprep.subr.mxu0 0.0
        %333 = vmatpush1.msra.mxu0 0.0
        %334 = vmatprep.subr.mxu0 0.0
        %335 = vmatpush1.msra.mxu0 0.0
        %336 = vmatprep.subr.mxu0 0.0
        %337 = vmatpush1.msra.mxu0 0.0
        %338 = vmatprep.subr.mxu0 0.0
        %339 = vmatpush1.msra.mxu0 0.0
        %340 = vmatprep.subr.mxu0 0.0
        %341 = vmatpush1.msra.mxu0 0.0
        %342 = vmatprep.subr.mxu0 0.0
        %343 = vmatpush1.msra.mxu0 0.0
        %344 = vmatprep.subr.mxu0 0.0
        %345 = vmatpush1.msra.mxu0 0.0
        %346 = vmatprep.subr.mxu0 0.0
        %347 = vmatpush1.msra.mxu0 0.0
        %348 = vmatprep.subr.mxu0 0.0
        %349 = vmatpush1.msra.mxu0 0.0
        %350 = vmatprep.subr.mxu0 0.0
        %351 = vmatpush1.msra.mxu0 0.0
        %352 = vmatprep.subr.mxu0 0.0
        %353 = vmatpush1.msra.mxu0 0.0
        %354 = vmatprep.subr.mxu0 0.0
        %355 = vmatpush1.msra.mxu0 0.0
        %356 = vmatprep.subr.mxu0 0.0
        %357 = vmatpush1.msra.mxu0 0.0
        %358 = vmatprep.subr.mxu0 0.0
        %359 = vmatpush1.msra.mxu0 0.0
        %360 = vmatprep.subr.mxu0 0.0
        %361 = vmatpush1.msra.mxu0 0.0
        %362 = vmatprep.subr.mxu0 0.0
        %363 = vmatpush1.msra.mxu0 0.0
        %364 = vmatprep.mubr.f32.mxu0 0.0
        %365 = vmatmul.mubr.f32.gmra.mrb[0].mxu0 %v285
        %v366 = vpop.f32.mrb[0].mxu0
        %v367 = vadd.f32 %v282, %v366
        %v368 = vpop.f32.mrb[0].mxu0
        %369 = vmatprep.mubr.f32.mxu0 0.0
        %370 = vmatmul.mubr.f32.gmra.mrb[0].mxu0 %v288
        %v371 = vpop.f32.mrb[0].mxu0
        %v372 = vadd.f32 %v282, %v371
        %v373 = vpop.f32.mrb[0].mxu0
        %374 = vmatprep.mubr.f32.mxu0 0.0
        %375 = vmatmul.mubr.f32.gmra.mrb[0].mxu0 %v291
        %v376 = vpop.f32.mrb[0].mxu0
        %v377 = vadd.f32 %v282, %v376
        %v378 = vpop.f32.mrb[0].mxu0
        %379 = vmatprep.mubr.f32.mxu0 0.0
        %380 = vmatmul.mubr.f32.gmra.mrb[0].mxu0 %v294
        %v381 = vpop.f32.mrb[0].mxu0
        %v382 = vadd.f32 %v282, %v381
        %v383 = vpop.f32.mrb[0].mxu0
        %384 = vdwg.mxu0
        %v385 = vld [vmem:[%s2 + $0x4] sm:$0x3]
        %v386 = vld [vmem:[%s2 + $0x6] sm:$0x1]
        %v387 = vlaneseq
        %v388 = vshrl.u32 %v387, 7
        %v389 = vsub.s32 0, %v388
        %v390 = vrot.slane %v386, %v389
        %vm391 = vcmask 15360
        %v393 = vsel %vm391, %v273, 0
        %v396 = vsel %vm391, %v274, 0
        %v399 = vsel %vm391, %v275, 0
        %v402 = vsel %vm391, %v276, 0
        %vm404 = vcmask 1041408
        %v406 = vsel %vm404, %v385, 0
        %408 = vmatprep.subr.mxu0 0.0
        %409 = vmatpush1.msra.mxu0 %v406
        %410 = vmatprep.subr.mxu0 0.0
        %411 = vmatpush1.msra.mxu0 0.0
        %412 = vmatprep.subr.mxu0 0.0
        %413 = vmatpush1.msra.mxu0 0.0
        %414 = vmatprep.subr.mxu0 0.0
        %415 = vmatpush1.msra.mxu0 0.0
        %416 = vmatprep.subr.mxu0 0.0
        %417 = vmatpush1.msra.mxu0 0.0
        %418 = vmatprep.subr.mxu0 0.0
        %419 = vmatpush1.msra.mxu0 0.0
        %420 = vmatprep.subr.mxu0 0.0
        %421 = vmatpush1.msra.mxu0 0.0
        %422 = vmatprep.subr.mxu0 0.0
        %423 = vmatpush1.msra.mxu0 0.0
        %424 = vmatprep.subr.mxu0 0.0
        %425 = vmatpush1.msra.mxu0 0.0
        %426 = vmatprep.subr.mxu0 0.0
        %427 = vmatpush1.msra.mxu0 0.0
        %428 = vmatprep.subr.mxu0 0.0
        %429 = vmatpush1.msra.mxu0 0.0
        %430 = vmatprep.subr.mxu0 0.0
        %431 = vmatpush1.msra.mxu0 0.0
        %432 = vmatprep.subr.mxu0 0.0
        %433 = vmatpush1.msra.mxu0 0.0
        %434 = vmatprep.subr.mxu0 0.0
        %435 = vmatpush1.msra.mxu0 0.0
        %436 = vmatprep.subr.mxu0 0.0
        %437 = vmatpush1.msra.mxu0 0.0
        %438 = vmatprep.subr.mxu0 0.0
        %439 = vmatpush1.msra.mxu0 0.0
        %440 = vmatprep.subr.mxu0 0.0
        %441 = vmatpush1.msra.mxu0 0.0
        %442 = vmatprep.subr.mxu0 0.0
        %443 = vmatpush1.msra.mxu0 0.0
        %444 = vmatprep.subr.mxu0 0.0
        %445 = vmatpush1.msra.mxu0 0.0
        %446 = vmatprep.subr.mxu0 0.0
        %447 = vmatpush1.msra.mxu0 0.0
        %448 = vmatprep.subr.mxu0 0.0
        %449 = vmatpush1.msra.mxu0 0.0
        %450 = vmatprep.subr.mxu0 0.0
        %451 = vmatpush1.msra.mxu0 0.0
        %452 = vmatprep.subr.mxu0 0.0
        %453 = vmatpush1.msra.mxu0 0.0
        %454 = vmatprep.subr.mxu0 0.0
        %455 = vmatpush1.msra.mxu0 0.0
        %456 = vmatprep.subr.mxu0 0.0
        %457 = vmatpush1.msra.mxu0 0.0
        %458 = vmatprep.subr.mxu0 0.0
        %459 = vmatpush1.msra.mxu0 0.0
        %460 = vmatprep.subr.mxu0 0.0
        %461 = vmatpush1.msra.mxu0 0.0
        %462 = vmatprep.subr.mxu0 0.0
        %463 = vmatpush1.msra.mxu0 0.0
        %464 = vmatprep.subr.mxu0 0.0
        %465 = vmatpush1.msra.mxu0 0.0
        %466 = vmatprep.subr.mxu0 0.0
        %467 = vmatpush1.msra.mxu0 0.0
        %468 = vmatprep.subr.mxu0 0.0
        %469 = vmatpush1.msra.mxu0 0.0
        %470 = vmatprep.subr.mxu0 0.0
        %471 = vmatpush1.msra.mxu0 0.0
        %472 = vmatprep.mubr.f32.mxu0 0.0
        %473 = vmatmul.mubr.f32.gmra.mrb[0].mxu0 %v393
        %v474 = vpop.f32.mrb[0].mxu0
        %v475 = vadd.f32 %v390, %v474
        %v476 = vpop.f32.mrb[0].mxu0
        %477 = vmatprep.mubr.f32.mxu0 0.0
        %478 = vmatmul.mubr.f32.gmra.mrb[0].mxu0 %v396
        %v479 = vpop.f32.mrb[0].mxu0
        %v480 = vadd.f32 %v390, %v479
        %v481 = vpop.f32.mrb[0].mxu0
        %482 = vmatprep.mubr.f32.mxu0 0.0
        %483 = vmatmul.mubr.f32.gmra.mrb[0].mxu0 %v399
        %v484 = vpop.f32.mrb[0].mxu0
        %v485 = vadd.f32 %v390, %v484
        %v486 = vpop.f32.mrb[0].mxu0
        %487 = vmatprep.mubr.f32.mxu0 0.0
        %488 = vmatmul.mubr.f32.gmra.mrb[0].mxu0 %v402
        %v489 = vpop.f32.mrb[0].mxu0
        %v490 = vadd.f32 %v390, %v489
        %v491 = vpop.f32.mrb[0].mxu0
        %492 = vdwg.mxu0
        %v493 = vlaneseq
        %v494 = vshrl.u32 %v493, 7
        %v495 = vadd.s32 %v494, 8
        %v496 = vadd.s32 %v494, 16
        %v497 = vadd.s32 %v494, 24
        %v498 = vlaneseq
        %v499 = vand.u32 %v498, 127
        %v500 = vcvt.s32.f32 %v499
        %vm501 = vcmp.eq.s32.totalorder %v494, %v499
        %vm502 = vcmp.eq.s32.totalorder %v495, %v499
        %vm503 = vcmp.eq.s32.totalorder %v496, %v499
        %vm504 = vcmp.eq.s32.totalorder %v497, %v499
        %v505 = vsel %vm501, 1e+30, 0.0
        %v506 = vsel %vm502, 1e+30, 0.0
        %v507 = vsel %vm503, 1e+30, 0.0
        %v508 = vsel %vm504, 1e+30, 0.0
        %v509 = vmul.f32 %v500, 1e-05
        %vm510 = vcmask 64512
        %v512 = vsel %vm510, %v367, 0
        %v515 = vsel %vm510, %v372, 0
        %v518 = vsel %vm510, %v377, 0
        %v521 = vsel %vm510, %v382, 0
        %523 = vmatprep.subr.mxu0 0.0
        %524 = vmatpush1.xpose.msra.mxu0 %v512
        %525 = vmatprep.subr.mxu0 0.0
        %526 = vmatpush1.xpose.msra.mxu0 %v515
        %527 = vmatprep.subr.mxu0 0.0
        %528 = vmatpush1.xpose.msra.mxu0 %v518
        %529 = vmatprep.subr.mxu0 0.0
        %530 = vmatpush1.xpose.msra.mxu0 %v521
        %531 = vmatprep.subr.mxu0 0.0
        %532 = vmatpush1.xpose.msra.mxu0 0.0
        %533 = vmatprep.subr.mxu0 0.0
        %534 = vmatpush1.xpose.msra.mxu0 0.0
        %535 = vmatprep.subr.mxu0 0.0
        %536 = vmatpush1.xpose.msra.mxu0 0.0
        %537 = vmatprep.subr.mxu0 0.0
        %538 = vmatpush1.xpose.msra.mxu0 0.0
        %539 = vmatprep.subr.mxu0 0.0
        %540 = vmatpush1.xpose.msra.mxu0 0.0
        %541 = vmatprep.subr.mxu0 0.0
        %542 = vmatpush1.xpose.msra.mxu0 0.0
        %543 = vmatprep.subr.mxu0 0.0
        %544 = vmatpush1.xpose.msra.mxu0 0.0
        %545 = vmatprep.subr.mxu0 0.0
        %546 = vmatpush1.xpose.msra.mxu0 0.0
        %547 = vmatprep.subr.mxu0 0.0
        %548 = vmatpush1.xpose.msra.mxu0 0.0
        %549 = vmatprep.subr.mxu0 0.0
        %550 = vmatpush1.xpose.msra.mxu0 0.0
        %551 = vmatprep.subr.mxu0 0.0
        %552 = vmatpush1.xpose.msra.mxu0 0.0
        %553 = vmatprep.subr.mxu0 0.0
        %554 = vmatpush1.xpose.msra.mxu0 0.0
        %555 = vmatprep.subr.mxu0 0.0
        %556 = vmatpush1.xpose.msra.mxu0 0.0
        %557 = vmatprep.subr.mxu0 0.0
        %558 = vmatpush1.xpose.msra.mxu0 0.0
        %559 = vmatprep.subr.mxu0 0.0
        %560 = vmatpush1.xpose.msra.mxu0 0.0
        %561 = vmatprep.subr.mxu0 0.0
        %562 = vmatpush1.xpose.msra.mxu0 0.0
        %563 = vmatprep.subr.mxu0 0.0
        %564 = vmatpush1.xpose.msra.mxu0 0.0
        %565 = vmatprep.subr.mxu0 0.0
        %566 = vmatpush1.xpose.msra.mxu0 0.0
        %567 = vmatprep.subr.mxu0 0.0
        %568 = vmatpush1.xpose.msra.mxu0 0.0
        %569 = vmatprep.subr.mxu0 0.0
        %570 = vmatpush1.xpose.msra.mxu0 0.0
        %571 = vmatprep.subr.mxu0 0.0
        %572 = vmatpush1.xpose.msra.mxu0 0.0
        %573 = vmatprep.subr.mxu0 0.0
        %574 = vmatpush1.xpose.msra.mxu0 0.0
        %575 = vmatprep.subr.mxu0 0.0
        %576 = vmatpush1.xpose.msra.mxu0 0.0
        %577 = vmatprep.subr.mxu0 0.0
        %578 = vmatpush1.xpose.msra.mxu0 0.0
        %579 = vmatprep.subr.mxu0 0.0
        %580 = vmatpush1.xpose.msra.mxu0 0.0
        %581 = vmatprep.subr.mxu0 0.0
        %582 = vmatpush1.xpose.msra.mxu0 0.0
        %583 = vmatprep.subr.mxu0 0.0
        %584 = vmatpush1.xpose.msra.mxu0 0.0
        %585 = vmatprep.subr.mxu0 0.0
        %586 = vmatpush1.xpose.msra.mxu0 0.0
        %587 = vmatprep.mubr.f32.mxu0 0.0
        %588 = vmatmul.mubr.f32.gmra.mrb[0].mxu0 %v512
        %v589 = vpop.f32.mrb[0].mxu0
        %v590 = vadd.f32 0.0, %v589
        %v591 = vpop.f32.mrb[0].mxu0
        %592 = vmatprep.mubr.f32.mxu0 0.0
        %593 = vmatmul.mubr.f32.gmra.mrb[0].mxu0 %v515
        %v594 = vpop.f32.mrb[0].mxu0
        %v595 = vadd.f32 0.0, %v594
        %v596 = vpop.f32.mrb[0].mxu0
        %597 = vmatprep.mubr.f32.mxu0 0.0
        %598 = vmatmul.mubr.f32.gmra.mrb[0].mxu0 %v518
        %v599 = vpop.f32.mrb[0].mxu0
        %v600 = vadd.f32 0.0, %v599
        %v601 = vpop.f32.mrb[0].mxu0
        %602 = vmatprep.mubr.f32.mxu0 0.0
        %603 = vmatmul.mubr.f32.gmra.mrb[0].mxu0 %v521
        %v604 = vpop.f32.mrb[0].mxu0
        %v605 = vadd.f32 0.0, %v604
        %v606 = vpop.f32.mrb[0].mxu0
        %607 = vdwg.mxu0
        %v608 = vmul.f32 %v367, %v367
        %v609 = vmul.f32 %v372, %v372
        %v610 = vmul.f32 %v377, %v377
        %v611 = vmul.f32 %v382, %v382
        %v613 = vsel %vm510, 1.0, 0
        %v616 = vsel %vm510, %v608, 0
        %v619 = vsel %vm510, %v609, 0
        %v622 = vsel %vm510, %v610, 0
        %v625 = vsel %vm510, %v611, 0
        %627 = vmatprep.subr.mxu0 0.0
        %628 = vmatpush1.xpose.msra.mxu0 %v616
        %629 = vmatprep.subr.mxu0 0.0
        %630 = vmatpush1.xpose.msra.mxu0 %v619
        %631 = vmatprep.subr.mxu0 0.0
        %632 = vmatpush1.xpose.msra.mxu0 %v622
        %633 = vmatprep.subr.mxu0 0.0
        %634 = vmatpush1.xpose.msra.mxu0 %v625
        %635 = vmatprep.subr.mxu0 0.0
        %636 = vmatpush1.xpose.msra.mxu0 0.0
        %637 = vmatprep.subr.mxu0 0.0
        %638 = vmatpush1.xpose.msra.mxu0 0.0
        %639 = vmatprep.subr.mxu0 0.0
        %640 = vmatpush1.xpose.msra.mxu0 0.0
        %641 = vmatprep.subr.mxu0 0.0
        %642 = vmatpush1.xpose.msra.mxu0 0.0
        %643 = vmatprep.subr.mxu0 0.0
        %644 = vmatpush1.xpose.msra.mxu0 0.0
        %645 = vmatprep.subr.mxu0 0.0
        %646 = vmatpush1.xpose.msra.mxu0 0.0
        %647 = vmatprep.subr.mxu0 0.0
        %648 = vmatpush1.xpose.msra.mxu0 0.0
        %649 = vmatprep.subr.mxu0 0.0
        %650 = vmatpush1.xpose.msra.mxu0 0.0
        %651 = vmatprep.subr.mxu0 0.0
        %652 = vmatpush1.xpose.msra.mxu0 0.0
        %653 = vmatprep.subr.mxu0 0.0
        %654 = vmatpush1.xpose.msra.mxu0 0.0
        %655 = vmatprep.subr.mxu0 0.0
        %656 = vmatpush1.xpose.msra.mxu0 0.0
        %657 = vmatprep.subr.mxu0 0.0
        %658 = vmatpush1.xpose.msra.mxu0 0.0
        %659 = vmatprep.subr.mxu0 0.0
        %660 = vmatpush1.xpose.msra.mxu0 0.0
        %661 = vmatprep.subr.mxu0 0.0
        %662 = vmatpush1.xpose.msra.mxu0 0.0
        %663 = vmatprep.subr.mxu0 0.0
        %664 = vmatpush1.xpose.msra.mxu0 0.0
        %665 = vmatprep.subr.mxu0 0.0
        %666 = vmatpush1.xpose.msra.mxu0 0.0
        %667 = vmatprep.subr.mxu0 0.0
        %668 = vmatpush1.xpose.msra.mxu0 0.0
        %669 = vmatprep.subr.mxu0 0.0
        %670 = vmatpush1.xpose.msra.mxu0 0.0
        %671 = vmatprep.subr.mxu0 0.0
        %672 = vmatpush1.xpose.msra.mxu0 0.0
        %673 = vmatprep.subr.mxu0 0.0
        %674 = vmatpush1.xpose.msra.mxu0 0.0
        %675 = vmatprep.subr.mxu0 0.0
        %676 = vmatpush1.xpose.msra.mxu0 0.0
        %677 = vmatprep.subr.mxu0 0.0
        %678 = vmatpush1.xpose.msra.mxu0 0.0
        %679 = vmatprep.subr.mxu0 0.0
        %680 = vmatpush1.xpose.msra.mxu0 0.0
        %681 = vmatprep.subr.mxu0 0.0
        %682 = vmatpush1.xpose.msra.mxu0 0.0
        %683 = vmatprep.subr.mxu0 0.0
        %684 = vmatpush1.xpose.msra.mxu0 0.0
        %685 = vmatprep.subr.mxu0 0.0
        %686 = vmatpush1.xpose.msra.mxu0 0.0
        %687 = vmatprep.subr.mxu0 0.0
        %688 = vmatpush1.xpose.msra.mxu0 0.0
        %689 = vmatprep.subr.mxu0 0.0
        %690 = vmatpush1.xpose.msra.mxu0 0.0
        %691 = vmatprep.mubr.f32.mxu0 0.0
        %692 = vmatmul.mubr.f32.gmra.mrb[0].mxu0 %v613
        %v693 = vpop.f32.mrb[0].mxu0
        %v694 = vadd.f32 0.0, %v693
        %v695 = vpop.f32.mrb[0].mxu0
        %696 = vmatprep.mubr.f32.mxu0 0.0
        %697 = vmatmul.mubr.f32.gmra.mrb[0].mxu0 %v613
        %v698 = vpop.f32.mrb[0].mxu0
        %v699 = vadd.f32 0.0, %v698
        %v700 = vpop.f32.mrb[0].mxu0
        %701 = vmatprep.mubr.f32.mxu0 0.0
        %702 = vmatmul.mubr.f32.gmra.mrb[0].mxu0 %v613
        %v703 = vpop.f32.mrb[0].mxu0
        %v704 = vadd.f32 0.0, %v703
        %v705 = vpop.f32.mrb[0].mxu0
        %706 = vmatprep.mubr.f32.mxu0 0.0
        %707 = vmatmul.mubr.f32.gmra.mrb[0].mxu0 %v613
        %v708 = vpop.f32.mrb[0].mxu0
        %v709 = vadd.f32 0.0, %v708
        %v710 = vpop.f32.mrb[0].mxu0
        %711 = vdwg.mxu0
        %v712 = vmul.f32 %v590, 2.0
        %v713 = vmul.f32 %v595, 2.0
        %v714 = vmul.f32 %v600, 2.0
        %v715 = vmul.f32 %v605, 2.0
        %v716 = vsub.f32 %v694, %v712
        %v717 = vsub.f32 %v699, %v713
        %v718 = vsub.f32 %v704, %v714
        %v719 = vsub.f32 %v709, %v715
        %v720 = vadd.f32 %v716, %v505
        %v721 = vadd.f32 %v717, %v506
        %v722 = vadd.f32 %v718, %v507
        %v723 = vadd.f32 %v719, %v508
        %v724 = vadd.f32 %v720, %v509
        %v725 = vadd.f32 %v721, %v509
        %v726 = vadd.f32 %v722, %v509
        %v727 = vadd.f32 %v723, %v509
        %vm728 = vcmask 261120
        %v729 = vsel %vm728, %v724, inf
        %730 = vmin.xlane.f32.xlu0 %v729
        %v731 = vpop.xlane.xlu0 %730
        %v732 = vsel %vm728, %v725, inf
        %733 = vmin.xlane.f32.xlu0 %v732
        %v734 = vpop.xlane.xlu0 %733
        %v735 = vsel %vm728, %v726, inf
        %736 = vmin.xlane.f32.xlu0 %v735
        %v737 = vpop.xlane.xlu0 %736
        %v738 = vsel %vm728, %v727, inf
        %739 = vmin.xlane.f32.xlu0 %v738
        %v740 = vpop.xlane.xlu0 %739
        %vm741 = vcmp.eq.f32.partialorder %v724, %v731
        %vm742 = vcmp.eq.f32.partialorder %v725, %v734
        %vm743 = vcmp.eq.f32.partialorder %v726, %v737
        %vm744 = vcmp.eq.f32.partialorder %v727, %v740
        %v745 = vsel %vm741, 1, 0
        %v746 = vsel %vm742, 1, 0
        %v747 = vsel %vm743, 1, 0
        %v748 = vsel %vm744, 1, 0
        %v749 = vcvt.s32.f32 %v745
        %v750 = vcvt.s32.f32 %v746
        %v751 = vcvt.s32.f32 %v747
        %v752 = vcvt.s32.f32 %v748
        %v753 = vmul.f32 %v749, 1e+30
        %v754 = vmul.f32 %v750, 1e+30
        %v755 = vmul.f32 %v751, 1e+30
        %v756 = vmul.f32 %v752, 1e+30
        %v757 = vadd.f32 %v724, %v753
        %v758 = vadd.f32 %v725, %v754
        %v759 = vadd.f32 %v726, %v755
        %v760 = vadd.f32 %v727, %v756
        %v761 = vsel %vm728, %v757, inf
        %762 = vmin.xlane.f32.xlu0 %v761
        %v763 = vpop.xlane.xlu0 %762
        %v764 = vsel %vm728, %v758, inf
        %765 = vmin.xlane.f32.xlu0 %v764
        %v766 = vpop.xlane.xlu0 %765
        %v767 = vsel %vm728, %v759, inf
        %768 = vmin.xlane.f32.xlu0 %v767
        %v769 = vpop.xlane.xlu0 %768
        %v770 = vsel %vm728, %v760, inf
        %771 = vmin.xlane.f32.xlu0 %v770
        %v772 = vpop.xlane.xlu0 %771
        %vm773 = vcmp.eq.f32.partialorder %v757, %v763
        %vm774 = vcmp.eq.f32.partialorder %v758, %v766
        %vm775 = vcmp.eq.f32.partialorder %v759, %v769
        %vm776 = vcmp.eq.f32.partialorder %v760, %v772
        %v777 = vsel %vm773, 1, 0
        %v778 = vsel %vm774, 1, 0
        %v779 = vsel %vm775, 1, 0
        %v780 = vsel %vm776, 1, 0
        %v781 = vcvt.s32.f32 %v777
        %v782 = vcvt.s32.f32 %v778
        %v783 = vcvt.s32.f32 %v779
        %v784 = vcvt.s32.f32 %v780
        %v785 = vmul.f32 %v781, 1e+30
        %v786 = vmul.f32 %v782, 1e+30
        %v787 = vmul.f32 %v783, 1e+30
        %v788 = vmul.f32 %v784, 1e+30
        %v789 = vadd.f32 %v757, %v785
        %v790 = vadd.f32 %v758, %v786
        %v791 = vadd.f32 %v759, %v787
        %v792 = vadd.f32 %v760, %v788
        %v793 = vsel %vm728, %v789, inf
        %794 = vmin.xlane.f32.xlu0 %v793
        %v795 = vpop.xlane.xlu0 %794
        %v796 = vsel %vm728, %v790, inf
        %797 = vmin.xlane.f32.xlu0 %v796
        %v798 = vpop.xlane.xlu0 %797
        %v799 = vsel %vm728, %v791, inf
        %800 = vmin.xlane.f32.xlu0 %v799
        %v801 = vpop.xlane.xlu0 %800
        %v802 = vsel %vm728, %v792, inf
        %803 = vmin.xlane.f32.xlu0 %v802
        %v804 = vpop.xlane.xlu0 %803
        %vm805 = vcmp.eq.f32.partialorder %v789, %v795
        %vm806 = vcmp.eq.f32.partialorder %v790, %v798
        %vm807 = vcmp.eq.f32.partialorder %v791, %v801
        %vm808 = vcmp.eq.f32.partialorder %v792, %v804
        %v809 = vsel %vm805, 1, 0
        %v810 = vsel %vm806, 1, 0
        %v811 = vsel %vm807, 1, 0
        %v812 = vsel %vm808, 1, 0
        %v813 = vcvt.s32.f32 %v809
        %v814 = vcvt.s32.f32 %v810
        %v815 = vcvt.s32.f32 %v811
        %v816 = vcvt.s32.f32 %v812
        %v817 = vmul.f32 %v813, 1e+30
        %v818 = vmul.f32 %v814, 1e+30
        %v819 = vmul.f32 %v815, 1e+30
        %v820 = vmul.f32 %v816, 1e+30
        %v821 = vadd.f32 %v789, %v817
        %v822 = vadd.f32 %v790, %v818
        %v823 = vadd.f32 %v791, %v819
        %v824 = vadd.f32 %v792, %v820
        %v825 = vsel %vm728, %v821, inf
        %826 = vmin.xlane.f32.xlu0 %v825
        %v827 = vpop.xlane.xlu0 %826
        %v828 = vsel %vm728, %v822, inf
        %829 = vmin.xlane.f32.xlu0 %v828
        %v830 = vpop.xlane.xlu0 %829
        %v831 = vsel %vm728, %v823, inf
        %832 = vmin.xlane.f32.xlu0 %v831
        %v833 = vpop.xlane.xlu0 %832
        %v834 = vsel %vm728, %v824, inf
        %835 = vmin.xlane.f32.xlu0 %v834
        %v836 = vpop.xlane.xlu0 %835
        %vm837 = vcmp.eq.f32.partialorder %v821, %v827
        %vm838 = vcmp.eq.f32.partialorder %v822, %v830
        %vm839 = vcmp.eq.f32.partialorder %v823, %v833
        %vm840 = vcmp.eq.f32.partialorder %v824, %v836
        %v841 = vsel %vm837, 1, 0
        %v842 = vsel %vm838, 1, 0
        %v843 = vsel %vm839, 1, 0
        %v844 = vsel %vm840, 1, 0
        %v845 = vcvt.s32.f32 %v841
        %v846 = vcvt.s32.f32 %v842
        %v847 = vcvt.s32.f32 %v843
        %v848 = vcvt.s32.f32 %v844
        %v849 = vadd.f32 %v749, %v781
        %v850 = vadd.f32 %v750, %v782
        %v851 = vadd.f32 %v751, %v783
        %v852 = vadd.f32 %v752, %v784
        %v853 = vadd.f32 %v849, %v813
        %v854 = vadd.f32 %v850, %v814
        %v855 = vadd.f32 %v851, %v815
        %v856 = vadd.f32 %v852, %v816
        %v857 = vadd.f32 %v853, %v845
        %v858 = vadd.f32 %v854, %v846
        %v859 = vadd.f32 %v855, %v847
        %v860 = vadd.f32 %v856, %v848
        %v862 = vsel %vm728, %v857, 0
        %v865 = vsel %vm728, %v858, 0
        %v868 = vsel %vm728, %v859, 0
        %v871 = vsel %vm728, %v860, 0
        %873 = vmatprep.subr.mxu0 0.0
        %874 = vmatpush1.msra.mxu0 %v367
        %875 = vmatprep.subr.mxu0 0.0
        %876 = vmatpush1.msra.mxu0 %v372
        %877 = vmatprep.subr.mxu0 0.0
        %878 = vmatpush1.msra.mxu0 %v377
        %879 = vmatprep.subr.mxu0 0.0
        %880 = vmatpush1.msra.mxu0 %v382
        %881 = vmatprep.subr.mxu0 0.0
        %882 = vmatpush1.msra.mxu0 0.0
        %883 = vmatprep.subr.mxu0 0.0
        %884 = vmatpush1.msra.mxu0 0.0
        %885 = vmatprep.subr.mxu0 0.0
        %886 = vmatpush1.msra.mxu0 0.0
        %887 = vmatprep.subr.mxu0 0.0
        %888 = vmatpush1.msra.mxu0 0.0
        %889 = vmatprep.subr.mxu0 0.0
        %890 = vmatpush1.msra.mxu0 0.0
        %891 = vmatprep.subr.mxu0 0.0
        %892 = vmatpush1.msra.mxu0 0.0
        %893 = vmatprep.subr.mxu0 0.0
        %894 = vmatpush1.msra.mxu0 0.0
        %895 = vmatprep.subr.mxu0 0.0
        %896 = vmatpush1.msra.mxu0 0.0
        %897 = vmatprep.subr.mxu0 0.0
        %898 = vmatpush1.msra.mxu0 0.0
        %899 = vmatprep.subr.mxu0 0.0
        %900 = vmatpush1.msra.mxu0 0.0
        %901 = vmatprep.subr.mxu0 0.0
        %902 = vmatpush1.msra.mxu0 0.0
        %903 = vmatprep.subr.mxu0 0.0
        %904 = vmatpush1.msra.mxu0 0.0
        %905 = vmatprep.subr.mxu0 0.0
        %906 = vmatpush1.msra.mxu0 0.0
        %907 = vmatprep.subr.mxu0 0.0
        %908 = vmatpush1.msra.mxu0 0.0
        %909 = vmatprep.subr.mxu0 0.0
        %910 = vmatpush1.msra.mxu0 0.0
        %911 = vmatprep.subr.mxu0 0.0
        %912 = vmatpush1.msra.mxu0 0.0
        %913 = vmatprep.subr.mxu0 0.0
        %914 = vmatpush1.msra.mxu0 0.0
        %915 = vmatprep.subr.mxu0 0.0
        %916 = vmatpush1.msra.mxu0 0.0
        %917 = vmatprep.subr.mxu0 0.0
        %918 = vmatpush1.msra.mxu0 0.0
        %919 = vmatprep.subr.mxu0 0.0
        %920 = vmatpush1.msra.mxu0 0.0
        %921 = vmatprep.subr.mxu0 0.0
        %922 = vmatpush1.msra.mxu0 0.0
        %923 = vmatprep.subr.mxu0 0.0
        %924 = vmatpush1.msra.mxu0 0.0
        %925 = vmatprep.subr.mxu0 0.0
        %926 = vmatpush1.msra.mxu0 0.0
        %927 = vmatprep.subr.mxu0 0.0
        %928 = vmatpush1.msra.mxu0 0.0
        %929 = vmatprep.subr.mxu0 0.0
        %930 = vmatpush1.msra.mxu0 0.0
        %931 = vmatprep.subr.mxu0 0.0
        %932 = vmatpush1.msra.mxu0 0.0
        %933 = vmatprep.subr.mxu0 0.0
        %934 = vmatpush1.msra.mxu0 0.0
        %935 = vmatprep.subr.mxu0 0.0
        %936 = vmatpush1.msra.mxu0 0.0
        %937 = vmatprep.mubr.f32.mxu0 0.0
        %938 = vmatmul.mubr.f32.gmra.mrb[0].mxu0 %v862
        %v939 = vpop.f32.mrb[0].mxu0
        %v940 = vadd.f32 0.0, %v939
        %v941 = vpop.f32.mrb[0].mxu0
        %942 = vmatprep.mubr.f32.mxu0 0.0
        %943 = vmatmul.mubr.f32.gmra.mrb[0].mxu0 %v865
        %v944 = vpop.f32.mrb[0].mxu0
        %v945 = vadd.f32 0.0, %v944
        %v946 = vpop.f32.mrb[0].mxu0
        %947 = vmatprep.mubr.f32.mxu0 0.0
        %948 = vmatmul.mubr.f32.gmra.mrb[0].mxu0 %v868
        %v949 = vpop.f32.mrb[0].mxu0
        %v950 = vadd.f32 0.0, %v949
        %v951 = vpop.f32.mrb[0].mxu0
        %952 = vmatprep.mubr.f32.mxu0 0.0
        %953 = vmatmul.mubr.f32.gmra.mrb[0].mxu0 %v871
        %v954 = vpop.f32.mrb[0].mxu0
        %v955 = vadd.f32 0.0, %v954
        %v956 = vpop.f32.mrb[0].mxu0
        %957 = vdwg.mxu0
        %v958 = vmul.f32 %v940, 0.25
        %v959 = vmul.f32 %v945, 0.25
        %v960 = vmul.f32 %v950, 0.25
        %v961 = vmul.f32 %v955, 0.25
        %v962 = vsub.f32 %v367, %v958
        %v963 = vsub.f32 %v372, %v959
        %v964 = vsub.f32 %v377, %v960
        %v965 = vsub.f32 %v382, %v961
        %966 = vrot.lane.b32.xlu0 %v367, 8
        %v967 = vpop.permute.xlu0 %966
        %968 = vrot.lane.b32.xlu0 %v372, 8
        %v969 = vpop.permute.xlu0 %968
        %970 = vrot.lane.b32.xlu0 %v377, 8
        %v971 = vpop.permute.xlu0 %970
        %972 = vrot.lane.b32.xlu0 %v382, 8
        %v973 = vpop.permute.xlu0 %972
        %v978 = vsel %vm510, %v962, %v967
        %v979 = vsel %vm510, %v963, %v969
        %v980 = vsel %vm510, %v964, %v971
        %v981 = vsel %vm510, %v965, %v973
        %v982 = vld [vmem:[%s2 + $0x7] sm:$0xff]
        %v983 = vld [vmem:[%s2 + $0xf] sm:$0xff]
        %v984 = vld [vmem:[%s2 + $0x17] sm:$0x1]
        %v985 = vlaneseq
        %v986 = vshrl.u32 %v985, 7
        %v987 = vsub.s32 0, %v986
        %v988 = vrot.slane %v984, %v987
        %vm989 = vcmask 130048
        %v991 = vsel %vm989, %v978, 0
        %v994 = vsel %vm989, %v979, 0
        %v997 = vsel %vm989, %v980, 0
        %v1000 = vsel %vm989, %v981, 0
        %1002 = vmatprep.subr.mxu0 0.0
        %1003 = vmatpush1.msra.mxu0 %v982
        %1004 = vmatprep.subr.mxu0 0.0
        %1005 = vmatpush1.msra.mxu0 %v983
        %1006 = vmatprep.subr.mxu0 0.0
        %1007 = vmatpush1.msra.mxu0 0.0
        %1008 = vmatprep.subr.mxu0 0.0
        %1009 = vmatpush1.msra.mxu0 0.0
        %1010 = vmatprep.subr.mxu0 0.0
        %1011 = vmatpush1.msra.mxu0 0.0
        %1012 = vmatprep.subr.mxu0 0.0
        %1013 = vmatpush1.msra.mxu0 0.0
        %1014 = vmatprep.subr.mxu0 0.0
        %1015 = vmatpush1.msra.mxu0 0.0
        %1016 = vmatprep.subr.mxu0 0.0
        %1017 = vmatpush1.msra.mxu0 0.0
        %1018 = vmatprep.subr.mxu0 0.0
        %1019 = vmatpush1.msra.mxu0 0.0
        %1020 = vmatprep.subr.mxu0 0.0
        %1021 = vmatpush1.msra.mxu0 0.0
        %1022 = vmatprep.subr.mxu0 0.0
        %1023 = vmatpush1.msra.mxu0 0.0
        %1024 = vmatprep.subr.mxu0 0.0
        %1025 = vmatpush1.msra.mxu0 0.0
        %1026 = vmatprep.subr.mxu0 0.0
        %1027 = vmatpush1.msra.mxu0 0.0
        %1028 = vmatprep.subr.mxu0 0.0
        %1029 = vmatpush1.msra.mxu0 0.0
        %1030 = vmatprep.subr.mxu0 0.0
        %1031 = vmatpush1.msra.mxu0 0.0
        %1032 = vmatprep.subr.mxu0 0.0
        %1033 = vmatpush1.msra.mxu0 0.0
        %1034 = vmatprep.subr.mxu0 0.0
        %1035 = vmatpush1.msra.mxu0 0.0
        %1036 = vmatprep.subr.mxu0 0.0
        %1037 = vmatpush1.msra.mxu0 0.0
        %1038 = vmatprep.subr.mxu0 0.0
        %1039 = vmatpush1.msra.mxu0 0.0
        %1040 = vmatprep.subr.mxu0 0.0
        %1041 = vmatpush1.msra.mxu0 0.0
        %1042 = vmatprep.subr.mxu0 0.0
        %1043 = vmatpush1.msra.mxu0 0.0
        %1044 = vmatprep.subr.mxu0 0.0
        %1045 = vmatpush1.msra.mxu0 0.0
        %1046 = vmatprep.subr.mxu0 0.0
        %1047 = vmatpush1.msra.mxu0 0.0
        %1048 = vmatprep.subr.mxu0 0.0
        %1049 = vmatpush1.msra.mxu0 0.0
        %1050 = vmatprep.subr.mxu0 0.0
        %1051 = vmatpush1.msra.mxu0 0.0
        %1052 = vmatprep.subr.mxu0 0.0
        %1053 = vmatpush1.msra.mxu0 0.0
        %1054 = vmatprep.subr.mxu0 0.0
        %1055 = vmatpush1.msra.mxu0 0.0
        %1056 = vmatprep.subr.mxu0 0.0
        %1057 = vmatpush1.msra.mxu0 0.0
        %1058 = vmatprep.subr.mxu0 0.0
        %1059 = vmatpush1.msra.mxu0 0.0
        %1060 = vmatprep.subr.mxu0 0.0
        %1061 = vmatpush1.msra.mxu0 0.0
        %1062 = vmatprep.subr.mxu0 0.0
        %1063 = vmatpush1.msra.mxu0 0.0
        %1064 = vmatprep.subr.mxu0 0.0
        %1065 = vmatpush1.msra.mxu0 0.0
        %1066 = vmatprep.mubr.f32.mxu0 0.0
        %1067 = vmatmul.mubr.f32.gmra.mrb[0].mxu0 %v991
        %v1068 = vpop.f32.mrb[0].mxu0
        %v1069 = vadd.f32 %v988, %v1068
        %v1070 = vpop.f32.mrb[0].mxu0
        %1071 = vmatprep.mubr.f32.mxu0 0.0
        %1072 = vmatmul.mubr.f32.gmra.mrb[0].mxu0 %v994
        %v1073 = vpop.f32.mrb[0].mxu0
        %v1074 = vadd.f32 %v988, %v1073
        %v1075 = vpop.f32.mrb[0].mxu0
        %1076 = vmatprep.mubr.f32.mxu0 0.0
        %1077 = vmatmul.mubr.f32.gmra.mrb[0].mxu0 %v997
        %v1078 = vpop.f32.mrb[0].mxu0
        %v1079 = vadd.f32 %v988, %v1078
        %v1080 = vpop.f32.mrb[0].mxu0
        %1081 = vmatprep.mubr.f32.mxu0 0.0
        %1082 = vmatmul.mubr.f32.gmra.mrb[0].mxu0 %v1000
        %v1083 = vpop.f32.mrb[0].mxu0
        %v1084 = vadd.f32 %v988, %v1083
        %v1085 = vpop.f32.mrb[0].mxu0
        %1086 = vdwg.mxu0
        %v1087 = vld [vmem:[%s2 + $0x18] sm:$0xff]
        %v1088 = vld [vmem:[%s2 + $0x20] sm:$0xff]
        %v1089 = vld [vmem:[%s2 + $0x38] sm:$0x1]
        %v1090 = vlaneseq
        %v1091 = vshrl.u32 %v1090, 7
        %v1092 = vsub.s32 0, %v1091
        %v1093 = vrot.slane %v1089, %v1092
        %v1095 = vsel %vm989, %v475, 0
        %v1098 = vsel %vm989, %v480, 0
        %v1101 = vsel %vm989, %v485, 0
        %v1104 = vsel %vm989, %v490, 0
        %1106 = vmatprep.subr.mxu0 0.0
        %1107 = vmatpush1.msra.mxu0 %v1087
        %1108 = vmatprep.subr.mxu0 0.0
        %1109 = vmatpush1.msra.mxu0 %v1088
        %1110 = vmatprep.subr.mxu0 0.0
        %1111 = vmatpush1.msra.mxu0 0.0
        %1112 = vmatprep.subr.mxu0 0.0
        %1113 = vmatpush1.msra.mxu0 0.0
        %1114 = vmatprep.subr.mxu0 0.0
        %1115 = vmatpush1.msra.mxu0 0.0
        %1116 = vmatprep.subr.mxu0 0.0
        %1117 = vmatpush1.msra.mxu0 0.0
        %1118 = vmatprep.subr.mxu0 0.0
        %1119 = vmatpush1.msra.mxu0 0.0
        %1120 = vmatprep.subr.mxu0 0.0
        %1121 = vmatpush1.msra.mxu0 0.0
        %1122 = vmatprep.subr.mxu0 0.0
        %1123 = vmatpush1.msra.mxu0 0.0
        %1124 = vmatprep.subr.mxu0 0.0
        %1125 = vmatpush1.msra.mxu0 0.0
        %1126 = vmatprep.subr.mxu0 0.0
        %1127 = vmatpush1.msra.mxu0 0.0
        %1128 = vmatprep.subr.mxu0 0.0
        %1129 = vmatpush1.msra.mxu0 0.0
        %1130 = vmatprep.subr.mxu0 0.0
        %1131 = vmatpush1.msra.mxu0 0.0
        %1132 = vmatprep.subr.mxu0 0.0
        %1133 = vmatpush1.msra.mxu0 0.0
        %1134 = vmatprep.subr.mxu0 0.0
        %1135 = vmatpush1.msra.mxu0 0.0
        %1136 = vmatprep.subr.mxu0 0.0
        %1137 = vmatpush1.msra.mxu0 0.0
        %1138 = vmatprep.subr.mxu0 0.0
        %1139 = vmatpush1.msra.mxu0 0.0
        %1140 = vmatprep.subr.mxu0 0.0
        %1141 = vmatpush1.msra.mxu0 0.0
        %1142 = vmatprep.subr.mxu0 0.0
        %1143 = vmatpush1.msra.mxu0 0.0
        %1144 = vmatprep.subr.mxu0 0.0
        %1145 = vmatpush1.msra.mxu0 0.0
        %1146 = vmatprep.subr.mxu0 0.0
        %1147 = vmatpush1.msra.mxu0 0.0
        %1148 = vmatprep.subr.mxu0 0.0
        %1149 = vmatpush1.msra.mxu0 0.0
        %1150 = vmatprep.subr.mxu0 0.0
        %1151 = vmatpush1.msra.mxu0 0.0
        %1152 = vmatprep.subr.mxu0 0.0
        %1153 = vmatpush1.msra.mxu0 0.0
        %1154 = vmatprep.subr.mxu0 0.0
        %1155 = vmatpush1.msra.mxu0 0.0
        %1156 = vmatprep.subr.mxu0 0.0
        %1157 = vmatpush1.msra.mxu0 0.0
        %1158 = vmatprep.subr.mxu0 0.0
        %1159 = vmatpush1.msra.mxu0 0.0
        %1160 = vmatprep.subr.mxu0 0.0
        %1161 = vmatpush1.msra.mxu0 0.0
        %1162 = vmatprep.subr.mxu0 0.0
        %1163 = vmatpush1.msra.mxu0 0.0
        %1164 = vmatprep.subr.mxu0 0.0
        %1165 = vmatpush1.msra.mxu0 0.0
        %1166 = vmatprep.subr.mxu0 0.0
        %1167 = vmatpush1.msra.mxu0 0.0
        %1168 = vmatprep.subr.mxu0 0.0
        %1169 = vmatpush1.msra.mxu0 0.0
        %1170 = vmatprep.mubr.f32.mxu0 0.0
        %1171 = vmatmul.mubr.f32.gmra.mrb[0].mxu0 %v1095
        %v1172 = vpop.f32.mrb[0].mxu0
        %v1173 = vadd.f32 %v1093, %v1172
        %v1174 = vpop.f32.mrb[0].mxu0
        %1175 = vmatprep.mubr.f32.mxu0 0.0
        %1176 = vmatmul.mubr.f32.gmra.mrb[0].mxu0 %v1098
        %v1177 = vpop.f32.mrb[0].mxu0
        %v1178 = vadd.f32 %v1093, %v1177
        %v1179 = vpop.f32.mrb[0].mxu0
        %1180 = vmatprep.mubr.f32.mxu0 0.0
        %1181 = vmatmul.mubr.f32.gmra.mrb[0].mxu0 %v1101
        %v1182 = vpop.f32.mrb[0].mxu0
        %v1183 = vadd.f32 %v1093, %v1182
        %v1184 = vpop.f32.mrb[0].mxu0
        %1185 = vmatprep.mubr.f32.mxu0 0.0
        %1186 = vmatmul.mubr.f32.gmra.mrb[0].mxu0 %v1104
        %v1187 = vpop.f32.mrb[0].mxu0
        %v1188 = vadd.f32 %v1093, %v1187
        %v1189 = vpop.f32.mrb[0].mxu0
        %1190 = vdwg.mxu0
        %v1191 = vld [vmem:[%s2 + $0x28] sm:$0xff]
        %v1192 = vld [vmem:[%s2 + $0x30] sm:$0xff]
        %1193 = vmatprep.subr.mxu0 0.0
        %1194 = vmatpush1.msra.mxu0 %v1191
        %1195 = vmatprep.subr.mxu0 0.0
        %1196 = vmatpush1.msra.mxu0 %v1192
        %1197 = vmatprep.subr.mxu0 0.0
        %1198 = vmatpush1.msra.mxu0 0.0
        %1199 = vmatprep.subr.mxu0 0.0
        %1200 = vmatpush1.msra.mxu0 0.0
        %1201 = vmatprep.subr.mxu0 0.0
        %1202 = vmatpush1.msra.mxu0 0.0
        %1203 = vmatprep.subr.mxu0 0.0
        %1204 = vmatpush1.msra.mxu0 0.0
        %1205 = vmatprep.subr.mxu0 0.0
        %1206 = vmatpush1.msra.mxu0 0.0
        %1207 = vmatprep.subr.mxu0 0.0
        %1208 = vmatpush1.msra.mxu0 0.0
        %1209 = vmatprep.subr.mxu0 0.0
        %1210 = vmatpush1.msra.mxu0 0.0
        %1211 = vmatprep.subr.mxu0 0.0
        %1212 = vmatpush1.msra.mxu0 0.0
        %1213 = vmatprep.subr.mxu0 0.0
        %1214 = vmatpush1.msra.mxu0 0.0
        %1215 = vmatprep.subr.mxu0 0.0
        %1216 = vmatpush1.msra.mxu0 0.0
        %1217 = vmatprep.subr.mxu0 0.0
        %1218 = vmatpush1.msra.mxu0 0.0
        %1219 = vmatprep.subr.mxu0 0.0
        %1220 = vmatpush1.msra.mxu0 0.0
        %1221 = vmatprep.subr.mxu0 0.0
        %1222 = vmatpush1.msra.mxu0 0.0
        %1223 = vmatprep.subr.mxu0 0.0
        %1224 = vmatpush1.msra.mxu0 0.0
        %1225 = vmatprep.subr.mxu0 0.0
        %1226 = vmatpush1.msra.mxu0 0.0
        %1227 = vmatprep.subr.mxu0 0.0
        %1228 = vmatpush1.msra.mxu0 0.0
        %1229 = vmatprep.subr.mxu0 0.0
        %1230 = vmatpush1.msra.mxu0 0.0
        %1231 = vmatprep.subr.mxu0 0.0
        %1232 = vmatpush1.msra.mxu0 0.0
        %1233 = vmatprep.subr.mxu0 0.0
        %1234 = vmatpush1.msra.mxu0 0.0
        %1235 = vmatprep.subr.mxu0 0.0
        %1236 = vmatpush1.msra.mxu0 0.0
        %1237 = vmatprep.subr.mxu0 0.0
        %1238 = vmatpush1.msra.mxu0 0.0
        %1239 = vmatprep.subr.mxu0 0.0
        %1240 = vmatpush1.msra.mxu0 0.0
        %1241 = vmatprep.subr.mxu0 0.0
        %1242 = vmatpush1.msra.mxu0 0.0
        %1243 = vmatprep.subr.mxu0 0.0
        %1244 = vmatpush1.msra.mxu0 0.0
        %1245 = vmatprep.subr.mxu0 0.0
        %1246 = vmatpush1.msra.mxu0 0.0
        %1247 = vmatprep.subr.mxu0 0.0
        %1248 = vmatpush1.msra.mxu0 0.0
        %1249 = vmatprep.subr.mxu0 0.0
        %1250 = vmatpush1.msra.mxu0 0.0
        %1251 = vmatprep.subr.mxu0 0.0
        %1252 = vmatpush1.msra.mxu0 0.0
        %1253 = vmatprep.subr.mxu0 0.0
        %1254 = vmatpush1.msra.mxu0 0.0
        %1255 = vmatprep.subr.mxu0 0.0
        %1256 = vmatpush1.msra.mxu0 0.0
        %1257 = vmatprep.mubr.f32.mxu0 0.0
        %1258 = vmatmul.mubr.f32.gmra.mrb[0].mxu0 %v1095
        %v1259 = vpop.f32.mrb[0].mxu0
        %v1260 = vadd.f32 0.0, %v1259
        %v1261 = vpop.f32.mrb[0].mxu0
        %1262 = vmatprep.mubr.f32.mxu0 0.0
        %1263 = vmatmul.mubr.f32.gmra.mrb[0].mxu0 %v1098
        %v1264 = vpop.f32.mrb[0].mxu0
        %v1265 = vadd.f32 0.0, %v1264
        %v1266 = vpop.f32.mrb[0].mxu0
        %1267 = vmatprep.mubr.f32.mxu0 0.0
        %1268 = vmatmul.mubr.f32.gmra.mrb[0].mxu0 %v1101
        %v1269 = vpop.f32.mrb[0].mxu0
        %v1270 = vadd.f32 0.0, %v1269
        %v1271 = vpop.f32.mrb[0].mxu0
        %1272 = vmatprep.mubr.f32.mxu0 0.0
        %1273 = vmatmul.mubr.f32.gmra.mrb[0].mxu0 %v1104
        %v1274 = vpop.f32.mrb[0].mxu0
        %v1275 = vadd.f32 0.0, %v1274
        %v1276 = vpop.f32.mrb[0].mxu0
        %1277 = vdwg.mxu0
        %v1279 = vsel %vm728, %v749, 0
        %v1282 = vsel %vm728, %v750, 0
        %v1285 = vsel %vm728, %v751, 0
        %v1288 = vsel %vm728, %v752, 0
        %v1291 = vsel %vm728, %v781, 0
        %v1294 = vsel %vm728, %v782, 0
        %v1297 = vsel %vm728, %v783, 0
        %v1300 = vsel %vm728, %v784, 0
        %v1303 = vsel %vm728, %v813, 0
        %v1306 = vsel %vm728, %v814, 0
        %v1309 = vsel %vm728, %v815, 0
        %v1312 = vsel %vm728, %v816, 0
        %v1315 = vsel %vm728, %v845, 0
        %v1318 = vsel %vm728, %v846, 0
        %v1321 = vsel %vm728, %v847, 0
        %v1324 = vsel %vm728, %v848, 0
        %1326 = vmatprep.subr.mxu0 0.0
        %1327 = vmatpush1.msra.mxu0 %v1260
        %1328 = vmatprep.subr.mxu0 0.0
        %1329 = vmatpush1.msra.mxu0 %v1265
        %1330 = vmatprep.subr.mxu0 0.0
        %1331 = vmatpush1.msra.mxu0 %v1270
        %1332 = vmatprep.subr.mxu0 0.0
        %1333 = vmatpush1.msra.mxu0 %v1275
        %1334 = vmatprep.subr.mxu0 0.0
        %1335 = vmatpush1.msra.mxu0 0.0
        %1336 = vmatprep.subr.mxu0 0.0
        %1337 = vmatpush1.msra.mxu0 0.0
        %1338 = vmatprep.subr.mxu0 0.0
        %1339 = vmatpush1.msra.mxu0 0.0
        %1340 = vmatprep.subr.mxu0 0.0
        %1341 = vmatpush1.msra.mxu0 0.0
        %1342 = vmatprep.subr.mxu0 0.0
        %1343 = vmatpush1.msra.mxu0 0.0
        %1344 = vmatprep.subr.mxu0 0.0
        %1345 = vmatpush1.msra.mxu0 0.0
        %1346 = vmatprep.subr.mxu0 0.0
        %1347 = vmatpush1.msra.mxu0 0.0
        %1348 = vmatprep.subr.mxu0 0.0
        %1349 = vmatpush1.msra.mxu0 0.0
        %1350 = vmatprep.subr.mxu0 0.0
        %1351 = vmatpush1.msra.mxu0 0.0
        %1352 = vmatprep.subr.mxu0 0.0
        %1353 = vmatpush1.msra.mxu0 0.0
        %1354 = vmatprep.subr.mxu0 0.0
        %1355 = vmatpush1.msra.mxu0 0.0
        %1356 = vmatprep.subr.mxu0 0.0
        %1357 = vmatpush1.msra.mxu0 0.0
        %1358 = vmatprep.subr.mxu0 0.0
        %1359 = vmatpush1.msra.mxu0 0.0
        %1360 = vmatprep.subr.mxu0 0.0
        %1361 = vmatpush1.msra.mxu0 0.0
        %1362 = vmatprep.subr.mxu0 0.0
        %1363 = vmatpush1.msra.mxu0 0.0
        %1364 = vmatprep.subr.mxu0 0.0
        %1365 = vmatpush1.msra.mxu0 0.0
        %1366 = vmatprep.subr.mxu0 0.0
        %1367 = vmatpush1.msra.mxu0 0.0
        %1368 = vmatprep.subr.mxu0 0.0
        %1369 = vmatpush1.msra.mxu0 0.0
        %1370 = vmatprep.subr.mxu0 0.0
        %1371 = vmatpush1.msra.mxu0 0.0
        %1372 = vmatprep.subr.mxu0 0.0
        %1373 = vmatpush1.msra.mxu0 0.0
        %1374 = vmatprep.subr.mxu0 0.0
        %1375 = vmatpush1.msra.mxu0 0.0
        %1376 = vmatprep.subr.mxu0 0.0
        %1377 = vmatpush1.msra.mxu0 0.0
        %1378 = vmatprep.subr.mxu0 0.0
        %1379 = vmatpush1.msra.mxu0 0.0
        %1380 = vmatprep.subr.mxu0 0.0
        %1381 = vmatpush1.msra.mxu0 0.0
        %1382 = vmatprep.subr.mxu0 0.0
        %1383 = vmatpush1.msra.mxu0 0.0
        %1384 = vmatprep.subr.mxu0 0.0
        %1385 = vmatpush1.msra.mxu0 0.0
        %1386 = vmatprep.subr.mxu0 0.0
        %1387 = vmatpush1.msra.mxu0 0.0
        %1388 = vmatprep.subr.mxu0 0.0
        %1389 = vmatpush1.msra.mxu0 0.0
        %1390 = vmatprep.mubr.f32.mxu0 0.0
        %1391 = vmatmul.mubr.f32.gmra.mrb[0].mxu0 %v1279
        %v1392 = vpop.f32.mrb[0].mxu0
        %v1393 = vadd.f32 0.0, %v1392
        %v1394 = vpop.f32.mrb[0].mxu0
        %1395 = vmatprep.mubr.f32.mxu0 0.0
        %1396 = vmatmul.mubr.f32.gmra.mrb[0].mxu0 %v1282
        %v1397 = vpop.f32.mrb[0].mxu0
        %v1398 = vadd.f32 0.0, %v1397
        %v1399 = vpop.f32.mrb[0].mxu0
        %1400 = vmatprep.mubr.f32.mxu0 0.0
        %1401 = vmatmul.mubr.f32.gmra.mrb[0].mxu0 %v1285
        %v1402 = vpop.f32.mrb[0].mxu0
        %v1403 = vadd.f32 0.0, %v1402
        %v1404 = vpop.f32.mrb[0].mxu0
        %1405 = vmatprep.mubr.f32.mxu0 0.0
        %1406 = vmatmul.mubr.f32.gmra.mrb[0].mxu0 %v1288
        %v1407 = vpop.f32.mrb[0].mxu0
        %v1408 = vadd.f32 0.0, %v1407
        %v1409 = vpop.f32.mrb[0].mxu0
        %1410 = vmatprep.mubr.f32.mxu0 0.0
        %1411 = vmatmul.mubr.f32.gmra.mrb[0].mxu0 %v1291
        %v1412 = vpop.f32.mrb[0].mxu0
        %v1413 = vadd.f32 0.0, %v1412
        %v1414 = vpop.f32.mrb[0].mxu0
        %1415 = vmatprep.mubr.f32.mxu0 0.0
        %1416 = vmatmul.mubr.f32.gmra.mrb[0].mxu0 %v1294
        %v1417 = vpop.f32.mrb[0].mxu0
        %v1418 = vadd.f32 0.0, %v1417
        %v1419 = vpop.f32.mrb[0].mxu0
        %1420 = vmatprep.mubr.f32.mxu0 0.0
        %1421 = vmatmul.mubr.f32.gmra.mrb[0].mxu0 %v1297
        %v1422 = vpop.f32.mrb[0].mxu0
        %v1423 = vadd.f32 0.0, %v1422
        %v1424 = vpop.f32.mrb[0].mxu0
        %1425 = vmatprep.mubr.f32.mxu0 0.0
        %1426 = vmatmul.mubr.f32.gmra.mrb[0].mxu0 %v1300
        %v1427 = vpop.f32.mrb[0].mxu0
        %v1428 = vadd.f32 0.0, %v1427
        %v1429 = vpop.f32.mrb[0].mxu0
        %1430 = vmatprep.mubr.f32.mxu0 0.0
        %1431 = vmatmul.mubr.f32.gmra.mrb[0].mxu0 %v1303
        %v1432 = vpop.f32.mrb[0].mxu0
        %v1433 = vadd.f32 0.0, %v1432
        %v1434 = vpop.f32.mrb[0].mxu0
        %1435 = vmatprep.mubr.f32.mxu0 0.0
        %1436 = vmatmul.mubr.f32.gmra.mrb[0].mxu0 %v1306
        %v1437 = vpop.f32.mrb[0].mxu0
        %v1438 = vadd.f32 0.0, %v1437
        %v1439 = vpop.f32.mrb[0].mxu0
        %1440 = vmatprep.mubr.f32.mxu0 0.0
        %1441 = vmatmul.mubr.f32.gmra.mrb[0].mxu0 %v1309
        %v1442 = vpop.f32.mrb[0].mxu0
        %v1443 = vadd.f32 0.0, %v1442
        %v1444 = vpop.f32.mrb[0].mxu0
        %1445 = vmatprep.mubr.f32.mxu0 0.0
        %1446 = vmatmul.mubr.f32.gmra.mrb[0].mxu0 %v1312
        %v1447 = vpop.f32.mrb[0].mxu0
        %v1448 = vadd.f32 0.0, %v1447
        %v1449 = vpop.f32.mrb[0].mxu0
        %1450 = vmatprep.mubr.f32.mxu0 0.0
        %1451 = vmatmul.mubr.f32.gmra.mrb[0].mxu0 %v1315
        %v1452 = vpop.f32.mrb[0].mxu0
        %v1453 = vadd.f32 0.0, %v1452
        %v1454 = vpop.f32.mrb[0].mxu0
        %1455 = vmatprep.mubr.f32.mxu0 0.0
        %1456 = vmatmul.mubr.f32.gmra.mrb[0].mxu0 %v1318
        %v1457 = vpop.f32.mrb[0].mxu0
        %v1458 = vadd.f32 0.0, %v1457
        %v1459 = vpop.f32.mrb[0].mxu0
        %1460 = vmatprep.mubr.f32.mxu0 0.0
        %1461 = vmatmul.mubr.f32.gmra.mrb[0].mxu0 %v1321
        %v1462 = vpop.f32.mrb[0].mxu0
        %v1463 = vadd.f32 0.0, %v1462
        %v1464 = vpop.f32.mrb[0].mxu0
        %1465 = vmatprep.mubr.f32.mxu0 0.0
        %1466 = vmatmul.mubr.f32.gmra.mrb[0].mxu0 %v1324
        %v1467 = vpop.f32.mrb[0].mxu0
        %v1468 = vadd.f32 0.0, %v1467
        %v1469 = vpop.f32.mrb[0].mxu0
        %1470 = vdwg.mxu0
        %v1471 = vsub.f32 %v1173, %v1393
        %v1472 = vsub.f32 %v1178, %v1398
        %v1473 = vsub.f32 %v1183, %v1403
        %v1474 = vsub.f32 %v1188, %v1408
        %v1475 = vsub.f32 %v1173, %v1413
        %v1476 = vsub.f32 %v1178, %v1418
        %v1477 = vsub.f32 %v1183, %v1423
        %v1478 = vsub.f32 %v1188, %v1428
        %v1479 = vsub.f32 %v1173, %v1433
        %v1480 = vsub.f32 %v1178, %v1438
        %v1481 = vsub.f32 %v1183, %v1443
        %v1482 = vsub.f32 %v1188, %v1448
        %v1483 = vsub.f32 %v1173, %v1453
        %v1484 = vsub.f32 %v1178, %v1458
        %v1485 = vsub.f32 %v1183, %v1463
        %v1486 = vsub.f32 %v1188, %v1468
        %v1487 = vmax.f32 %v1471, 0.0
        %v1488 = vmax.f32 %v1472, 0.0
        %v1489 = vmax.f32 %v1473, 0.0
        %v1490 = vmax.f32 %v1474, 0.0
        %v1491 = vmax.f32 %v1475, 0.0
        %v1492 = vmax.f32 %v1476, 0.0
        %v1493 = vmax.f32 %v1477, 0.0
        %v1494 = vmax.f32 %v1478, 0.0
        %v1495 = vmax.f32 %v1479, 0.0
        %v1496 = vmax.f32 %v1480, 0.0
        %v1497 = vmax.f32 %v1481, 0.0
        %v1498 = vmax.f32 %v1482, 0.0
        %v1499 = vmax.f32 %v1483, 0.0
        %v1500 = vmax.f32 %v1484, 0.0
        %v1501 = vmax.f32 %v1485, 0.0
        %v1502 = vmax.f32 %v1486, 0.0
        %v1503 = vpack.c.bf16 %v1488, %v1487
        %v1504 = vpack.c.bf16 %v1490, %v1489
        %v1505 = vpack.c.bf16 %v1492, %v1491
        %v1506 = vpack.c.bf16 %v1494, %v1493
        %v1507 = vpack.c.bf16 %v1496, %v1495
        %v1508 = vpack.c.bf16 %v1498, %v1497
        %v1509 = vpack.c.bf16 %v1500, %v1499
        %v1510 = vpack.c.bf16 %v1502, %v1501
        %v1511 = vld [vmem:[#allocation2] sm:$0xf]
        %v1512 = vld [vmem:[#allocation2 + $0x4] sm:$0xf]
        %v1513 = vld [vmem:[#allocation2 + $0x8] sm:$0xf]
        %v1514 = vld [vmem:[#allocation2 + $0xc] sm:$0xf]
        %v1515 = vld [vmem:[#allocation2 + $0x10] sm:$0xf]
        %v1516 = vld [vmem:[#allocation2 + $0x14] sm:$0xf]
        %v1517 = vld [vmem:[#allocation2 + $0x18] sm:$0xf]
        %v1518 = vld [vmem:[#allocation2 + $0x1c] sm:$0xf]
        %v1519 = vld [vmem:[%s2 + $0x39] sm:$0x1]
        %v1520 = vlaneseq
        %v1521 = vshrl.u32 %v1520, 7
        %v1522 = vsub.s32 0, %v1521
        %v1523 = vrot.slane %v1519, %v1522
        %v1532 = vunpack.c.l.b16 %v1511
        %v1533 = vunpack.c.l.b16 %v1512
        %v1534 = vunpack.c.l.b16 %v1513
        %v1535 = vunpack.c.l.b16 %v1514
        %v1536 = vunpack.c.l.b16 %v1515
        %v1537 = vunpack.c.l.b16 %v1516
        %v1538 = vunpack.c.l.b16 %v1517
        %v1539 = vunpack.c.l.b16 %v1518
        %v1540 = vpack.c.b16 %v1533, %v1532
        %v1541 = vpack.c.b16 %v1535, %v1534
        %v1542 = vpack.c.b16 %v1537, %v1536
        %v1543 = vpack.c.b16 %v1539, %v1538
        %vm1548 = vcmask 523264
        %v1550 = vsel %vm1548, %v1503, 0
        %v1553 = vsel %vm1548, %v1504, 0
        %v1556 = vsel %vm1548, %v1505, 0
        %v1559 = vsel %vm1548, %v1506, 0
        %v1562 = vsel %vm1548, %v1507, 0
        %v1565 = vsel %vm1548, %v1508, 0
        %v1568 = vsel %vm1548, %v1509, 0
        %v1571 = vsel %vm1548, %v1510, 0
        %1573 = vmatprep.subr.bf16.mxu0 0
        %1574 = vmatpush1.bf16.msra.mxu0 %v1540
        %1575 = vmatprep.subr.bf16.mxu0 0
        %1576 = vmatpush1.bf16.msra.mxu0 %v1541
        %1577 = vmatprep.subr.bf16.mxu0 0
        %1578 = vmatpush1.bf16.msra.mxu0 %v1542
        %1579 = vmatprep.subr.bf16.mxu0 0
        %1580 = vmatpush1.bf16.msra.mxu0 %v1543
        %1581 = vmatprep.subr.bf16.mxu0 0
        %1582 = vmatpush1.bf16.msra.mxu0 0
        %1583 = vmatprep.subr.bf16.mxu0 0
        %1584 = vmatpush1.bf16.msra.mxu0 0
        %1585 = vmatprep.subr.bf16.mxu0 0
        %1586 = vmatpush1.bf16.msra.mxu0 0
        %1587 = vmatprep.subr.bf16.mxu0 0
        %1588 = vmatpush1.bf16.msra.mxu0 0
        %1589 = vmatprep.subr.bf16.mxu0 0
        %1590 = vmatpush1.bf16.msra.mxu0 0
        %1591 = vmatprep.subr.bf16.mxu0 0
        %1592 = vmatpush1.bf16.msra.mxu0 0
        %1593 = vmatprep.subr.bf16.mxu0 0
        %1594 = vmatpush1.bf16.msra.mxu0 0
        %1595 = vmatprep.subr.bf16.mxu0 0
        %1596 = vmatpush1.bf16.msra.mxu0 0
        %1597 = vmatprep.subr.bf16.mxu0 0
        %1598 = vmatpush1.bf16.msra.mxu0 0
        %1599 = vmatprep.subr.bf16.mxu0 0
        %1600 = vmatpush1.bf16.msra.mxu0 0
        %1601 = vmatprep.subr.bf16.mxu0 0
        %1602 = vmatpush1.bf16.msra.mxu0 0
        %1603 = vmatprep.subr.bf16.mxu0 0
        %1604 = vmatpush1.bf16.msra.mxu0 0
        %1605 = vmatprep.mubr.bf16.mxu0 0
        %1606 = vmatmul.mubr.bf16.gmra.mrb[0].mxu0 %v1550
        %v1607 = vpop.f32.mrb[0].mxu0
        %v1608 = vadd.f32 %v1523, %v1607
        %v1609 = vpop.f32.mrb[0].mxu0
        %v1610 = vpop.f32.mrb[0].mxu0
        %v1611 = vadd.f32 %v1523, %v1610
        %v1612 = vpop.f32.mrb[0].mxu0
        %1613 = vmatprep.mubr.bf16.mxu0 0
        %1614 = vmatmul.mubr.bf16.gmra.mrb[0].mxu0 %v1553
        %v1615 = vpop.f32.mrb[0].mxu0
        %v1616 = vadd.f32 %v1523, %v1615
        %v1617 = vpop.f32.mrb[0].mxu0
        %v1618 = vpop.f32.mrb[0].mxu0
        %v1619 = vadd.f32 %v1523, %v1618
        %v1620 = vpop.f32.mrb[0].mxu0
        %1621 = vmatprep.mubr.bf16.mxu0 0
        %1622 = vmatmul.mubr.bf16.gmra.mrb[0].mxu0 %v1556
        %v1623 = vpop.f32.mrb[0].mxu0
        %v1624 = vadd.f32 %v1523, %v1623
        %v1625 = vpop.f32.mrb[0].mxu0
        %v1626 = vpop.f32.mrb[0].mxu0
        %v1627 = vadd.f32 %v1523, %v1626
        %v1628 = vpop.f32.mrb[0].mxu0
        %1629 = vmatprep.mubr.bf16.mxu0 0
        %1630 = vmatmul.mubr.bf16.gmra.mrb[0].mxu0 %v1559
        %v1631 = vpop.f32.mrb[0].mxu0
        %v1632 = vadd.f32 %v1523, %v1631
        %v1633 = vpop.f32.mrb[0].mxu0
        %v1634 = vpop.f32.mrb[0].mxu0
        %v1635 = vadd.f32 %v1523, %v1634
        %v1636 = vpop.f32.mrb[0].mxu0
        %1637 = vmatprep.mubr.bf16.mxu0 0
        %1638 = vmatmul.mubr.bf16.gmra.mrb[0].mxu0 %v1562
        %v1639 = vpop.f32.mrb[0].mxu0
        %v1640 = vadd.f32 %v1523, %v1639
        %v1641 = vpop.f32.mrb[0].mxu0
        %v1642 = vpop.f32.mrb[0].mxu0
        %v1643 = vadd.f32 %v1523, %v1642
        %v1644 = vpop.f32.mrb[0].mxu0
        %1645 = vmatprep.mubr.bf16.mxu0 0
        %1646 = vmatmul.mubr.bf16.gmra.mrb[0].mxu0 %v1565
        %v1647 = vpop.f32.mrb[0].mxu0
        %v1648 = vadd.f32 %v1523, %v1647
        %v1649 = vpop.f32.mrb[0].mxu0
        %v1650 = vpop.f32.mrb[0].mxu0
        %v1651 = vadd.f32 %v1523, %v1650
        %v1652 = vpop.f32.mrb[0].mxu0
        %1653 = vmatprep.mubr.bf16.mxu0 0
        %1654 = vmatmul.mubr.bf16.gmra.mrb[0].mxu0 %v1568
        %v1655 = vpop.f32.mrb[0].mxu0
        %v1656 = vadd.f32 %v1523, %v1655
        %v1657 = vpop.f32.mrb[0].mxu0
        %v1658 = vpop.f32.mrb[0].mxu0
        %v1659 = vadd.f32 %v1523, %v1658
        %v1660 = vpop.f32.mrb[0].mxu0
        %1661 = vmatprep.mubr.bf16.mxu0 0
        %1662 = vmatmul.mubr.bf16.gmra.mrb[0].mxu0 %v1571
        %v1663 = vpop.f32.mrb[0].mxu0
        %v1664 = vadd.f32 %v1523, %v1663
        %v1665 = vpop.f32.mrb[0].mxu0
        %v1666 = vpop.f32.mrb[0].mxu0
        %v1667 = vadd.f32 %v1523, %v1666
        %v1668 = vpop.f32.mrb[0].mxu0
        %1669 = vdwg.mxu0
        %v1670 = vmax.f32 %v1608, 0.0
        %v1671 = vmax.f32 %v1611, 0.0
        %v1672 = vmax.f32 %v1616, 0.0
        %v1673 = vmax.f32 %v1619, 0.0
        %v1674 = vmax.f32 %v1624, 0.0
        %v1675 = vmax.f32 %v1627, 0.0
        %v1676 = vmax.f32 %v1632, 0.0
        %v1677 = vmax.f32 %v1635, 0.0
        %v1678 = vmax.f32 %v1640, 0.0
        %v1679 = vmax.f32 %v1643, 0.0
        %v1680 = vmax.f32 %v1648, 0.0
        %v1681 = vmax.f32 %v1651, 0.0
        %v1682 = vmax.f32 %v1656, 0.0
        %v1683 = vmax.f32 %v1659, 0.0
        %v1684 = vmax.f32 %v1664, 0.0
        %v1685 = vmax.f32 %v1667, 0.0
        %v1686 = vpack.c.bf16 %v1671, %v1670
        %v1687 = vpack.c.bf16 %v1673, %v1672
        %v1688 = vpack.c.bf16 %v1675, %v1674
        %v1689 = vpack.c.bf16 %v1677, %v1676
        %v1690 = vpack.c.bf16 %v1679, %v1678
        %v1691 = vpack.c.bf16 %v1681, %v1680
        %v1692 = vpack.c.bf16 %v1683, %v1682
        %v1693 = vpack.c.bf16 %v1685, %v1684
        %v1694 = vld [vmem:[#allocation2 + $0x20] sm:$0xf]
        %v1695 = vld [vmem:[#allocation2 + $0x24] sm:$0xf]
        %v1696 = vld [vmem:[#allocation2 + $0x28] sm:$0xf]
        %v1697 = vld [vmem:[#allocation2 + $0x2c] sm:$0xf]
        %v1698 = vld [vmem:[#allocation2 + $0x30] sm:$0xf]
        %v1699 = vld [vmem:[#allocation2 + $0x34] sm:$0xf]
        %v1700 = vld [vmem:[#allocation2 + $0x38] sm:$0xf]
        %v1701 = vld [vmem:[#allocation2 + $0x3c] sm:$0xf]
        %v1702 = vld [vmem:[#allocation2 + $0x40] sm:$0xf]
        %v1703 = vld [vmem:[#allocation2 + $0x44] sm:$0xf]
        %v1704 = vld [vmem:[#allocation2 + $0x48] sm:$0xf]
        %v1705 = vld [vmem:[#allocation2 + $0x4c] sm:$0xf]
        %v1706 = vld [vmem:[#allocation2 + $0x50] sm:$0xf]
        %v1707 = vld [vmem:[#allocation2 + $0x54] sm:$0xf]
        %v1708 = vld [vmem:[#allocation2 + $0x58] sm:$0xf]
        %v1709 = vld [vmem:[#allocation2 + $0x5c] sm:$0xf]
        %v1710 = vld [vmem:[%s2 + $0x3a] sm:$0x1]
        %v1711 = vlaneseq
        %v1712 = vshrl.u32 %v1711, 7
        %v1713 = vsub.s32 0, %v1712
        %v1714 = vrot.slane %v1710, %v1713
        %v1731 = vunpack.c.l.b16 %v1694
        %v1732 = vunpack.c.l.b16 %v1695
        %v1733 = vunpack.c.l.b16 %v1696
        %v1734 = vunpack.c.l.b16 %v1697
        %v1735 = vunpack.c.l.b16 %v1698
        %v1736 = vunpack.c.l.b16 %v1699
        %v1737 = vunpack.c.l.b16 %v1700
        %v1738 = vunpack.c.l.b16 %v1701
        %v1739 = vunpack.c.l.b16 %v1702
        %v1740 = vunpack.c.l.b16 %v1703
        %v1741 = vunpack.c.l.b16 %v1704
        %v1742 = vunpack.c.l.b16 %v1705
        %v1743 = vunpack.c.l.b16 %v1706
        %v1744 = vunpack.c.l.b16 %v1707
        %v1745 = vunpack.c.l.b16 %v1708
        %v1746 = vunpack.c.l.b16 %v1709
        %v1747 = vpack.c.b16 %v1732, %v1731
        %v1748 = vpack.c.b16 %v1734, %v1733
        %v1749 = vpack.c.b16 %v1736, %v1735
        %v1750 = vpack.c.b16 %v1738, %v1737
        %v1751 = vpack.c.b16 %v1740, %v1739
        %v1752 = vpack.c.b16 %v1742, %v1741
        %v1753 = vpack.c.b16 %v1744, %v1743
        %v1754 = vpack.c.b16 %v1746, %v1745
        %1763 = vmatprep.subr.bf16.mxu0 0
        %1764 = vmatpush1.bf16.msra.mxu0 %v1747
        %1765 = vmatprep.subr.bf16.mxu0 0
        %1766 = vmatpush1.bf16.msra.mxu0 %v1748
        %1767 = vmatprep.subr.bf16.mxu0 0
        %1768 = vmatpush1.bf16.msra.mxu0 %v1749
        %1769 = vmatprep.subr.bf16.mxu0 0
        %1770 = vmatpush1.bf16.msra.mxu0 %v1750
        %1771 = vmatprep.subr.bf16.mxu0 0
        %1772 = vmatpush1.bf16.msra.mxu0 %v1751
        %1773 = vmatprep.subr.bf16.mxu0 0
        %1774 = vmatpush1.bf16.msra.mxu0 %v1752
        %1775 = vmatprep.subr.bf16.mxu0 0
        %1776 = vmatpush1.bf16.msra.mxu0 %v1753
        %1777 = vmatprep.subr.bf16.mxu0 0
        %1778 = vmatpush1.bf16.msra.mxu0 %v1754
        %1779 = vmatprep.subr.bf16.mxu0 0
        %1780 = vmatpush1.bf16.msra.mxu0 0
        %1781 = vmatprep.subr.bf16.mxu0 0
        %1782 = vmatpush1.bf16.msra.mxu0 0
        %1783 = vmatprep.subr.bf16.mxu0 0
        %1784 = vmatpush1.bf16.msra.mxu0 0
        %1785 = vmatprep.subr.bf16.mxu0 0
        %1786 = vmatpush1.bf16.msra.mxu0 0
        %1787 = vmatprep.subr.bf16.mxu0 0
        %1788 = vmatpush1.bf16.msra.mxu0 0
        %1789 = vmatprep.subr.bf16.mxu0 0
        %1790 = vmatpush1.bf16.msra.mxu0 0
        %1791 = vmatprep.subr.bf16.mxu0 0
        %1792 = vmatpush1.bf16.msra.mxu0 0
        %1793 = vmatprep.subr.bf16.mxu0 0
        %1794 = vmatpush1.bf16.msra.mxu0 0
        %1795 = vmatprep.mubr.bf16.mxu0 0
        %1796 = vmatmul.mubr.bf16.gmra.mrb[0].mxu0 %v1686
        %v1797 = vpop.f32.mrb[0].mxu0
        %v1798 = vadd.f32 %v1714, %v1797
        %v1799 = vpop.f32.mrb[0].mxu0
        %v1800 = vpop.f32.mrb[0].mxu0
        %v1801 = vadd.f32 %v1714, %v1800
        %v1802 = vpop.f32.mrb[0].mxu0
        %1803 = vmatprep.mubr.bf16.mxu0 0
        %1804 = vmatmul.mubr.bf16.gmra.mrb[0].mxu0 %v1687
        %v1805 = vpop.f32.mrb[0].mxu0
        %v1806 = vadd.f32 %v1714, %v1805
        %v1807 = vpop.f32.mrb[0].mxu0
        %v1808 = vpop.f32.mrb[0].mxu0
        %v1809 = vadd.f32 %v1714, %v1808
        %v1810 = vpop.f32.mrb[0].mxu0
        %1811 = vmatprep.mubr.bf16.mxu0 0
        %1812 = vmatmul.mubr.bf16.gmra.mrb[0].mxu0 %v1688
        %v1813 = vpop.f32.mrb[0].mxu0
        %v1814 = vadd.f32 %v1714, %v1813
        %v1815 = vpop.f32.mrb[0].mxu0
        %v1816 = vpop.f32.mrb[0].mxu0
        %v1817 = vadd.f32 %v1714, %v1816
        %v1818 = vpop.f32.mrb[0].mxu0
        %1819 = vmatprep.mubr.bf16.mxu0 0
        %1820 = vmatmul.mubr.bf16.gmra.mrb[0].mxu0 %v1689
        %v1821 = vpop.f32.mrb[0].mxu0
        %v1822 = vadd.f32 %v1714, %v1821
        %v1823 = vpop.f32.mrb[0].mxu0
        %v1824 = vpop.f32.mrb[0].mxu0
        %v1825 = vadd.f32 %v1714, %v1824
        %v1826 = vpop.f32.mrb[0].mxu0
        %1827 = vmatprep.mubr.bf16.mxu0 0
        %1828 = vmatmul.mubr.bf16.gmra.mrb[0].mxu0 %v1690
        %v1829 = vpop.f32.mrb[0].mxu0
        %v1830 = vadd.f32 %v1714, %v1829
        %v1831 = vpop.f32.mrb[0].mxu0
        %v1832 = vpop.f32.mrb[0].mxu0
        %v1833 = vadd.f32 %v1714, %v1832
        %v1834 = vpop.f32.mrb[0].mxu0
        %1835 = vmatprep.mubr.bf16.mxu0 0
        %1836 = vmatmul.mubr.bf16.gmra.mrb[0].mxu0 %v1691
        %v1837 = vpop.f32.mrb[0].mxu0
        %v1838 = vadd.f32 %v1714, %v1837
        %v1839 = vpop.f32.mrb[0].mxu0
        %v1840 = vpop.f32.mrb[0].mxu0
        %v1841 = vadd.f32 %v1714, %v1840
        %v1842 = vpop.f32.mrb[0].mxu0
        %1843 = vmatprep.mubr.bf16.mxu0 0
        %1844 = vmatmul.mubr.bf16.gmra.mrb[0].mxu0 %v1692
        %v1845 = vpop.f32.mrb[0].mxu0
        %v1846 = vadd.f32 %v1714, %v1845
        %v1847 = vpop.f32.mrb[0].mxu0
        %v1848 = vpop.f32.mrb[0].mxu0
        %v1849 = vadd.f32 %v1714, %v1848
        %v1850 = vpop.f32.mrb[0].mxu0
        %1851 = vmatprep.mubr.bf16.mxu0 0
        %1852 = vmatmul.mubr.bf16.gmra.mrb[0].mxu0 %v1693
        %v1853 = vpop.f32.mrb[0].mxu0
        %v1854 = vadd.f32 %v1714, %v1853
        %v1855 = vpop.f32.mrb[0].mxu0
        %v1856 = vpop.f32.mrb[0].mxu0
        %v1857 = vadd.f32 %v1714, %v1856
        %v1858 = vpop.f32.mrb[0].mxu0
        %1859 = vdwg.mxu0
        %v1860 = vmax.f32 %v1798, 0.0
        %v1861 = vmax.f32 %v1801, 0.0
        %v1862 = vmax.f32 %v1806, 0.0
        %v1863 = vmax.f32 %v1809, 0.0
        %v1864 = vmax.f32 %v1814, 0.0
        %v1865 = vmax.f32 %v1817, 0.0
        %v1866 = vmax.f32 %v1822, 0.0
        %v1867 = vmax.f32 %v1825, 0.0
        %v1868 = vmax.f32 %v1830, 0.0
        %v1869 = vmax.f32 %v1833, 0.0
        %v1870 = vmax.f32 %v1838, 0.0
        %v1871 = vmax.f32 %v1841, 0.0
        %v1872 = vmax.f32 %v1846, 0.0
        %v1873 = vmax.f32 %v1849, 0.0
        %v1874 = vmax.f32 %v1854, 0.0
        %v1875 = vmax.f32 %v1857, 0.0
        %v1876 = vpack.c.bf16 %v1861, %v1860
        %v1877 = vpack.c.bf16 %v1863, %v1862
        %v1878 = vpack.c.bf16 %v1865, %v1864
        %v1879 = vpack.c.bf16 %v1867, %v1866
        %v1880 = vpack.c.bf16 %v1869, %v1868
        %v1881 = vpack.c.bf16 %v1871, %v1870
        %v1882 = vpack.c.bf16 %v1873, %v1872
        %v1883 = vpack.c.bf16 %v1875, %v1874
        %v1884 = vld [vmem:[#allocation2 + $0x60] sm:$0xf]
        %v1885 = vld [vmem:[#allocation2 + $0x64] sm:$0xf]
        %v1886 = vld [vmem:[#allocation2 + $0x68] sm:$0xf]
        %v1887 = vld [vmem:[#allocation2 + $0x6c] sm:$0xf]
        %v1888 = vld [vmem:[#allocation2 + $0x70] sm:$0xf]
        %v1889 = vld [vmem:[#allocation2 + $0x74] sm:$0xf]
        %v1890 = vld [vmem:[#allocation2 + $0x78] sm:$0xf]
        %v1891 = vld [vmem:[#allocation2 + $0x7c] sm:$0xf]
        %v1892 = vld [vmem:[#allocation2 + $0x80] sm:$0xf]
        %v1893 = vld [vmem:[#allocation2 + $0x84] sm:$0xf]
        %v1894 = vld [vmem:[#allocation2 + $0x88] sm:$0xf]
        %v1895 = vld [vmem:[#allocation2 + $0x8c] sm:$0xf]
        %v1896 = vld [vmem:[#allocation2 + $0x90] sm:$0xf]
        %v1897 = vld [vmem:[#allocation2 + $0x94] sm:$0xf]
        %v1898 = vld [vmem:[#allocation2 + $0x98] sm:$0xf]
        %v1899 = vld [vmem:[#allocation2 + $0x9c] sm:$0xf]
        %v1900 = vld [vmem:[%s2 + $0x3b] sm:$0x1]
        %v1901 = vlaneseq
        %v1902 = vshrl.u32 %v1901, 7
        %v1903 = vsub.s32 0, %v1902
        %v1904 = vrot.slane %v1900, %v1903
        %v1921 = vunpack.c.l.b16 %v1884
        %v1922 = vunpack.c.l.b16 %v1885
        %v1923 = vunpack.c.l.b16 %v1886
        %v1924 = vunpack.c.l.b16 %v1887
        %v1925 = vunpack.c.l.b16 %v1888
        %v1926 = vunpack.c.l.b16 %v1889
        %v1927 = vunpack.c.l.b16 %v1890
        %v1928 = vunpack.c.l.b16 %v1891
        %v1929 = vunpack.c.l.b16 %v1892
        %v1930 = vunpack.c.l.b16 %v1893
        %v1931 = vunpack.c.l.b16 %v1894
        %v1932 = vunpack.c.l.b16 %v1895
        %v1933 = vunpack.c.l.b16 %v1896
        %v1934 = vunpack.c.l.b16 %v1897
        %v1935 = vunpack.c.l.b16 %v1898
        %v1936 = vunpack.c.l.b16 %v1899
        %v1937 = vpack.c.b16 %v1922, %v1921
        %v1938 = vpack.c.b16 %v1924, %v1923
        %v1939 = vpack.c.b16 %v1926, %v1925
        %v1940 = vpack.c.b16 %v1928, %v1927
        %v1941 = vpack.c.b16 %v1930, %v1929
        %v1942 = vpack.c.b16 %v1932, %v1931
        %v1943 = vpack.c.b16 %v1934, %v1933
        %v1944 = vpack.c.b16 %v1936, %v1935
        %1953 = vmatprep.subr.bf16.mxu0 0
        %1954 = vmatpush1.bf16.msra.mxu0 %v1937
        %1955 = vmatprep.subr.bf16.mxu0 0
        %1956 = vmatpush1.bf16.msra.mxu0 %v1938
        %1957 = vmatprep.subr.bf16.mxu0 0
        %1958 = vmatpush1.bf16.msra.mxu0 %v1939
        %1959 = vmatprep.subr.bf16.mxu0 0
        %1960 = vmatpush1.bf16.msra.mxu0 %v1940
        %1961 = vmatprep.subr.bf16.mxu0 0
        %1962 = vmatpush1.bf16.msra.mxu0 %v1941
        %1963 = vmatprep.subr.bf16.mxu0 0
        %1964 = vmatpush1.bf16.msra.mxu0 %v1942
        %1965 = vmatprep.subr.bf16.mxu0 0
        %1966 = vmatpush1.bf16.msra.mxu0 %v1943
        %1967 = vmatprep.subr.bf16.mxu0 0
        %1968 = vmatpush1.bf16.msra.mxu0 %v1944
        %1969 = vmatprep.subr.bf16.mxu0 0
        %1970 = vmatpush1.bf16.msra.mxu0 0
        %1971 = vmatprep.subr.bf16.mxu0 0
        %1972 = vmatpush1.bf16.msra.mxu0 0
        %1973 = vmatprep.subr.bf16.mxu0 0
        %1974 = vmatpush1.bf16.msra.mxu0 0
        %1975 = vmatprep.subr.bf16.mxu0 0
        %1976 = vmatpush1.bf16.msra.mxu0 0
        %1977 = vmatprep.subr.bf16.mxu0 0
        %1978 = vmatpush1.bf16.msra.mxu0 0
        %1979 = vmatprep.subr.bf16.mxu0 0
        %1980 = vmatpush1.bf16.msra.mxu0 0
        %1981 = vmatprep.subr.bf16.mxu0 0
        %1982 = vmatpush1.bf16.msra.mxu0 0
        %1983 = vmatprep.subr.bf16.mxu0 0
        %1984 = vmatpush1.bf16.msra.mxu0 0
        %1985 = vmatprep.mubr.bf16.mxu0 0
        %1986 = vmatmul.mubr.bf16.gmra.mrb[0].mxu0 %v1876
        %v1987 = vpop.f32.mrb[0].mxu0
        %v1988 = vadd.f32 %v1904, %v1987
        %v1989 = vpop.f32.mrb[0].mxu0
        %v1990 = vpop.f32.mrb[0].mxu0
        %v1991 = vadd.f32 %v1904, %v1990
        %v1992 = vpop.f32.mrb[0].mxu0
        %1993 = vmatprep.mubr.bf16.mxu0 0
        %1994 = vmatmul.mubr.bf16.gmra.mrb[0].mxu0 %v1877
        %v1995 = vpop.f32.mrb[0].mxu0
        %v1996 = vadd.f32 %v1904, %v1995
        %v1997 = vpop.f32.mrb[0].mxu0
        %v1998 = vpop.f32.mrb[0].mxu0
        %v1999 = vadd.f32 %v1904, %v1998
        %v2000 = vpop.f32.mrb[0].mxu0
        %2001 = vmatprep.mubr.bf16.mxu0 0
        %2002 = vmatmul.mubr.bf16.gmra.mrb[0].mxu0 %v1878
        %v2003 = vpop.f32.mrb[0].mxu0
        %v2004 = vadd.f32 %v1904, %v2003
        %v2005 = vpop.f32.mrb[0].mxu0
        %v2006 = vpop.f32.mrb[0].mxu0
        %v2007 = vadd.f32 %v1904, %v2006
        %v2008 = vpop.f32.mrb[0].mxu0
        %2009 = vmatprep.mubr.bf16.mxu0 0
        %2010 = vmatmul.mubr.bf16.gmra.mrb[0].mxu0 %v1879
        %v2011 = vpop.f32.mrb[0].mxu0
        %v2012 = vadd.f32 %v1904, %v2011
        %v2013 = vpop.f32.mrb[0].mxu0
        %v2014 = vpop.f32.mrb[0].mxu0
        %v2015 = vadd.f32 %v1904, %v2014
        %v2016 = vpop.f32.mrb[0].mxu0
        %2017 = vmatprep.mubr.bf16.mxu0 0
        %2018 = vmatmul.mubr.bf16.gmra.mrb[0].mxu0 %v1880
        %v2019 = vpop.f32.mrb[0].mxu0
        %v2020 = vadd.f32 %v1904, %v2019
        %v2021 = vpop.f32.mrb[0].mxu0
        %v2022 = vpop.f32.mrb[0].mxu0
        %v2023 = vadd.f32 %v1904, %v2022
        %v2024 = vpop.f32.mrb[0].mxu0
        %2025 = vmatprep.mubr.bf16.mxu0 0
        %2026 = vmatmul.mubr.bf16.gmra.mrb[0].mxu0 %v1881
        %v2027 = vpop.f32.mrb[0].mxu0
        %v2028 = vadd.f32 %v1904, %v2027
        %v2029 = vpop.f32.mrb[0].mxu0
        %v2030 = vpop.f32.mrb[0].mxu0
        %v2031 = vadd.f32 %v1904, %v2030
        %v2032 = vpop.f32.mrb[0].mxu0
        %2033 = vmatprep.mubr.bf16.mxu0 0
        %2034 = vmatmul.mubr.bf16.gmra.mrb[0].mxu0 %v1882
        %v2035 = vpop.f32.mrb[0].mxu0
        %v2036 = vadd.f32 %v1904, %v2035
        %v2037 = vpop.f32.mrb[0].mxu0
        %v2038 = vpop.f32.mrb[0].mxu0
        %v2039 = vadd.f32 %v1904, %v2038
        %v2040 = vpop.f32.mrb[0].mxu0
        %2041 = vmatprep.mubr.bf16.mxu0 0
        %2042 = vmatmul.mubr.bf16.gmra.mrb[0].mxu0 %v1883
        %v2043 = vpop.f32.mrb[0].mxu0
        %v2044 = vadd.f32 %v1904, %v2043
        %v2045 = vpop.f32.mrb[0].mxu0
        %v2046 = vpop.f32.mrb[0].mxu0
        %v2047 = vadd.f32 %v1904, %v2046
        %v2048 = vpop.f32.mrb[0].mxu0
        %2049 = vdwg.mxu0
        %v2050 = vmax.f32 %v1988, 0.0
        %v2051 = vmax.f32 %v1991, 0.0
        %v2052 = vmax.f32 %v1996, 0.0
        %v2053 = vmax.f32 %v1999, 0.0
        %v2054 = vmax.f32 %v2004, 0.0
        %v2055 = vmax.f32 %v2007, 0.0
        %v2056 = vmax.f32 %v2012, 0.0
        %v2057 = vmax.f32 %v2015, 0.0
        %v2058 = vmax.f32 %v2020, 0.0
        %v2059 = vmax.f32 %v2023, 0.0
        %v2060 = vmax.f32 %v2028, 0.0
        %v2061 = vmax.f32 %v2031, 0.0
        %v2062 = vmax.f32 %v2036, 0.0
        %v2063 = vmax.f32 %v2039, 0.0
        %v2064 = vmax.f32 %v2044, 0.0
        %v2065 = vmax.f32 %v2047, 0.0
        %v2066 = vpack.c.bf16 %v2051, %v2050
        %v2067 = vpack.c.bf16 %v2053, %v2052
        %v2068 = vpack.c.bf16 %v2055, %v2054
        %v2069 = vpack.c.bf16 %v2057, %v2056
        %v2070 = vpack.c.bf16 %v2059, %v2058
        %v2071 = vpack.c.bf16 %v2061, %v2060
        %v2072 = vpack.c.bf16 %v2063, %v2062
        %v2073 = vpack.c.bf16 %v2065, %v2064
        %v2074 = vld [vmem:[#allocation2 + $0xa0] sm:$0xf]
        %v2075 = vld [vmem:[#allocation2 + $0xa4] sm:$0xf]
        %v2076 = vld [vmem:[#allocation2 + $0xa8] sm:$0xf]
        %v2077 = vld [vmem:[#allocation2 + $0xac] sm:$0xf]
        %v2078 = vld [vmem:[#allocation2 + $0xb0] sm:$0xf]
        %v2079 = vld [vmem:[#allocation2 + $0xb4] sm:$0xf]
        %v2080 = vld [vmem:[#allocation2 + $0xb8] sm:$0xf]
        %v2081 = vld [vmem:[#allocation2 + $0xbc] sm:$0xf]
        %v2082 = vld [vmem:[#allocation2 + $0xc0] sm:$0xf]
        %v2083 = vld [vmem:[#allocation2 + $0xc4] sm:$0xf]
        %v2084 = vld [vmem:[#allocation2 + $0xc8] sm:$0xf]
        %v2085 = vld [vmem:[#allocation2 + $0xcc] sm:$0xf]
        %v2086 = vld [vmem:[#allocation2 + $0xd0] sm:$0xf]
        %v2087 = vld [vmem:[#allocation2 + $0xd4] sm:$0xf]
        %v2088 = vld [vmem:[#allocation2 + $0xd8] sm:$0xf]
        %v2089 = vld [vmem:[#allocation2 + $0xdc] sm:$0xf]
        %v2090 = vld [vmem:[%s2 + $0x3c] sm:$0x1]
        %v2091 = vlaneseq
        %v2092 = vshrl.u32 %v2091, 7
        %v2093 = vsub.s32 0, %v2092
        %v2094 = vrot.slane %v2090, %v2093
        %v2111 = vunpack.c.l.b16 %v2074
        %v2112 = vunpack.c.l.b16 %v2075
        %v2113 = vunpack.c.l.b16 %v2076
        %v2114 = vunpack.c.l.b16 %v2077
        %v2115 = vunpack.c.l.b16 %v2078
        %v2116 = vunpack.c.l.b16 %v2079
        %v2117 = vunpack.c.l.b16 %v2080
        %v2118 = vunpack.c.l.b16 %v2081
        %v2119 = vunpack.c.l.b16 %v2082
        %v2120 = vunpack.c.l.b16 %v2083
        %v2121 = vunpack.c.l.b16 %v2084
        %v2122 = vunpack.c.l.b16 %v2085
        %v2123 = vunpack.c.l.b16 %v2086
        %v2124 = vunpack.c.l.b16 %v2087
        %v2125 = vunpack.c.l.b16 %v2088
        %v2126 = vunpack.c.l.b16 %v2089
        %v2127 = vpack.c.b16 %v2112, %v2111
        %v2128 = vpack.c.b16 %v2114, %v2113
        %v2129 = vpack.c.b16 %v2116, %v2115
        %v2130 = vpack.c.b16 %v2118, %v2117
        %v2131 = vpack.c.b16 %v2120, %v2119
        %v2132 = vpack.c.b16 %v2122, %v2121
        %v2133 = vpack.c.b16 %v2124, %v2123
        %v2134 = vpack.c.b16 %v2126, %v2125
        %2143 = vmatprep.subr.bf16.mxu0 0
        %2144 = vmatpush1.bf16.msra.mxu0 %v2127
        %2145 = vmatprep.subr.bf16.mxu0 0
        %2146 = vmatpush1.bf16.msra.mxu0 %v2128
        %2147 = vmatprep.subr.bf16.mxu0 0
        %2148 = vmatpush1.bf16.msra.mxu0 %v2129
        %2149 = vmatprep.subr.bf16.mxu0 0
        %2150 = vmatpush1.bf16.msra.mxu0 %v2130
        %2151 = vmatprep.subr.bf16.mxu0 0
        %2152 = vmatpush1.bf16.msra.mxu0 %v2131
        %2153 = vmatprep.subr.bf16.mxu0 0
        %2154 = vmatpush1.bf16.msra.mxu0 %v2132
        %2155 = vmatprep.subr.bf16.mxu0 0
        %2156 = vmatpush1.bf16.msra.mxu0 %v2133
        %2157 = vmatprep.subr.bf16.mxu0 0
        %2158 = vmatpush1.bf16.msra.mxu0 %v2134
        %2159 = vmatprep.subr.bf16.mxu0 0
        %2160 = vmatpush1.bf16.msra.mxu0 0
        %2161 = vmatprep.subr.bf16.mxu0 0
        %2162 = vmatpush1.bf16.msra.mxu0 0
        %2163 = vmatprep.subr.bf16.mxu0 0
        %2164 = vmatpush1.bf16.msra.mxu0 0
        %2165 = vmatprep.subr.bf16.mxu0 0
        %2166 = vmatpush1.bf16.msra.mxu0 0
        %2167 = vmatprep.subr.bf16.mxu0 0
        %2168 = vmatpush1.bf16.msra.mxu0 0
        %2169 = vmatprep.subr.bf16.mxu0 0
        %2170 = vmatpush1.bf16.msra.mxu0 0
        %2171 = vmatprep.subr.bf16.mxu0 0
        %2172 = vmatpush1.bf16.msra.mxu0 0
        %2173 = vmatprep.subr.bf16.mxu0 0
        %2174 = vmatpush1.bf16.msra.mxu0 0
        %2175 = vmatprep.mubr.bf16.mxu0 0
        %2176 = vmatmul.mubr.bf16.gmra.mrb[0].mxu0 %v2066
        %v2177 = vpop.f32.mrb[0].mxu0
        %v2178 = vadd.f32 %v2094, %v2177
        %v2179 = vpop.f32.mrb[0].mxu0
        %v2180 = vpop.f32.mrb[0].mxu0
        %v2181 = vadd.f32 %v2094, %v2180
        %v2182 = vpop.f32.mrb[0].mxu0
        %2183 = vmatprep.mubr.bf16.mxu0 0
        %2184 = vmatmul.mubr.bf16.gmra.mrb[0].mxu0 %v2067
        %v2185 = vpop.f32.mrb[0].mxu0
        %v2186 = vadd.f32 %v2094, %v2185
        %v2187 = vpop.f32.mrb[0].mxu0
        %v2188 = vpop.f32.mrb[0].mxu0
        %v2189 = vadd.f32 %v2094, %v2188
        %v2190 = vpop.f32.mrb[0].mxu0
        %2191 = vmatprep.mubr.bf16.mxu0 0
        %2192 = vmatmul.mubr.bf16.gmra.mrb[0].mxu0 %v2068
        %v2193 = vpop.f32.mrb[0].mxu0
        %v2194 = vadd.f32 %v2094, %v2193
        %v2195 = vpop.f32.mrb[0].mxu0
        %v2196 = vpop.f32.mrb[0].mxu0
        %v2197 = vadd.f32 %v2094, %v2196
        %v2198 = vpop.f32.mrb[0].mxu0
        %2199 = vmatprep.mubr.bf16.mxu0 0
        %2200 = vmatmul.mubr.bf16.gmra.mrb[0].mxu0 %v2069
        %v2201 = vpop.f32.mrb[0].mxu0
        %v2202 = vadd.f32 %v2094, %v2201
        %v2203 = vpop.f32.mrb[0].mxu0
        %v2204 = vpop.f32.mrb[0].mxu0
        %v2205 = vadd.f32 %v2094, %v2204
        %v2206 = vpop.f32.mrb[0].mxu0
        %2207 = vmatprep.mubr.bf16.mxu0 0
        %2208 = vmatmul.mubr.bf16.gmra.mrb[0].mxu0 %v2070
        %v2209 = vpop.f32.mrb[0].mxu0
        %v2210 = vadd.f32 %v2094, %v2209
        %v2211 = vpop.f32.mrb[0].mxu0
        %v2212 = vpop.f32.mrb[0].mxu0
        %v2213 = vadd.f32 %v2094, %v2212
        %v2214 = vpop.f32.mrb[0].mxu0
        %2215 = vmatprep.mubr.bf16.mxu0 0
        %2216 = vmatmul.mubr.bf16.gmra.mrb[0].mxu0 %v2071
        %v2217 = vpop.f32.mrb[0].mxu0
        %v2218 = vadd.f32 %v2094, %v2217
        %v2219 = vpop.f32.mrb[0].mxu0
        %v2220 = vpop.f32.mrb[0].mxu0
        %v2221 = vadd.f32 %v2094, %v2220
        %v2222 = vpop.f32.mrb[0].mxu0
        %2223 = vmatprep.mubr.bf16.mxu0 0
        %2224 = vmatmul.mubr.bf16.gmra.mrb[0].mxu0 %v2072
        %v2225 = vpop.f32.mrb[0].mxu0
        %v2226 = vadd.f32 %v2094, %v2225
        %v2227 = vpop.f32.mrb[0].mxu0
        %v2228 = vpop.f32.mrb[0].mxu0
        %v2229 = vadd.f32 %v2094, %v2228
        %v2230 = vpop.f32.mrb[0].mxu0
        %2231 = vmatprep.mubr.bf16.mxu0 0
        %2232 = vmatmul.mubr.bf16.gmra.mrb[0].mxu0 %v2073
        %v2233 = vpop.f32.mrb[0].mxu0
        %v2234 = vadd.f32 %v2094, %v2233
        %v2235 = vpop.f32.mrb[0].mxu0
        %v2236 = vpop.f32.mrb[0].mxu0
        %v2237 = vadd.f32 %v2094, %v2236
        %v2238 = vpop.f32.mrb[0].mxu0
        %2239 = vdwg.mxu0
        %v2240 = vmax.f32 %v2178, 0.0
        %v2241 = vmax.f32 %v2181, 0.0
        %v2242 = vmax.f32 %v2186, 0.0
        %v2243 = vmax.f32 %v2189, 0.0
        %v2244 = vmax.f32 %v2194, 0.0
        %v2245 = vmax.f32 %v2197, 0.0
        %v2246 = vmax.f32 %v2202, 0.0
        %v2247 = vmax.f32 %v2205, 0.0
        %v2248 = vmax.f32 %v2210, 0.0
        %v2249 = vmax.f32 %v2213, 0.0
        %v2250 = vmax.f32 %v2218, 0.0
        %v2251 = vmax.f32 %v2221, 0.0
        %v2252 = vmax.f32 %v2226, 0.0
        %v2253 = vmax.f32 %v2229, 0.0
        %v2254 = vmax.f32 %v2234, 0.0
        %v2255 = vmax.f32 %v2237, 0.0
        %v2256 = vpack.c.bf16 %v2241, %v2240
        %v2257 = vpack.c.bf16 %v2243, %v2242
        %v2258 = vpack.c.bf16 %v2245, %v2244
        %v2259 = vpack.c.bf16 %v2247, %v2246
        %v2260 = vpack.c.bf16 %v2249, %v2248
        %v2261 = vpack.c.bf16 %v2251, %v2250
        %v2262 = vpack.c.bf16 %v2253, %v2252
        %v2263 = vpack.c.bf16 %v2255, %v2254
        %v2264 = vld [vmem:[#allocation2 + $0xe0] sm:$0xf]
        %v2265 = vld [vmem:[#allocation2 + $0xe4] sm:$0xf]
        %v2266 = vld [vmem:[#allocation2 + $0xe8] sm:$0xf]
        %v2267 = vld [vmem:[#allocation2 + $0xec] sm:$0xf]
        %v2268 = vld [vmem:[#allocation2 + $0xf0] sm:$0xf]
        %v2269 = vld [vmem:[#allocation2 + $0xf4] sm:$0xf]
        %v2270 = vld [vmem:[#allocation2 + $0xf8] sm:$0xf]
        %v2271 = vld [vmem:[#allocation2 + $0xfc] sm:$0xf]
        %v2272 = vld [vmem:[%s2 + $0x3d] sm:$0x1]
        %v2273 = vlaneseq
        %v2274 = vshrl.u32 %v2273, 7
        %v2275 = vsub.s32 0, %v2274
        %v2276 = vrot.slane %v2272, %v2275
        %v2285 = vunpack.c.l.b16 %v2264
        %v2286 = vunpack.c.l.b16 %v2265
        %v2287 = vunpack.c.l.b16 %v2266
        %v2288 = vunpack.c.l.b16 %v2267
        %v2289 = vunpack.c.l.b16 %v2268
        %v2290 = vunpack.c.l.b16 %v2269
        %v2291 = vunpack.c.l.b16 %v2270
        %v2292 = vunpack.c.l.b16 %v2271
        %v2293 = vpack.c.b16 %v2286, %v2285
        %v2294 = vpack.c.b16 %v2288, %v2287
        %v2295 = vpack.c.b16 %v2290, %v2289
        %v2296 = vpack.c.b16 %v2292, %v2291
        %v2302 = vsel %vm1548, %v2256, 0
        %v2305 = vsel %vm1548, %v2257, 0
        %v2308 = vsel %vm1548, %v2258, 0
        %v2311 = vsel %vm1548, %v2259, 0
        %v2314 = vsel %vm1548, %v2260, 0
        %v2317 = vsel %vm1548, %v2261, 0
        %v2320 = vsel %vm1548, %v2262, 0
        %v2323 = vsel %vm1548, %v2263, 0
        %2325 = vmatprep.subr.bf16.mxu0 0
        %2326 = vmatpush1.bf16.msra.mxu0 %v2293
        %2327 = vmatprep.subr.bf16.mxu0 0
        %2328 = vmatpush1.bf16.msra.mxu0 %v2294
        %2329 = vmatprep.subr.bf16.mxu0 0
        %2330 = vmatpush1.bf16.msra.mxu0 %v2295
        %2331 = vmatprep.subr.bf16.mxu0 0
        %2332 = vmatpush1.bf16.msra.mxu0 %v2296
        %2333 = vmatprep.subr.bf16.mxu0 0
        %2334 = vmatpush1.bf16.msra.mxu0 0
        %2335 = vmatprep.subr.bf16.mxu0 0
        %2336 = vmatpush1.bf16.msra.mxu0 0
        %2337 = vmatprep.subr.bf16.mxu0 0
        %2338 = vmatpush1.bf16.msra.mxu0 0
        %2339 = vmatprep.subr.bf16.mxu0 0
        %2340 = vmatpush1.bf16.msra.mxu0 0
        %2341 = vmatprep.subr.bf16.mxu0 0
        %2342 = vmatpush1.bf16.msra.mxu0 0
        %2343 = vmatprep.subr.bf16.mxu0 0
        %2344 = vmatpush1.bf16.msra.mxu0 0
        %2345 = vmatprep.subr.bf16.mxu0 0
        %2346 = vmatpush1.bf16.msra.mxu0 0
        %2347 = vmatprep.subr.bf16.mxu0 0
        %2348 = vmatpush1.bf16.msra.mxu0 0
        %2349 = vmatprep.subr.bf16.mxu0 0
        %2350 = vmatpush1.bf16.msra.mxu0 0
        %2351 = vmatprep.subr.bf16.mxu0 0
        %2352 = vmatpush1.bf16.msra.mxu0 0
        %2353 = vmatprep.subr.bf16.mxu0 0
        %2354 = vmatpush1.bf16.msra.mxu0 0
        %2355 = vmatprep.subr.bf16.mxu0 0
        %2356 = vmatpush1.bf16.msra.mxu0 0
        %2357 = vmatprep.mubr.bf16.mxu0 0
        %2358 = vmatmul.mubr.bf16.gmra.mrb[0].mxu0 %v2302
        %v2359 = vpop.f32.mrb[0].mxu0
        %v2360 = vadd.f32 %v2276, %v2359
        %v2361 = vpop.f32.mrb[0].mxu0
        %v2362 = vpop.f32.mrb[0].mxu0
        %v2363 = vadd.f32 %v2276, %v2362
        %v2364 = vpop.f32.mrb[0].mxu0
        %2365 = vmatprep.mubr.bf16.mxu0 0
        %2366 = vmatmul.mubr.bf16.gmra.mrb[0].mxu0 %v2305
        %v2367 = vpop.f32.mrb[0].mxu0
        %v2368 = vadd.f32 %v2276, %v2367
        %v2369 = vpop.f32.mrb[0].mxu0
        %v2370 = vpop.f32.mrb[0].mxu0
        %v2371 = vadd.f32 %v2276, %v2370
        %v2372 = vpop.f32.mrb[0].mxu0
        %2373 = vmatprep.mubr.bf16.mxu0 0
        %2374 = vmatmul.mubr.bf16.gmra.mrb[0].mxu0 %v2308
        %v2375 = vpop.f32.mrb[0].mxu0
        %v2376 = vadd.f32 %v2276, %v2375
        %v2377 = vpop.f32.mrb[0].mxu0
        %v2378 = vpop.f32.mrb[0].mxu0
        %v2379 = vadd.f32 %v2276, %v2378
        %v2380 = vpop.f32.mrb[0].mxu0
        %2381 = vmatprep.mubr.bf16.mxu0 0
        %2382 = vmatmul.mubr.bf16.gmra.mrb[0].mxu0 %v2311
        %v2383 = vpop.f32.mrb[0].mxu0
        %v2384 = vadd.f32 %v2276, %v2383
        %v2385 = vpop.f32.mrb[0].mxu0
        %v2386 = vpop.f32.mrb[0].mxu0
        %v2387 = vadd.f32 %v2276, %v2386
        %v2388 = vpop.f32.mrb[0].mxu0
        %2389 = vmatprep.mubr.bf16.mxu0 0
        %2390 = vmatmul.mubr.bf16.gmra.mrb[0].mxu0 %v2314
        %v2391 = vpop.f32.mrb[0].mxu0
        %v2392 = vadd.f32 %v2276, %v2391
        %v2393 = vpop.f32.mrb[0].mxu0
        %v2394 = vpop.f32.mrb[0].mxu0
        %v2395 = vadd.f32 %v2276, %v2394
        %v2396 = vpop.f32.mrb[0].mxu0
        %2397 = vmatprep.mubr.bf16.mxu0 0
        %2398 = vmatmul.mubr.bf16.gmra.mrb[0].mxu0 %v2317
        %v2399 = vpop.f32.mrb[0].mxu0
        %v2400 = vadd.f32 %v2276, %v2399
        %v2401 = vpop.f32.mrb[0].mxu0
        %v2402 = vpop.f32.mrb[0].mxu0
        %v2403 = vadd.f32 %v2276, %v2402
        %v2404 = vpop.f32.mrb[0].mxu0
        %2405 = vmatprep.mubr.bf16.mxu0 0
        %2406 = vmatmul.mubr.bf16.gmra.mrb[0].mxu0 %v2320
        %v2407 = vpop.f32.mrb[0].mxu0
        %v2408 = vadd.f32 %v2276, %v2407
        %v2409 = vpop.f32.mrb[0].mxu0
        %v2410 = vpop.f32.mrb[0].mxu0
        %v2411 = vadd.f32 %v2276, %v2410
        %v2412 = vpop.f32.mrb[0].mxu0
        %2413 = vmatprep.mubr.bf16.mxu0 0
        %2414 = vmatmul.mubr.bf16.gmra.mrb[0].mxu0 %v2323
        %v2415 = vpop.f32.mrb[0].mxu0
        %v2416 = vadd.f32 %v2276, %v2415
        %v2417 = vpop.f32.mrb[0].mxu0
        %v2418 = vpop.f32.mrb[0].mxu0
        %v2419 = vadd.f32 %v2276, %v2418
        %v2420 = vpop.f32.mrb[0].mxu0
        %2421 = vdwg.mxu0
        %v2422 = vadd.f32 %v2360, %v2376
        %v2423 = vadd.f32 %v2363, %v2379
        %v2424 = vadd.f32 %v2368, %v2384
        %v2425 = vadd.f32 %v2371, %v2387
        %v2426 = vadd.f32 %v2422, %v2392
        %v2427 = vadd.f32 %v2423, %v2395
        %v2428 = vadd.f32 %v2424, %v2400
        %v2429 = vadd.f32 %v2425, %v2403
        %v2430 = vadd.f32 %v2426, %v2408
        %v2431 = vadd.f32 %v2427, %v2411
        %v2432 = vadd.f32 %v2428, %v2416
        %v2433 = vadd.f32 %v2429, %v2419
        %v2434 = vmul.f32 %v2430, 0.25
        %v2435 = vmul.f32 %v2431, 0.25
        %v2436 = vmul.f32 %v2432, 0.25
        %v2437 = vmul.f32 %v2433, 0.25
        %v2439 = vsel %vm510, %v1069, 0
        %v2442 = vsel %vm510, %v1074, 0
        %v2445 = vsel %vm510, %v1079, 0
        %v2448 = vsel %vm510, %v1084, 0
        %2450 = vmatprep.subr.mxu0 0.0
        %2451 = vmatpush1.xpose.msra.mxu0 %v2439
        %2452 = vmatprep.subr.mxu0 0.0
        %2453 = vmatpush1.xpose.msra.mxu0 %v2442
        %2454 = vmatprep.subr.mxu0 0.0
        %2455 = vmatpush1.xpose.msra.mxu0 %v2445
        %2456 = vmatprep.subr.mxu0 0.0
        %2457 = vmatpush1.xpose.msra.mxu0 %v2448
        %2458 = vmatprep.subr.mxu0 0.0
        %2459 = vmatpush1.xpose.msra.mxu0 0.0
        %2460 = vmatprep.subr.mxu0 0.0
        %2461 = vmatpush1.xpose.msra.mxu0 0.0
        %2462 = vmatprep.subr.mxu0 0.0
        %2463 = vmatpush1.xpose.msra.mxu0 0.0
        %2464 = vmatprep.subr.mxu0 0.0
        %2465 = vmatpush1.xpose.msra.mxu0 0.0
        %2466 = vmatprep.subr.mxu0 0.0
        %2467 = vmatpush1.xpose.msra.mxu0 0.0
        %2468 = vmatprep.subr.mxu0 0.0
        %2469 = vmatpush1.xpose.msra.mxu0 0.0
        %2470 = vmatprep.subr.mxu0 0.0
        %2471 = vmatpush1.xpose.msra.mxu0 0.0
        %2472 = vmatprep.subr.mxu0 0.0
        %2473 = vmatpush1.xpose.msra.mxu0 0.0
        %2474 = vmatprep.subr.mxu0 0.0
        %2475 = vmatpush1.xpose.msra.mxu0 0.0
        %2476 = vmatprep.subr.mxu0 0.0
        %2477 = vmatpush1.xpose.msra.mxu0 0.0
        %2478 = vmatprep.subr.mxu0 0.0
        %2479 = vmatpush1.xpose.msra.mxu0 0.0
        %2480 = vmatprep.subr.mxu0 0.0
        %2481 = vmatpush1.xpose.msra.mxu0 0.0
        %2482 = vmatprep.subr.mxu0 0.0
        %2483 = vmatpush1.xpose.msra.mxu0 0.0
        %2484 = vmatprep.subr.mxu0 0.0
        %2485 = vmatpush1.xpose.msra.mxu0 0.0
        %2486 = vmatprep.subr.mxu0 0.0
        %2487 = vmatpush1.xpose.msra.mxu0 0.0
        %2488 = vmatprep.subr.mxu0 0.0
        %2489 = vmatpush1.xpose.msra.mxu0 0.0
        %2490 = vmatprep.subr.mxu0 0.0
        %2491 = vmatpush1.xpose.msra.mxu0 0.0
        %2492 = vmatprep.subr.mxu0 0.0
        %2493 = vmatpush1.xpose.msra.mxu0 0.0
        %2494 = vmatprep.subr.mxu0 0.0
        %2495 = vmatpush1.xpose.msra.mxu0 0.0
        %2496 = vmatprep.subr.mxu0 0.0
        %2497 = vmatpush1.xpose.msra.mxu0 0.0
        %2498 = vmatprep.subr.mxu0 0.0
        %2499 = vmatpush1.xpose.msra.mxu0 0.0
        %2500 = vmatprep.subr.mxu0 0.0
        %2501 = vmatpush1.xpose.msra.mxu0 0.0
        %2502 = vmatprep.subr.mxu0 0.0
        %2503 = vmatpush1.xpose.msra.mxu0 0.0
        %2504 = vmatprep.subr.mxu0 0.0
        %2505 = vmatpush1.xpose.msra.mxu0 0.0
        %2506 = vmatprep.subr.mxu0 0.0
        %2507 = vmatpush1.xpose.msra.mxu0 0.0
        %2508 = vmatprep.subr.mxu0 0.0
        %2509 = vmatpush1.xpose.msra.mxu0 0.0
        %2510 = vmatprep.subr.mxu0 0.0
        %2511 = vmatpush1.xpose.msra.mxu0 0.0
        %2512 = vmatprep.subr.mxu0 0.0
        %2513 = vmatpush1.xpose.msra.mxu0 0.0
        %2514 = vmatprep.mubr.f32.mxu0 0.0
        %2515 = vmatmul.mubr.f32.gmra.mrb[0].mxu0 %v2439
        %v2516 = vpop.f32.mrb[0].mxu0
        %v2517 = vadd.f32 0.0, %v2516
        %v2518 = vpop.f32.mrb[0].mxu0
        %2519 = vmatprep.mubr.f32.mxu0 0.0
        %2520 = vmatmul.mubr.f32.gmra.mrb[0].mxu0 %v2442
        %v2521 = vpop.f32.mrb[0].mxu0
        %v2522 = vadd.f32 0.0, %v2521
        %v2523 = vpop.f32.mrb[0].mxu0
        %2524 = vmatprep.mubr.f32.mxu0 0.0
        %2525 = vmatmul.mubr.f32.gmra.mrb[0].mxu0 %v2445
        %v2526 = vpop.f32.mrb[0].mxu0
        %v2527 = vadd.f32 0.0, %v2526
        %v2528 = vpop.f32.mrb[0].mxu0
        %2529 = vmatprep.mubr.f32.mxu0 0.0
        %2530 = vmatmul.mubr.f32.gmra.mrb[0].mxu0 %v2448
        %v2531 = vpop.f32.mrb[0].mxu0
        %v2532 = vadd.f32 0.0, %v2531
        %v2533 = vpop.f32.mrb[0].mxu0
        %2534 = vdwg.mxu0
        %v2535 = vmul.f32 %v1069, %v1069
        %v2536 = vmul.f32 %v1074, %v1074
        %v2537 = vmul.f32 %v1079, %v1079
        %v2538 = vmul.f32 %v1084, %v1084
        %v2540 = vsel %vm510, %v2535, 0
        %v2543 = vsel %vm510, %v2536, 0
        %v2546 = vsel %vm510, %v2537, 0
        %v2549 = vsel %vm510, %v2538, 0
        %2551 = vmatprep.subr.mxu0 0.0
        %2552 = vmatpush1.xpose.msra.mxu0 %v2540
        %2553 = vmatprep.subr.mxu0 0.0
        %2554 = vmatpush1.xpose.msra.mxu0 %v2543
        %2555 = vmatprep.subr.mxu0 0.0
        %2556 = vmatpush1.xpose.msra.mxu0 %v2546
        %2557 = vmatprep.subr.mxu0 0.0
        %2558 = vmatpush1.xpose.msra.mxu0 %v2549
        %2559 = vmatprep.subr.mxu0 0.0
        %2560 = vmatpush1.xpose.msra.mxu0 0.0
        %2561 = vmatprep.subr.mxu0 0.0
        %2562 = vmatpush1.xpose.msra.mxu0 0.0
        %2563 = vmatprep.subr.mxu0 0.0
        %2564 = vmatpush1.xpose.msra.mxu0 0.0
        %2565 = vmatprep.subr.mxu0 0.0
        %2566 = vmatpush1.xpose.msra.mxu0 0.0
        %2567 = vmatprep.subr.mxu0 0.0
        %2568 = vmatpush1.xpose.msra.mxu0 0.0
        %2569 = vmatprep.subr.mxu0 0.0
        %2570 = vmatpush1.xpose.msra.mxu0 0.0
        %2571 = vmatprep.subr.mxu0 0.0
        %2572 = vmatpush1.xpose.msra.mxu0 0.0
        %2573 = vmatprep.subr.mxu0 0.0
        %2574 = vmatpush1.xpose.msra.mxu0 0.0
        %2575 = vmatprep.subr.mxu0 0.0
        %2576 = vmatpush1.xpose.msra.mxu0 0.0
        %2577 = vmatprep.subr.mxu0 0.0
        %2578 = vmatpush1.xpose.msra.mxu0 0.0
        %2579 = vmatprep.subr.mxu0 0.0
        %2580 = vmatpush1.xpose.msra.mxu0 0.0
        %2581 = vmatprep.subr.mxu0 0.0
        %2582 = vmatpush1.xpose.msra.mxu0 0.0
        %2583 = vmatprep.subr.mxu0 0.0
        %2584 = vmatpush1.xpose.msra.mxu0 0.0
        %2585 = vmatprep.subr.mxu0 0.0
        %2586 = vmatpush1.xpose.msra.mxu0 0.0
        %2587 = vmatprep.subr.mxu0 0.0
        %2588 = vmatpush1.xpose.msra.mxu0 0.0
        %2589 = vmatprep.subr.mxu0 0.0
        %2590 = vmatpush1.xpose.msra.mxu0 0.0
        %2591 = vmatprep.subr.mxu0 0.0
        %2592 = vmatpush1.xpose.msra.mxu0 0.0
        %2593 = vmatprep.subr.mxu0 0.0
        %2594 = vmatpush1.xpose.msra.mxu0 0.0
        %2595 = vmatprep.subr.mxu0 0.0
        %2596 = vmatpush1.xpose.msra.mxu0 0.0
        %2597 = vmatprep.subr.mxu0 0.0
        %2598 = vmatpush1.xpose.msra.mxu0 0.0
        %2599 = vmatprep.subr.mxu0 0.0
        %2600 = vmatpush1.xpose.msra.mxu0 0.0
        %2601 = vmatprep.subr.mxu0 0.0
        %2602 = vmatpush1.xpose.msra.mxu0 0.0
        %2603 = vmatprep.subr.mxu0 0.0
        %2604 = vmatpush1.xpose.msra.mxu0 0.0
        %2605 = vmatprep.subr.mxu0 0.0
        %2606 = vmatpush1.xpose.msra.mxu0 0.0
        %2607 = vmatprep.subr.mxu0 0.0
        %2608 = vmatpush1.xpose.msra.mxu0 0.0
        %2609 = vmatprep.subr.mxu0 0.0
        %2610 = vmatpush1.xpose.msra.mxu0 0.0
        %2611 = vmatprep.subr.mxu0 0.0
        %2612 = vmatpush1.xpose.msra.mxu0 0.0
        %2613 = vmatprep.subr.mxu0 0.0
        %2614 = vmatpush1.xpose.msra.mxu0 0.0
        %2615 = vmatprep.mubr.f32.mxu0 0.0
        %2616 = vmatmul.mubr.f32.gmra.mrb[0].mxu0 %v613
        %v2617 = vpop.f32.mrb[0].mxu0
        %v2618 = vadd.f32 0.0, %v2617
        %v2619 = vpop.f32.mrb[0].mxu0
        %2620 = vmatprep.mubr.f32.mxu0 0.0
        %2621 = vmatmul.mubr.f32.gmra.mrb[0].mxu0 %v613
        %v2622 = vpop.f32.mrb[0].mxu0
        %v2623 = vadd.f32 0.0, %v2622
        %v2624 = vpop.f32.mrb[0].mxu0
        %2625 = vmatprep.mubr.f32.mxu0 0.0
        %2626 = vmatmul.mubr.f32.gmra.mrb[0].mxu0 %v613
        %v2627 = vpop.f32.mrb[0].mxu0
        %v2628 = vadd.f32 0.0, %v2627
        %v2629 = vpop.f32.mrb[0].mxu0
        %2630 = vmatprep.mubr.f32.mxu0 0.0
        %2631 = vmatmul.mubr.f32.gmra.mrb[0].mxu0 %v613
        %v2632 = vpop.f32.mrb[0].mxu0
        %v2633 = vadd.f32 0.0, %v2632
        %v2634 = vpop.f32.mrb[0].mxu0
        %2635 = vdwg.mxu0
        %v2636 = vmul.f32 %v2517, 2.0
        %v2637 = vmul.f32 %v2522, 2.0
        %v2638 = vmul.f32 %v2527, 2.0
        %v2639 = vmul.f32 %v2532, 2.0
        %v2640 = vsub.f32 %v2618, %v2636
        %v2641 = vsub.f32 %v2623, %v2637
        %v2642 = vsub.f32 %v2628, %v2638
        %v2643 = vsub.f32 %v2633, %v2639
        %v2644 = vadd.f32 %v2640, %v505
        %v2645 = vadd.f32 %v2641, %v506
        %v2646 = vadd.f32 %v2642, %v507
        %v2647 = vadd.f32 %v2643, %v508
        %v2648 = vadd.f32 %v2644, %v509
        %v2649 = vadd.f32 %v2645, %v509
        %v2650 = vadd.f32 %v2646, %v509
        %v2651 = vadd.f32 %v2647, %v509
        %v2652 = vsel %vm728, %v2648, inf
        %2653 = vmin.xlane.f32.xlu0 %v2652
        %v2654 = vpop.xlane.xlu0 %2653
        %v2655 = vsel %vm728, %v2649, inf
        %2656 = vmin.xlane.f32.xlu0 %v2655
        %v2657 = vpop.xlane.xlu0 %2656
        %v2658 = vsel %vm728, %v2650, inf
        %2659 = vmin.xlane.f32.xlu0 %v2658
        %v2660 = vpop.xlane.xlu0 %2659
        %v2661 = vsel %vm728, %v2651, inf
        %2662 = vmin.xlane.f32.xlu0 %v2661
        %v2663 = vpop.xlane.xlu0 %2662
        %vm2664 = vcmp.eq.f32.partialorder %v2648, %v2654
        %vm2665 = vcmp.eq.f32.partialorder %v2649, %v2657
        %vm2666 = vcmp.eq.f32.partialorder %v2650, %v2660
        %vm2667 = vcmp.eq.f32.partialorder %v2651, %v2663
        %v2668 = vsel %vm2664, 1, 0
        %v2669 = vsel %vm2665, 1, 0
        %v2670 = vsel %vm2666, 1, 0
        %v2671 = vsel %vm2667, 1, 0
        %v2672 = vcvt.s32.f32 %v2668
        %v2673 = vcvt.s32.f32 %v2669
        %v2674 = vcvt.s32.f32 %v2670
        %v2675 = vcvt.s32.f32 %v2671
        %v2676 = vmul.f32 %v2672, 1e+30
        %v2677 = vmul.f32 %v2673, 1e+30
        %v2678 = vmul.f32 %v2674, 1e+30
        %v2679 = vmul.f32 %v2675, 1e+30
        %v2680 = vadd.f32 %v2648, %v2676
        %v2681 = vadd.f32 %v2649, %v2677
        %v2682 = vadd.f32 %v2650, %v2678
        %v2683 = vadd.f32 %v2651, %v2679
        %v2684 = vsel %vm728, %v2680, inf
        %2685 = vmin.xlane.f32.xlu0 %v2684
        %v2686 = vpop.xlane.xlu0 %2685
        %v2687 = vsel %vm728, %v2681, inf
        %2688 = vmin.xlane.f32.xlu0 %v2687
        %v2689 = vpop.xlane.xlu0 %2688
        %v2690 = vsel %vm728, %v2682, inf
        %2691 = vmin.xlane.f32.xlu0 %v2690
        %v2692 = vpop.xlane.xlu0 %2691
        %v2693 = vsel %vm728, %v2683, inf
        %2694 = vmin.xlane.f32.xlu0 %v2693
        %v2695 = vpop.xlane.xlu0 %2694
        %vm2696 = vcmp.eq.f32.partialorder %v2680, %v2686
        %vm2697 = vcmp.eq.f32.partialorder %v2681, %v2689
        %vm2698 = vcmp.eq.f32.partialorder %v2682, %v2692
        %vm2699 = vcmp.eq.f32.partialorder %v2683, %v2695
        %v2700 = vsel %vm2696, 1, 0
        %v2701 = vsel %vm2697, 1, 0
        %v2702 = vsel %vm2698, 1, 0
        %v2703 = vsel %vm2699, 1, 0
        %v2704 = vcvt.s32.f32 %v2700
        %v2705 = vcvt.s32.f32 %v2701
        %v2706 = vcvt.s32.f32 %v2702
        %v2707 = vcvt.s32.f32 %v2703
        %v2708 = vmul.f32 %v2704, 1e+30
        %v2709 = vmul.f32 %v2705, 1e+30
        %v2710 = vmul.f32 %v2706, 1e+30
        %v2711 = vmul.f32 %v2707, 1e+30
        %v2712 = vadd.f32 %v2680, %v2708
        %v2713 = vadd.f32 %v2681, %v2709
        %v2714 = vadd.f32 %v2682, %v2710
        %v2715 = vadd.f32 %v2683, %v2711
        %v2716 = vsel %vm728, %v2712, inf
        %2717 = vmin.xlane.f32.xlu0 %v2716
        %v2718 = vpop.xlane.xlu0 %2717
        %v2719 = vsel %vm728, %v2713, inf
        %2720 = vmin.xlane.f32.xlu0 %v2719
        %v2721 = vpop.xlane.xlu0 %2720
        %v2722 = vsel %vm728, %v2714, inf
        %2723 = vmin.xlane.f32.xlu0 %v2722
        %v2724 = vpop.xlane.xlu0 %2723
        %v2725 = vsel %vm728, %v2715, inf
        %2726 = vmin.xlane.f32.xlu0 %v2725
        %v2727 = vpop.xlane.xlu0 %2726
        %vm2728 = vcmp.eq.f32.partialorder %v2712, %v2718
        %vm2729 = vcmp.eq.f32.partialorder %v2713, %v2721
        %vm2730 = vcmp.eq.f32.partialorder %v2714, %v2724
        %vm2731 = vcmp.eq.f32.partialorder %v2715, %v2727
        %v2732 = vsel %vm2728, 1, 0
        %v2733 = vsel %vm2729, 1, 0
        %v2734 = vsel %vm2730, 1, 0
        %v2735 = vsel %vm2731, 1, 0
        %v2736 = vcvt.s32.f32 %v2732
        %v2737 = vcvt.s32.f32 %v2733
        %v2738 = vcvt.s32.f32 %v2734
        %v2739 = vcvt.s32.f32 %v2735
        %v2740 = vmul.f32 %v2736, 1e+30
        %v2741 = vmul.f32 %v2737, 1e+30
        %v2742 = vmul.f32 %v2738, 1e+30
        %v2743 = vmul.f32 %v2739, 1e+30
        %v2744 = vadd.f32 %v2712, %v2740
        %v2745 = vadd.f32 %v2713, %v2741
        %v2746 = vadd.f32 %v2714, %v2742
        %v2747 = vadd.f32 %v2715, %v2743
        %v2748 = vsel %vm728, %v2744, inf
        %2749 = vmin.xlane.f32.xlu0 %v2748
        %v2750 = vpop.xlane.xlu0 %2749
        %v2751 = vsel %vm728, %v2745, inf
        %2752 = vmin.xlane.f32.xlu0 %v2751
        %v2753 = vpop.xlane.xlu0 %2752
        %v2754 = vsel %vm728, %v2746, inf
        %2755 = vmin.xlane.f32.xlu0 %v2754
        %v2756 = vpop.xlane.xlu0 %2755
        %v2757 = vsel %vm728, %v2747, inf
        %2758 = vmin.xlane.f32.xlu0 %v2757
        %v2759 = vpop.xlane.xlu0 %2758
        %vm2760 = vcmp.eq.f32.partialorder %v2744, %v2750
        %vm2761 = vcmp.eq.f32.partialorder %v2745, %v2753
        %vm2762 = vcmp.eq.f32.partialorder %v2746, %v2756
        %vm2763 = vcmp.eq.f32.partialorder %v2747, %v2759
        %v2764 = vsel %vm2760, 1, 0
        %v2765 = vsel %vm2761, 1, 0
        %v2766 = vsel %vm2762, 1, 0
        %v2767 = vsel %vm2763, 1, 0
        %v2768 = vcvt.s32.f32 %v2764
        %v2769 = vcvt.s32.f32 %v2765
        %v2770 = vcvt.s32.f32 %v2766
        %v2771 = vcvt.s32.f32 %v2767
        %v2772 = vadd.f32 %v2672, %v2704
        %v2773 = vadd.f32 %v2673, %v2705
        %v2774 = vadd.f32 %v2674, %v2706
        %v2775 = vadd.f32 %v2675, %v2707
        %v2776 = vadd.f32 %v2772, %v2736
        %v2777 = vadd.f32 %v2773, %v2737
        %v2778 = vadd.f32 %v2774, %v2738
        %v2779 = vadd.f32 %v2775, %v2739
        %v2780 = vadd.f32 %v2776, %v2768
        %v2781 = vadd.f32 %v2777, %v2769
        %v2782 = vadd.f32 %v2778, %v2770
        %v2783 = vadd.f32 %v2779, %v2771
        %v2785 = vsel %vm728, %v2780, 0
        %v2788 = vsel %vm728, %v2781, 0
        %v2791 = vsel %vm728, %v2782, 0
        %v2794 = vsel %vm728, %v2783, 0
        %2796 = vmatprep.subr.mxu0 0.0
        %2797 = vmatpush1.msra.mxu0 %v1069
        %2798 = vmatprep.subr.mxu0 0.0
        %2799 = vmatpush1.msra.mxu0 %v1074
        %2800 = vmatprep.subr.mxu0 0.0
        %2801 = vmatpush1.msra.mxu0 %v1079
        %2802 = vmatprep.subr.mxu0 0.0
        %2803 = vmatpush1.msra.mxu0 %v1084
        %2804 = vmatprep.subr.mxu0 0.0
        %2805 = vmatpush1.msra.mxu0 0.0
        %2806 = vmatprep.subr.mxu0 0.0
        %2807 = vmatpush1.msra.mxu0 0.0
        %2808 = vmatprep.subr.mxu0 0.0
        %2809 = vmatpush1.msra.mxu0 0.0
        %2810 = vmatprep.subr.mxu0 0.0
        %2811 = vmatpush1.msra.mxu0 0.0
        %2812 = vmatprep.subr.mxu0 0.0
        %2813 = vmatpush1.msra.mxu0 0.0
        %2814 = vmatprep.subr.mxu0 0.0
        %2815 = vmatpush1.msra.mxu0 0.0
        %2816 = vmatprep.subr.mxu0 0.0
        %2817 = vmatpush1.msra.mxu0 0.0
        %2818 = vmatprep.subr.mxu0 0.0
        %2819 = vmatpush1.msra.mxu0 0.0
        %2820 = vmatprep.subr.mxu0 0.0
        %2821 = vmatpush1.msra.mxu0 0.0
        %2822 = vmatprep.subr.mxu0 0.0
        %2823 = vmatpush1.msra.mxu0 0.0
        %2824 = vmatprep.subr.mxu0 0.0
        %2825 = vmatpush1.msra.mxu0 0.0
        %2826 = vmatprep.subr.mxu0 0.0
        %2827 = vmatpush1.msra.mxu0 0.0
        %2828 = vmatprep.subr.mxu0 0.0
        %2829 = vmatpush1.msra.mxu0 0.0
        %2830 = vmatprep.subr.mxu0 0.0
        %2831 = vmatpush1.msra.mxu0 0.0
        %2832 = vmatprep.subr.mxu0 0.0
        %2833 = vmatpush1.msra.mxu0 0.0
        %2834 = vmatprep.subr.mxu0 0.0
        %2835 = vmatpush1.msra.mxu0 0.0
        %2836 = vmatprep.subr.mxu0 0.0
        %2837 = vmatpush1.msra.mxu0 0.0
        %2838 = vmatprep.subr.mxu0 0.0
        %2839 = vmatpush1.msra.mxu0 0.0
        %2840 = vmatprep.subr.mxu0 0.0
        %2841 = vmatpush1.msra.mxu0 0.0
        %2842 = vmatprep.subr.mxu0 0.0
        %2843 = vmatpush1.msra.mxu0 0.0
        %2844 = vmatprep.subr.mxu0 0.0
        %2845 = vmatpush1.msra.mxu0 0.0
        %2846 = vmatprep.subr.mxu0 0.0
        %2847 = vmatpush1.msra.mxu0 0.0
        %2848 = vmatprep.subr.mxu0 0.0
        %2849 = vmatpush1.msra.mxu0 0.0
        %2850 = vmatprep.subr.mxu0 0.0
        %2851 = vmatpush1.msra.mxu0 0.0
        %2852 = vmatprep.subr.mxu0 0.0
        %2853 = vmatpush1.msra.mxu0 0.0
        %2854 = vmatprep.subr.mxu0 0.0
        %2855 = vmatpush1.msra.mxu0 0.0
        %2856 = vmatprep.subr.mxu0 0.0
        %2857 = vmatpush1.msra.mxu0 0.0
        %2858 = vmatprep.subr.mxu0 0.0
        %2859 = vmatpush1.msra.mxu0 0.0
        %2860 = vmatprep.mubr.f32.mxu0 0.0
        %2861 = vmatmul.mubr.f32.gmra.mrb[0].mxu0 %v2785
        %v2862 = vpop.f32.mrb[0].mxu0
        %v2863 = vadd.f32 0.0, %v2862
        %v2864 = vpop.f32.mrb[0].mxu0
        %2865 = vmatprep.mubr.f32.mxu0 0.0
        %2866 = vmatmul.mubr.f32.gmra.mrb[0].mxu0 %v2788
        %v2867 = vpop.f32.mrb[0].mxu0
        %v2868 = vadd.f32 0.0, %v2867
        %v2869 = vpop.f32.mrb[0].mxu0
        %2870 = vmatprep.mubr.f32.mxu0 0.0
        %2871 = vmatmul.mubr.f32.gmra.mrb[0].mxu0 %v2791
        %v2872 = vpop.f32.mrb[0].mxu0
        %v2873 = vadd.f32 0.0, %v2872
        %v2874 = vpop.f32.mrb[0].mxu0
        %2875 = vmatprep.mubr.f32.mxu0 0.0
        %2876 = vmatmul.mubr.f32.gmra.mrb[0].mxu0 %v2794
        %v2877 = vpop.f32.mrb[0].mxu0
        %v2878 = vadd.f32 0.0, %v2877
        %v2879 = vpop.f32.mrb[0].mxu0
        %2880 = vdwg.mxu0
        %v2881 = vmul.f32 %v2863, 0.25
        %v2882 = vmul.f32 %v2868, 0.25
        %v2883 = vmul.f32 %v2873, 0.25
        %v2884 = vmul.f32 %v2878, 0.25
        %v2885 = vsub.f32 %v1069, %v2881
        %v2886 = vsub.f32 %v1074, %v2882
        %v2887 = vsub.f32 %v1079, %v2883
        %v2888 = vsub.f32 %v1084, %v2884
        %2889 = vrot.lane.b32.xlu0 %v1069, 8
        %v2890 = vpop.permute.xlu0 %2889
        %2891 = vrot.lane.b32.xlu0 %v1074, 8
        %v2892 = vpop.permute.xlu0 %2891
        %2893 = vrot.lane.b32.xlu0 %v1079, 8
        %v2894 = vpop.permute.xlu0 %2893
        %2895 = vrot.lane.b32.xlu0 %v1084, 8
        %v2896 = vpop.permute.xlu0 %2895
        %v2901 = vsel %vm510, %v2885, %v2890
        %v2902 = vsel %vm510, %v2886, %v2892
        %v2903 = vsel %vm510, %v2887, %v2894
        %v2904 = vsel %vm510, %v2888, %v2896
        %v2905 = vld [vmem:[%s2 + $0x3e] sm:$0xff]
        %v2906 = vld [vmem:[%s2 + $0x46] sm:$0xff]
        %v2907 = vld [vmem:[%s2 + $0x4e] sm:$0x1]
        %v2908 = vlaneseq
        %v2909 = vshrl.u32 %v2908, 7
        %v2910 = vsub.s32 0, %v2909
        %v2911 = vrot.slane %v2907, %v2910
        %v2913 = vsel %vm989, %v2901, 0
        %v2916 = vsel %vm989, %v2902, 0
        %v2919 = vsel %vm989, %v2903, 0
        %v2922 = vsel %vm989, %v2904, 0
        %2924 = vmatprep.subr.mxu0 0.0
        %2925 = vmatpush1.msra.mxu0 %v2905
        %2926 = vmatprep.subr.mxu0 0.0
        %2927 = vmatpush1.msra.mxu0 %v2906
        %2928 = vmatprep.subr.mxu0 0.0
        %2929 = vmatpush1.msra.mxu0 0.0
        %2930 = vmatprep.subr.mxu0 0.0
        %2931 = vmatpush1.msra.mxu0 0.0
        %2932 = vmatprep.subr.mxu0 0.0
        %2933 = vmatpush1.msra.mxu0 0.0
        %2934 = vmatprep.subr.mxu0 0.0
        %2935 = vmatpush1.msra.mxu0 0.0
        %2936 = vmatprep.subr.mxu0 0.0
        %2937 = vmatpush1.msra.mxu0 0.0
        %2938 = vmatprep.subr.mxu0 0.0
        %2939 = vmatpush1.msra.mxu0 0.0
        %2940 = vmatprep.subr.mxu0 0.0
        %2941 = vmatpush1.msra.mxu0 0.0
        %2942 = vmatprep.subr.mxu0 0.0
        %2943 = vmatpush1.msra.mxu0 0.0
        %2944 = vmatprep.subr.mxu0 0.0
        %2945 = vmatpush1.msra.mxu0 0.0
        %2946 = vmatprep.subr.mxu0 0.0
        %2947 = vmatpush1.msra.mxu0 0.0
        %2948 = vmatprep.subr.mxu0 0.0
        %2949 = vmatpush1.msra.mxu0 0.0
        %2950 = vmatprep.subr.mxu0 0.0
        %2951 = vmatpush1.msra.mxu0 0.0
        %2952 = vmatprep.subr.mxu0 0.0
        %2953 = vmatpush1.msra.mxu0 0.0
        %2954 = vmatprep.subr.mxu0 0.0
        %2955 = vmatpush1.msra.mxu0 0.0
        %2956 = vmatprep.subr.mxu0 0.0
        %2957 = vmatpush1.msra.mxu0 0.0
        %2958 = vmatprep.subr.mxu0 0.0
        %2959 = vmatpush1.msra.mxu0 0.0
        %2960 = vmatprep.subr.mxu0 0.0
        %2961 = vmatpush1.msra.mxu0 0.0
        %2962 = vmatprep.subr.mxu0 0.0
        %2963 = vmatpush1.msra.mxu0 0.0
        %2964 = vmatprep.subr.mxu0 0.0
        %2965 = vmatpush1.msra.mxu0 0.0
        %2966 = vmatprep.subr.mxu0 0.0
        %2967 = vmatpush1.msra.mxu0 0.0
        %2968 = vmatprep.subr.mxu0 0.0
        %2969 = vmatpush1.msra.mxu0 0.0
        %2970 = vmatprep.subr.mxu0 0.0
        %2971 = vmatpush1.msra.mxu0 0.0
        %2972 = vmatprep.subr.mxu0 0.0
        %2973 = vmatpush1.msra.mxu0 0.0
        %2974 = vmatprep.subr.mxu0 0.0
        %2975 = vmatpush1.msra.mxu0 0.0
        %2976 = vmatprep.subr.mxu0 0.0
        %2977 = vmatpush1.msra.mxu0 0.0
        %2978 = vmatprep.subr.mxu0 0.0
        %2979 = vmatpush1.msra.mxu0 0.0
        %2980 = vmatprep.subr.mxu0 0.0
        %2981 = vmatpush1.msra.mxu0 0.0
        %2982 = vmatprep.subr.mxu0 0.0
        %2983 = vmatpush1.msra.mxu0 0.0
        %2984 = vmatprep.subr.mxu0 0.0
        %2985 = vmatpush1.msra.mxu0 0.0
        %2986 = vmatprep.subr.mxu0 0.0
        %2987 = vmatpush1.msra.mxu0 0.0
        %2988 = vmatprep.mubr.f32.mxu0 0.0
        %2989 = vmatmul.mubr.f32.gmra.mrb[0].mxu0 %v2913
        %v2990 = vpop.f32.mrb[0].mxu0
        %v2991 = vadd.f32 %v2911, %v2990
        %v2992 = vpop.f32.mrb[0].mxu0
        %2993 = vmatprep.mubr.f32.mxu0 0.0
        %2994 = vmatmul.mubr.f32.gmra.mrb[0].mxu0 %v2916
        %v2995 = vpop.f32.mrb[0].mxu0
        %v2996 = vadd.f32 %v2911, %v2995
        %v2997 = vpop.f32.mrb[0].mxu0
        %2998 = vmatprep.mubr.f32.mxu0 0.0
        %2999 = vmatmul.mubr.f32.gmra.mrb[0].mxu0 %v2919
        %v3000 = vpop.f32.mrb[0].mxu0
        %v3001 = vadd.f32 %v2911, %v3000
        %v3002 = vpop.f32.mrb[0].mxu0
        %3003 = vmatprep.mubr.f32.mxu0 0.0
        %3004 = vmatmul.mubr.f32.gmra.mrb[0].mxu0 %v2922
        %v3005 = vpop.f32.mrb[0].mxu0
        %v3006 = vadd.f32 %v2911, %v3005
        %v3007 = vpop.f32.mrb[0].mxu0
        %3008 = vdwg.mxu0
        %v3009 = vld [vmem:[%s2 + $0x4f] sm:$0xff]
        %v3010 = vld [vmem:[%s2 + $0x57] sm:$0xff]
        %v3011 = vld [vmem:[%s2 + $0x6f] sm:$0x1]
        %v3012 = vlaneseq
        %v3013 = vshrl.u32 %v3012, 7
        %v3014 = vsub.s32 0, %v3013
        %v3015 = vrot.slane %v3011, %v3014
        %v3017 = vsel %vm989, %v2434, 0
        %v3020 = vsel %vm989, %v2435, 0
        %v3023 = vsel %vm989, %v2436, 0
        %v3026 = vsel %vm989, %v2437, 0
        %3028 = vmatprep.subr.mxu0 0.0
        %3029 = vmatpush1.msra.mxu0 %v3009
        %3030 = vmatprep.subr.mxu0 0.0
        %3031 = vmatpush1.msra.mxu0 %v3010
        %3032 = vmatprep.subr.mxu0 0.0
        %3033 = vmatpush1.msra.mxu0 0.0
        %3034 = vmatprep.subr.mxu0 0.0
        %3035 = vmatpush1.msra.mxu0 0.0
        %3036 = vmatprep.subr.mxu0 0.0
        %3037 = vmatpush1.msra.mxu0 0.0
        %3038 = vmatprep.subr.mxu0 0.0
        %3039 = vmatpush1.msra.mxu0 0.0
        %3040 = vmatprep.subr.mxu0 0.0
        %3041 = vmatpush1.msra.mxu0 0.0
        %3042 = vmatprep.subr.mxu0 0.0
        %3043 = vmatpush1.msra.mxu0 0.0
        %3044 = vmatprep.subr.mxu0 0.0
        %3045 = vmatpush1.msra.mxu0 0.0
        %3046 = vmatprep.subr.mxu0 0.0
        %3047 = vmatpush1.msra.mxu0 0.0
        %3048 = vmatprep.subr.mxu0 0.0
        %3049 = vmatpush1.msra.mxu0 0.0
        %3050 = vmatprep.subr.mxu0 0.0
        %3051 = vmatpush1.msra.mxu0 0.0
        %3052 = vmatprep.subr.mxu0 0.0
        %3053 = vmatpush1.msra.mxu0 0.0
        %3054 = vmatprep.subr.mxu0 0.0
        %3055 = vmatpush1.msra.mxu0 0.0
        %3056 = vmatprep.subr.mxu0 0.0
        %3057 = vmatpush1.msra.mxu0 0.0
        %3058 = vmatprep.subr.mxu0 0.0
        %3059 = vmatpush1.msra.mxu0 0.0
        %3060 = vmatprep.subr.mxu0 0.0
        %3061 = vmatpush1.msra.mxu0 0.0
        %3062 = vmatprep.subr.mxu0 0.0
        %3063 = vmatpush1.msra.mxu0 0.0
        %3064 = vmatprep.subr.mxu0 0.0
        %3065 = vmatpush1.msra.mxu0 0.0
        %3066 = vmatprep.subr.mxu0 0.0
        %3067 = vmatpush1.msra.mxu0 0.0
        %3068 = vmatprep.subr.mxu0 0.0
        %3069 = vmatpush1.msra.mxu0 0.0
        %3070 = vmatprep.subr.mxu0 0.0
        %3071 = vmatpush1.msra.mxu0 0.0
        %3072 = vmatprep.subr.mxu0 0.0
        %3073 = vmatpush1.msra.mxu0 0.0
        %3074 = vmatprep.subr.mxu0 0.0
        %3075 = vmatpush1.msra.mxu0 0.0
        %3076 = vmatprep.subr.mxu0 0.0
        %3077 = vmatpush1.msra.mxu0 0.0
        %3078 = vmatprep.subr.mxu0 0.0
        %3079 = vmatpush1.msra.mxu0 0.0
        %3080 = vmatprep.subr.mxu0 0.0
        %3081 = vmatpush1.msra.mxu0 0.0
        %3082 = vmatprep.subr.mxu0 0.0
        %3083 = vmatpush1.msra.mxu0 0.0
        %3084 = vmatprep.subr.mxu0 0.0
        %3085 = vmatpush1.msra.mxu0 0.0
        %3086 = vmatprep.subr.mxu0 0.0
        %3087 = vmatpush1.msra.mxu0 0.0
        %3088 = vmatprep.subr.mxu0 0.0
        %3089 = vmatpush1.msra.mxu0 0.0
        %3090 = vmatprep.subr.mxu0 0.0
        %3091 = vmatpush1.msra.mxu0 0.0
        %3092 = vmatprep.mubr.f32.mxu0 0.0
        %3093 = vmatmul.mubr.f32.gmra.mrb[0].mxu0 %v3017
        %v3094 = vpop.f32.mrb[0].mxu0
        %v3095 = vadd.f32 %v3015, %v3094
        %v3096 = vpop.f32.mrb[0].mxu0
        %3097 = vmatprep.mubr.f32.mxu0 0.0
        %3098 = vmatmul.mubr.f32.gmra.mrb[0].mxu0 %v3020
        %v3099 = vpop.f32.mrb[0].mxu0
        %v3100 = vadd.f32 %v3015, %v3099
        %v3101 = vpop.f32.mrb[0].mxu0
        %3102 = vmatprep.mubr.f32.mxu0 0.0
        %3103 = vmatmul.mubr.f32.gmra.mrb[0].mxu0 %v3023
        %v3104 = vpop.f32.mrb[0].mxu0
        %v3105 = vadd.f32 %v3015, %v3104
        %v3106 = vpop.f32.mrb[0].mxu0
        %3107 = vmatprep.mubr.f32.mxu0 0.0
        %3108 = vmatmul.mubr.f32.gmra.mrb[0].mxu0 %v3026
        %v3109 = vpop.f32.mrb[0].mxu0
        %v3110 = vadd.f32 %v3015, %v3109
        %v3111 = vpop.f32.mrb[0].mxu0
        %3112 = vdwg.mxu0
        %v3113 = vld [vmem:[%s2 + $0x5f] sm:$0xff]
        %v3114 = vld [vmem:[%s2 + $0x67] sm:$0xff]
        %3115 = vmatprep.subr.mxu0 0.0
        %3116 = vmatpush1.msra.mxu0 %v3113
        %3117 = vmatprep.subr.mxu0 0.0
        %3118 = vmatpush1.msra.mxu0 %v3114
        %3119 = vmatprep.subr.mxu0 0.0
        %3120 = vmatpush1.msra.mxu0 0.0
        %3121 = vmatprep.subr.mxu0 0.0
        %3122 = vmatpush1.msra.mxu0 0.0
        %3123 = vmatprep.subr.mxu0 0.0
        %3124 = vmatpush1.msra.mxu0 0.0
        %3125 = vmatprep.subr.mxu0 0.0
        %3126 = vmatpush1.msra.mxu0 0.0
        %3127 = vmatprep.subr.mxu0 0.0
        %3128 = vmatpush1.msra.mxu0 0.0
        %3129 = vmatprep.subr.mxu0 0.0
        %3130 = vmatpush1.msra.mxu0 0.0
        %3131 = vmatprep.subr.mxu0 0.0
        %3132 = vmatpush1.msra.mxu0 0.0
        %3133 = vmatprep.subr.mxu0 0.0
        %3134 = vmatpush1.msra.mxu0 0.0
        %3135 = vmatprep.subr.mxu0 0.0
        %3136 = vmatpush1.msra.mxu0 0.0
        %3137 = vmatprep.subr.mxu0 0.0
        %3138 = vmatpush1.msra.mxu0 0.0
        %3139 = vmatprep.subr.mxu0 0.0
        %3140 = vmatpush1.msra.mxu0 0.0
        %3141 = vmatprep.subr.mxu0 0.0
        %3142 = vmatpush1.msra.mxu0 0.0
        %3143 = vmatprep.subr.mxu0 0.0
        %3144 = vmatpush1.msra.mxu0 0.0
        %3145 = vmatprep.subr.mxu0 0.0
        %3146 = vmatpush1.msra.mxu0 0.0
        %3147 = vmatprep.subr.mxu0 0.0
        %3148 = vmatpush1.msra.mxu0 0.0
        %3149 = vmatprep.subr.mxu0 0.0
        %3150 = vmatpush1.msra.mxu0 0.0
        %3151 = vmatprep.subr.mxu0 0.0
        %3152 = vmatpush1.msra.mxu0 0.0
        %3153 = vmatprep.subr.mxu0 0.0
        %3154 = vmatpush1.msra.mxu0 0.0
        %3155 = vmatprep.subr.mxu0 0.0
        %3156 = vmatpush1.msra.mxu0 0.0
        %3157 = vmatprep.subr.mxu0 0.0
        %3158 = vmatpush1.msra.mxu0 0.0
        %3159 = vmatprep.subr.mxu0 0.0
        %3160 = vmatpush1.msra.mxu0 0.0
        %3161 = vmatprep.subr.mxu0 0.0
        %3162 = vmatpush1.msra.mxu0 0.0
        %3163 = vmatprep.subr.mxu0 0.0
        %3164 = vmatpush1.msra.mxu0 0.0
        %3165 = vmatprep.subr.mxu0 0.0
        %3166 = vmatpush1.msra.mxu0 0.0
        %3167 = vmatprep.subr.mxu0 0.0
        %3168 = vmatpush1.msra.mxu0 0.0
        %3169 = vmatprep.subr.mxu0 0.0
        %3170 = vmatpush1.msra.mxu0 0.0
        %3171 = vmatprep.subr.mxu0 0.0
        %3172 = vmatpush1.msra.mxu0 0.0
        %3173 = vmatprep.subr.mxu0 0.0
        %3174 = vmatpush1.msra.mxu0 0.0
        %3175 = vmatprep.subr.mxu0 0.0
        %3176 = vmatpush1.msra.mxu0 0.0
        %3177 = vmatprep.subr.mxu0 0.0
        %3178 = vmatpush1.msra.mxu0 0.0
        %3179 = vmatprep.mubr.f32.mxu0 0.0
        %3180 = vmatmul.mubr.f32.gmra.mrb[0].mxu0 %v3017
        %v3181 = vpop.f32.mrb[0].mxu0
        %v3182 = vadd.f32 0.0, %v3181
        %v3183 = vpop.f32.mrb[0].mxu0
        %3184 = vmatprep.mubr.f32.mxu0 0.0
        %3185 = vmatmul.mubr.f32.gmra.mrb[0].mxu0 %v3020
        %v3186 = vpop.f32.mrb[0].mxu0
        %v3187 = vadd.f32 0.0, %v3186
        %v3188 = vpop.f32.mrb[0].mxu0
        %3189 = vmatprep.mubr.f32.mxu0 0.0
        %3190 = vmatmul.mubr.f32.gmra.mrb[0].mxu0 %v3023
        %v3191 = vpop.f32.mrb[0].mxu0
        %v3192 = vadd.f32 0.0, %v3191
        %v3193 = vpop.f32.mrb[0].mxu0
        %3194 = vmatprep.mubr.f32.mxu0 0.0
        %3195 = vmatmul.mubr.f32.gmra.mrb[0].mxu0 %v3026
        %v3196 = vpop.f32.mrb[0].mxu0
        %v3197 = vadd.f32 0.0, %v3196
        %v3198 = vpop.f32.mrb[0].mxu0
        %3199 = vdwg.mxu0
        %v3201 = vsel %vm728, %v2672, 0
        %v3204 = vsel %vm728, %v2673, 0
        %v3207 = vsel %vm728, %v2674, 0
        %v3210 = vsel %vm728, %v2675, 0
        %v3213 = vsel %vm728, %v2704, 0
        %v3216 = vsel %vm728, %v2705, 0
        %v3219 = vsel %vm728, %v2706, 0
        %v3222 = vsel %vm728, %v2707, 0
        %v3225 = vsel %vm728, %v2736, 0
        %v3228 = vsel %vm728, %v2737, 0
        %v3231 = vsel %vm728, %v2738, 0
        %v3234 = vsel %vm728, %v2739, 0
        %v3237 = vsel %vm728, %v2768, 0
        %v3240 = vsel %vm728, %v2769, 0
        %v3243 = vsel %vm728, %v2770, 0
        %v3246 = vsel %vm728, %v2771, 0
        %3248 = vmatprep.subr.mxu0 0.0
        %3249 = vmatpush1.msra.mxu0 %v3182
        %3250 = vmatprep.subr.mxu0 0.0
        %3251 = vmatpush1.msra.mxu0 %v3187
        %3252 = vmatprep.subr.mxu0 0.0
        %3253 = vmatpush1.msra.mxu0 %v3192
        %3254 = vmatprep.subr.mxu0 0.0
        %3255 = vmatpush1.msra.mxu0 %v3197
        %3256 = vmatprep.subr.mxu0 0.0
        %3257 = vmatpush1.msra.mxu0 0.0
        %3258 = vmatprep.subr.mxu0 0.0
        %3259 = vmatpush1.msra.mxu0 0.0
        %3260 = vmatprep.subr.mxu0 0.0
        %3261 = vmatpush1.msra.mxu0 0.0
        %3262 = vmatprep.subr.mxu0 0.0
        %3263 = vmatpush1.msra.mxu0 0.0
        %3264 = vmatprep.subr.mxu0 0.0
        %3265 = vmatpush1.msra.mxu0 0.0
        %3266 = vmatprep.subr.mxu0 0.0
        %3267 = vmatpush1.msra.mxu0 0.0
        %3268 = vmatprep.subr.mxu0 0.0
        %3269 = vmatpush1.msra.mxu0 0.0
        %3270 = vmatprep.subr.mxu0 0.0
        %3271 = vmatpush1.msra.mxu0 0.0
        %3272 = vmatprep.subr.mxu0 0.0
        %3273 = vmatpush1.msra.mxu0 0.0
        %3274 = vmatprep.subr.mxu0 0.0
        %3275 = vmatpush1.msra.mxu0 0.0
        %3276 = vmatprep.subr.mxu0 0.0
        %3277 = vmatpush1.msra.mxu0 0.0
        %3278 = vmatprep.subr.mxu0 0.0
        %3279 = vmatpush1.msra.mxu0 0.0
        %3280 = vmatprep.subr.mxu0 0.0
        %3281 = vmatpush1.msra.mxu0 0.0
        %3282 = vmatprep.subr.mxu0 0.0
        %3283 = vmatpush1.msra.mxu0 0.0
        %3284 = vmatprep.subr.mxu0 0.0
        %3285 = vmatpush1.msra.mxu0 0.0
        %3286 = vmatprep.subr.mxu0 0.0
        %3287 = vmatpush1.msra.mxu0 0.0
        %3288 = vmatprep.subr.mxu0 0.0
        %3289 = vmatpush1.msra.mxu0 0.0
        %3290 = vmatprep.subr.mxu0 0.0
        %3291 = vmatpush1.msra.mxu0 0.0
        %3292 = vmatprep.subr.mxu0 0.0
        %3293 = vmatpush1.msra.mxu0 0.0
        %3294 = vmatprep.subr.mxu0 0.0
        %3295 = vmatpush1.msra.mxu0 0.0
        %3296 = vmatprep.subr.mxu0 0.0
        %3297 = vmatpush1.msra.mxu0 0.0
        %3298 = vmatprep.subr.mxu0 0.0
        %3299 = vmatpush1.msra.mxu0 0.0
        %3300 = vmatprep.subr.mxu0 0.0
        %3301 = vmatpush1.msra.mxu0 0.0
        %3302 = vmatprep.subr.mxu0 0.0
        %3303 = vmatpush1.msra.mxu0 0.0
        %3304 = vmatprep.subr.mxu0 0.0
        %3305 = vmatpush1.msra.mxu0 0.0
        %3306 = vmatprep.subr.mxu0 0.0
        %3307 = vmatpush1.msra.mxu0 0.0
        %3308 = vmatprep.subr.mxu0 0.0
        %3309 = vmatpush1.msra.mxu0 0.0
        %3310 = vmatprep.subr.mxu0 0.0
        %3311 = vmatpush1.msra.mxu0 0.0
        %3312 = vmatprep.mubr.f32.mxu0 0.0
        %3313 = vmatmul.mubr.f32.gmra.mrb[0].mxu0 %v3201
        %v3314 = vpop.f32.mrb[0].mxu0
        %v3315 = vadd.f32 0.0, %v3314
        %v3316 = vpop.f32.mrb[0].mxu0
        %3317 = vmatprep.mubr.f32.mxu0 0.0
        %3318 = vmatmul.mubr.f32.gmra.mrb[0].mxu0 %v3204
        %v3319 = vpop.f32.mrb[0].mxu0
        %v3320 = vadd.f32 0.0, %v3319
        %v3321 = vpop.f32.mrb[0].mxu0
        %3322 = vmatprep.mubr.f32.mxu0 0.0
        %3323 = vmatmul.mubr.f32.gmra.mrb[0].mxu0 %v3207
        %v3324 = vpop.f32.mrb[0].mxu0
        %v3325 = vadd.f32 0.0, %v3324
        %v3326 = vpop.f32.mrb[0].mxu0
        %3327 = vmatprep.mubr.f32.mxu0 0.0
        %3328 = vmatmul.mubr.f32.gmra.mrb[0].mxu0 %v3210
        %v3329 = vpop.f32.mrb[0].mxu0
        %v3330 = vadd.f32 0.0, %v3329
        %v3331 = vpop.f32.mrb[0].mxu0
        %3332 = vmatprep.mubr.f32.mxu0 0.0
        %3333 = vmatmul.mubr.f32.gmra.mrb[0].mxu0 %v3213
        %v3334 = vpop.f32.mrb[0].mxu0
        %v3335 = vadd.f32 0.0, %v3334
        %v3336 = vpop.f32.mrb[0].mxu0
        %3337 = vmatprep.mubr.f32.mxu0 0.0
        %3338 = vmatmul.mubr.f32.gmra.mrb[0].mxu0 %v3216
        %v3339 = vpop.f32.mrb[0].mxu0
        %v3340 = vadd.f32 0.0, %v3339
        %v3341 = vpop.f32.mrb[0].mxu0
        %3342 = vmatprep.mubr.f32.mxu0 0.0
        %3343 = vmatmul.mubr.f32.gmra.mrb[0].mxu0 %v3219
        %v3344 = vpop.f32.mrb[0].mxu0
        %v3345 = vadd.f32 0.0, %v3344
        %v3346 = vpop.f32.mrb[0].mxu0
        %3347 = vmatprep.mubr.f32.mxu0 0.0
        %3348 = vmatmul.mubr.f32.gmra.mrb[0].mxu0 %v3222
        %v3349 = vpop.f32.mrb[0].mxu0
        %v3350 = vadd.f32 0.0, %v3349
        %v3351 = vpop.f32.mrb[0].mxu0
        %3352 = vmatprep.mubr.f32.mxu0 0.0
        %3353 = vmatmul.mubr.f32.gmra.mrb[0].mxu0 %v3225
        %v3354 = vpop.f32.mrb[0].mxu0
        %v3355 = vadd.f32 0.0, %v3354
        %v3356 = vpop.f32.mrb[0].mxu0
        %3357 = vmatprep.mubr.f32.mxu0 0.0
        %3358 = vmatmul.mubr.f32.gmra.mrb[0].mxu0 %v3228
        %v3359 = vpop.f32.mrb[0].mxu0
        %v3360 = vadd.f32 0.0, %v3359
        %v3361 = vpop.f32.mrb[0].mxu0
        %3362 = vmatprep.mubr.f32.mxu0 0.0
        %3363 = vmatmul.mubr.f32.gmra.mrb[0].mxu0 %v3231
        %v3364 = vpop.f32.mrb[0].mxu0
        %v3365 = vadd.f32 0.0, %v3364
        %v3366 = vpop.f32.mrb[0].mxu0
        %3367 = vmatprep.mubr.f32.mxu0 0.0
        %3368 = vmatmul.mubr.f32.gmra.mrb[0].mxu0 %v3234
        %v3369 = vpop.f32.mrb[0].mxu0
        %v3370 = vadd.f32 0.0, %v3369
        %v3371 = vpop.f32.mrb[0].mxu0
        %3372 = vmatprep.mubr.f32.mxu0 0.0
        %3373 = vmatmul.mubr.f32.gmra.mrb[0].mxu0 %v3237
        %v3374 = vpop.f32.mrb[0].mxu0
        %v3375 = vadd.f32 0.0, %v3374
        %v3376 = vpop.f32.mrb[0].mxu0
        %3377 = vmatprep.mubr.f32.mxu0 0.0
        %3378 = vmatmul.mubr.f32.gmra.mrb[0].mxu0 %v3240
        %v3379 = vpop.f32.mrb[0].mxu0
        %v3380 = vadd.f32 0.0, %v3379
        %v3381 = vpop.f32.mrb[0].mxu0
        %3382 = vmatprep.mubr.f32.mxu0 0.0
        %3383 = vmatmul.mubr.f32.gmra.mrb[0].mxu0 %v3243
        %v3384 = vpop.f32.mrb[0].mxu0
        %v3385 = vadd.f32 0.0, %v3384
        %v3386 = vpop.f32.mrb[0].mxu0
        %3387 = vmatprep.mubr.f32.mxu0 0.0
        %3388 = vmatmul.mubr.f32.gmra.mrb[0].mxu0 %v3246
        %v3389 = vpop.f32.mrb[0].mxu0
        %v3390 = vadd.f32 0.0, %v3389
        %v3391 = vpop.f32.mrb[0].mxu0
        %3392 = vdwg.mxu0
        %v3393 = vsub.f32 %v3095, %v3315
        %v3394 = vsub.f32 %v3100, %v3320
        %v3395 = vsub.f32 %v3105, %v3325
        %v3396 = vsub.f32 %v3110, %v3330
        %v3397 = vsub.f32 %v3095, %v3335
        %v3398 = vsub.f32 %v3100, %v3340
        %v3399 = vsub.f32 %v3105, %v3345
        %v3400 = vsub.f32 %v3110, %v3350
        %v3401 = vsub.f32 %v3095, %v3355
        %v3402 = vsub.f32 %v3100, %v3360
        %v3403 = vsub.f32 %v3105, %v3365
        %v3404 = vsub.f32 %v3110, %v3370
        %v3405 = vsub.f32 %v3095, %v3375
        %v3406 = vsub.f32 %v3100, %v3380
        %v3407 = vsub.f32 %v3105, %v3385
        %v3408 = vsub.f32 %v3110, %v3390
        %v3409 = vmax.f32 %v3393, 0.0
        %v3410 = vmax.f32 %v3394, 0.0
        %v3411 = vmax.f32 %v3395, 0.0
        %v3412 = vmax.f32 %v3396, 0.0
        %v3413 = vmax.f32 %v3397, 0.0
        %v3414 = vmax.f32 %v3398, 0.0
        %v3415 = vmax.f32 %v3399, 0.0
        %v3416 = vmax.f32 %v3400, 0.0
        %v3417 = vmax.f32 %v3401, 0.0
        %v3418 = vmax.f32 %v3402, 0.0
        %v3419 = vmax.f32 %v3403, 0.0
        %v3420 = vmax.f32 %v3404, 0.0
        %v3421 = vmax.f32 %v3405, 0.0
        %v3422 = vmax.f32 %v3406, 0.0
        %v3423 = vmax.f32 %v3407, 0.0
        %v3424 = vmax.f32 %v3408, 0.0
        %v3425 = vpack.c.bf16 %v3410, %v3409
        %v3426 = vpack.c.bf16 %v3412, %v3411
        %v3427 = vpack.c.bf16 %v3414, %v3413
        %v3428 = vpack.c.bf16 %v3416, %v3415
        %v3429 = vpack.c.bf16 %v3418, %v3417
        %v3430 = vpack.c.bf16 %v3420, %v3419
        %v3431 = vpack.c.bf16 %v3422, %v3421
        %v3432 = vpack.c.bf16 %v3424, %v3423
        %v3433 = vld [vmem:[#allocation2 + $0x100] sm:$0xf]
        %v3434 = vld [vmem:[#allocation2 + $0x104] sm:$0xf]
        %v3435 = vld [vmem:[#allocation2 + $0x108] sm:$0xf]
        %v3436 = vld [vmem:[#allocation2 + $0x10c] sm:$0xf]
        %v3437 = vld [vmem:[#allocation2 + $0x110] sm:$0xf]
        %v3438 = vld [vmem:[#allocation2 + $0x114] sm:$0xf]
        %v3439 = vld [vmem:[#allocation2 + $0x118] sm:$0xf]
        %v3440 = vld [vmem:[#allocation2 + $0x11c] sm:$0xf]
        %v3441 = vld [vmem:[%s2 + $0x70] sm:$0x1]
        %v3442 = vlaneseq
        %v3443 = vshrl.u32 %v3442, 7
        %v3444 = vsub.s32 0, %v3443
        %v3445 = vrot.slane %v3441, %v3444
        %v3454 = vunpack.c.l.b16 %v3433
        %v3455 = vunpack.c.l.b16 %v3434
        %v3456 = vunpack.c.l.b16 %v3435
        %v3457 = vunpack.c.l.b16 %v3436
        %v3458 = vunpack.c.l.b16 %v3437
        %v3459 = vunpack.c.l.b16 %v3438
        %v3460 = vunpack.c.l.b16 %v3439
        %v3461 = vunpack.c.l.b16 %v3440
        %v3462 = vpack.c.b16 %v3455, %v3454
        %v3463 = vpack.c.b16 %v3457, %v3456
        %v3464 = vpack.c.b16 %v3459, %v3458
        %v3465 = vpack.c.b16 %v3461, %v3460
        %v3471 = vsel %vm1548, %v3425, 0
        %v3474 = vsel %vm1548, %v3426, 0
        %v3477 = vsel %vm1548, %v3427, 0
        %v3480 = vsel %vm1548, %v3428, 0
        %v3483 = vsel %vm1548, %v3429, 0
        %v3486 = vsel %vm1548, %v3430, 0
        %v3489 = vsel %vm1548, %v3431, 0
        %v3492 = vsel %vm1548, %v3432, 0
        %3494 = vmatprep.subr.bf16.mxu0 0
        %3495 = vmatpush1.bf16.msra.mxu0 %v3462
        %3496 = vmatprep.subr.bf16.mxu0 0
        %3497 = vmatpush1.bf16.msra.mxu0 %v3463
        %3498 = vmatprep.subr.bf16.mxu0 0
        %3499 = vmatpush1.bf16.msra.mxu0 %v3464
        %3500 = vmatprep.subr.bf16.mxu0 0
        %3501 = vmatpush1.bf16.msra.mxu0 %v3465
        %3502 = vmatprep.subr.bf16.mxu0 0
        %3503 = vmatpush1.bf16.msra.mxu0 0
        %3504 = vmatprep.subr.bf16.mxu0 0
        %3505 = vmatpush1.bf16.msra.mxu0 0
        %3506 = vmatprep.subr.bf16.mxu0 0
        %3507 = vmatpush1.bf16.msra.mxu0 0
        %3508 = vmatprep.subr.bf16.mxu0 0
        %3509 = vmatpush1.bf16.msra.mxu0 0
        %3510 = vmatprep.subr.bf16.mxu0 0
        %3511 = vmatpush1.bf16.msra.mxu0 0
        %3512 = vmatprep.subr.bf16.mxu0 0
        %3513 = vmatpush1.bf16.msra.mxu0 0
        %3514 = vmatprep.subr.bf16.mxu0 0
        %3515 = vmatpush1.bf16.msra.mxu0 0
        %3516 = vmatprep.subr.bf16.mxu0 0
        %3517 = vmatpush1.bf16.msra.mxu0 0
        %3518 = vmatprep.subr.bf16.mxu0 0
        %3519 = vmatpush1.bf16.msra.mxu0 0
        %3520 = vmatprep.subr.bf16.mxu0 0
        %3521 = vmatpush1.bf16.msra.mxu0 0
        %3522 = vmatprep.subr.bf16.mxu0 0
        %3523 = vmatpush1.bf16.msra.mxu0 0
        %3524 = vmatprep.subr.bf16.mxu0 0
        %3525 = vmatpush1.bf16.msra.mxu0 0
        %3526 = vmatprep.mubr.bf16.mxu0 0
        %3527 = vmatmul.mubr.bf16.gmra.mrb[0].mxu0 %v3471
        %v3528 = vpop.f32.mrb[0].mxu0
        %v3529 = vadd.f32 %v3445, %v3528
        %v3530 = vpop.f32.mrb[0].mxu0
        %v3531 = vpop.f32.mrb[0].mxu0
        %v3532 = vadd.f32 %v3445, %v3531
        %v3533 = vpop.f32.mrb[0].mxu0
        %3534 = vmatprep.mubr.bf16.mxu0 0
        %3535 = vmatmul.mubr.bf16.gmra.mrb[0].mxu0 %v3474
        %v3536 = vpop.f32.mrb[0].mxu0
        %v3537 = vadd.f32 %v3445, %v3536
        %v3538 = vpop.f32.mrb[0].mxu0
        %v3539 = vpop.f32.mrb[0].mxu0
        %v3540 = vadd.f32 %v3445, %v3539
        %v3541 = vpop.f32.mrb[0].mxu0
        %3542 = vmatprep.mubr.bf16.mxu0 0
        %3543 = vmatmul.mubr.bf16.gmra.mrb[0].mxu0 %v3477
        %v3544 = vpop.f32.mrb[0].mxu0
        %v3545 = vadd.f32 %v3445, %v3544
        %v3546 = vpop.f32.mrb[0].mxu0
        %v3547 = vpop.f32.mrb[0].mxu0
        %v3548 = vadd.f32 %v3445, %v3547
        %v3549 = vpop.f32.mrb[0].mxu0
        %3550 = vmatprep.mubr.bf16.mxu0 0
        %3551 = vmatmul.mubr.bf16.gmra.mrb[0].mxu0 %v3480
        %v3552 = vpop.f32.mrb[0].mxu0
        %v3553 = vadd.f32 %v3445, %v3552
        %v3554 = vpop.f32.mrb[0].mxu0
        %v3555 = vpop.f32.mrb[0].mxu0
        %v3556 = vadd.f32 %v3445, %v3555
        %v3557 = vpop.f32.mrb[0].mxu0
        %3558 = vmatprep.mubr.bf16.mxu0 0
        %3559 = vmatmul.mubr.bf16.gmra.mrb[0].mxu0 %v3483
        %v3560 = vpop.f32.mrb[0].mxu0
        %v3561 = vadd.f32 %v3445, %v3560
        %v3562 = vpop.f32.mrb[0].mxu0
        %v3563 = vpop.f32.mrb[0].mxu0
        %v3564 = vadd.f32 %v3445, %v3563
        %v3565 = vpop.f32.mrb[0].mxu0
        %3566 = vmatprep.mubr.bf16.mxu0 0
        %3567 = vmatmul.mubr.bf16.gmra.mrb[0].mxu0 %v3486
        %v3568 = vpop.f32.mrb[0].mxu0
        %v3569 = vadd.f32 %v3445, %v3568
        %v3570 = vpop.f32.mrb[0].mxu0
        %v3571 = vpop.f32.mrb[0].mxu0
        %v3572 = vadd.f32 %v3445, %v3571
        %v3573 = vpop.f32.mrb[0].mxu0
        %3574 = vmatprep.mubr.bf16.mxu0 0
        %3575 = vmatmul.mubr.bf16.gmra.mrb[0].mxu0 %v3489
        %v3576 = vpop.f32.mrb[0].mxu0
        %v3577 = vadd.f32 %v3445, %v3576
        %v3578 = vpop.f32.mrb[0].mxu0
        %v3579 = vpop.f32.mrb[0].mxu0
        %v3580 = vadd.f32 %v3445, %v3579
        %v3581 = vpop.f32.mrb[0].mxu0
        %3582 = vmatprep.mubr.bf16.mxu0 0
        %3583 = vmatmul.mubr.bf16.gmra.mrb[0].mxu0 %v3492
        %v3584 = vpop.f32.mrb[0].mxu0
        %v3585 = vadd.f32 %v3445, %v3584
        %v3586 = vpop.f32.mrb[0].mxu0
        %v3587 = vpop.f32.mrb[0].mxu0
        %v3588 = vadd.f32 %v3445, %v3587
        %v3589 = vpop.f32.mrb[0].mxu0
        %3590 = vdwg.mxu0
        %v3591 = vmax.f32 %v3529, 0.0
        %v3592 = vmax.f32 %v3532, 0.0
        %v3593 = vmax.f32 %v3537, 0.0
        %v3594 = vmax.f32 %v3540, 0.0
        %v3595 = vmax.f32 %v3545, 0.0
        %v3596 = vmax.f32 %v3548, 0.0
        %v3597 = vmax.f32 %v3553, 0.0
        %v3598 = vmax.f32 %v3556, 0.0
        %v3599 = vmax.f32 %v3561, 0.0
        %v3600 = vmax.f32 %v3564, 0.0
        %v3601 = vmax.f32 %v3569, 0.0
        %v3602 = vmax.f32 %v3572, 0.0
        %v3603 = vmax.f32 %v3577, 0.0
        %v3604 = vmax.f32 %v3580, 0.0
        %v3605 = vmax.f32 %v3585, 0.0
        %v3606 = vmax.f32 %v3588, 0.0
        %v3607 = vpack.c.bf16 %v3592, %v3591
        %v3608 = vpack.c.bf16 %v3594, %v3593
        %v3609 = vpack.c.bf16 %v3596, %v3595
        %v3610 = vpack.c.bf16 %v3598, %v3597
        %v3611 = vpack.c.bf16 %v3600, %v3599
        %v3612 = vpack.c.bf16 %v3602, %v3601
        %v3613 = vpack.c.bf16 %v3604, %v3603
        %v3614 = vpack.c.bf16 %v3606, %v3605
        %v3615 = vld [vmem:[#allocation2 + $0x120] sm:$0xf]
        %v3616 = vld [vmem:[#allocation2 + $0x124] sm:$0xf]
        %v3617 = vld [vmem:[#allocation2 + $0x128] sm:$0xf]
        %v3618 = vld [vmem:[#allocation2 + $0x12c] sm:$0xf]
        %v3619 = vld [vmem:[#allocation2 + $0x130] sm:$0xf]
        %v3620 = vld [vmem:[#allocation2 + $0x134] sm:$0xf]
        %v3621 = vld [vmem:[#allocation2 + $0x138] sm:$0xf]
        %v3622 = vld [vmem:[#allocation2 + $0x13c] sm:$0xf]
        %v3623 = vld [vmem:[#allocation2 + $0x140] sm:$0xf]
        %v3624 = vld [vmem:[#allocation2 + $0x144] sm:$0xf]
        %v3625 = vld [vmem:[#allocation2 + $0x148] sm:$0xf]
        %v3626 = vld [vmem:[#allocation2 + $0x14c] sm:$0xf]
        %v3627 = vld [vmem:[#allocation2 + $0x150] sm:$0xf]
        %v3628 = vld [vmem:[#allocation2 + $0x154] sm:$0xf]
        %v3629 = vld [vmem:[#allocation2 + $0x158] sm:$0xf]
        %v3630 = vld [vmem:[#allocation2 + $0x15c] sm:$0xf]
        %v3631 = vld [vmem:[%s2 + $0x71] sm:$0x1]
        %v3632 = vlaneseq
        %v3633 = vshrl.u32 %v3632, 7
        %v3634 = vsub.s32 0, %v3633
        %v3635 = vrot.slane %v3631, %v3634
        %v3652 = vunpack.c.l.b16 %v3615
        %v3653 = vunpack.c.l.b16 %v3616
        %v3654 = vunpack.c.l.b16 %v3617
        %v3655 = vunpack.c.l.b16 %v3618
        %v3656 = vunpack.c.l.b16 %v3619
        %v3657 = vunpack.c.l.b16 %v3620
        %v3658 = vunpack.c.l.b16 %v3621
        %v3659 = vunpack.c.l.b16 %v3622
        %v3660 = vunpack.c.l.b16 %v3623
        %v3661 = vunpack.c.l.b16 %v3624
        %v3662 = vunpack.c.l.b16 %v3625
        %v3663 = vunpack.c.l.b16 %v3626
        %v3664 = vunpack.c.l.b16 %v3627
        %v3665 = vunpack.c.l.b16 %v3628
        %v3666 = vunpack.c.l.b16 %v3629
        %v3667 = vunpack.c.l.b16 %v3630
        %v3668 = vpack.c.b16 %v3653, %v3652
        %v3669 = vpack.c.b16 %v3655, %v3654
        %v3670 = vpack.c.b16 %v3657, %v3656
        %v3671 = vpack.c.b16 %v3659, %v3658
        %v3672 = vpack.c.b16 %v3661, %v3660
        %v3673 = vpack.c.b16 %v3663, %v3662
        %v3674 = vpack.c.b16 %v3665, %v3664
        %v3675 = vpack.c.b16 %v3667, %v3666
        %3684 = vmatprep.subr.bf16.mxu0 0
        %3685 = vmatpush1.bf16.msra.mxu0 %v3668
        %3686 = vmatprep.subr.bf16.mxu0 0
        %3687 = vmatpush1.bf16.msra.mxu0 %v3669
        %3688 = vmatprep.subr.bf16.mxu0 0
        %3689 = vmatpush1.bf16.msra.mxu0 %v3670
        %3690 = vmatprep.subr.bf16.mxu0 0
        %3691 = vmatpush1.bf16.msra.mxu0 %v3671
        %3692 = vmatprep.subr.bf16.mxu0 0
        %3693 = vmatpush1.bf16.msra.mxu0 %v3672
        %3694 = vmatprep.subr.bf16.mxu0 0
        %3695 = vmatpush1.bf16.msra.mxu0 %v3673
        %3696 = vmatprep.subr.bf16.mxu0 0
        %3697 = vmatpush1.bf16.msra.mxu0 %v3674
        %3698 = vmatprep.subr.bf16.mxu0 0
        %3699 = vmatpush1.bf16.msra.mxu0 %v3675
        %3700 = vmatprep.subr.bf16.mxu0 0
        %3701 = vmatpush1.bf16.msra.mxu0 0
        %3702 = vmatprep.subr.bf16.mxu0 0
        %3703 = vmatpush1.bf16.msra.mxu0 0
        %3704 = vmatprep.subr.bf16.mxu0 0
        %3705 = vmatpush1.bf16.msra.mxu0 0
        %3706 = vmatprep.subr.bf16.mxu0 0
        %3707 = vmatpush1.bf16.msra.mxu0 0
        %3708 = vmatprep.subr.bf16.mxu0 0
        %3709 = vmatpush1.bf16.msra.mxu0 0
        %3710 = vmatprep.subr.bf16.mxu0 0
        %3711 = vmatpush1.bf16.msra.mxu0 0
        %3712 = vmatprep.subr.bf16.mxu0 0
        %3713 = vmatpush1.bf16.msra.mxu0 0
        %3714 = vmatprep.subr.bf16.mxu0 0
        %3715 = vmatpush1.bf16.msra.mxu0 0
        %3716 = vmatprep.mubr.bf16.mxu0 0
        %3717 = vmatmul.mubr.bf16.gmra.mrb[0].mxu0 %v3607
        %v3718 = vpop.f32.mrb[0].mxu0
        %v3719 = vadd.f32 %v3635, %v3718
        %v3720 = vpop.f32.mrb[0].mxu0
        %v3721 = vpop.f32.mrb[0].mxu0
        %v3722 = vadd.f32 %v3635, %v3721
        %v3723 = vpop.f32.mrb[0].mxu0
        %3724 = vmatprep.mubr.bf16.mxu0 0
        %3725 = vmatmul.mubr.bf16.gmra.mrb[0].mxu0 %v3608
        %v3726 = vpop.f32.mrb[0].mxu0
        %v3727 = vadd.f32 %v3635, %v3726
        %v3728 = vpop.f32.mrb[0].mxu0
        %v3729 = vpop.f32.mrb[0].mxu0
        %v3730 = vadd.f32 %v3635, %v3729
        %v3731 = vpop.f32.mrb[0].mxu0
        %3732 = vmatprep.mubr.bf16.mxu0 0
        %3733 = vmatmul.mubr.bf16.gmra.mrb[0].mxu0 %v3609
        %v3734 = vpop.f32.mrb[0].mxu0
        %v3735 = vadd.f32 %v3635, %v3734
        %v3736 = vpop.f32.mrb[0].mxu0
        %v3737 = vpop.f32.mrb[0].mxu0
        %v3738 = vadd.f32 %v3635, %v3737
        %v3739 = vpop.f32.mrb[0].mxu0
        %3740 = vmatprep.mubr.bf16.mxu0 0
        %3741 = vmatmul.mubr.bf16.gmra.mrb[0].mxu0 %v3610
        %v3742 = vpop.f32.mrb[0].mxu0
        %v3743 = vadd.f32 %v3635, %v3742
        %v3744 = vpop.f32.mrb[0].mxu0
        %v3745 = vpop.f32.mrb[0].mxu0
        %v3746 = vadd.f32 %v3635, %v3745
        %v3747 = vpop.f32.mrb[0].mxu0
        %3748 = vmatprep.mubr.bf16.mxu0 0
        %3749 = vmatmul.mubr.bf16.gmra.mrb[0].mxu0 %v3611
        %v3750 = vpop.f32.mrb[0].mxu0
        %v3751 = vadd.f32 %v3635, %v3750
        %v3752 = vpop.f32.mrb[0].mxu0
        %v3753 = vpop.f32.mrb[0].mxu0
        %v3754 = vadd.f32 %v3635, %v3753
        %v3755 = vpop.f32.mrb[0].mxu0
        %3756 = vmatprep.mubr.bf16.mxu0 0
        %3757 = vmatmul.mubr.bf16.gmra.mrb[0].mxu0 %v3612
        %v3758 = vpop.f32.mrb[0].mxu0
        %v3759 = vadd.f32 %v3635, %v3758
        %v3760 = vpop.f32.mrb[0].mxu0
        %v3761 = vpop.f32.mrb[0].mxu0
        %v3762 = vadd.f32 %v3635, %v3761
        %v3763 = vpop.f32.mrb[0].mxu0
        %3764 = vmatprep.mubr.bf16.mxu0 0
        %3765 = vmatmul.mubr.bf16.gmra.mrb[0].mxu0 %v3613
        %v3766 = vpop.f32.mrb[0].mxu0
        %v3767 = vadd.f32 %v3635, %v3766
        %v3768 = vpop.f32.mrb[0].mxu0
        %v3769 = vpop.f32.mrb[0].mxu0
        %v3770 = vadd.f32 %v3635, %v3769
        %v3771 = vpop.f32.mrb[0].mxu0
        %3772 = vmatprep.mubr.bf16.mxu0 0
        %3773 = vmatmul.mubr.bf16.gmra.mrb[0].mxu0 %v3614
        %v3774 = vpop.f32.mrb[0].mxu0
        %v3775 = vadd.f32 %v3635, %v3774
        %v3776 = vpop.f32.mrb[0].mxu0
        %v3777 = vpop.f32.mrb[0].mxu0
        %v3778 = vadd.f32 %v3635, %v3777
        %v3779 = vpop.f32.mrb[0].mxu0
        %3780 = vdwg.mxu0
        %v3781 = vmax.f32 %v3719, 0.0
        %v3782 = vmax.f32 %v3722, 0.0
        %v3783 = vmax.f32 %v3727, 0.0
        %v3784 = vmax.f32 %v3730, 0.0
        %v3785 = vmax.f32 %v3735, 0.0
        %v3786 = vmax.f32 %v3738, 0.0
        %v3787 = vmax.f32 %v3743, 0.0
        %v3788 = vmax.f32 %v3746, 0.0
        %v3789 = vmax.f32 %v3751, 0.0
        %v3790 = vmax.f32 %v3754, 0.0
        %v3791 = vmax.f32 %v3759, 0.0
        %v3792 = vmax.f32 %v3762, 0.0
        %v3793 = vmax.f32 %v3767, 0.0
        %v3794 = vmax.f32 %v3770, 0.0
        %v3795 = vmax.f32 %v3775, 0.0
        %v3796 = vmax.f32 %v3778, 0.0
        %v3797 = vpack.c.bf16 %v3782, %v3781
        %v3798 = vpack.c.bf16 %v3784, %v3783
        %v3799 = vpack.c.bf16 %v3786, %v3785
        %v3800 = vpack.c.bf16 %v3788, %v3787
        %v3801 = vpack.c.bf16 %v3790, %v3789
        %v3802 = vpack.c.bf16 %v3792, %v3791
        %v3803 = vpack.c.bf16 %v3794, %v3793
        %v3804 = vpack.c.bf16 %v3796, %v3795
        %v3805 = vld [vmem:[#allocation2 + $0x160] sm:$0xf]
        %v3806 = vld [vmem:[#allocation2 + $0x164] sm:$0xf]
        %v3807 = vld [vmem:[#allocation2 + $0x168] sm:$0xf]
        %v3808 = vld [vmem:[#allocation2 + $0x16c] sm:$0xf]
        %v3809 = vld [vmem:[#allocation2 + $0x170] sm:$0xf]
        %v3810 = vld [vmem:[#allocation2 + $0x174] sm:$0xf]
        %v3811 = vld [vmem:[#allocation2 + $0x178] sm:$0xf]
        %v3812 = vld [vmem:[#allocation2 + $0x17c] sm:$0xf]
        %v3813 = vld [vmem:[#allocation2 + $0x180] sm:$0xf]
        %v3814 = vld [vmem:[#allocation2 + $0x184] sm:$0xf]
        %v3815 = vld [vmem:[#allocation2 + $0x188] sm:$0xf]
        %v3816 = vld [vmem:[#allocation2 + $0x18c] sm:$0xf]
        %v3817 = vld [vmem:[#allocation2 + $0x190] sm:$0xf]
        %v3818 = vld [vmem:[#allocation2 + $0x194] sm:$0xf]
        %v3819 = vld [vmem:[#allocation2 + $0x198] sm:$0xf]
        %v3820 = vld [vmem:[#allocation2 + $0x19c] sm:$0xf]
        %v3821 = vld [vmem:[%s2 + $0x72] sm:$0x1]
        %v3822 = vlaneseq
        %v3823 = vshrl.u32 %v3822, 7
        %v3824 = vsub.s32 0, %v3823
        %v3825 = vrot.slane %v3821, %v3824
        %v3842 = vunpack.c.l.b16 %v3805
        %v3843 = vunpack.c.l.b16 %v3806
        %v3844 = vunpack.c.l.b16 %v3807
        %v3845 = vunpack.c.l.b16 %v3808
        %v3846 = vunpack.c.l.b16 %v3809
        %v3847 = vunpack.c.l.b16 %v3810
        %v3848 = vunpack.c.l.b16 %v3811
        %v3849 = vunpack.c.l.b16 %v3812
        %v3850 = vunpack.c.l.b16 %v3813
        %v3851 = vunpack.c.l.b16 %v3814
        %v3852 = vunpack.c.l.b16 %v3815
        %v3853 = vunpack.c.l.b16 %v3816
        %v3854 = vunpack.c.l.b16 %v3817
        %v3855 = vunpack.c.l.b16 %v3818
        %v3856 = vunpack.c.l.b16 %v3819
        %v3857 = vunpack.c.l.b16 %v3820
        %v3858 = vpack.c.b16 %v3843, %v3842
        %v3859 = vpack.c.b16 %v3845, %v3844
        %v3860 = vpack.c.b16 %v3847, %v3846
        %v3861 = vpack.c.b16 %v3849, %v3848
        %v3862 = vpack.c.b16 %v3851, %v3850
        %v3863 = vpack.c.b16 %v3853, %v3852
        %v3864 = vpack.c.b16 %v3855, %v3854
        %v3865 = vpack.c.b16 %v3857, %v3856
        %3874 = vmatprep.subr.bf16.mxu0 0
        %3875 = vmatpush1.bf16.msra.mxu0 %v3858
        %3876 = vmatprep.subr.bf16.mxu0 0
        %3877 = vmatpush1.bf16.msra.mxu0 %v3859
        %3878 = vmatprep.subr.bf16.mxu0 0
        %3879 = vmatpush1.bf16.msra.mxu0 %v3860
        %3880 = vmatprep.subr.bf16.mxu0 0
        %3881 = vmatpush1.bf16.msra.mxu0 %v3861
        %3882 = vmatprep.subr.bf16.mxu0 0
        %3883 = vmatpush1.bf16.msra.mxu0 %v3862
        %3884 = vmatprep.subr.bf16.mxu0 0
        %3885 = vmatpush1.bf16.msra.mxu0 %v3863
        %3886 = vmatprep.subr.bf16.mxu0 0
        %3887 = vmatpush1.bf16.msra.mxu0 %v3864
        %3888 = vmatprep.subr.bf16.mxu0 0
        %3889 = vmatpush1.bf16.msra.mxu0 %v3865
        %3890 = vmatprep.subr.bf16.mxu0 0
        %3891 = vmatpush1.bf16.msra.mxu0 0
        %3892 = vmatprep.subr.bf16.mxu0 0
        %3893 = vmatpush1.bf16.msra.mxu0 0
        %3894 = vmatprep.subr.bf16.mxu0 0
        %3895 = vmatpush1.bf16.msra.mxu0 0
        %3896 = vmatprep.subr.bf16.mxu0 0
        %3897 = vmatpush1.bf16.msra.mxu0 0
        %3898 = vmatprep.subr.bf16.mxu0 0
        %3899 = vmatpush1.bf16.msra.mxu0 0
        %3900 = vmatprep.subr.bf16.mxu0 0
        %3901 = vmatpush1.bf16.msra.mxu0 0
        %3902 = vmatprep.subr.bf16.mxu0 0
        %3903 = vmatpush1.bf16.msra.mxu0 0
        %3904 = vmatprep.subr.bf16.mxu0 0
        %3905 = vmatpush1.bf16.msra.mxu0 0
        %3906 = vmatprep.mubr.bf16.mxu0 0
        %3907 = vmatmul.mubr.bf16.gmra.mrb[0].mxu0 %v3797
        %v3908 = vpop.f32.mrb[0].mxu0
        %v3909 = vadd.f32 %v3825, %v3908
        %v3910 = vpop.f32.mrb[0].mxu0
        %v3911 = vpop.f32.mrb[0].mxu0
        %v3912 = vadd.f32 %v3825, %v3911
        %v3913 = vpop.f32.mrb[0].mxu0
        %3914 = vmatprep.mubr.bf16.mxu0 0
        %3915 = vmatmul.mubr.bf16.gmra.mrb[0].mxu0 %v3798
        %v3916 = vpop.f32.mrb[0].mxu0
        %v3917 = vadd.f32 %v3825, %v3916
        %v3918 = vpop.f32.mrb[0].mxu0
        %v3919 = vpop.f32.mrb[0].mxu0
        %v3920 = vadd.f32 %v3825, %v3919
        %v3921 = vpop.f32.mrb[0].mxu0
        %3922 = vmatprep.mubr.bf16.mxu0 0
        %3923 = vmatmul.mubr.bf16.gmra.mrb[0].mxu0 %v3799
        %v3924 = vpop.f32.mrb[0].mxu0
        %v3925 = vadd.f32 %v3825, %v3924
        %v3926 = vpop.f32.mrb[0].mxu0
        %v3927 = vpop.f32.mrb[0].mxu0
        %v3928 = vadd.f32 %v3825, %v3927
        %v3929 = vpop.f32.mrb[0].mxu0
        %3930 = vmatprep.mubr.bf16.mxu0 0
        %3931 = vmatmul.mubr.bf16.gmra.mrb[0].mxu0 %v3800
        %v3932 = vpop.f32.mrb[0].mxu0
        %v3933 = vadd.f32 %v3825, %v3932
        %v3934 = vpop.f32.mrb[0].mxu0
        %v3935 = vpop.f32.mrb[0].mxu0
        %v3936 = vadd.f32 %v3825, %v3935
        %v3937 = vpop.f32.mrb[0].mxu0
        %3938 = vmatprep.mubr.bf16.mxu0 0
        %3939 = vmatmul.mubr.bf16.gmra.mrb[0].mxu0 %v3801
        %v3940 = vpop.f32.mrb[0].mxu0
        %v3941 = vadd.f32 %v3825, %v3940
        %v3942 = vpop.f32.mrb[0].mxu0
        %v3943 = vpop.f32.mrb[0].mxu0
        %v3944 = vadd.f32 %v3825, %v3943
        %v3945 = vpop.f32.mrb[0].mxu0
        %3946 = vmatprep.mubr.bf16.mxu0 0
        %3947 = vmatmul.mubr.bf16.gmra.mrb[0].mxu0 %v3802
        %v3948 = vpop.f32.mrb[0].mxu0
        %v3949 = vadd.f32 %v3825, %v3948
        %v3950 = vpop.f32.mrb[0].mxu0
        %v3951 = vpop.f32.mrb[0].mxu0
        %v3952 = vadd.f32 %v3825, %v3951
        %v3953 = vpop.f32.mrb[0].mxu0
        %3954 = vmatprep.mubr.bf16.mxu0 0
        %3955 = vmatmul.mubr.bf16.gmra.mrb[0].mxu0 %v3803
        %v3956 = vpop.f32.mrb[0].mxu0
        %v3957 = vadd.f32 %v3825, %v3956
        %v3958 = vpop.f32.mrb[0].mxu0
        %v3959 = vpop.f32.mrb[0].mxu0
        %v3960 = vadd.f32 %v3825, %v3959
        %v3961 = vpop.f32.mrb[0].mxu0
        %3962 = vmatprep.mubr.bf16.mxu0 0
        %3963 = vmatmul.mubr.bf16.gmra.mrb[0].mxu0 %v3804
        %v3964 = vpop.f32.mrb[0].mxu0
        %v3965 = vadd.f32 %v3825, %v3964
        %v3966 = vpop.f32.mrb[0].mxu0
        %v3967 = vpop.f32.mrb[0].mxu0
        %v3968 = vadd.f32 %v3825, %v3967
        %v3969 = vpop.f32.mrb[0].mxu0
        %3970 = vdwg.mxu0
        %v3971 = vmax.f32 %v3909, 0.0
        %v3972 = vmax.f32 %v3912, 0.0
        %v3973 = vmax.f32 %v3917, 0.0
        %v3974 = vmax.f32 %v3920, 0.0
        %v3975 = vmax.f32 %v3925, 0.0
        %v3976 = vmax.f32 %v3928, 0.0
        %v3977 = vmax.f32 %v3933, 0.0
        %v3978 = vmax.f32 %v3936, 0.0
        %v3979 = vmax.f32 %v3941, 0.0
        %v3980 = vmax.f32 %v3944, 0.0
        %v3981 = vmax.f32 %v3949, 0.0
        %v3982 = vmax.f32 %v3952, 0.0
        %v3983 = vmax.f32 %v3957, 0.0
        %v3984 = vmax.f32 %v3960, 0.0
        %v3985 = vmax.f32 %v3965, 0.0
        %v3986 = vmax.f32 %v3968, 0.0
        %v3987 = vpack.c.bf16 %v3972, %v3971
        %v3988 = vpack.c.bf16 %v3974, %v3973
        %v3989 = vpack.c.bf16 %v3976, %v3975
        %v3990 = vpack.c.bf16 %v3978, %v3977
        %v3991 = vpack.c.bf16 %v3980, %v3979
        %v3992 = vpack.c.bf16 %v3982, %v3981
        %v3993 = vpack.c.bf16 %v3984, %v3983
        %v3994 = vpack.c.bf16 %v3986, %v3985
        %v3995 = vld [vmem:[#allocation2 + $0x1a0] sm:$0xf]
        %v3996 = vld [vmem:[#allocation2 + $0x1a4] sm:$0xf]
        %v3997 = vld [vmem:[#allocation2 + $0x1a8] sm:$0xf]
        %v3998 = vld [vmem:[#allocation2 + $0x1ac] sm:$0xf]
        %v3999 = vld [vmem:[#allocation2 + $0x1b0] sm:$0xf]
        %v4000 = vld [vmem:[#allocation2 + $0x1b4] sm:$0xf]
        %v4001 = vld [vmem:[#allocation2 + $0x1b8] sm:$0xf]
        %v4002 = vld [vmem:[#allocation2 + $0x1bc] sm:$0xf]
        %v4003 = vld [vmem:[#allocation2 + $0x1c0] sm:$0xf]
        %v4004 = vld [vmem:[#allocation2 + $0x1c4] sm:$0xf]
        %v4005 = vld [vmem:[#allocation2 + $0x1c8] sm:$0xf]
        %v4006 = vld [vmem:[#allocation2 + $0x1cc] sm:$0xf]
        %v4007 = vld [vmem:[#allocation2 + $0x1d0] sm:$0xf]
        %v4008 = vld [vmem:[#allocation2 + $0x1d4] sm:$0xf]
        %v4009 = vld [vmem:[#allocation2 + $0x1d8] sm:$0xf]
        %v4010 = vld [vmem:[#allocation2 + $0x1dc] sm:$0xf]
        %v4011 = vld [vmem:[%s2 + $0x73] sm:$0x1]
        %v4012 = vlaneseq
        %v4013 = vshrl.u32 %v4012, 7
        %v4014 = vsub.s32 0, %v4013
        %v4015 = vrot.slane %v4011, %v4014
        %v4032 = vunpack.c.l.b16 %v3995
        %v4033 = vunpack.c.l.b16 %v3996
        %v4034 = vunpack.c.l.b16 %v3997
        %v4035 = vunpack.c.l.b16 %v3998
        %v4036 = vunpack.c.l.b16 %v3999
        %v4037 = vunpack.c.l.b16 %v4000
        %v4038 = vunpack.c.l.b16 %v4001
        %v4039 = vunpack.c.l.b16 %v4002
        %v4040 = vunpack.c.l.b16 %v4003
        %v4041 = vunpack.c.l.b16 %v4004
        %v4042 = vunpack.c.l.b16 %v4005
        %v4043 = vunpack.c.l.b16 %v4006
        %v4044 = vunpack.c.l.b16 %v4007
        %v4045 = vunpack.c.l.b16 %v4008
        %v4046 = vunpack.c.l.b16 %v4009
        %v4047 = vunpack.c.l.b16 %v4010
        %v4048 = vpack.c.b16 %v4033, %v4032
        %v4049 = vpack.c.b16 %v4035, %v4034
        %v4050 = vpack.c.b16 %v4037, %v4036
        %v4051 = vpack.c.b16 %v4039, %v4038
        %v4052 = vpack.c.b16 %v4041, %v4040
        %v4053 = vpack.c.b16 %v4043, %v4042
        %v4054 = vpack.c.b16 %v4045, %v4044
        %v4055 = vpack.c.b16 %v4047, %v4046
        %4064 = vmatprep.subr.bf16.mxu0 0
        %4065 = vmatpush1.bf16.msra.mxu0 %v4048
        %4066 = vmatprep.subr.bf16.mxu0 0
        %4067 = vmatpush1.bf16.msra.mxu0 %v4049
        %4068 = vmatprep.subr.bf16.mxu0 0
        %4069 = vmatpush1.bf16.msra.mxu0 %v4050
        %4070 = vmatprep.subr.bf16.mxu0 0
        %4071 = vmatpush1.bf16.msra.mxu0 %v4051
        %4072 = vmatprep.subr.bf16.mxu0 0
        %4073 = vmatpush1.bf16.msra.mxu0 %v4052
        %4074 = vmatprep.subr.bf16.mxu0 0
        %4075 = vmatpush1.bf16.msra.mxu0 %v4053
        %4076 = vmatprep.subr.bf16.mxu0 0
        %4077 = vmatpush1.bf16.msra.mxu0 %v4054
        %4078 = vmatprep.subr.bf16.mxu0 0
        %4079 = vmatpush1.bf16.msra.mxu0 %v4055
        %4080 = vmatprep.subr.bf16.mxu0 0
        %4081 = vmatpush1.bf16.msra.mxu0 0
        %4082 = vmatprep.subr.bf16.mxu0 0
        %4083 = vmatpush1.bf16.msra.mxu0 0
        %4084 = vmatprep.subr.bf16.mxu0 0
        %4085 = vmatpush1.bf16.msra.mxu0 0
        %4086 = vmatprep.subr.bf16.mxu0 0
        %4087 = vmatpush1.bf16.msra.mxu0 0
        %4088 = vmatprep.subr.bf16.mxu0 0
        %4089 = vmatpush1.bf16.msra.mxu0 0
        %4090 = vmatprep.subr.bf16.mxu0 0
        %4091 = vmatpush1.bf16.msra.mxu0 0
        %4092 = vmatprep.subr.bf16.mxu0 0
        %4093 = vmatpush1.bf16.msra.mxu0 0
        %4094 = vmatprep.subr.bf16.mxu0 0
        %4095 = vmatpush1.bf16.msra.mxu0 0
        %4096 = vmatprep.mubr.bf16.mxu0 0
        %4097 = vmatmul.mubr.bf16.gmra.mrb[0].mxu0 %v3987
        %v4098 = vpop.f32.mrb[0].mxu0
        %v4099 = vadd.f32 %v4015, %v4098
        %v4100 = vpop.f32.mrb[0].mxu0
        %v4101 = vpop.f32.mrb[0].mxu0
        %v4102 = vadd.f32 %v4015, %v4101
        %v4103 = vpop.f32.mrb[0].mxu0
        %4104 = vmatprep.mubr.bf16.mxu0 0
        %4105 = vmatmul.mubr.bf16.gmra.mrb[0].mxu0 %v3988
        %v4106 = vpop.f32.mrb[0].mxu0
        %v4107 = vadd.f32 %v4015, %v4106
        %v4108 = vpop.f32.mrb[0].mxu0
        %v4109 = vpop.f32.mrb[0].mxu0
        %v4110 = vadd.f32 %v4015, %v4109
        %v4111 = vpop.f32.mrb[0].mxu0
        %4112 = vmatprep.mubr.bf16.mxu0 0
        %4113 = vmatmul.mubr.bf16.gmra.mrb[0].mxu0 %v3989
        %v4114 = vpop.f32.mrb[0].mxu0
        %v4115 = vadd.f32 %v4015, %v4114
        %v4116 = vpop.f32.mrb[0].mxu0
        %v4117 = vpop.f32.mrb[0].mxu0
        %v4118 = vadd.f32 %v4015, %v4117
        %v4119 = vpop.f32.mrb[0].mxu0
        %4120 = vmatprep.mubr.bf16.mxu0 0
        %4121 = vmatmul.mubr.bf16.gmra.mrb[0].mxu0 %v3990
        %v4122 = vpop.f32.mrb[0].mxu0
        %v4123 = vadd.f32 %v4015, %v4122
        %v4124 = vpop.f32.mrb[0].mxu0
        %v4125 = vpop.f32.mrb[0].mxu0
        %v4126 = vadd.f32 %v4015, %v4125
        %v4127 = vpop.f32.mrb[0].mxu0
        %4128 = vmatprep.mubr.bf16.mxu0 0
        %4129 = vmatmul.mubr.bf16.gmra.mrb[0].mxu0 %v3991
        %v4130 = vpop.f32.mrb[0].mxu0
        %v4131 = vadd.f32 %v4015, %v4130
        %v4132 = vpop.f32.mrb[0].mxu0
        %v4133 = vpop.f32.mrb[0].mxu0
        %v4134 = vadd.f32 %v4015, %v4133
        %v4135 = vpop.f32.mrb[0].mxu0
        %4136 = vmatprep.mubr.bf16.mxu0 0
        %4137 = vmatmul.mubr.bf16.gmra.mrb[0].mxu0 %v3992
        %v4138 = vpop.f32.mrb[0].mxu0
        %v4139 = vadd.f32 %v4015, %v4138
        %v4140 = vpop.f32.mrb[0].mxu0
        %v4141 = vpop.f32.mrb[0].mxu0
        %v4142 = vadd.f32 %v4015, %v4141
        %v4143 = vpop.f32.mrb[0].mxu0
        %4144 = vmatprep.mubr.bf16.mxu0 0
        %4145 = vmatmul.mubr.bf16.gmra.mrb[0].mxu0 %v3993
        %v4146 = vpop.f32.mrb[0].mxu0
        %v4147 = vadd.f32 %v4015, %v4146
        %v4148 = vpop.f32.mrb[0].mxu0
        %v4149 = vpop.f32.mrb[0].mxu0
        %v4150 = vadd.f32 %v4015, %v4149
        %v4151 = vpop.f32.mrb[0].mxu0
        %4152 = vmatprep.mubr.bf16.mxu0 0
        %4153 = vmatmul.mubr.bf16.gmra.mrb[0].mxu0 %v3994
        %v4154 = vpop.f32.mrb[0].mxu0
        %v4155 = vadd.f32 %v4015, %v4154
        %v4156 = vpop.f32.mrb[0].mxu0
        %v4157 = vpop.f32.mrb[0].mxu0
        %v4158 = vadd.f32 %v4015, %v4157
        %v4159 = vpop.f32.mrb[0].mxu0
        %4160 = vdwg.mxu0
        %v4161 = vmax.f32 %v4099, 0.0
        %v4162 = vmax.f32 %v4102, 0.0
        %v4163 = vmax.f32 %v4107, 0.0
        %v4164 = vmax.f32 %v4110, 0.0
        %v4165 = vmax.f32 %v4115, 0.0
        %v4166 = vmax.f32 %v4118, 0.0
        %v4167 = vmax.f32 %v4123, 0.0
        %v4168 = vmax.f32 %v4126, 0.0
        %v4169 = vmax.f32 %v4131, 0.0
        %v4170 = vmax.f32 %v4134, 0.0
        %v4171 = vmax.f32 %v4139, 0.0
        %v4172 = vmax.f32 %v4142, 0.0
        %v4173 = vmax.f32 %v4147, 0.0
        %v4174 = vmax.f32 %v4150, 0.0
        %v4175 = vmax.f32 %v4155, 0.0
        %v4176 = vmax.f32 %v4158, 0.0
        %v4177 = vpack.c.bf16 %v4162, %v4161
        %v4178 = vpack.c.bf16 %v4164, %v4163
        %v4179 = vpack.c.bf16 %v4166, %v4165
        %v4180 = vpack.c.bf16 %v4168, %v4167
        %v4181 = vpack.c.bf16 %v4170, %v4169
        %v4182 = vpack.c.bf16 %v4172, %v4171
        %v4183 = vpack.c.bf16 %v4174, %v4173
        %v4184 = vpack.c.bf16 %v4176, %v4175
        %v4185 = vld [vmem:[#allocation2 + $0x1e0] sm:$0xf]
        %v4186 = vld [vmem:[#allocation2 + $0x1e4] sm:$0xf]
        %v4187 = vld [vmem:[#allocation2 + $0x1e8] sm:$0xf]
        %v4188 = vld [vmem:[#allocation2 + $0x1ec] sm:$0xf]
        %v4189 = vld [vmem:[#allocation2 + $0x1f0] sm:$0xf]
        %v4190 = vld [vmem:[#allocation2 + $0x1f4] sm:$0xf]
        %v4191 = vld [vmem:[#allocation2 + $0x1f8] sm:$0xf]
        %v4192 = vld [vmem:[#allocation2 + $0x1fc] sm:$0xf]
        %v4193 = vld [vmem:[%s2 + $0x74] sm:$0x1]
        %v4194 = vlaneseq
        %v4195 = vshrl.u32 %v4194, 7
        %v4196 = vsub.s32 0, %v4195
        %v4197 = vrot.slane %v4193, %v4196
        %v4206 = vunpack.c.l.b16 %v4185
        %v4207 = vunpack.c.l.b16 %v4186
        %v4208 = vunpack.c.l.b16 %v4187
        %v4209 = vunpack.c.l.b16 %v4188
        %v4210 = vunpack.c.l.b16 %v4189
        %v4211 = vunpack.c.l.b16 %v4190
        %v4212 = vunpack.c.l.b16 %v4191
        %v4213 = vunpack.c.l.b16 %v4192
        %v4214 = vpack.c.b16 %v4207, %v4206
        %v4215 = vpack.c.b16 %v4209, %v4208
        %v4216 = vpack.c.b16 %v4211, %v4210
        %v4217 = vpack.c.b16 %v4213, %v4212
        %v4223 = vsel %vm1548, %v4177, 0
        %v4226 = vsel %vm1548, %v4178, 0
        %v4229 = vsel %vm1548, %v4179, 0
        %v4232 = vsel %vm1548, %v4180, 0
        %v4235 = vsel %vm1548, %v4181, 0
        %v4238 = vsel %vm1548, %v4182, 0
        %v4241 = vsel %vm1548, %v4183, 0
        %v4244 = vsel %vm1548, %v4184, 0
        %4246 = vmatprep.subr.bf16.mxu0 0
        %4247 = vmatpush1.bf16.msra.mxu0 %v4214
        %4248 = vmatprep.subr.bf16.mxu0 0
        %4249 = vmatpush1.bf16.msra.mxu0 %v4215
        %4250 = vmatprep.subr.bf16.mxu0 0
        %4251 = vmatpush1.bf16.msra.mxu0 %v4216
        %4252 = vmatprep.subr.bf16.mxu0 0
        %4253 = vmatpush1.bf16.msra.mxu0 %v4217
        %4254 = vmatprep.subr.bf16.mxu0 0
        %4255 = vmatpush1.bf16.msra.mxu0 0
        %4256 = vmatprep.subr.bf16.mxu0 0
        %4257 = vmatpush1.bf16.msra.mxu0 0
        %4258 = vmatprep.subr.bf16.mxu0 0
        %4259 = vmatpush1.bf16.msra.mxu0 0
        %4260 = vmatprep.subr.bf16.mxu0 0
        %4261 = vmatpush1.bf16.msra.mxu0 0
        %4262 = vmatprep.subr.bf16.mxu0 0
        %4263 = vmatpush1.bf16.msra.mxu0 0
        %4264 = vmatprep.subr.bf16.mxu0 0
        %4265 = vmatpush1.bf16.msra.mxu0 0
        %4266 = vmatprep.subr.bf16.mxu0 0
        %4267 = vmatpush1.bf16.msra.mxu0 0
        %4268 = vmatprep.subr.bf16.mxu0 0
        %4269 = vmatpush1.bf16.msra.mxu0 0
        %4270 = vmatprep.subr.bf16.mxu0 0
        %4271 = vmatpush1.bf16.msra.mxu0 0
        %4272 = vmatprep.subr.bf16.mxu0 0
        %4273 = vmatpush1.bf16.msra.mxu0 0
        %4274 = vmatprep.subr.bf16.mxu0 0
        %4275 = vmatpush1.bf16.msra.mxu0 0
        %4276 = vmatprep.subr.bf16.mxu0 0
        %4277 = vmatpush1.bf16.msra.mxu0 0
        %4278 = vmatprep.mubr.bf16.mxu0 0
        %4279 = vmatmul.mubr.bf16.gmra.mrb[0].mxu0 %v4223
        %v4280 = vpop.f32.mrb[0].mxu0
        %v4281 = vadd.f32 %v4197, %v4280
        %v4282 = vpop.f32.mrb[0].mxu0
        %v4283 = vpop.f32.mrb[0].mxu0
        %v4284 = vadd.f32 %v4197, %v4283
        %v4285 = vpop.f32.mrb[0].mxu0
        %4286 = vmatprep.mubr.bf16.mxu0 0
        %4287 = vmatmul.mubr.bf16.gmra.mrb[0].mxu0 %v4226
        %v4288 = vpop.f32.mrb[0].mxu0
        %v4289 = vadd.f32 %v4197, %v4288
        %v4290 = vpop.f32.mrb[0].mxu0
        %v4291 = vpop.f32.mrb[0].mxu0
        %v4292 = vadd.f32 %v4197, %v4291
        %v4293 = vpop.f32.mrb[0].mxu0
        %4294 = vmatprep.mubr.bf16.mxu0 0
        %4295 = vmatmul.mubr.bf16.gmra.mrb[0].mxu0 %v4229
        %v4296 = vpop.f32.mrb[0].mxu0
        %v4297 = vadd.f32 %v4197, %v4296
        %v4298 = vpop.f32.mrb[0].mxu0
        %v4299 = vpop.f32.mrb[0].mxu0
        %v4300 = vadd.f32 %v4197, %v4299
        %v4301 = vpop.f32.mrb[0].mxu0
        %4302 = vmatprep.mubr.bf16.mxu0 0
        %4303 = vmatmul.mubr.bf16.gmra.mrb[0].mxu0 %v4232
        %v4304 = vpop.f32.mrb[0].mxu0
        %v4305 = vadd.f32 %v4197, %v4304
        %v4306 = vpop.f32.mrb[0].mxu0
        %v4307 = vpop.f32.mrb[0].mxu0
        %v4308 = vadd.f32 %v4197, %v4307
        %v4309 = vpop.f32.mrb[0].mxu0
        %4310 = vmatprep.mubr.bf16.mxu0 0
        %4311 = vmatmul.mubr.bf16.gmra.mrb[0].mxu0 %v4235
        %v4312 = vpop.f32.mrb[0].mxu0
        %v4313 = vadd.f32 %v4197, %v4312
        %v4314 = vpop.f32.mrb[0].mxu0
        %v4315 = vpop.f32.mrb[0].mxu0
        %v4316 = vadd.f32 %v4197, %v4315
        %v4317 = vpop.f32.mrb[0].mxu0
        %4318 = vmatprep.mubr.bf16.mxu0 0
        %4319 = vmatmul.mubr.bf16.gmra.mrb[0].mxu0 %v4238
        %v4320 = vpop.f32.mrb[0].mxu0
        %v4321 = vadd.f32 %v4197, %v4320
        %v4322 = vpop.f32.mrb[0].mxu0
        %v4323 = vpop.f32.mrb[0].mxu0
        %v4324 = vadd.f32 %v4197, %v4323
        %v4325 = vpop.f32.mrb[0].mxu0
        %4326 = vmatprep.mubr.bf16.mxu0 0
        %4327 = vmatmul.mubr.bf16.gmra.mrb[0].mxu0 %v4241
        %v4328 = vpop.f32.mrb[0].mxu0
        %v4329 = vadd.f32 %v4197, %v4328
        %v4330 = vpop.f32.mrb[0].mxu0
        %v4331 = vpop.f32.mrb[0].mxu0
        %v4332 = vadd.f32 %v4197, %v4331
        %v4333 = vpop.f32.mrb[0].mxu0
        %4334 = vmatprep.mubr.bf16.mxu0 0
        %4335 = vmatmul.mubr.bf16.gmra.mrb[0].mxu0 %v4244
        %v4336 = vpop.f32.mrb[0].mxu0
        %v4337 = vadd.f32 %v4197, %v4336
        %v4338 = vpop.f32.mrb[0].mxu0
        %v4339 = vpop.f32.mrb[0].mxu0
        %v4340 = vadd.f32 %v4197, %v4339
        %v4341 = vpop.f32.mrb[0].mxu0
        %4342 = vdwg.mxu0
        %v4343 = vadd.f32 %v4281, %v4297
        %v4344 = vadd.f32 %v4284, %v4300
        %v4345 = vadd.f32 %v4289, %v4305
        %v4346 = vadd.f32 %v4292, %v4308
        %v4347 = vadd.f32 %v4343, %v4313
        %v4348 = vadd.f32 %v4344, %v4316
        %v4349 = vadd.f32 %v4345, %v4321
        %v4350 = vadd.f32 %v4346, %v4324
        %v4351 = vadd.f32 %v4347, %v4329
        %v4352 = vadd.f32 %v4348, %v4332
        %v4353 = vadd.f32 %v4349, %v4337
        %v4354 = vadd.f32 %v4350, %v4340
        %v4355 = vmul.f32 %v4351, 0.25
        %v4356 = vmul.f32 %v4352, 0.25
        %v4357 = vmul.f32 %v4353, 0.25
        %v4358 = vmul.f32 %v4354, 0.25
        %v4360 = vsel %vm510, %v2991, 0
        %v4363 = vsel %vm510, %v2996, 0
        %v4366 = vsel %vm510, %v3001, 0
        %v4369 = vsel %vm510, %v3006, 0
        %4371 = vmatprep.subr.mxu0 0.0
        %4372 = vmatpush1.xpose.msra.mxu0 %v4360
        %4373 = vmatprep.subr.mxu0 0.0
        %4374 = vmatpush1.xpose.msra.mxu0 %v4363
        %4375 = vmatprep.subr.mxu0 0.0
        %4376 = vmatpush1.xpose.msra.mxu0 %v4366
        %4377 = vmatprep.subr.mxu0 0.0
        %4378 = vmatpush1.xpose.msra.mxu0 %v4369
        %4379 = vmatprep.subr.mxu0 0.0
        %4380 = vmatpush1.xpose.msra.mxu0 0.0
        %4381 = vmatprep.subr.mxu0 0.0
        %4382 = vmatpush1.xpose.msra.mxu0 0.0
        %4383 = vmatprep.subr.mxu0 0.0
        %4384 = vmatpush1.xpose.msra.mxu0 0.0
        %4385 = vmatprep.subr.mxu0 0.0
        %4386 = vmatpush1.xpose.msra.mxu0 0.0
        %4387 = vmatprep.subr.mxu0 0.0
        %4388 = vmatpush1.xpose.msra.mxu0 0.0
        %4389 = vmatprep.subr.mxu0 0.0
        %4390 = vmatpush1.xpose.msra.mxu0 0.0
        %4391 = vmatprep.subr.mxu0 0.0
        %4392 = vmatpush1.xpose.msra.mxu0 0.0
        %4393 = vmatprep.subr.mxu0 0.0
        %4394 = vmatpush1.xpose.msra.mxu0 0.0
        %4395 = vmatprep.subr.mxu0 0.0
        %4396 = vmatpush1.xpose.msra.mxu0 0.0
        %4397 = vmatprep.subr.mxu0 0.0
        %4398 = vmatpush1.xpose.msra.mxu0 0.0
        %4399 = vmatprep.subr.mxu0 0.0
        %4400 = vmatpush1.xpose.msra.mxu0 0.0
        %4401 = vmatprep.subr.mxu0 0.0
        %4402 = vmatpush1.xpose.msra.mxu0 0.0
        %4403 = vmatprep.subr.mxu0 0.0
        %4404 = vmatpush1.xpose.msra.mxu0 0.0
        %4405 = vmatprep.subr.mxu0 0.0
        %4406 = vmatpush1.xpose.msra.mxu0 0.0
        %4407 = vmatprep.subr.mxu0 0.0
        %4408 = vmatpush1.xpose.msra.mxu0 0.0
        %4409 = vmatprep.subr.mxu0 0.0
        %4410 = vmatpush1.xpose.msra.mxu0 0.0
        %4411 = vmatprep.subr.mxu0 0.0
        %4412 = vmatpush1.xpose.msra.mxu0 0.0
        %4413 = vmatprep.subr.mxu0 0.0
        %4414 = vmatpush1.xpose.msra.mxu0 0.0
        %4415 = vmatprep.subr.mxu0 0.0
        %4416 = vmatpush1.xpose.msra.mxu0 0.0
        %4417 = vmatprep.subr.mxu0 0.0
        %4418 = vmatpush1.xpose.msra.mxu0 0.0
        %4419 = vmatprep.subr.mxu0 0.0
        %4420 = vmatpush1.xpose.msra.mxu0 0.0
        %4421 = vmatprep.subr.mxu0 0.0
        %4422 = vmatpush1.xpose.msra.mxu0 0.0
        %4423 = vmatprep.subr.mxu0 0.0
        %4424 = vmatpush1.xpose.msra.mxu0 0.0
        %4425 = vmatprep.subr.mxu0 0.0
        %4426 = vmatpush1.xpose.msra.mxu0 0.0
        %4427 = vmatprep.subr.mxu0 0.0
        %4428 = vmatpush1.xpose.msra.mxu0 0.0
        %4429 = vmatprep.subr.mxu0 0.0
        %4430 = vmatpush1.xpose.msra.mxu0 0.0
        %4431 = vmatprep.subr.mxu0 0.0
        %4432 = vmatpush1.xpose.msra.mxu0 0.0
        %4433 = vmatprep.subr.mxu0 0.0
        %4434 = vmatpush1.xpose.msra.mxu0 0.0
        %4435 = vmatprep.mubr.f32.mxu0 0.0
        %4436 = vmatmul.mubr.f32.gmra.mrb[0].mxu0 %v4360
        %v4437 = vpop.f32.mrb[0].mxu0
        %v4438 = vadd.f32 0.0, %v4437
        %v4439 = vpop.f32.mrb[0].mxu0
        %4440 = vmatprep.mubr.f32.mxu0 0.0
        %4441 = vmatmul.mubr.f32.gmra.mrb[0].mxu0 %v4363
        %v4442 = vpop.f32.mrb[0].mxu0
        %v4443 = vadd.f32 0.0, %v4442
        %v4444 = vpop.f32.mrb[0].mxu0
        %4445 = vmatprep.mubr.f32.mxu0 0.0
        %4446 = vmatmul.mubr.f32.gmra.mrb[0].mxu0 %v4366
        %v4447 = vpop.f32.mrb[0].mxu0
        %v4448 = vadd.f32 0.0, %v4447
        %v4449 = vpop.f32.mrb[0].mxu0
        %4450 = vmatprep.mubr.f32.mxu0 0.0
        %4451 = vmatmul.mubr.f32.gmra.mrb[0].mxu0 %v4369
        %v4452 = vpop.f32.mrb[0].mxu0
        %v4453 = vadd.f32 0.0, %v4452
        %v4454 = vpop.f32.mrb[0].mxu0
        %4455 = vdwg.mxu0
        %v4456 = vmul.f32 %v2991, %v2991
        %v4457 = vmul.f32 %v2996, %v2996
        %v4458 = vmul.f32 %v3001, %v3001
        %v4459 = vmul.f32 %v3006, %v3006
        %v4461 = vsel %vm510, %v4456, 0
        %v4464 = vsel %vm510, %v4457, 0
        %v4467 = vsel %vm510, %v4458, 0
        %v4470 = vsel %vm510, %v4459, 0
        %4472 = vmatprep.subr.mxu0 0.0
        %4473 = vmatpush1.xpose.msra.mxu0 %v4461
        %4474 = vmatprep.subr.mxu0 0.0
        %4475 = vmatpush1.xpose.msra.mxu0 %v4464
        %4476 = vmatprep.subr.mxu0 0.0
        %4477 = vmatpush1.xpose.msra.mxu0 %v4467
        %4478 = vmatprep.subr.mxu0 0.0
        %4479 = vmatpush1.xpose.msra.mxu0 %v4470
        %4480 = vmatprep.subr.mxu0 0.0
        %4481 = vmatpush1.xpose.msra.mxu0 0.0
        %4482 = vmatprep.subr.mxu0 0.0
        %4483 = vmatpush1.xpose.msra.mxu0 0.0
        %4484 = vmatprep.subr.mxu0 0.0
        %4485 = vmatpush1.xpose.msra.mxu0 0.0
        %4486 = vmatprep.subr.mxu0 0.0
        %4487 = vmatpush1.xpose.msra.mxu0 0.0
        %4488 = vmatprep.subr.mxu0 0.0
        %4489 = vmatpush1.xpose.msra.mxu0 0.0
        %4490 = vmatprep.subr.mxu0 0.0
        %4491 = vmatpush1.xpose.msra.mxu0 0.0
        %4492 = vmatprep.subr.mxu0 0.0
        %4493 = vmatpush1.xpose.msra.mxu0 0.0
        %4494 = vmatprep.subr.mxu0 0.0
        %4495 = vmatpush1.xpose.msra.mxu0 0.0
        %4496 = vmatprep.subr.mxu0 0.0
        %4497 = vmatpush1.xpose.msra.mxu0 0.0
        %4498 = vmatprep.subr.mxu0 0.0
        %4499 = vmatpush1.xpose.msra.mxu0 0.0
        %4500 = vmatprep.subr.mxu0 0.0
        %4501 = vmatpush1.xpose.msra.mxu0 0.0
        %4502 = vmatprep.subr.mxu0 0.0
        %4503 = vmatpush1.xpose.msra.mxu0 0.0
        %4504 = vmatprep.subr.mxu0 0.0
        %4505 = vmatpush1.xpose.msra.mxu0 0.0
        %4506 = vmatprep.subr.mxu0 0.0
        %4507 = vmatpush1.xpose.msra.mxu0 0.0
        %4508 = vmatprep.subr.mxu0 0.0
        %4509 = vmatpush1.xpose.msra.mxu0 0.0
        %4510 = vmatprep.subr.mxu0 0.0
        %4511 = vmatpush1.xpose.msra.mxu0 0.0
        %4512 = vmatprep.subr.mxu0 0.0
        %4513 = vmatpush1.xpose.msra.mxu0 0.0
        %4514 = vmatprep.subr.mxu0 0.0
        %4515 = vmatpush1.xpose.msra.mxu0 0.0
        %4516 = vmatprep.subr.mxu0 0.0
        %4517 = vmatpush1.xpose.msra.mxu0 0.0
        %4518 = vmatprep.subr.mxu0 0.0
        %4519 = vmatpush1.xpose.msra.mxu0 0.0
        %4520 = vmatprep.subr.mxu0 0.0
        %4521 = vmatpush1.xpose.msra.mxu0 0.0
        %4522 = vmatprep.subr.mxu0 0.0
        %4523 = vmatpush1.xpose.msra.mxu0 0.0
        %4524 = vmatprep.subr.mxu0 0.0
        %4525 = vmatpush1.xpose.msra.mxu0 0.0
        %4526 = vmatprep.subr.mxu0 0.0
        %4527 = vmatpush1.xpose.msra.mxu0 0.0
        %4528 = vmatprep.subr.mxu0 0.0
        %4529 = vmatpush1.xpose.msra.mxu0 0.0
        %4530 = vmatprep.subr.mxu0 0.0
        %4531 = vmatpush1.xpose.msra.mxu0 0.0
        %4532 = vmatprep.subr.mxu0 0.0
        %4533 = vmatpush1.xpose.msra.mxu0 0.0
        %4534 = vmatprep.subr.mxu0 0.0
        %4535 = vmatpush1.xpose.msra.mxu0 0.0
        %4536 = vmatprep.mubr.f32.mxu0 0.0
        %4537 = vmatmul.mubr.f32.gmra.mrb[0].mxu0 %v613
        %v4538 = vpop.f32.mrb[0].mxu0
        %v4539 = vadd.f32 0.0, %v4538
        %v4540 = vpop.f32.mrb[0].mxu0
        %4541 = vmatprep.mubr.f32.mxu0 0.0
        %4542 = vmatmul.mubr.f32.gmra.mrb[0].mxu0 %v613
        %v4543 = vpop.f32.mrb[0].mxu0
        %v4544 = vadd.f32 0.0, %v4543
        %v4545 = vpop.f32.mrb[0].mxu0
        %4546 = vmatprep.mubr.f32.mxu0 0.0
        %4547 = vmatmul.mubr.f32.gmra.mrb[0].mxu0 %v613
        %v4548 = vpop.f32.mrb[0].mxu0
        %v4549 = vadd.f32 0.0, %v4548
        %v4550 = vpop.f32.mrb[0].mxu0
        %4551 = vmatprep.mubr.f32.mxu0 0.0
        %4552 = vmatmul.mubr.f32.gmra.mrb[0].mxu0 %v613
        %v4553 = vpop.f32.mrb[0].mxu0
        %v4554 = vadd.f32 0.0, %v4553
        %v4555 = vpop.f32.mrb[0].mxu0
        %4556 = vdwg.mxu0
        %v4557 = vmul.f32 %v4438, 2.0
        %v4558 = vmul.f32 %v4443, 2.0
        %v4559 = vmul.f32 %v4448, 2.0
        %v4560 = vmul.f32 %v4453, 2.0
        %v4561 = vsub.f32 %v4539, %v4557
        %v4562 = vsub.f32 %v4544, %v4558
        %v4563 = vsub.f32 %v4549, %v4559
        %v4564 = vsub.f32 %v4554, %v4560
        %v4565 = vadd.f32 %v4561, %v505
        %v4566 = vadd.f32 %v4562, %v506
        %v4567 = vadd.f32 %v4563, %v507
        %v4568 = vadd.f32 %v4564, %v508
        %v4569 = vadd.f32 %v4565, %v509
        %v4570 = vadd.f32 %v4566, %v509
        %v4571 = vadd.f32 %v4567, %v509
        %v4572 = vadd.f32 %v4568, %v509
        %v4573 = vsel %vm728, %v4569, inf
        %4574 = vmin.xlane.f32.xlu0 %v4573
        %v4575 = vpop.xlane.xlu0 %4574
        %v4576 = vsel %vm728, %v4570, inf
        %4577 = vmin.xlane.f32.xlu0 %v4576
        %v4578 = vpop.xlane.xlu0 %4577
        %v4579 = vsel %vm728, %v4571, inf
        %4580 = vmin.xlane.f32.xlu0 %v4579
        %v4581 = vpop.xlane.xlu0 %4580
        %v4582 = vsel %vm728, %v4572, inf
        %4583 = vmin.xlane.f32.xlu0 %v4582
        %v4584 = vpop.xlane.xlu0 %4583
        %vm4585 = vcmp.eq.f32.partialorder %v4569, %v4575
        %vm4586 = vcmp.eq.f32.partialorder %v4570, %v4578
        %vm4587 = vcmp.eq.f32.partialorder %v4571, %v4581
        %vm4588 = vcmp.eq.f32.partialorder %v4572, %v4584
        %v4589 = vsel %vm4585, 1, 0
        %v4590 = vsel %vm4586, 1, 0
        %v4591 = vsel %vm4587, 1, 0
        %v4592 = vsel %vm4588, 1, 0
        %v4593 = vcvt.s32.f32 %v4589
        %v4594 = vcvt.s32.f32 %v4590
        %v4595 = vcvt.s32.f32 %v4591
        %v4596 = vcvt.s32.f32 %v4592
        %v4597 = vmul.f32 %v4593, 1e+30
        %v4598 = vmul.f32 %v4594, 1e+30
        %v4599 = vmul.f32 %v4595, 1e+30
        %v4600 = vmul.f32 %v4596, 1e+30
        %v4601 = vadd.f32 %v4569, %v4597
        %v4602 = vadd.f32 %v4570, %v4598
        %v4603 = vadd.f32 %v4571, %v4599
        %v4604 = vadd.f32 %v4572, %v4600
        %v4605 = vsel %vm728, %v4601, inf
        %4606 = vmin.xlane.f32.xlu0 %v4605
        %v4607 = vpop.xlane.xlu0 %4606
        %v4608 = vsel %vm728, %v4602, inf
        %4609 = vmin.xlane.f32.xlu0 %v4608
        %v4610 = vpop.xlane.xlu0 %4609
        %v4611 = vsel %vm728, %v4603, inf
        %4612 = vmin.xlane.f32.xlu0 %v4611
        %v4613 = vpop.xlane.xlu0 %4612
        %v4614 = vsel %vm728, %v4604, inf
        %4615 = vmin.xlane.f32.xlu0 %v4614
        %v4616 = vpop.xlane.xlu0 %4615
        %vm4617 = vcmp.eq.f32.partialorder %v4601, %v4607
        %vm4618 = vcmp.eq.f32.partialorder %v4602, %v4610
        %vm4619 = vcmp.eq.f32.partialorder %v4603, %v4613
        %vm4620 = vcmp.eq.f32.partialorder %v4604, %v4616
        %v4621 = vsel %vm4617, 1, 0
        %v4622 = vsel %vm4618, 1, 0
        %v4623 = vsel %vm4619, 1, 0
        %v4624 = vsel %vm4620, 1, 0
        %v4625 = vcvt.s32.f32 %v4621
        %v4626 = vcvt.s32.f32 %v4622
        %v4627 = vcvt.s32.f32 %v4623
        %v4628 = vcvt.s32.f32 %v4624
        %v4629 = vmul.f32 %v4625, 1e+30
        %v4630 = vmul.f32 %v4626, 1e+30
        %v4631 = vmul.f32 %v4627, 1e+30
        %v4632 = vmul.f32 %v4628, 1e+30
        %v4633 = vadd.f32 %v4601, %v4629
        %v4634 = vadd.f32 %v4602, %v4630
        %v4635 = vadd.f32 %v4603, %v4631
        %v4636 = vadd.f32 %v4604, %v4632
        %v4637 = vsel %vm728, %v4633, inf
        %4638 = vmin.xlane.f32.xlu0 %v4637
        %v4639 = vpop.xlane.xlu0 %4638
        %v4640 = vsel %vm728, %v4634, inf
        %4641 = vmin.xlane.f32.xlu0 %v4640
        %v4642 = vpop.xlane.xlu0 %4641
        %v4643 = vsel %vm728, %v4635, inf
        %4644 = vmin.xlane.f32.xlu0 %v4643
        %v4645 = vpop.xlane.xlu0 %4644
        %v4646 = vsel %vm728, %v4636, inf
        %4647 = vmin.xlane.f32.xlu0 %v4646
        %v4648 = vpop.xlane.xlu0 %4647
        %vm4649 = vcmp.eq.f32.partialorder %v4633, %v4639
        %vm4650 = vcmp.eq.f32.partialorder %v4634, %v4642
        %vm4651 = vcmp.eq.f32.partialorder %v4635, %v4645
        %vm4652 = vcmp.eq.f32.partialorder %v4636, %v4648
        %v4653 = vsel %vm4649, 1, 0
        %v4654 = vsel %vm4650, 1, 0
        %v4655 = vsel %vm4651, 1, 0
        %v4656 = vsel %vm4652, 1, 0
        %v4657 = vcvt.s32.f32 %v4653
        %v4658 = vcvt.s32.f32 %v4654
        %v4659 = vcvt.s32.f32 %v4655
        %v4660 = vcvt.s32.f32 %v4656
        %v4661 = vmul.f32 %v4657, 1e+30
        %v4662 = vmul.f32 %v4658, 1e+30
        %v4663 = vmul.f32 %v4659, 1e+30
        %v4664 = vmul.f32 %v4660, 1e+30
        %v4665 = vadd.f32 %v4633, %v4661
        %v4666 = vadd.f32 %v4634, %v4662
        %v4667 = vadd.f32 %v4635, %v4663
        %v4668 = vadd.f32 %v4636, %v4664
        %v4669 = vsel %vm728, %v4665, inf
        %4670 = vmin.xlane.f32.xlu0 %v4669
        %v4671 = vpop.xlane.xlu0 %4670
        %v4672 = vsel %vm728, %v4666, inf
        %4673 = vmin.xlane.f32.xlu0 %v4672
        %v4674 = vpop.xlane.xlu0 %4673
        %v4675 = vsel %vm728, %v4667, inf
        %4676 = vmin.xlane.f32.xlu0 %v4675
        %v4677 = vpop.xlane.xlu0 %4676
        %v4678 = vsel %vm728, %v4668, inf
        %4679 = vmin.xlane.f32.xlu0 %v4678
        %v4680 = vpop.xlane.xlu0 %4679
        %vm4681 = vcmp.eq.f32.partialorder %v4665, %v4671
        %vm4682 = vcmp.eq.f32.partialorder %v4666, %v4674
        %vm4683 = vcmp.eq.f32.partialorder %v4667, %v4677
        %vm4684 = vcmp.eq.f32.partialorder %v4668, %v4680
        %v4685 = vsel %vm4681, 1, 0
        %v4686 = vsel %vm4682, 1, 0
        %v4687 = vsel %vm4683, 1, 0
        %v4688 = vsel %vm4684, 1, 0
        %v4689 = vcvt.s32.f32 %v4685
        %v4690 = vcvt.s32.f32 %v4686
        %v4691 = vcvt.s32.f32 %v4687
        %v4692 = vcvt.s32.f32 %v4688
        %4697 = vrot.lane.b32.xlu0 %v4355, 8
        %v4698 = vpop.permute.xlu0 %4697
        %4699 = vrot.lane.b32.xlu0 %v4356, 8
        %v4700 = vpop.permute.xlu0 %4699
        %4701 = vrot.lane.b32.xlu0 %v4357, 8
        %v4702 = vpop.permute.xlu0 %4701
        %4703 = vrot.lane.b32.xlu0 %v4358, 8
        %v4704 = vpop.permute.xlu0 %4703
        %v4709 = vsel %vm510, %v2991, %v4698
        %v4710 = vsel %vm510, %v2996, %v4700
        %v4711 = vsel %vm510, %v3001, %v4702
        %v4712 = vsel %vm510, %v3006, %v4704
        %v4713 = vld [vmem:[%s2 + $0x75] sm:$0xff]
        %v4714 = vld [vmem:[%s2 + $0x7d] sm:$0xff]
        %v4715 = vld [vmem:[%s2 + $0x85] sm:$0xff]
        %vm4716 = vcmask 195584
        %v4718 = vsel %vm4716, %v4709, 0
        %v4721 = vsel %vm4716, %v4710, 0
        %v4724 = vsel %vm4716, %v4711, 0
        %v4727 = vsel %vm4716, %v4712, 0
        %4729 = vmatprep.subr.mxu0 0.0
        %4730 = vmatpush1.msra.mxu0 %v4713
        %4731 = vmatprep.subr.mxu0 0.0
        %4732 = vmatpush1.msra.mxu0 %v4714
        %4733 = vmatprep.subr.mxu0 0.0
        %4734 = vmatpush1.msra.mxu0 %v4715
        %4735 = vmatprep.subr.mxu0 0.0
        %4736 = vmatpush1.msra.mxu0 0.0
        %4737 = vmatprep.subr.mxu0 0.0
        %4738 = vmatpush1.msra.mxu0 0.0
        %4739 = vmatprep.subr.mxu0 0.0
        %4740 = vmatpush1.msra.mxu0 0.0
        %4741 = vmatprep.subr.mxu0 0.0
        %4742 = vmatpush1.msra.mxu0 0.0
        %4743 = vmatprep.subr.mxu0 0.0
        %4744 = vmatpush1.msra.mxu0 0.0
        %4745 = vmatprep.subr.mxu0 0.0
        %4746 = vmatpush1.msra.mxu0 0.0
        %4747 = vmatprep.subr.mxu0 0.0
        %4748 = vmatpush1.msra.mxu0 0.0
        %4749 = vmatprep.subr.mxu0 0.0
        %4750 = vmatpush1.msra.mxu0 0.0
        %4751 = vmatprep.subr.mxu0 0.0
        %4752 = vmatpush1.msra.mxu0 0.0
        %4753 = vmatprep.subr.mxu0 0.0
        %4754 = vmatpush1.msra.mxu0 0.0
        %4755 = vmatprep.subr.mxu0 0.0
        %4756 = vmatpush1.msra.mxu0 0.0
        %4757 = vmatprep.subr.mxu0 0.0
        %4758 = vmatpush1.msra.mxu0 0.0
        %4759 = vmatprep.subr.mxu0 0.0
        %4760 = vmatpush1.msra.mxu0 0.0
        %4761 = vmatprep.subr.mxu0 0.0
        %4762 = vmatpush1.msra.mxu0 0.0
        %4763 = vmatprep.subr.mxu0 0.0
        %4764 = vmatpush1.msra.mxu0 0.0
        %4765 = vmatprep.subr.mxu0 0.0
        %4766 = vmatpush1.msra.mxu0 0.0
        %4767 = vmatprep.subr.mxu0 0.0
        %4768 = vmatpush1.msra.mxu0 0.0
        %4769 = vmatprep.subr.mxu0 0.0
        %4770 = vmatpush1.msra.mxu0 0.0
        %4771 = vmatprep.subr.mxu0 0.0
        %4772 = vmatpush1.msra.mxu0 0.0
        %4773 = vmatprep.subr.mxu0 0.0
        %4774 = vmatpush1.msra.mxu0 0.0
        %4775 = vmatprep.subr.mxu0 0.0
        %4776 = vmatpush1.msra.mxu0 0.0
        %4777 = vmatprep.subr.mxu0 0.0
        %4778 = vmatpush1.msra.mxu0 0.0
        %4779 = vmatprep.subr.mxu0 0.0
        %4780 = vmatpush1.msra.mxu0 0.0
        %4781 = vmatprep.subr.mxu0 0.0
        %4782 = vmatpush1.msra.mxu0 0.0
        %4783 = vmatprep.subr.mxu0 0.0
        %4784 = vmatpush1.msra.mxu0 0.0
        %4785 = vmatprep.subr.mxu0 0.0
        %4786 = vmatpush1.msra.mxu0 0.0
        %4787 = vmatprep.subr.mxu0 0.0
        %4788 = vmatpush1.msra.mxu0 0.0
        %4789 = vmatprep.subr.mxu0 0.0
        %4790 = vmatpush1.msra.mxu0 0.0
        %4791 = vmatprep.subr.mxu0 0.0
        %4792 = vmatpush1.msra.mxu0 0.0
        %4793 = vmatprep.mubr.f32.mxu0 0.0
        %4794 = vmatmul.mubr.f32.gmra.mrb[0].mxu0 %v4718
        %v4795 = vpop.f32.mrb[0].mxu0
        %v4796 = vadd.f32 0.0, %v4795
        %v4797 = vpop.f32.mrb[0].mxu0
        %4798 = vmatprep.mubr.f32.mxu0 0.0
        %4799 = vmatmul.mubr.f32.gmra.mrb[0].mxu0 %v4721
        %v4800 = vpop.f32.mrb[0].mxu0
        %v4801 = vadd.f32 0.0, %v4800
        %v4802 = vpop.f32.mrb[0].mxu0
        %4803 = vmatprep.mubr.f32.mxu0 0.0
        %4804 = vmatmul.mubr.f32.gmra.mrb[0].mxu0 %v4724
        %v4805 = vpop.f32.mrb[0].mxu0
        %v4806 = vadd.f32 0.0, %v4805
        %v4807 = vpop.f32.mrb[0].mxu0
        %4808 = vmatprep.mubr.f32.mxu0 0.0
        %4809 = vmatmul.mubr.f32.gmra.mrb[0].mxu0 %v4727
        %v4810 = vpop.f32.mrb[0].mxu0
        %v4811 = vadd.f32 0.0, %v4810
        %v4812 = vpop.f32.mrb[0].mxu0
        %4813 = vdwg.mxu0
        %v4814 = vld [vmem:[%s2 + $0x8d] sm:$0xff]
        %v4815 = vld [vmem:[%s2 + $0x95] sm:$0xff]
        %v4816 = vld [vmem:[%s2 + $0x9d] sm:$0xff]
        %v4817 = vld [vmem:[%s2 + $0xa5] sm:$0x1]
        %v4818 = vlaneseq
        %v4819 = vshrl.u32 %v4818, 7
        %v4820 = vsub.s32 0, %v4819
        %v4821 = vrot.slane %v4817, %v4820
        %4822 = vmatprep.subr.mxu0 0.0
        %4823 = vmatpush1.msra.mxu0 %v4814
        %4824 = vmatprep.subr.mxu0 0.0
        %4825 = vmatpush1.msra.mxu0 %v4815
        %4826 = vmatprep.subr.mxu0 0.0
        %4827 = vmatpush1.msra.mxu0 %v4816
        %4828 = vmatprep.subr.mxu0 0.0
        %4829 = vmatpush1.msra.mxu0 0.0
        %4830 = vmatprep.subr.mxu0 0.0
        %4831 = vmatpush1.msra.mxu0 0.0
        %4832 = vmatprep.subr.mxu0 0.0
        %4833 = vmatpush1.msra.mxu0 0.0
        %4834 = vmatprep.subr.mxu0 0.0
        %4835 = vmatpush1.msra.mxu0 0.0
        %4836 = vmatprep.subr.mxu0 0.0
        %4837 = vmatpush1.msra.mxu0 0.0
        %4838 = vmatprep.subr.mxu0 0.0
        %4839 = vmatpush1.msra.mxu0 0.0
        %4840 = vmatprep.subr.mxu0 0.0
        %4841 = vmatpush1.msra.mxu0 0.0
        %4842 = vmatprep.subr.mxu0 0.0
        %4843 = vmatpush1.msra.mxu0 0.0
        %4844 = vmatprep.subr.mxu0 0.0
        %4845 = vmatpush1.msra.mxu0 0.0
        %4846 = vmatprep.subr.mxu0 0.0
        %4847 = vmatpush1.msra.mxu0 0.0
        %4848 = vmatprep.subr.mxu0 0.0
        %4849 = vmatpush1.msra.mxu0 0.0
        %4850 = vmatprep.subr.mxu0 0.0
        %4851 = vmatpush1.msra.mxu0 0.0
        %4852 = vmatprep.subr.mxu0 0.0
        %4853 = vmatpush1.msra.mxu0 0.0
        %4854 = vmatprep.subr.mxu0 0.0
        %4855 = vmatpush1.msra.mxu0 0.0
        %4856 = vmatprep.subr.mxu0 0.0
        %4857 = vmatpush1.msra.mxu0 0.0
        %4858 = vmatprep.subr.mxu0 0.0
        %4859 = vmatpush1.msra.mxu0 0.0
        %4860 = vmatprep.subr.mxu0 0.0
        %4861 = vmatpush1.msra.mxu0 0.0
        %4862 = vmatprep.subr.mxu0 0.0
        %4863 = vmatpush1.msra.mxu0 0.0
        %4864 = vmatprep.subr.mxu0 0.0
        %4865 = vmatpush1.msra.mxu0 0.0
        %4866 = vmatprep.subr.mxu0 0.0
        %4867 = vmatpush1.msra.mxu0 0.0
        %4868 = vmatprep.subr.mxu0 0.0
        %4869 = vmatpush1.msra.mxu0 0.0
        %4870 = vmatprep.subr.mxu0 0.0
        %4871 = vmatpush1.msra.mxu0 0.0
        %4872 = vmatprep.subr.mxu0 0.0
        %4873 = vmatpush1.msra.mxu0 0.0
        %4874 = vmatprep.subr.mxu0 0.0
        %4875 = vmatpush1.msra.mxu0 0.0
        %4876 = vmatprep.subr.mxu0 0.0
        %4877 = vmatpush1.msra.mxu0 0.0
        %4878 = vmatprep.subr.mxu0 0.0
        %4879 = vmatpush1.msra.mxu0 0.0
        %4880 = vmatprep.subr.mxu0 0.0
        %4881 = vmatpush1.msra.mxu0 0.0
        %4882 = vmatprep.subr.mxu0 0.0
        %4883 = vmatpush1.msra.mxu0 0.0
        %4884 = vmatprep.subr.mxu0 0.0
        %4885 = vmatpush1.msra.mxu0 0.0
        %4886 = vmatprep.mubr.f32.mxu0 0.0
        %4887 = vmatmul.mubr.f32.gmra.mrb[0].mxu0 %v4718
        %v4888 = vpop.f32.mrb[0].mxu0
        %v4889 = vadd.f32 %v4821, %v4888
        %v4890 = vpop.f32.mrb[0].mxu0
        %4891 = vmatprep.mubr.f32.mxu0 0.0
        %4892 = vmatmul.mubr.f32.gmra.mrb[0].mxu0 %v4721
        %v4893 = vpop.f32.mrb[0].mxu0
        %v4894 = vadd.f32 %v4821, %v4893
        %v4895 = vpop.f32.mrb[0].mxu0
        %4896 = vmatprep.mubr.f32.mxu0 0.0
        %4897 = vmatmul.mubr.f32.gmra.mrb[0].mxu0 %v4724
        %v4898 = vpop.f32.mrb[0].mxu0
        %v4899 = vadd.f32 %v4821, %v4898
        %v4900 = vpop.f32.mrb[0].mxu0
        %4901 = vmatprep.mubr.f32.mxu0 0.0
        %4902 = vmatmul.mubr.f32.gmra.mrb[0].mxu0 %v4727
        %v4903 = vpop.f32.mrb[0].mxu0
        %v4904 = vadd.f32 %v4821, %v4903
        %v4905 = vpop.f32.mrb[0].mxu0
        %4906 = vdwg.mxu0
        %v4908 = vsel %vm728, %v4593, 0
        %v4911 = vsel %vm728, %v4594, 0
        %v4914 = vsel %vm728, %v4595, 0
        %v4917 = vsel %vm728, %v4596, 0
        %v4920 = vsel %vm728, %v4625, 0
        %v4923 = vsel %vm728, %v4626, 0
        %v4926 = vsel %vm728, %v4627, 0
        %v4929 = vsel %vm728, %v4628, 0
        %v4932 = vsel %vm728, %v4657, 0
        %v4935 = vsel %vm728, %v4658, 0
        %v4938 = vsel %vm728, %v4659, 0
        %v4941 = vsel %vm728, %v4660, 0
        %v4944 = vsel %vm728, %v4689, 0
        %v4947 = vsel %vm728, %v4690, 0
        %v4950 = vsel %vm728, %v4691, 0
        %v4953 = vsel %vm728, %v4692, 0
        %4955 = vmatprep.subr.mxu0 0.0
        %4956 = vmatpush1.msra.mxu0 %v4796
        %4957 = vmatprep.subr.mxu0 0.0
        %4958 = vmatpush1.msra.mxu0 %v4801
        %4959 = vmatprep.subr.mxu0 0.0
        %4960 = vmatpush1.msra.mxu0 %v4806
        %4961 = vmatprep.subr.mxu0 0.0
        %4962 = vmatpush1.msra.mxu0 %v4811
        %4963 = vmatprep.subr.mxu0 0.0
        %4964 = vmatpush1.msra.mxu0 0.0
        %4965 = vmatprep.subr.mxu0 0.0
        %4966 = vmatpush1.msra.mxu0 0.0
        %4967 = vmatprep.subr.mxu0 0.0
        %4968 = vmatpush1.msra.mxu0 0.0
        %4969 = vmatprep.subr.mxu0 0.0
        %4970 = vmatpush1.msra.mxu0 0.0
        %4971 = vmatprep.subr.mxu0 0.0
        %4972 = vmatpush1.msra.mxu0 0.0
        %4973 = vmatprep.subr.mxu0 0.0
        %4974 = vmatpush1.msra.mxu0 0.0
        %4975 = vmatprep.subr.mxu0 0.0
        %4976 = vmatpush1.msra.mxu0 0.0
        %4977 = vmatprep.subr.mxu0 0.0
        %4978 = vmatpush1.msra.mxu0 0.0
        %4979 = vmatprep.subr.mxu0 0.0
        %4980 = vmatpush1.msra.mxu0 0.0
        %4981 = vmatprep.subr.mxu0 0.0
        %4982 = vmatpush1.msra.mxu0 0.0
        %4983 = vmatprep.subr.mxu0 0.0
        %4984 = vmatpush1.msra.mxu0 0.0
        %4985 = vmatprep.subr.mxu0 0.0
        %4986 = vmatpush1.msra.mxu0 0.0
        %4987 = vmatprep.subr.mxu0 0.0
        %4988 = vmatpush1.msra.mxu0 0.0
        %4989 = vmatprep.subr.mxu0 0.0
        %4990 = vmatpush1.msra.mxu0 0.0
        %4991 = vmatprep.subr.mxu0 0.0
        %4992 = vmatpush1.msra.mxu0 0.0
        %4993 = vmatprep.subr.mxu0 0.0
        %4994 = vmatpush1.msra.mxu0 0.0
        %4995 = vmatprep.subr.mxu0 0.0
        %4996 = vmatpush1.msra.mxu0 0.0
        %4997 = vmatprep.subr.mxu0 0.0
        %4998 = vmatpush1.msra.mxu0 0.0
        %4999 = vmatprep.subr.mxu0 0.0
        %5000 = vmatpush1.msra.mxu0 0.0
        %5001 = vmatprep.subr.mxu0 0.0
        %5002 = vmatpush1.msra.mxu0 0.0
        %5003 = vmatprep.subr.mxu0 0.0
        %5004 = vmatpush1.msra.mxu0 0.0
        %5005 = vmatprep.subr.mxu0 0.0
        %5006 = vmatpush1.msra.mxu0 0.0
        %5007 = vmatprep.subr.mxu0 0.0
        %5008 = vmatpush1.msra.mxu0 0.0
        %5009 = vmatprep.subr.mxu0 0.0
        %5010 = vmatpush1.msra.mxu0 0.0
        %5011 = vmatprep.subr.mxu0 0.0
        %5012 = vmatpush1.msra.mxu0 0.0
        %5013 = vmatprep.subr.mxu0 0.0
        %5014 = vmatpush1.msra.mxu0 0.0
        %5015 = vmatprep.subr.mxu0 0.0
        %5016 = vmatpush1.msra.mxu0 0.0
        %5017 = vmatprep.subr.mxu0 0.0
        %5018 = vmatpush1.msra.mxu0 0.0
        %5019 = vmatprep.mubr.f32.mxu0 0.0
        %5020 = vmatmul.mubr.f32.gmra.mrb[0].mxu0 %v4908
        %v5021 = vpop.f32.mrb[0].mxu0
        %v5022 = vadd.f32 %v4889, %v5021
        %v5023 = vpop.f32.mrb[0].mxu0
        %5024 = vmatprep.mubr.f32.mxu0 0.0
        %5025 = vmatmul.mubr.f32.gmra.mrb[0].mxu0 %v4911
        %v5026 = vpop.f32.mrb[0].mxu0
        %v5027 = vadd.f32 %v4894, %v5026
        %v5028 = vpop.f32.mrb[0].mxu0
        %5029 = vmatprep.mubr.f32.mxu0 0.0
        %5030 = vmatmul.mubr.f32.gmra.mrb[0].mxu0 %v4914
        %v5031 = vpop.f32.mrb[0].mxu0
        %v5032 = vadd.f32 %v4899, %v5031
        %v5033 = vpop.f32.mrb[0].mxu0
        %5034 = vmatprep.mubr.f32.mxu0 0.0
        %5035 = vmatmul.mubr.f32.gmra.mrb[0].mxu0 %v4917
        %v5036 = vpop.f32.mrb[0].mxu0
        %v5037 = vadd.f32 %v4904, %v5036
        %v5038 = vpop.f32.mrb[0].mxu0
        %5039 = vmatprep.mubr.f32.mxu0 0.0
        %5040 = vmatmul.mubr.f32.gmra.mrb[0].mxu0 %v4920
        %v5041 = vpop.f32.mrb[0].mxu0
        %v5042 = vadd.f32 %v4889, %v5041
        %v5043 = vpop.f32.mrb[0].mxu0
        %5044 = vmatprep.mubr.f32.mxu0 0.0
        %5045 = vmatmul.mubr.f32.gmra.mrb[0].mxu0 %v4923
        %v5046 = vpop.f32.mrb[0].mxu0
        %v5047 = vadd.f32 %v4894, %v5046
        %v5048 = vpop.f32.mrb[0].mxu0
        %5049 = vmatprep.mubr.f32.mxu0 0.0
        %5050 = vmatmul.mubr.f32.gmra.mrb[0].mxu0 %v4926
        %v5051 = vpop.f32.mrb[0].mxu0
        %v5052 = vadd.f32 %v4899, %v5051
        %v5053 = vpop.f32.mrb[0].mxu0
        %5054 = vmatprep.mubr.f32.mxu0 0.0
        %5055 = vmatmul.mubr.f32.gmra.mrb[0].mxu0 %v4929
        %v5056 = vpop.f32.mrb[0].mxu0
        %v5057 = vadd.f32 %v4904, %v5056
        %v5058 = vpop.f32.mrb[0].mxu0
        %5059 = vmatprep.mubr.f32.mxu0 0.0
        %5060 = vmatmul.mubr.f32.gmra.mrb[0].mxu0 %v4932
        %v5061 = vpop.f32.mrb[0].mxu0
        %v5062 = vadd.f32 %v4889, %v5061
        %v5063 = vpop.f32.mrb[0].mxu0
        %5064 = vmatprep.mubr.f32.mxu0 0.0
        %5065 = vmatmul.mubr.f32.gmra.mrb[0].mxu0 %v4935
        %v5066 = vpop.f32.mrb[0].mxu0
        %v5067 = vadd.f32 %v4894, %v5066
        %v5068 = vpop.f32.mrb[0].mxu0
        %5069 = vmatprep.mubr.f32.mxu0 0.0
        %5070 = vmatmul.mubr.f32.gmra.mrb[0].mxu0 %v4938
        %v5071 = vpop.f32.mrb[0].mxu0
        %v5072 = vadd.f32 %v4899, %v5071
        %v5073 = vpop.f32.mrb[0].mxu0
        %5074 = vmatprep.mubr.f32.mxu0 0.0
        %5075 = vmatmul.mubr.f32.gmra.mrb[0].mxu0 %v4941
        %v5076 = vpop.f32.mrb[0].mxu0
        %v5077 = vadd.f32 %v4904, %v5076
        %v5078 = vpop.f32.mrb[0].mxu0
        %5079 = vmatprep.mubr.f32.mxu0 0.0
        %5080 = vmatmul.mubr.f32.gmra.mrb[0].mxu0 %v4944
        %v5081 = vpop.f32.mrb[0].mxu0
        %v5082 = vadd.f32 %v4889, %v5081
        %v5083 = vpop.f32.mrb[0].mxu0
        %5084 = vmatprep.mubr.f32.mxu0 0.0
        %5085 = vmatmul.mubr.f32.gmra.mrb[0].mxu0 %v4947
        %v5086 = vpop.f32.mrb[0].mxu0
        %v5087 = vadd.f32 %v4894, %v5086
        %v5088 = vpop.f32.mrb[0].mxu0
        %5089 = vmatprep.mubr.f32.mxu0 0.0
        %5090 = vmatmul.mubr.f32.gmra.mrb[0].mxu0 %v4950
        %v5091 = vpop.f32.mrb[0].mxu0
        %v5092 = vadd.f32 %v4899, %v5091
        %v5093 = vpop.f32.mrb[0].mxu0
        %5094 = vmatprep.mubr.f32.mxu0 0.0
        %5095 = vmatmul.mubr.f32.gmra.mrb[0].mxu0 %v4953
        %v5096 = vpop.f32.mrb[0].mxu0
        %v5097 = vadd.f32 %v4904, %v5096
        %v5098 = vpop.f32.mrb[0].mxu0
        %5099 = vdwg.mxu0
        %v5100 = vmax.f32 %v5022, 0.0
        %v5101 = vmax.f32 %v5027, 0.0
        %v5102 = vmax.f32 %v5032, 0.0
        %v5103 = vmax.f32 %v5037, 0.0
        %v5104 = vmax.f32 %v5042, 0.0
        %v5105 = vmax.f32 %v5047, 0.0
        %v5106 = vmax.f32 %v5052, 0.0
        %v5107 = vmax.f32 %v5057, 0.0
        %v5108 = vmax.f32 %v5062, 0.0
        %v5109 = vmax.f32 %v5067, 0.0
        %v5110 = vmax.f32 %v5072, 0.0
        %v5111 = vmax.f32 %v5077, 0.0
        %v5112 = vmax.f32 %v5082, 0.0
        %v5113 = vmax.f32 %v5087, 0.0
        %v5114 = vmax.f32 %v5092, 0.0
        %v5115 = vmax.f32 %v5097, 0.0
        %v5116 = vpack.c.bf16 %v5101, %v5100
        %v5117 = vpack.c.bf16 %v5103, %v5102
        %v5118 = vpack.c.bf16 %v5105, %v5104
        %v5119 = vpack.c.bf16 %v5107, %v5106
        %v5120 = vpack.c.bf16 %v5109, %v5108
        %v5121 = vpack.c.bf16 %v5111, %v5110
        %v5122 = vpack.c.bf16 %v5113, %v5112
        %v5123 = vpack.c.bf16 %v5115, %v5114
        %v5124 = vld [vmem:[#allocation2 + $0x200] sm:$0xf]
        %v5125 = vld [vmem:[#allocation2 + $0x204] sm:$0xf]
        %v5126 = vld [vmem:[#allocation2 + $0x208] sm:$0xf]
        %v5127 = vld [vmem:[#allocation2 + $0x20c] sm:$0xf]
        %v5128 = vld [vmem:[%s2 + $0xa6] sm:$0x1]
        %v5129 = vlaneseq
        %v5130 = vshrl.u32 %v5129, 7
        %v5131 = vsub.s32 0, %v5130
        %v5132 = vrot.slane %v5128, %v5131
        %v5137 = vunpack.c.l.b16 %v5124
        %v5138 = vunpack.c.l.b16 %v5125
        %v5139 = vunpack.c.l.b16 %v5126
        %v5140 = vunpack.c.l.b16 %v5127
        %v5141 = vpack.c.b16 %v5138, %v5137
        %v5142 = vpack.c.b16 %v5140, %v5139
        %v5146 = vsel %vm728, %v5116, 0
        %v5149 = vsel %vm728, %v5117, 0
        %v5152 = vsel %vm728, %v5118, 0
        %v5155 = vsel %vm728, %v5119, 0
        %v5158 = vsel %vm728, %v5120, 0
        %v5161 = vsel %vm728, %v5121, 0
        %v5164 = vsel %vm728, %v5122, 0
        %v5167 = vsel %vm728, %v5123, 0
        %5169 = vmatprep.subr.bf16.mxu0 0
        %5170 = vmatpush1.bf16.msra.mxu0 %v5141
        %5171 = vmatprep.subr.bf16.mxu0 0
        %5172 = vmatpush1.bf16.msra.mxu0 %v5142
        %5173 = vmatprep.subr.bf16.mxu0 0
        %5174 = vmatpush1.bf16.msra.mxu0 0
        %5175 = vmatprep.subr.bf16.mxu0 0
        %5176 = vmatpush1.bf16.msra.mxu0 0
        %5177 = vmatprep.subr.bf16.mxu0 0
        %5178 = vmatpush1.bf16.msra.mxu0 0
        %5179 = vmatprep.subr.bf16.mxu0 0
        %5180 = vmatpush1.bf16.msra.mxu0 0
        %5181 = vmatprep.subr.bf16.mxu0 0
        %5182 = vmatpush1.bf16.msra.mxu0 0
        %5183 = vmatprep.subr.bf16.mxu0 0
        %5184 = vmatpush1.bf16.msra.mxu0 0
        %5185 = vmatprep.subr.bf16.mxu0 0
        %5186 = vmatpush1.bf16.msra.mxu0 0
        %5187 = vmatprep.subr.bf16.mxu0 0
        %5188 = vmatpush1.bf16.msra.mxu0 0
        %5189 = vmatprep.subr.bf16.mxu0 0
        %5190 = vmatpush1.bf16.msra.mxu0 0
        %5191 = vmatprep.subr.bf16.mxu0 0
        %5192 = vmatpush1.bf16.msra.mxu0 0
        %5193 = vmatprep.subr.bf16.mxu0 0
        %5194 = vmatpush1.bf16.msra.mxu0 0
        %5195 = vmatprep.subr.bf16.mxu0 0
        %5196 = vmatpush1.bf16.msra.mxu0 0
        %5197 = vmatprep.subr.bf16.mxu0 0
        %5198 = vmatpush1.bf16.msra.mxu0 0
        %5199 = vmatprep.subr.bf16.mxu0 0
        %5200 = vmatpush1.bf16.msra.mxu0 0
        %5201 = vmatprep.mubr.bf16.mxu0 0
        %5202 = vmatmul.mubr.bf16.gmra.mrb[0].mxu0 %v5146
        %v5203 = vpop.f32.mrb[0].mxu0
        %v5204 = vadd.f32 %v5132, %v5203
        %v5205 = vpop.f32.mrb[0].mxu0
        %v5206 = vpop.f32.mrb[0].mxu0
        %v5207 = vadd.f32 %v5132, %v5206
        %v5208 = vpop.f32.mrb[0].mxu0
        %5209 = vmatprep.mubr.bf16.mxu0 0
        %5210 = vmatmul.mubr.bf16.gmra.mrb[0].mxu0 %v5149
        %v5211 = vpop.f32.mrb[0].mxu0
        %v5212 = vadd.f32 %v5132, %v5211
        %v5213 = vpop.f32.mrb[0].mxu0
        %v5214 = vpop.f32.mrb[0].mxu0
        %v5215 = vadd.f32 %v5132, %v5214
        %v5216 = vpop.f32.mrb[0].mxu0
        %5217 = vmatprep.mubr.bf16.mxu0 0
        %5218 = vmatmul.mubr.bf16.gmra.mrb[0].mxu0 %v5152
        %v5219 = vpop.f32.mrb[0].mxu0
        %v5220 = vadd.f32 %v5132, %v5219
        %v5221 = vpop.f32.mrb[0].mxu0
        %v5222 = vpop.f32.mrb[0].mxu0
        %v5223 = vadd.f32 %v5132, %v5222
        %v5224 = vpop.f32.mrb[0].mxu0
        %5225 = vmatprep.mubr.bf16.mxu0 0
        %5226 = vmatmul.mubr.bf16.gmra.mrb[0].mxu0 %v5155
        %v5227 = vpop.f32.mrb[0].mxu0
        %v5228 = vadd.f32 %v5132, %v5227
        %v5229 = vpop.f32.mrb[0].mxu0
        %v5230 = vpop.f32.mrb[0].mxu0
        %v5231 = vadd.f32 %v5132, %v5230
        %v5232 = vpop.f32.mrb[0].mxu0
        %5233 = vmatprep.mubr.bf16.mxu0 0
        %5234 = vmatmul.mubr.bf16.gmra.mrb[0].mxu0 %v5158
        %v5235 = vpop.f32.mrb[0].mxu0
        %v5236 = vadd.f32 %v5132, %v5235
        %v5237 = vpop.f32.mrb[0].mxu0
        %v5238 = vpop.f32.mrb[0].mxu0
        %v5239 = vadd.f32 %v5132, %v5238
        %v5240 = vpop.f32.mrb[0].mxu0
        %5241 = vmatprep.mubr.bf16.mxu0 0
        %5242 = vmatmul.mubr.bf16.gmra.mrb[0].mxu0 %v5161
        %v5243 = vpop.f32.mrb[0].mxu0
        %v5244 = vadd.f32 %v5132, %v5243
        %v5245 = vpop.f32.mrb[0].mxu0
        %v5246 = vpop.f32.mrb[0].mxu0
        %v5247 = vadd.f32 %v5132, %v5246
        %v5248 = vpop.f32.mrb[0].mxu0
        %5249 = vmatprep.mubr.bf16.mxu0 0
        %5250 = vmatmul.mubr.bf16.gmra.mrb[0].mxu0 %v5164
        %v5251 = vpop.f32.mrb[0].mxu0
        %v5252 = vadd.f32 %v5132, %v5251
        %v5253 = vpop.f32.mrb[0].mxu0
        %v5254 = vpop.f32.mrb[0].mxu0
        %v5255 = vadd.f32 %v5132, %v5254
        %v5256 = vpop.f32.mrb[0].mxu0
        %5257 = vmatprep.mubr.bf16.mxu0 0
        %5258 = vmatmul.mubr.bf16.gmra.mrb[0].mxu0 %v5167
        %v5259 = vpop.f32.mrb[0].mxu0
        %v5260 = vadd.f32 %v5132, %v5259
        %v5261 = vpop.f32.mrb[0].mxu0
        %v5262 = vpop.f32.mrb[0].mxu0
        %v5263 = vadd.f32 %v5132, %v5262
        %v5264 = vpop.f32.mrb[0].mxu0
        %5265 = vdwg.mxu0
        %v5266 = vmax.f32 %v5204, 0.0
        %v5267 = vmax.f32 %v5207, 0.0
        %v5268 = vmax.f32 %v5212, 0.0
        %v5269 = vmax.f32 %v5215, 0.0
        %v5270 = vmax.f32 %v5220, 0.0
        %v5271 = vmax.f32 %v5223, 0.0
        %v5272 = vmax.f32 %v5228, 0.0
        %v5273 = vmax.f32 %v5231, 0.0
        %v5274 = vmax.f32 %v5236, 0.0
        %v5275 = vmax.f32 %v5239, 0.0
        %v5276 = vmax.f32 %v5244, 0.0
        %v5277 = vmax.f32 %v5247, 0.0
        %v5278 = vmax.f32 %v5252, 0.0
        %v5279 = vmax.f32 %v5255, 0.0
        %v5280 = vmax.f32 %v5260, 0.0
        %v5281 = vmax.f32 %v5263, 0.0
        %v5282 = vpack.c.bf16 %v5267, %v5266
        %v5283 = vpack.c.bf16 %v5269, %v5268
        %v5284 = vpack.c.bf16 %v5271, %v5270
        %v5285 = vpack.c.bf16 %v5273, %v5272
        %v5286 = vpack.c.bf16 %v5275, %v5274
        %v5287 = vpack.c.bf16 %v5277, %v5276
        %v5288 = vpack.c.bf16 %v5279, %v5278
        %v5289 = vpack.c.bf16 %v5281, %v5280
        %v5290 = vld [vmem:[#allocation2 + $0x210] sm:$0xf]
        %v5291 = vld [vmem:[#allocation2 + $0x214] sm:$0xf]
        %v5292 = vld [vmem:[#allocation2 + $0x218] sm:$0xf]
        %v5293 = vld [vmem:[#allocation2 + $0x21c] sm:$0xf]
        %v5294 = vld [vmem:[#allocation2 + $0x220] sm:$0xf]
        %v5295 = vld [vmem:[#allocation2 + $0x224] sm:$0xf]
        %v5296 = vld [vmem:[#allocation2 + $0x228] sm:$0xf]
        %v5297 = vld [vmem:[#allocation2 + $0x22c] sm:$0xf]
        %v5298 = vld [vmem:[%s2 + $0xa7] sm:$0x1]
        %v5299 = vlaneseq
        %v5300 = vshrl.u32 %v5299, 7
        %v5301 = vsub.s32 0, %v5300
        %v5302 = vrot.slane %v5298, %v5301
        %v5311 = vunpack.c.l.b16 %v5290
        %v5312 = vunpack.c.l.b16 %v5291
        %v5313 = vunpack.c.l.b16 %v5292
        %v5314 = vunpack.c.l.b16 %v5293
        %v5315 = vunpack.c.l.b16 %v5294
        %v5316 = vunpack.c.l.b16 %v5295
        %v5317 = vunpack.c.l.b16 %v5296
        %v5318 = vunpack.c.l.b16 %v5297
        %v5319 = vpack.c.b16 %v5312, %v5311
        %v5320 = vpack.c.b16 %v5314, %v5313
        %v5321 = vpack.c.b16 %v5316, %v5315
        %v5322 = vpack.c.b16 %v5318, %v5317
        %v5328 = vsel %vm1548, %v5282, 0
        %v5331 = vsel %vm1548, %v5283, 0
        %v5334 = vsel %vm1548, %v5284, 0
        %v5337 = vsel %vm1548, %v5285, 0
        %v5340 = vsel %vm1548, %v5286, 0
        %v5343 = vsel %vm1548, %v5287, 0
        %v5346 = vsel %vm1548, %v5288, 0
        %v5349 = vsel %vm1548, %v5289, 0
        %5351 = vmatprep.subr.bf16.mxu0 0
        %5352 = vmatpush1.bf16.msra.mxu0 %v5319
        %5353 = vmatprep.subr.bf16.mxu0 0
        %5354 = vmatpush1.bf16.msra.mxu0 %v5320
        %5355 = vmatprep.subr.bf16.mxu0 0
        %5356 = vmatpush1.bf16.msra.mxu0 %v5321
        %5357 = vmatprep.subr.bf16.mxu0 0
        %5358 = vmatpush1.bf16.msra.mxu0 %v5322
        %5359 = vmatprep.subr.bf16.mxu0 0
        %5360 = vmatpush1.bf16.msra.mxu0 0
        %5361 = vmatprep.subr.bf16.mxu0 0
        %5362 = vmatpush1.bf16.msra.mxu0 0
        %5363 = vmatprep.subr.bf16.mxu0 0
        %5364 = vmatpush1.bf16.msra.mxu0 0
        %5365 = vmatprep.subr.bf16.mxu0 0
        %5366 = vmatpush1.bf16.msra.mxu0 0
        %5367 = vmatprep.subr.bf16.mxu0 0
        %5368 = vmatpush1.bf16.msra.mxu0 0
        %5369 = vmatprep.subr.bf16.mxu0 0
        %5370 = vmatpush1.bf16.msra.mxu0 0
        %5371 = vmatprep.subr.bf16.mxu0 0
        %5372 = vmatpush1.bf16.msra.mxu0 0
        %5373 = vmatprep.subr.bf16.mxu0 0
        %5374 = vmatpush1.bf16.msra.mxu0 0
        %5375 = vmatprep.subr.bf16.mxu0 0
        %5376 = vmatpush1.bf16.msra.mxu0 0
        %5377 = vmatprep.subr.bf16.mxu0 0
        %5378 = vmatpush1.bf16.msra.mxu0 0
        %5379 = vmatprep.subr.bf16.mxu0 0
        %5380 = vmatpush1.bf16.msra.mxu0 0
        %5381 = vmatprep.subr.bf16.mxu0 0
        %5382 = vmatpush1.bf16.msra.mxu0 0
        %5383 = vmatprep.mubr.bf16.mxu0 0
        %5384 = vmatmul.mubr.bf16.gmra.mrb[0].mxu0 %v5328
        %v5385 = vpop.f32.mrb[0].mxu0
        %v5386 = vadd.f32 %v5302, %v5385
        %v5387 = vpop.f32.mrb[0].mxu0
        %v5388 = vpop.f32.mrb[0].mxu0
        %v5389 = vadd.f32 %v5302, %v5388
        %v5390 = vpop.f32.mrb[0].mxu0
        %5391 = vmatprep.mubr.bf16.mxu0 0
        %5392 = vmatmul.mubr.bf16.gmra.mrb[0].mxu0 %v5331
        %v5393 = vpop.f32.mrb[0].mxu0
        %v5394 = vadd.f32 %v5302, %v5393
        %v5395 = vpop.f32.mrb[0].mxu0
        %v5396 = vpop.f32.mrb[0].mxu0
        %v5397 = vadd.f32 %v5302, %v5396
        %v5398 = vpop.f32.mrb[0].mxu0
        %5399 = vmatprep.mubr.bf16.mxu0 0
        %5400 = vmatmul.mubr.bf16.gmra.mrb[0].mxu0 %v5334
        %v5401 = vpop.f32.mrb[0].mxu0
        %v5402 = vadd.f32 %v5302, %v5401
        %v5403 = vpop.f32.mrb[0].mxu0
        %v5404 = vpop.f32.mrb[0].mxu0
        %v5405 = vadd.f32 %v5302, %v5404
        %v5406 = vpop.f32.mrb[0].mxu0
        %5407 = vmatprep.mubr.bf16.mxu0 0
        %5408 = vmatmul.mubr.bf16.gmra.mrb[0].mxu0 %v5337
        %v5409 = vpop.f32.mrb[0].mxu0
        %v5410 = vadd.f32 %v5302, %v5409
        %v5411 = vpop.f32.mrb[0].mxu0
        %v5412 = vpop.f32.mrb[0].mxu0
        %v5413 = vadd.f32 %v5302, %v5412
        %v5414 = vpop.f32.mrb[0].mxu0
        %5415 = vmatprep.mubr.bf16.mxu0 0
        %5416 = vmatmul.mubr.bf16.gmra.mrb[0].mxu0 %v5340
        %v5417 = vpop.f32.mrb[0].mxu0
        %v5418 = vadd.f32 %v5302, %v5417
        %v5419 = vpop.f32.mrb[0].mxu0
        %v5420 = vpop.f32.mrb[0].mxu0
        %v5421 = vadd.f32 %v5302, %v5420
        %v5422 = vpop.f32.mrb[0].mxu0
        %5423 = vmatprep.mubr.bf16.mxu0 0
        %5424 = vmatmul.mubr.bf16.gmra.mrb[0].mxu0 %v5343
        %v5425 = vpop.f32.mrb[0].mxu0
        %v5426 = vadd.f32 %v5302, %v5425
        %v5427 = vpop.f32.mrb[0].mxu0
        %v5428 = vpop.f32.mrb[0].mxu0
        %v5429 = vadd.f32 %v5302, %v5428
        %v5430 = vpop.f32.mrb[0].mxu0
        %5431 = vmatprep.mubr.bf16.mxu0 0
        %5432 = vmatmul.mubr.bf16.gmra.mrb[0].mxu0 %v5346
        %v5433 = vpop.f32.mrb[0].mxu0
        %v5434 = vadd.f32 %v5302, %v5433
        %v5435 = vpop.f32.mrb[0].mxu0
        %v5436 = vpop.f32.mrb[0].mxu0
        %v5437 = vadd.f32 %v5302, %v5436
        %v5438 = vpop.f32.mrb[0].mxu0
        %5439 = vmatprep.mubr.bf16.mxu0 0
        %5440 = vmatmul.mubr.bf16.gmra.mrb[0].mxu0 %v5349
        %v5441 = vpop.f32.mrb[0].mxu0
        %v5442 = vadd.f32 %v5302, %v5441
        %v5443 = vpop.f32.mrb[0].mxu0
        %v5444 = vpop.f32.mrb[0].mxu0
        %v5445 = vadd.f32 %v5302, %v5444
        %v5446 = vpop.f32.mrb[0].mxu0
        %5447 = vdwg.mxu0
        %v5448 = vmax.f32 %v5386, 0.0
        %v5449 = vmax.f32 %v5389, 0.0
        %v5450 = vmax.f32 %v5394, 0.0
        %v5451 = vmax.f32 %v5397, 0.0
        %v5452 = vmax.f32 %v5402, 0.0
        %v5453 = vmax.f32 %v5405, 0.0
        %v5454 = vmax.f32 %v5410, 0.0
        %v5455 = vmax.f32 %v5413, 0.0
        %v5456 = vmax.f32 %v5418, 0.0
        %v5457 = vmax.f32 %v5421, 0.0
        %v5458 = vmax.f32 %v5426, 0.0
        %v5459 = vmax.f32 %v5429, 0.0
        %v5460 = vmax.f32 %v5434, 0.0
        %v5461 = vmax.f32 %v5437, 0.0
        %v5462 = vmax.f32 %v5442, 0.0
        %v5463 = vmax.f32 %v5445, 0.0
        %v5464 = vpack.c.bf16 %v5449, %v5448
        %v5465 = vpack.c.bf16 %v5451, %v5450
        %v5466 = vpack.c.bf16 %v5453, %v5452
        %v5467 = vpack.c.bf16 %v5455, %v5454
        %v5468 = vpack.c.bf16 %v5457, %v5456
        %v5469 = vpack.c.bf16 %v5459, %v5458
        %v5470 = vpack.c.bf16 %v5461, %v5460
        %v5471 = vpack.c.bf16 %v5463, %v5462
        %v5472 = vld [vmem:[#allocation2 + $0x230] sm:$0xf]
        %v5473 = vld [vmem:[#allocation2 + $0x234] sm:$0xf]
        %v5474 = vld [vmem:[#allocation2 + $0x238] sm:$0xf]
        %v5475 = vld [vmem:[#allocation2 + $0x23c] sm:$0xf]
        %v5476 = vld [vmem:[#allocation2 + $0x240] sm:$0xf]
        %v5477 = vld [vmem:[#allocation2 + $0x244] sm:$0xf]
        %v5478 = vld [vmem:[#allocation2 + $0x248] sm:$0xf]
        %v5479 = vld [vmem:[#allocation2 + $0x24c] sm:$0xf]
        %v5480 = vld [vmem:[%s2 + $0xa8] sm:$0x1]
        %v5481 = vlaneseq
        %v5482 = vshrl.u32 %v5481, 7
        %v5483 = vsub.s32 0, %v5482
        %v5484 = vrot.slane %v5480, %v5483
        %v5493 = vunpack.c.l.b16 %v5472
        %v5494 = vunpack.c.l.b16 %v5473
        %v5495 = vunpack.c.l.b16 %v5474
        %v5496 = vunpack.c.l.b16 %v5475
        %v5497 = vunpack.c.l.b16 %v5476
        %v5498 = vunpack.c.l.b16 %v5477
        %v5499 = vunpack.c.l.b16 %v5478
        %v5500 = vunpack.c.l.b16 %v5479
        %v5501 = vpack.c.b16 %v5494, %v5493
        %v5502 = vpack.c.b16 %v5496, %v5495
        %v5503 = vpack.c.b16 %v5498, %v5497
        %v5504 = vpack.c.b16 %v5500, %v5499
        %v5510 = vsel %vm1548, %v5464, 0
        %v5513 = vsel %vm1548, %v5465, 0
        %v5516 = vsel %vm1548, %v5466, 0
        %v5519 = vsel %vm1548, %v5467, 0
        %v5522 = vsel %vm1548, %v5468, 0
        %v5525 = vsel %vm1548, %v5469, 0
        %v5528 = vsel %vm1548, %v5470, 0
        %v5531 = vsel %vm1548, %v5471, 0
        %5533 = vmatprep.subr.bf16.mxu0 0
        %5534 = vmatpush1.bf16.msra.mxu0 %v5501
        %5535 = vmatprep.subr.bf16.mxu0 0
        %5536 = vmatpush1.bf16.msra.mxu0 %v5502
        %5537 = vmatprep.subr.bf16.mxu0 0
        %5538 = vmatpush1.bf16.msra.mxu0 %v5503
        %5539 = vmatprep.subr.bf16.mxu0 0
        %5540 = vmatpush1.bf16.msra.mxu0 %v5504
        %5541 = vmatprep.subr.bf16.mxu0 0
        %5542 = vmatpush1.bf16.msra.mxu0 0
        %5543 = vmatprep.subr.bf16.mxu0 0
        %5544 = vmatpush1.bf16.msra.mxu0 0
        %5545 = vmatprep.subr.bf16.mxu0 0
        %5546 = vmatpush1.bf16.msra.mxu0 0
        %5547 = vmatprep.subr.bf16.mxu0 0
        %5548 = vmatpush1.bf16.msra.mxu0 0
        %5549 = vmatprep.subr.bf16.mxu0 0
        %5550 = vmatpush1.bf16.msra.mxu0 0
        %5551 = vmatprep.subr.bf16.mxu0 0
        %5552 = vmatpush1.bf16.msra.mxu0 0
        %5553 = vmatprep.subr.bf16.mxu0 0
        %5554 = vmatpush1.bf16.msra.mxu0 0
        %5555 = vmatprep.subr.bf16.mxu0 0
        %5556 = vmatpush1.bf16.msra.mxu0 0
        %5557 = vmatprep.subr.bf16.mxu0 0
        %5558 = vmatpush1.bf16.msra.mxu0 0
        %5559 = vmatprep.subr.bf16.mxu0 0
        %5560 = vmatpush1.bf16.msra.mxu0 0
        %5561 = vmatprep.subr.bf16.mxu0 0
        %5562 = vmatpush1.bf16.msra.mxu0 0
        %5563 = vmatprep.subr.bf16.mxu0 0
        %5564 = vmatpush1.bf16.msra.mxu0 0
        %5565 = vmatprep.mubr.bf16.mxu0 0
        %5566 = vmatmul.mubr.bf16.gmra.mrb[0].mxu0 %v5510
        %v5567 = vpop.f32.mrb[0].mxu0
        %v5568 = vadd.f32 %v5484, %v5567
        %v5569 = vpop.f32.mrb[0].mxu0
        %v5570 = vpop.f32.mrb[0].mxu0
        %v5571 = vadd.f32 %v5484, %v5570
        %v5572 = vpop.f32.mrb[0].mxu0
        %5573 = vmatprep.mubr.bf16.mxu0 0
        %5574 = vmatmul.mubr.bf16.gmra.mrb[0].mxu0 %v5513
        %v5575 = vpop.f32.mrb[0].mxu0
        %v5576 = vadd.f32 %v5484, %v5575
        %v5577 = vpop.f32.mrb[0].mxu0
        %v5578 = vpop.f32.mrb[0].mxu0
        %v5579 = vadd.f32 %v5484, %v5578
        %v5580 = vpop.f32.mrb[0].mxu0
        %5581 = vmatprep.mubr.bf16.mxu0 0
        %5582 = vmatmul.mubr.bf16.gmra.mrb[0].mxu0 %v5516
        %v5583 = vpop.f32.mrb[0].mxu0
        %v5584 = vadd.f32 %v5484, %v5583
        %v5585 = vpop.f32.mrb[0].mxu0
        %v5586 = vpop.f32.mrb[0].mxu0
        %v5587 = vadd.f32 %v5484, %v5586
        %v5588 = vpop.f32.mrb[0].mxu0
        %5589 = vmatprep.mubr.bf16.mxu0 0
        %5590 = vmatmul.mubr.bf16.gmra.mrb[0].mxu0 %v5519
        %v5591 = vpop.f32.mrb[0].mxu0
        %v5592 = vadd.f32 %v5484, %v5591
        %v5593 = vpop.f32.mrb[0].mxu0
        %v5594 = vpop.f32.mrb[0].mxu0
        %v5595 = vadd.f32 %v5484, %v5594
        %v5596 = vpop.f32.mrb[0].mxu0
        %5597 = vmatprep.mubr.bf16.mxu0 0
        %5598 = vmatmul.mubr.bf16.gmra.mrb[0].mxu0 %v5522
        %v5599 = vpop.f32.mrb[0].mxu0
        %v5600 = vadd.f32 %v5484, %v5599
        %v5601 = vpop.f32.mrb[0].mxu0
        %v5602 = vpop.f32.mrb[0].mxu0
        %v5603 = vadd.f32 %v5484, %v5602
        %v5604 = vpop.f32.mrb[0].mxu0
        %5605 = vmatprep.mubr.bf16.mxu0 0
        %5606 = vmatmul.mubr.bf16.gmra.mrb[0].mxu0 %v5525
        %v5607 = vpop.f32.mrb[0].mxu0
        %v5608 = vadd.f32 %v5484, %v5607
        %v5609 = vpop.f32.mrb[0].mxu0
        %v5610 = vpop.f32.mrb[0].mxu0
        %v5611 = vadd.f32 %v5484, %v5610
        %v5612 = vpop.f32.mrb[0].mxu0
        %5613 = vmatprep.mubr.bf16.mxu0 0
        %5614 = vmatmul.mubr.bf16.gmra.mrb[0].mxu0 %v5528
        %v5615 = vpop.f32.mrb[0].mxu0
        %v5616 = vadd.f32 %v5484, %v5615
        %v5617 = vpop.f32.mrb[0].mxu0
        %v5618 = vpop.f32.mrb[0].mxu0
        %v5619 = vadd.f32 %v5484, %v5618
        %v5620 = vpop.f32.mrb[0].mxu0
        %5621 = vmatprep.mubr.bf16.mxu0 0
        %5622 = vmatmul.mubr.bf16.gmra.mrb[0].mxu0 %v5531
        %v5623 = vpop.f32.mrb[0].mxu0
        %v5624 = vadd.f32 %v5484, %v5623
        %v5625 = vpop.f32.mrb[0].mxu0
        %v5626 = vpop.f32.mrb[0].mxu0
        %v5627 = vadd.f32 %v5484, %v5626
        %v5628 = vpop.f32.mrb[0].mxu0
        %5629 = vdwg.mxu0
        %v5630 = vmax.f32 %v5568, 0.0
        %v5631 = vmax.f32 %v5571, 0.0
        %v5632 = vmax.f32 %v5576, 0.0
        %v5633 = vmax.f32 %v5579, 0.0
        %v5634 = vmax.f32 %v5584, 0.0
        %v5635 = vmax.f32 %v5587, 0.0
        %v5636 = vmax.f32 %v5592, 0.0
        %v5637 = vmax.f32 %v5595, 0.0
        %v5638 = vmax.f32 %v5600, 0.0
        %v5639 = vmax.f32 %v5603, 0.0
        %v5640 = vmax.f32 %v5608, 0.0
        %v5641 = vmax.f32 %v5611, 0.0
        %v5642 = vmax.f32 %v5616, 0.0
        %v5643 = vmax.f32 %v5619, 0.0
        %v5644 = vmax.f32 %v5624, 0.0
        %v5645 = vmax.f32 %v5627, 0.0
        %v5646 = vpack.c.bf16 %v5631, %v5630
        %v5647 = vpack.c.bf16 %v5633, %v5632
        %v5648 = vpack.c.bf16 %v5635, %v5634
        %v5649 = vpack.c.bf16 %v5637, %v5636
        %v5650 = vpack.c.bf16 %v5639, %v5638
        %v5651 = vpack.c.bf16 %v5641, %v5640
        %v5652 = vpack.c.bf16 %v5643, %v5642
        %v5653 = vpack.c.bf16 %v5645, %v5644
        %v5654 = vld [vmem:[#allocation2 + $0x250] sm:$0xf]
        %v5655 = vld [vmem:[#allocation2 + $0x254] sm:$0xf]
        %v5656 = vld [vmem:[#allocation2 + $0x258] sm:$0xf]
        %v5657 = vld [vmem:[#allocation2 + $0x25c] sm:$0xf]
        %v5658 = vld [vmem:[#allocation2 + $0x260] sm:$0xf]
        %v5659 = vld [vmem:[#allocation2 + $0x264] sm:$0xf]
        %v5660 = vld [vmem:[#allocation2 + $0x268] sm:$0xf]
        %v5661 = vld [vmem:[#allocation2 + $0x26c] sm:$0xf]
        %v5662 = vld [vmem:[%s2 + $0xa9] sm:$0x1]
        %v5663 = vlaneseq
        %v5664 = vshrl.u32 %v5663, 7
        %v5665 = vsub.s32 0, %v5664
        %v5666 = vrot.slane %v5662, %v5665
        %v5675 = vunpack.c.l.b16 %v5654
        %v5676 = vunpack.c.l.b16 %v5655
        %v5677 = vunpack.c.l.b16 %v5656
        %v5678 = vunpack.c.l.b16 %v5657
        %v5679 = vunpack.c.l.b16 %v5658
        %v5680 = vunpack.c.l.b16 %v5659
        %v5681 = vunpack.c.l.b16 %v5660
        %v5682 = vunpack.c.l.b16 %v5661
        %v5683 = vpack.c.b16 %v5676, %v5675
        %v5684 = vpack.c.b16 %v5678, %v5677
        %v5685 = vpack.c.b16 %v5680, %v5679
        %v5686 = vpack.c.b16 %v5682, %v5681
        %v5692 = vsel %vm1548, %v5646, 0
        %v5695 = vsel %vm1548, %v5647, 0
        %v5698 = vsel %vm1548, %v5648, 0
        %v5701 = vsel %vm1548, %v5649, 0
        %v5704 = vsel %vm1548, %v5650, 0
        %v5707 = vsel %vm1548, %v5651, 0
        %v5710 = vsel %vm1548, %v5652, 0
        %v5713 = vsel %vm1548, %v5653, 0
        %5715 = vmatprep.subr.bf16.mxu0 0
        %5716 = vmatpush1.bf16.msra.mxu0 %v5683
        %5717 = vmatprep.subr.bf16.mxu0 0
        %5718 = vmatpush1.bf16.msra.mxu0 %v5684
        %5719 = vmatprep.subr.bf16.mxu0 0
        %5720 = vmatpush1.bf16.msra.mxu0 %v5685
        %5721 = vmatprep.subr.bf16.mxu0 0
        %5722 = vmatpush1.bf16.msra.mxu0 %v5686
        %5723 = vmatprep.subr.bf16.mxu0 0
        %5724 = vmatpush1.bf16.msra.mxu0 0
        %5725 = vmatprep.subr.bf16.mxu0 0
        %5726 = vmatpush1.bf16.msra.mxu0 0
        %5727 = vmatprep.subr.bf16.mxu0 0
        %5728 = vmatpush1.bf16.msra.mxu0 0
        %5729 = vmatprep.subr.bf16.mxu0 0
        %5730 = vmatpush1.bf16.msra.mxu0 0
        %5731 = vmatprep.subr.bf16.mxu0 0
        %5732 = vmatpush1.bf16.msra.mxu0 0
        %5733 = vmatprep.subr.bf16.mxu0 0
        %5734 = vmatpush1.bf16.msra.mxu0 0
        %5735 = vmatprep.subr.bf16.mxu0 0
        %5736 = vmatpush1.bf16.msra.mxu0 0
        %5737 = vmatprep.subr.bf16.mxu0 0
        %5738 = vmatpush1.bf16.msra.mxu0 0
        %5739 = vmatprep.subr.bf16.mxu0 0
        %5740 = vmatpush1.bf16.msra.mxu0 0
        %5741 = vmatprep.subr.bf16.mxu0 0
        %5742 = vmatpush1.bf16.msra.mxu0 0
        %5743 = vmatprep.subr.bf16.mxu0 0
        %5744 = vmatpush1.bf16.msra.mxu0 0
        %5745 = vmatprep.subr.bf16.mxu0 0
        %5746 = vmatpush1.bf16.msra.mxu0 0
        %5747 = vmatprep.mubr.bf16.mxu0 0
        %5748 = vmatmul.mubr.bf16.gmra.mrb[0].mxu0 %v5692
        %v5749 = vpop.f32.mrb[0].mxu0
        %v5750 = vadd.f32 %v5666, %v5749
        %v5751 = vpop.f32.mrb[0].mxu0
        %v5752 = vpop.f32.mrb[0].mxu0
        %v5753 = vadd.f32 %v5666, %v5752
        %v5754 = vpop.f32.mrb[0].mxu0
        %5755 = vmatprep.mubr.bf16.mxu0 0
        %5756 = vmatmul.mubr.bf16.gmra.mrb[0].mxu0 %v5695
        %v5757 = vpop.f32.mrb[0].mxu0
        %v5758 = vadd.f32 %v5666, %v5757
        %v5759 = vpop.f32.mrb[0].mxu0
        %v5760 = vpop.f32.mrb[0].mxu0
        %v5761 = vadd.f32 %v5666, %v5760
        %v5762 = vpop.f32.mrb[0].mxu0
        %5763 = vmatprep.mubr.bf16.mxu0 0
        %5764 = vmatmul.mubr.bf16.gmra.mrb[0].mxu0 %v5698
        %v5765 = vpop.f32.mrb[0].mxu0
        %v5766 = vadd.f32 %v5666, %v5765
        %v5767 = vpop.f32.mrb[0].mxu0
        %v5768 = vpop.f32.mrb[0].mxu0
        %v5769 = vadd.f32 %v5666, %v5768
        %v5770 = vpop.f32.mrb[0].mxu0
        %5771 = vmatprep.mubr.bf16.mxu0 0
        %5772 = vmatmul.mubr.bf16.gmra.mrb[0].mxu0 %v5701
        %v5773 = vpop.f32.mrb[0].mxu0
        %v5774 = vadd.f32 %v5666, %v5773
        %v5775 = vpop.f32.mrb[0].mxu0
        %v5776 = vpop.f32.mrb[0].mxu0
        %v5777 = vadd.f32 %v5666, %v5776
        %v5778 = vpop.f32.mrb[0].mxu0
        %5779 = vmatprep.mubr.bf16.mxu0 0
        %5780 = vmatmul.mubr.bf16.gmra.mrb[0].mxu0 %v5704
        %v5781 = vpop.f32.mrb[0].mxu0
        %v5782 = vadd.f32 %v5666, %v5781
        %v5783 = vpop.f32.mrb[0].mxu0
        %v5784 = vpop.f32.mrb[0].mxu0
        %v5785 = vadd.f32 %v5666, %v5784
        %v5786 = vpop.f32.mrb[0].mxu0
        %5787 = vmatprep.mubr.bf16.mxu0 0
        %5788 = vmatmul.mubr.bf16.gmra.mrb[0].mxu0 %v5707
        %v5789 = vpop.f32.mrb[0].mxu0
        %v5790 = vadd.f32 %v5666, %v5789
        %v5791 = vpop.f32.mrb[0].mxu0
        %v5792 = vpop.f32.mrb[0].mxu0
        %v5793 = vadd.f32 %v5666, %v5792
        %v5794 = vpop.f32.mrb[0].mxu0
        %5795 = vmatprep.mubr.bf16.mxu0 0
        %5796 = vmatmul.mubr.bf16.gmra.mrb[0].mxu0 %v5710
        %v5797 = vpop.f32.mrb[0].mxu0
        %v5798 = vadd.f32 %v5666, %v5797
        %v5799 = vpop.f32.mrb[0].mxu0
        %v5800 = vpop.f32.mrb[0].mxu0
        %v5801 = vadd.f32 %v5666, %v5800
        %v5802 = vpop.f32.mrb[0].mxu0
        %5803 = vmatprep.mubr.bf16.mxu0 0
        %5804 = vmatmul.mubr.bf16.gmra.mrb[0].mxu0 %v5713
        %v5805 = vpop.f32.mrb[0].mxu0
        %v5806 = vadd.f32 %v5666, %v5805
        %v5807 = vpop.f32.mrb[0].mxu0
        %v5808 = vpop.f32.mrb[0].mxu0
        %v5809 = vadd.f32 %v5666, %v5808
        %v5810 = vpop.f32.mrb[0].mxu0
        %5811 = vdwg.mxu0
        %v5812 = vmax.f32 %v5750, 0.0
        %v5813 = vmax.f32 %v5753, 0.0
        %v5814 = vmax.f32 %v5758, 0.0
        %v5815 = vmax.f32 %v5761, 0.0
        %v5816 = vmax.f32 %v5766, 0.0
        %v5817 = vmax.f32 %v5769, 0.0
        %v5818 = vmax.f32 %v5774, 0.0
        %v5819 = vmax.f32 %v5777, 0.0
        %v5820 = vmax.f32 %v5782, 0.0
        %v5821 = vmax.f32 %v5785, 0.0
        %v5822 = vmax.f32 %v5790, 0.0
        %v5823 = vmax.f32 %v5793, 0.0
        %v5824 = vmax.f32 %v5798, 0.0
        %v5825 = vmax.f32 %v5801, 0.0
        %v5826 = vmax.f32 %v5806, 0.0
        %v5827 = vmax.f32 %v5809, 0.0
        %v5828 = vld [vmem:[%s2 + $0xaa] sm:$0xff]
        %v5830 = vsel %vm728, %v5828, 0
        %v5833 = vsel %vm728, %v5812, 0
        %v5836 = vsel %vm728, %v5813, 0
        %v5839 = vsel %vm728, %v5814, 0
        %v5842 = vsel %vm728, %v5815, 0
        %v5845 = vsel %vm728, %v5816, 0
        %v5848 = vsel %vm728, %v5817, 0
        %v5851 = vsel %vm728, %v5818, 0
        %v5854 = vsel %vm728, %v5819, 0
        %v5857 = vsel %vm728, %v5820, 0
        %v5860 = vsel %vm728, %v5821, 0
        %v5863 = vsel %vm728, %v5822, 0
        %v5866 = vsel %vm728, %v5823, 0
        %v5869 = vsel %vm728, %v5824, 0
        %v5872 = vsel %vm728, %v5825, 0
        %v5875 = vsel %vm728, %v5826, 0
        %v5878 = vsel %vm728, %v5827, 0
        %5880 = vmatprep.subr.mxu0 0.0
        %5881 = vmatpush1.xpose.msra.mxu0 %v5833
        %5882 = vmatprep.subr.mxu0 0.0
        %5883 = vmatpush1.xpose.msra.mxu0 %v5836
        %5884 = vmatprep.subr.mxu0 0.0
        %5885 = vmatpush1.xpose.msra.mxu0 %v5839
        %5886 = vmatprep.subr.mxu0 0.0
        %5887 = vmatpush1.xpose.msra.mxu0 %v5842
        %5888 = vmatprep.subr.mxu0 0.0
        %5889 = vmatpush1.xpose.msra.mxu0 %v5845
        %5890 = vmatprep.subr.mxu0 0.0
        %5891 = vmatpush1.xpose.msra.mxu0 %v5848
        %5892 = vmatprep.subr.mxu0 0.0
        %5893 = vmatpush1.xpose.msra.mxu0 %v5851
        %5894 = vmatprep.subr.mxu0 0.0
        %5895 = vmatpush1.xpose.msra.mxu0 %v5854
        %5896 = vmatprep.subr.mxu0 0.0
        %5897 = vmatpush1.xpose.msra.mxu0 %v5857
        %5898 = vmatprep.subr.mxu0 0.0
        %5899 = vmatpush1.xpose.msra.mxu0 %v5860
        %5900 = vmatprep.subr.mxu0 0.0
        %5901 = vmatpush1.xpose.msra.mxu0 %v5863
        %5902 = vmatprep.subr.mxu0 0.0
        %5903 = vmatpush1.xpose.msra.mxu0 %v5866
        %5904 = vmatprep.subr.mxu0 0.0
        %5905 = vmatpush1.xpose.msra.mxu0 %v5869
        %5906 = vmatprep.subr.mxu0 0.0
        %5907 = vmatpush1.xpose.msra.mxu0 %v5872
        %5908 = vmatprep.subr.mxu0 0.0
        %5909 = vmatpush1.xpose.msra.mxu0 %v5875
        %5910 = vmatprep.subr.mxu0 0.0
        %5911 = vmatpush1.xpose.msra.mxu0 %v5878
        %5912 = vmatprep.subr.mxu0 0.0
        %5913 = vmatpush1.xpose.msra.mxu0 0.0
        %5914 = vmatprep.subr.mxu0 0.0
        %5915 = vmatpush1.xpose.msra.mxu0 0.0
        %5916 = vmatprep.subr.mxu0 0.0
        %5917 = vmatpush1.xpose.msra.mxu0 0.0
        %5918 = vmatprep.subr.mxu0 0.0
        %5919 = vmatpush1.xpose.msra.mxu0 0.0
        %5920 = vmatprep.subr.mxu0 0.0
        %5921 = vmatpush1.xpose.msra.mxu0 0.0
        %5922 = vmatprep.subr.mxu0 0.0
        %5923 = vmatpush1.xpose.msra.mxu0 0.0
        %5924 = vmatprep.subr.mxu0 0.0
        %5925 = vmatpush1.xpose.msra.mxu0 0.0
        %5926 = vmatprep.subr.mxu0 0.0
        %5927 = vmatpush1.xpose.msra.mxu0 0.0
        %5928 = vmatprep.subr.mxu0 0.0
        %5929 = vmatpush1.xpose.msra.mxu0 0.0
        %5930 = vmatprep.subr.mxu0 0.0
        %5931 = vmatpush1.xpose.msra.mxu0 0.0
        %5932 = vmatprep.subr.mxu0 0.0
        %5933 = vmatpush1.xpose.msra.mxu0 0.0
        %5934 = vmatprep.subr.mxu0 0.0
        %5935 = vmatpush1.xpose.msra.mxu0 0.0
        %5936 = vmatprep.subr.mxu0 0.0
        %5937 = vmatpush1.xpose.msra.mxu0 0.0
        %5938 = vmatprep.subr.mxu0 0.0
        %5939 = vmatpush1.xpose.msra.mxu0 0.0
        %5940 = vmatprep.subr.mxu0 0.0
        %5941 = vmatpush1.xpose.msra.mxu0 0.0
        %5942 = vmatprep.subr.mxu0 0.0
        %5943 = vmatpush1.xpose.msra.mxu0 0.0
        %5944 = vmatprep.mubr.f32.mxu0 0.0
        %5945 = vmatmul.mubr.f32.gmra.mrb[0].mxu0 %v5830
        %v5946 = vpop.f32.mrb[0].mxu0
        %v5947 = vadd.f32 0.0, %v5946
        %v5948 = vpop.f32.mrb[0].mxu0
        %5949 = vdwg.mxu0
        %v5950 = vld [vmem:[%s2 + $0xb2] sm:$0x1]
        %5952 = vset.pattern.permute.xlu0 0
        %5953 = vperm.xlu0 %5952, %v5950
        %v5954 = vpop.permute.xlu0 %5953
        %v5956 = vadd.f32 %v5947, %v5954
        %5957 = vst [vmem:[%s247] sm:$0x1] %v5956
        %v5959 = vsel %vm728, %v500, 0
        %5961 = vmatprep.subr.mxu0 0.0
        %5962 = vmatpush1.xpose.msra.mxu0 %v4908
        %5963 = vmatprep.subr.mxu0 0.0
        %5964 = vmatpush1.xpose.msra.mxu0 %v4911
        %5965 = vmatprep.subr.mxu0 0.0
        %5966 = vmatpush1.xpose.msra.mxu0 %v4914
        %5967 = vmatprep.subr.mxu0 0.0
        %5968 = vmatpush1.xpose.msra.mxu0 %v4917
        %5969 = vmatprep.subr.mxu0 0.0
        %5970 = vmatpush1.xpose.msra.mxu0 0.0
        %5971 = vmatprep.subr.mxu0 0.0
        %5972 = vmatpush1.xpose.msra.mxu0 0.0
        %5973 = vmatprep.subr.mxu0 0.0
        %5974 = vmatpush1.xpose.msra.mxu0 0.0
        %5975 = vmatprep.subr.mxu0 0.0
        %5976 = vmatpush1.xpose.msra.mxu0 0.0
        %5977 = vmatprep.subr.mxu0 0.0
        %5978 = vmatpush1.xpose.msra.mxu0 0.0
        %5979 = vmatprep.subr.mxu0 0.0
        %5980 = vmatpush1.xpose.msra.mxu0 0.0
        %5981 = vmatprep.subr.mxu0 0.0
        %5982 = vmatpush1.xpose.msra.mxu0 0.0
        %5983 = vmatprep.subr.mxu0 0.0
        %5984 = vmatpush1.xpose.msra.mxu0 0.0
        %5985 = vmatprep.subr.mxu0 0.0
        %5986 = vmatpush1.xpose.msra.mxu0 0.0
        %5987 = vmatprep.subr.mxu0 0.0
        %5988 = vmatpush1.xpose.msra.mxu0 0.0
        %5989 = vmatprep.subr.mxu0 0.0
        %5990 = vmatpush1.xpose.msra.mxu0 0.0
        %5991 = vmatprep.subr.mxu0 0.0
        %5992 = vmatpush1.xpose.msra.mxu0 0.0
        %5993 = vmatprep.subr.mxu0 0.0
        %5994 = vmatpush1.xpose.msra.mxu0 0.0
        %5995 = vmatprep.subr.mxu0 0.0
        %5996 = vmatpush1.xpose.msra.mxu0 0.0
        %5997 = vmatprep.subr.mxu0 0.0
        %5998 = vmatpush1.xpose.msra.mxu0 0.0
        %5999 = vmatprep.subr.mxu0 0.0
        %6000 = vmatpush1.xpose.msra.mxu0 0.0
        %6001 = vmatprep.subr.mxu0 0.0
        %6002 = vmatpush1.xpose.msra.mxu0 0.0
        %6003 = vmatprep.subr.mxu0 0.0
        %6004 = vmatpush1.xpose.msra.mxu0 0.0
        %6005 = vmatprep.subr.mxu0 0.0
        %6006 = vmatpush1.xpose.msra.mxu0 0.0
        %6007 = vmatprep.subr.mxu0 0.0
        %6008 = vmatpush1.xpose.msra.mxu0 0.0
        %6009 = vmatprep.subr.mxu0 0.0
        %6010 = vmatpush1.xpose.msra.mxu0 0.0
        %6011 = vmatprep.subr.mxu0 0.0
        %6012 = vmatpush1.xpose.msra.mxu0 0.0
        %6013 = vmatprep.subr.mxu0 0.0
        %6014 = vmatpush1.xpose.msra.mxu0 0.0
        %6015 = vmatprep.subr.mxu0 0.0
        %6016 = vmatpush1.xpose.msra.mxu0 0.0
        %6017 = vmatprep.subr.mxu0 0.0
        %6018 = vmatpush1.xpose.msra.mxu0 0.0
        %6019 = vmatprep.subr.mxu0 0.0
        %6020 = vmatpush1.xpose.msra.mxu0 0.0
        %6021 = vmatprep.subr.mxu0 0.0
        %6022 = vmatpush1.xpose.msra.mxu0 0.0
        %6023 = vmatprep.subr.mxu0 0.0
        %6024 = vmatpush1.xpose.msra.mxu0 0.0
        %6025 = vmatprep.mubr.f32.mxu0 0.0
        %6026 = vmatmul.mubr.f32.gmra.mrb[0].mxu0 %v5959
        %v6027 = vpop.f32.mrb[0].mxu0
        %v6028 = vadd.f32 0.0, %v6027
        %v6029 = vpop.f32.mrb[0].mxu0
        %6030 = vdwg.mxu0
        %6031 = vmatprep.subr.mxu0 0.0
        %6032 = vmatpush1.xpose.msra.mxu0 %v4920
        %6033 = vmatprep.subr.mxu0 0.0
        %6034 = vmatpush1.xpose.msra.mxu0 %v4923
        %6035 = vmatprep.subr.mxu0 0.0
        %6036 = vmatpush1.xpose.msra.mxu0 %v4926
        %6037 = vmatprep.subr.mxu0 0.0
        %6038 = vmatpush1.xpose.msra.mxu0 %v4929
        %6039 = vmatprep.subr.mxu0 0.0
        %6040 = vmatpush1.xpose.msra.mxu0 0.0
        %6041 = vmatprep.subr.mxu0 0.0
        %6042 = vmatpush1.xpose.msra.mxu0 0.0
        %6043 = vmatprep.subr.mxu0 0.0
        %6044 = vmatpush1.xpose.msra.mxu0 0.0
        %6045 = vmatprep.subr.mxu0 0.0
        %6046 = vmatpush1.xpose.msra.mxu0 0.0
        %6047 = vmatprep.subr.mxu0 0.0
        %6048 = vmatpush1.xpose.msra.mxu0 0.0
        %6049 = vmatprep.subr.mxu0 0.0
        %6050 = vmatpush1.xpose.msra.mxu0 0.0
        %6051 = vmatprep.subr.mxu0 0.0
        %6052 = vmatpush1.xpose.msra.mxu0 0.0
        %6053 = vmatprep.subr.mxu0 0.0
        %6054 = vmatpush1.xpose.msra.mxu0 0.0
        %6055 = vmatprep.subr.mxu0 0.0
        %6056 = vmatpush1.xpose.msra.mxu0 0.0
        %6057 = vmatprep.subr.mxu0 0.0
        %6058 = vmatpush1.xpose.msra.mxu0 0.0
        %6059 = vmatprep.subr.mxu0 0.0
        %6060 = vmatpush1.xpose.msra.mxu0 0.0
        %6061 = vmatprep.subr.mxu0 0.0
        %6062 = vmatpush1.xpose.msra.mxu0 0.0
        %6063 = vmatprep.subr.mxu0 0.0
        %6064 = vmatpush1.xpose.msra.mxu0 0.0
        %6065 = vmatprep.subr.mxu0 0.0
        %6066 = vmatpush1.xpose.msra.mxu0 0.0
        %6067 = vmatprep.subr.mxu0 0.0
        %6068 = vmatpush1.xpose.msra.mxu0 0.0
        %6069 = vmatprep.subr.mxu0 0.0
        %6070 = vmatpush1.xpose.msra.mxu0 0.0
        %6071 = vmatprep.subr.mxu0 0.0
        %6072 = vmatpush1.xpose.msra.mxu0 0.0
        %6073 = vmatprep.subr.mxu0 0.0
        %6074 = vmatpush1.xpose.msra.mxu0 0.0
        %6075 = vmatprep.subr.mxu0 0.0
        %6076 = vmatpush1.xpose.msra.mxu0 0.0
        %6077 = vmatprep.subr.mxu0 0.0
        %6078 = vmatpush1.xpose.msra.mxu0 0.0
        %6079 = vmatprep.subr.mxu0 0.0
        %6080 = vmatpush1.xpose.msra.mxu0 0.0
        %6081 = vmatprep.subr.mxu0 0.0
        %6082 = vmatpush1.xpose.msra.mxu0 0.0
        %6083 = vmatprep.subr.mxu0 0.0
        %6084 = vmatpush1.xpose.msra.mxu0 0.0
        %6085 = vmatprep.subr.mxu0 0.0
        %6086 = vmatpush1.xpose.msra.mxu0 0.0
        %6087 = vmatprep.subr.mxu0 0.0
        %6088 = vmatpush1.xpose.msra.mxu0 0.0
        %6089 = vmatprep.subr.mxu0 0.0
        %6090 = vmatpush1.xpose.msra.mxu0 0.0
        %6091 = vmatprep.subr.mxu0 0.0
        %6092 = vmatpush1.xpose.msra.mxu0 0.0
        %6093 = vmatprep.subr.mxu0 0.0
        %6094 = vmatpush1.xpose.msra.mxu0 0.0
        %6095 = vmatprep.mubr.f32.mxu0 0.0
        %6096 = vmatmul.mubr.f32.gmra.mrb[0].mxu0 %v5959
        %v6097 = vpop.f32.mrb[0].mxu0
        %v6098 = vadd.f32 0.0, %v6097
        %v6099 = vpop.f32.mrb[0].mxu0
        %6100 = vdwg.mxu0
        %6101 = vmatprep.subr.mxu0 0.0
        %6102 = vmatpush1.xpose.msra.mxu0 %v4932
        %6103 = vmatprep.subr.mxu0 0.0
        %6104 = vmatpush1.xpose.msra.mxu0 %v4935
        %6105 = vmatprep.subr.mxu0 0.0
        %6106 = vmatpush1.xpose.msra.mxu0 %v4938
        %6107 = vmatprep.subr.mxu0 0.0
        %6108 = vmatpush1.xpose.msra.mxu0 %v4941
        %6109 = vmatprep.subr.mxu0 0.0
        %6110 = vmatpush1.xpose.msra.mxu0 0.0
        %6111 = vmatprep.subr.mxu0 0.0
        %6112 = vmatpush1.xpose.msra.mxu0 0.0
        %6113 = vmatprep.subr.mxu0 0.0
        %6114 = vmatpush1.xpose.msra.mxu0 0.0
        %6115 = vmatprep.subr.mxu0 0.0
        %6116 = vmatpush1.xpose.msra.mxu0 0.0
        %6117 = vmatprep.subr.mxu0 0.0
        %6118 = vmatpush1.xpose.msra.mxu0 0.0
        %6119 = vmatprep.subr.mxu0 0.0
        %6120 = vmatpush1.xpose.msra.mxu0 0.0
        %6121 = vmatprep.subr.mxu0 0.0
        %6122 = vmatpush1.xpose.msra.mxu0 0.0
        %6123 = vmatprep.subr.mxu0 0.0
        %6124 = vmatpush1.xpose.msra.mxu0 0.0
        %6125 = vmatprep.subr.mxu0 0.0
        %6126 = vmatpush1.xpose.msra.mxu0 0.0
        %6127 = vmatprep.subr.mxu0 0.0
        %6128 = vmatpush1.xpose.msra.mxu0 0.0
        %6129 = vmatprep.subr.mxu0 0.0
        %6130 = vmatpush1.xpose.msra.mxu0 0.0
        %6131 = vmatprep.subr.mxu0 0.0
        %6132 = vmatpush1.xpose.msra.mxu0 0.0
        %6133 = vmatprep.subr.mxu0 0.0
        %6134 = vmatpush1.xpose.msra.mxu0 0.0
        %6135 = vmatprep.subr.mxu0 0.0
        %6136 = vmatpush1.xpose.msra.mxu0 0.0
        %6137 = vmatprep.subr.mxu0 0.0
        %6138 = vmatpush1.xpose.msra.mxu0 0.0
        %6139 = vmatprep.subr.mxu0 0.0
        %6140 = vmatpush1.xpose.msra.mxu0 0.0
        %6141 = vmatprep.subr.mxu0 0.0
        %6142 = vmatpush1.xpose.msra.mxu0 0.0
        %6143 = vmatprep.subr.mxu0 0.0
        %6144 = vmatpush1.xpose.msra.mxu0 0.0
        %6145 = vmatprep.subr.mxu0 0.0
        %6146 = vmatpush1.xpose.msra.mxu0 0.0
        %6147 = vmatprep.subr.mxu0 0.0
        %6148 = vmatpush1.xpose.msra.mxu0 0.0
        %6149 = vmatprep.subr.mxu0 0.0
        %6150 = vmatpush1.xpose.msra.mxu0 0.0
        %6151 = vmatprep.subr.mxu0 0.0
        %6152 = vmatpush1.xpose.msra.mxu0 0.0
        %6153 = vmatprep.subr.mxu0 0.0
        %6154 = vmatpush1.xpose.msra.mxu0 0.0
        %6155 = vmatprep.subr.mxu0 0.0
        %6156 = vmatpush1.xpose.msra.mxu0 0.0
        %6157 = vmatprep.subr.mxu0 0.0
        %6158 = vmatpush1.xpose.msra.mxu0 0.0
        %6159 = vmatprep.subr.mxu0 0.0
        %6160 = vmatpush1.xpose.msra.mxu0 0.0
        %6161 = vmatprep.subr.mxu0 0.0
        %6162 = vmatpush1.xpose.msra.mxu0 0.0
        %6163 = vmatprep.subr.mxu0 0.0
        %6164 = vmatpush1.xpose.msra.mxu0 0.0
        %6165 = vmatprep.mubr.f32.mxu0 0.0
        %6166 = vmatmul.mubr.f32.gmra.mrb[0].mxu0 %v5959
        %v6167 = vpop.f32.mrb[0].mxu0
        %v6168 = vadd.f32 0.0, %v6167
        %v6169 = vpop.f32.mrb[0].mxu0
        %6170 = vdwg.mxu0
        %6171 = vmatprep.subr.mxu0 0.0
        %6172 = vmatpush1.xpose.msra.mxu0 %v4944
        %6173 = vmatprep.subr.mxu0 0.0
        %6174 = vmatpush1.xpose.msra.mxu0 %v4947
        %6175 = vmatprep.subr.mxu0 0.0
        %6176 = vmatpush1.xpose.msra.mxu0 %v4950
        %6177 = vmatprep.subr.mxu0 0.0
        %6178 = vmatpush1.xpose.msra.mxu0 %v4953
        %6179 = vmatprep.subr.mxu0 0.0
        %6180 = vmatpush1.xpose.msra.mxu0 0.0
        %6181 = vmatprep.subr.mxu0 0.0
        %6182 = vmatpush1.xpose.msra.mxu0 0.0
        %6183 = vmatprep.subr.mxu0 0.0
        %6184 = vmatpush1.xpose.msra.mxu0 0.0
        %6185 = vmatprep.subr.mxu0 0.0
        %6186 = vmatpush1.xpose.msra.mxu0 0.0
        %6187 = vmatprep.subr.mxu0 0.0
        %6188 = vmatpush1.xpose.msra.mxu0 0.0
        %6189 = vmatprep.subr.mxu0 0.0
        %6190 = vmatpush1.xpose.msra.mxu0 0.0
        %6191 = vmatprep.subr.mxu0 0.0
        %6192 = vmatpush1.xpose.msra.mxu0 0.0
        %6193 = vmatprep.subr.mxu0 0.0
        %6194 = vmatpush1.xpose.msra.mxu0 0.0
        %6195 = vmatprep.subr.mxu0 0.0
        %6196 = vmatpush1.xpose.msra.mxu0 0.0
        %6197 = vmatprep.subr.mxu0 0.0
        %6198 = vmatpush1.xpose.msra.mxu0 0.0
        %6199 = vmatprep.subr.mxu0 0.0
        %6200 = vmatpush1.xpose.msra.mxu0 0.0
        %6201 = vmatprep.subr.mxu0 0.0
        %6202 = vmatpush1.xpose.msra.mxu0 0.0
        %6203 = vmatprep.subr.mxu0 0.0
        %6204 = vmatpush1.xpose.msra.mxu0 0.0
        %6205 = vmatprep.subr.mxu0 0.0
        %6206 = vmatpush1.xpose.msra.mxu0 0.0
        %6207 = vmatprep.subr.mxu0 0.0
        %6208 = vmatpush1.xpose.msra.mxu0 0.0
        %6209 = vmatprep.subr.mxu0 0.0
        %6210 = vmatpush1.xpose.msra.mxu0 0.0
        %6211 = vmatprep.subr.mxu0 0.0
        %6212 = vmatpush1.xpose.msra.mxu0 0.0
        %6213 = vmatprep.subr.mxu0 0.0
        %6214 = vmatpush1.xpose.msra.mxu0 0.0
        %6215 = vmatprep.subr.mxu0 0.0
        %6216 = vmatpush1.xpose.msra.mxu0 0.0
        %6217 = vmatprep.subr.mxu0 0.0
        %6218 = vmatpush1.xpose.msra.mxu0 0.0
        %6219 = vmatprep.subr.mxu0 0.0
        %6220 = vmatpush1.xpose.msra.mxu0 0.0
        %6221 = vmatprep.subr.mxu0 0.0
        %6222 = vmatpush1.xpose.msra.mxu0 0.0
        %6223 = vmatprep.subr.mxu0 0.0
        %6224 = vmatpush1.xpose.msra.mxu0 0.0
        %6225 = vmatprep.subr.mxu0 0.0
        %6226 = vmatpush1.xpose.msra.mxu0 0.0
        %6227 = vmatprep.subr.mxu0 0.0
        %6228 = vmatpush1.xpose.msra.mxu0 0.0
        %6229 = vmatprep.subr.mxu0 0.0
        %6230 = vmatpush1.xpose.msra.mxu0 0.0
        %6231 = vmatprep.subr.mxu0 0.0
        %6232 = vmatpush1.xpose.msra.mxu0 0.0
        %6233 = vmatprep.subr.mxu0 0.0
        %6234 = vmatpush1.xpose.msra.mxu0 0.0
        %6235 = vmatprep.mubr.f32.mxu0 0.0
        %6236 = vmatmul.mubr.f32.gmra.mrb[0].mxu0 %v5959
        %v6237 = vpop.f32.mrb[0].mxu0
        %v6238 = vadd.f32 0.0, %v6237
        %v6239 = vpop.f32.mrb[0].mxu0
        %6240 = vdwg.mxu0
        %v6242 = vrot.slane %v6098, 7
        %v6245 = vrot.slane %v6168, 6
        %v6248 = vrot.slane %v6238, 5
        %vm6250 = vcmask 1040384
        %v6251 = vsel %vm6250, %v6028, %v6242
        %v6252 = vsel %vm404, %v6251, %v6245
        %v6253 = vsel %vm296, %v6252, %v6248
        %v6254 = vcvt.f32.s32.to.zero.pseudo %v6253
        %vm6255 = vcmask 257024
        %6256 = vst.msk [vmem:[%s267] sm:$0xf] %vm6255, %v6254
        %s6257 = sand.u32 %s123, 1
        %s6258 = scalar_lea.sflag [#allocation4], %s6257
        %s6259 = sand.u32 %s123, 1
        %s6260 = scalar_lea.vmem [#allocation5], %s6259
        %p6261 = scmp.lt.s32.totalorder %s21, 3
        %s6262 = scalar_select %p6261, %s21, 3
        %s6263 = smul.addr %s6262, 4
        %s6264 = scalar_lea.vmem %s5, %s6263
        // Predicated region
        $region41: #{forward.1} parent=35 // pred_check
          %p6265 = pneg %p133
        $region42: #{forward.1} parent=35 // pred_check_branch
          %6267 = sbr.rel (%p6265) target = $region44
        $region43: #{forward.1} parent=35 // pred_region
          %s6269 = ssub.s32 16, 16
          %6270 = vsyncadd %s6258, %s6269
          %s6271 = smul.addr %s21, 16
          %s6272 = scalar_lea.hbm %s4, %s6271
          %s6274 = sshll.u32 %s6260, 4
          %s6275 = int_to_ptr.vmem [resolvable:$true] %s6274
          %6277 = dma.vmem_to_hbm [thread:$0]  %s6275, 16, %s6272, %s6258
        $region44: #{forward.1} parent=35 // pred_fallthru
          _
        // Predicated region
        $region45: #{forward.1} parent=35 // pred_check
          %p6278 = pneg %p159
        $region46: #{forward.1} parent=35 // pred_check_branch
          %6280 = sbr.rel (%p6278) target = $region48
        $region47: #{forward.1} parent=35 // pred_region
          _
        $region48: #{forward.1} parent=35 // pred_fallthru
          _
      $region36: #{forward.1} parent=5 // pred_fallthru
        _
      %p6281 = scmp.le.s32.totalorder 2, %s16
      // Predicated region
      $region49: #{forward.1} parent=5 // pred_check
        %p6282 = pneg %p6281
      $region50: #{forward.1} parent=5 // pred_check_branch
        %6284 = sbr.rel (%p6282) target = $region52
      $region51: #{forward.1} parent=5 // pred_region
        %s6285 = ssub.s32 %s16, 2
        // Predicated region
        $region53: #{forward.1} parent=51 // pred_check
          %p6286 = pneg %p139
        $region54: #{forward.1} parent=51 // pred_check_branch
          %6288 = sbr.rel (%p6286) target = $region56
        $region55: #{forward.1} parent=51 // pred_region
          %s6289 = sand.u32 %s124, 1
          %s6290 = scalar_lea.sflag [#allocation4], %s6289
          %s6291 = sand.u32 %s124, 1
          %s6292 = scalar_lea.vmem [#allocation5], %s6291
          %6293 = dma.done %s6290, 16
        $region56: #{forward.1} parent=51 // pred_fallthru
          _
        // Predicated region
        $region57: #{forward.1} parent=51 // pred_check
          %p6294 = pneg %p165
        $region58: #{forward.1} parent=51 // pred_check_branch
          %6296 = sbr.rel (%p6294) target = $region60
        $region59: #{forward.1} parent=51 // pred_region
          %p6297 = scmp.lt.s32.totalorder %s22, 3
          %s6298 = scalar_select %p6297, %s22, 3
          %s6299 = smul.addr %s6298, 4
          %s6300 = scalar_lea.vmem %s5, %s6299
        $region60: #{forward.1} parent=51 // pred_fallthru
          _
      $region52: #{forward.1} parent=5 // pred_fallthru
        _
    $region6: #{forward.1} parent=1 // loop_footer
      %s20 = sadd.s32 1, %s16
    $region7: #{forward.1} parent=1 // loop_footer_branch
      %15 = sbr.rel target = $region3
    $region8: #{forward.1} parent=1 // loop_exit
      _
    %6301 = vsyncpa [#allocation3], 1
    %s6302 = scalar_lea.sflag [#allocation3], 1
    %6303 = vsyncpa %s6302, 1
    %6304 = vsyncpa [#allocation4], 1
    %s6305 = scalar_lea.sflag [#allocation4], 1
    %6306 = vsyncpa %s6305, 1

</llo_original>
